<compile_context>
chip_gen: v7x
topology: tpu7x:2x2x1
jax: 0.10.0
libtpu: 0.0.40
codegen_flags: <defaults>
</compile_context>

<pallas_src>
import math

import jax
import jax.numpy as jnp
from jax.experimental import pallas as pl
from jax.experimental.pallas import tpu as pltpu


# ----------------------------------------------------------------- helpers --

def _pool2x2(y, ph, pw):
    """2x2 max pool (stride 2, floor) of y:[H, W, C] -> [ph, pw, C]."""
    w, c = y.shape[1], y.shape[2]
    # H direction first: pure major-dim split + elementwise max (no relayout),
    # halving the data before any sublane work.
    z = y[:2 * ph].reshape(ph, 2, w, c)
    z = jnp.maximum(z[:, 0], z[:, 1])                  # [ph, W, C]
    # W direction: max of adjacent column pairs, reassembled with one sublane concat.
    cols = [
        jnp.maximum(z[:, 2 * k:2 * k + 1, :], z[:, 2 * k + 1:2 * k + 2, :])
        for k in range(pw)
    ]
    return jnp.concatenate(cols, axis=1)               # [ph, pw, C]


# ------------------------------------------------------------------ kernels --

def _conv_block_kernel(x_ref, w1_ref, b1_ref, w2_ref, b2_ref, o_ref):
    """Per-image fused conv1+ReLU+pool1 -> conv2+ReLU+pool2.

    x_ref:  [28, 28, 1]  (batch dim squeezed by BlockSpec)
    w1_ref: [9, 32]      conv1 taps, row = kh*3 + kw
    b1_ref: [1, 32]
    w2_ref: [288, 64]    conv2 im2col weight, row = kh*96 + kw*32 + cin
    b2_ref: [1, 64]
    o_ref:  [5, 5, 64]   pooled conv2 output in (h, w, c) order
    """
    x = x_ref[...]                                     # [28, 28, 1]
    w1 = w1_ref[...]                                   # [9, 32]

    # conv1 (Cin=1): nine shifted VPU multiply-accumulates, Cout on lanes.
    y1 = jnp.zeros((26, 26, 32), jnp.float32)
    for i in range(3):
        for j in range(3):
            tap = w1[i * 3 + j:i * 3 + j + 1, :]       # [1, 32]
            y1 = y1 + x[i:i + 26, j:j + 26, :] * tap   # [26, 26, 32]
    y1 = jnp.maximum(y1 + b1_ref[...], 0.0)

    p1 = _pool2x2(y1, 13, 13)                          # [13, 13, 32]

    # conv2 via in-VMEM im2col (K = 3*3*32 = 288): 9 shifted slices + one lane
    # concat, then one MXU dot per output row (M=11, K=288, N=64).
    w2 = w2_ref[...]                                   # [288, 64]
    pieces = [p1[i:i + 11, j:j + 11, :] for i in range(3) for j in range(3)]
    lhs = jnp.concatenate(pieces, axis=-1)             # [11, 11, 288]
    rows = [
        jnp.dot(lhs[h], w2, preferred_element_type=jnp.float32)[None]
        for h in range(11)
    ]
    y2 = jnp.concatenate(rows, axis=0)                 # [11, 11, 64]
    y2 = jnp.maximum(y2 + b2_ref[...], 0.0)

    o_ref[...] = _pool2x2(y2, 5, 5).astype(o_ref.dtype)    # [5, 5, 64]


def _fc_kernel(a_ref, w1_ref, b1_ref, w2_ref, b2_ref, o_ref):
    """Fused fc1 + ReLU + fc2 (fc2 output padded to 128 lanes)."""
    h = jnp.dot(a_ref[...], w1_ref[...], preferred_element_type=jnp.float32)
    h = jnp.maximum(h + b1_ref[...], 0.0)
    out = jnp.dot(h, w2_ref[...], preferred_element_type=jnp.float32) + b2_ref[...]
    o_ref[...] = out.astype(o_ref.dtype)


# ---------------------------------------------------------------- wrappers --

def conv_block(x_nhwc, w1, b1, w2, b2):
    n = x_nhwc.shape[0]
    return pl.pallas_call(
        _conv_block_kernel,
        out_shape=jax.ShapeDtypeStruct((n, 5, 5, 64), jnp.float32),
        grid=(n,),
        in_specs=[
            pl.BlockSpec((None, 28, 28, 1), lambda i: (i, 0, 0, 0)),
            pl.BlockSpec((9, 32), lambda i: (0, 0)),
            pl.BlockSpec((1, 32), lambda i: (0, 0)),
            pl.BlockSpec((288, 64), lambda i: (0, 0)),
            pl.BlockSpec((1, 64), lambda i: (0, 0)),
        ],
        out_specs=pl.BlockSpec((None, 5, 5, 64), lambda i: (i, 0, 0, 0)),
        compiler_params=pltpu.CompilerParams(
            dimension_semantics=("parallel",)),
    )(x_nhwc, w1, b1, w2, b2)


def fc_block(a, w1, b1, w2, b2):
    n, k = a.shape
    hidden = w1.shape[1]
    nout = w2.shape[1]
    tm = n if n <= 256 else 256
    assert n % tm == 0, "batch must be <=256 or a multiple of 256"
    return pl.pallas_call(
        _fc_kernel,
        out_shape=jax.ShapeDtypeStruct((n, nout), jnp.float32),
        grid=(n // tm,),
        in_specs=[
            pl.BlockSpec((tm, k), lambda i: (i, 0)),
            pl.BlockSpec((k, hidden), lambda i: (0, 0)),
            pl.BlockSpec((1, hidden), lambda i: (0, 0)),
            pl.BlockSpec((hidden, nout), lambda i: (0, 0)),
            pl.BlockSpec((1, nout), lambda i: (0, 0)),
        ],
        out_specs=pl.BlockSpec((tm, nout), lambda i: (i, 0)),
        compiler_params=pltpu.CompilerParams(
            dimension_semantics=("parallel",)),
    )(a, w1, b1, w2, b2)


# -------------------------------------------------------------------- model --

def init_params(key):
    """Params in the PyTorch module's layouts."""
    ks = jax.random.split(key, 8)

    def uinit(k, shape, fan_in):
        bound = 1.0 / math.sqrt(fan_in)
        return jax.random.uniform(k, shape, jnp.float32, -bound, bound)

    return {
        "conv1_w": uinit(ks[0], (32, 1, 3, 3), 1 * 3 * 3),
        "conv1_b": uinit(ks[1], (32,), 1 * 3 * 3),
        "conv2_w": uinit(ks[2], (64, 32, 3, 3), 32 * 3 * 3),
        "conv2_b": uinit(ks[3], (64,), 32 * 3 * 3),
        "fc1_w":   uinit(ks[4], (128, 64 * 5 * 5), 64 * 5 * 5),
        "fc1_b":   uinit(ks[5], (128,), 64 * 5 * 5),
        "fc2_w":   uinit(ks[6], (10, 128), 128),
        "fc2_b":   uinit(ks[7], (10,), 128),
    }


def prepare_params(p):
    """One-time layout plumbing so the forward pass does no runtime transposes."""
    w1 = jnp.transpose(p["conv1_w"], (2, 3, 1, 0)).reshape(9, 32)         # (kh*3+kw, cout)
    b1 = p["conv1_b"].reshape(1, 32)
    w2 = jnp.transpose(p["conv2_w"], (2, 3, 1, 0)).reshape(288, 64)       # (kh,kw,cin) x cout
    b2 = p["conv2_b"].reshape(1, 64)
    # fc1: torch flattens (c, h, w); the conv kernel produces (h, w, c).
    w1fc = jnp.transpose(p["fc1_w"].reshape(128, 64, 5, 5),
                         (2, 3, 1, 0)).reshape(1600, 128)
    b1fc = p["fc1_b"].reshape(1, 128)
    # fc2: pre-transpose and pad N=10 -> 128 lanes (sliced back in the wrapper).
    w2fc = jnp.zeros((128, 128), jnp.float32).at[:, :10].set(p["fc2_w"].T)
    b2fc = jnp.zeros((1, 128), jnp.float32).at[:, :10].set(p["fc2_b"][None, :])
    return {"w1": w1, "b1": b1, "w2": w2, "b2": b2,
            "w1fc": w1fc, "b1fc": b1fc, "w2fc": w2fc, "b2fc": b2fc}


@jax.jit
def cnn_forward(prepped, x_nchw):
    n = x_nchw.shape[0]
    # Cin == 1, so NCHW -> NHWC is a free reshape (no data movement).
    x = jnp.transpose(x_nchw, (0, 2, 3, 1))                        # [N, 28, 28, 1]
    pooled = conv_block(x, prepped["w1"], prepped["b1"],
                        prepped["w2"], prepped["b2"])              # [N, 5, 5, 64]
    a = pooled.reshape(n, 5 * 5 * 64)                              # (h, w, c) order
    logits = fc_block(a, prepped["w1fc"], prepped["b1fc"],
                      prepped["w2fc"], prepped["b2fc"])            # [N, 128]
    return logits[:, :10]


# ---------------------------------------------------------------- reference --

def cnn_forward_ref(params, x_nchw):
    """Pure-JAX reference (NCHW, mirrors the PyTorch forward)."""
    dn = jax.lax.conv_dimension_numbers(x_nchw.shape, params["conv1_w"].shape,
                                        ("NCHW", "OIHW", "NCHW"))

    def conv(x, w, b):
        y = jax.lax.conv_general_dilated(x, w, (1, 1), "VALID",
                                         dimension_numbers=dn)
        return jax.nn.relu(y + b[None, :, None, None])

    def pool(x):
        return jax.lax.reduce_window(x, -jnp.inf, jax.lax.max,
                                     (1, 1, 2, 2), (1, 1, 2, 2), "VALID")

    x = pool(conv(x_nchw, params["conv1_w"], params["conv1_b"]))
    x = pool(conv(x, params["conv2_w"], params["conv2_b"]))
    x = x.reshape(x.shape[0], 64 * 5 * 5)
    x = jax.nn.relu(x @ params["fc1_w"].T + params["fc1_b"])
    return x @ params["fc2_w"].T + params["fc2_b"]


# --------------------------------------------------------------------- main --

if __name__ == "__main__":
    key = jax.random.PRNGKey(0)
    k_params, k_x = jax.random.split(key)
    params = init_params(k_params)
    prepped = prepare_params(params)
    # Spatial size must be 28x28 so the flatten to 64*5*5 matches the module.
    x = jax.random.normal(k_x, (2, 1, 28, 28), jnp.float32)

    out = jax.block_until_ready(cnn_forward(prepped, x))
    assert out.shape == (2, 10), out.shape

    ref = jax.block_until_ready(cnn_forward_ref(params, x))
    assert jnp.allclose(out, ref, rtol=1e-3, atol=1e-3), float(jnp.max(jnp.abs(out - ref)))

    print("KERNEL_OK")
</pallas_src>

<mosaic_0001>
module attributes {stable_mosaic.version = 11 : i64} {
  func.func @_conv_block_kernel(%arg0: i32, %arg1: memref<1x28x28x1xf32, #tpu.memory_space<vmem>>, %arg2: memref<9x32xf32, #tpu.memory_space<vmem>>, %arg3: memref<1x32xf32, #tpu.memory_space<vmem>>, %arg4: memref<288x64xf32, #tpu.memory_space<vmem>>, %arg5: memref<1x64xf32, #tpu.memory_space<vmem>>, %arg6: memref<1x5x5x64xf32, #tpu.memory_space<vmem>>) attributes {dimension_semantics = [#tpu.dimension_semantics<parallel>], iteration_bounds = array<i64: 2>, scalar_prefetch = 0 : i64, scratch_operands = 0 : i64, tpu.core_type = #tpu.core_type<tc>, window_params = [{transform_indices = @transform_0, window_bounds = array<i64: 1, 28, 28, 1>}, {pipeline_mode = #tpu.pipeline_mode<synchronous>, transform_indices = @transform_1, window_bounds = array<i64: 9, 32>}, {pipeline_mode = #tpu.pipeline_mode<synchronous>, transform_indices = @transform_2, window_bounds = array<i64: 1, 32>}, {pipeline_mode = #tpu.pipeline_mode<synchronous>, transform_indices = @transform_3, window_bounds = array<i64: 288, 64>}, {pipeline_mode = #tpu.pipeline_mode<synchronous>, transform_indices = @transform_4, window_bounds = array<i64: 1, 64>}, {transform_indices = @transform_5, window_bounds = array<i64: 1, 5, 5, 64>}]} {
    %c0 = arith.constant 0 : index
    %c0_0 = arith.constant 0 : index
    %c0_1 = arith.constant 0 : index
    %c0_2 = arith.constant 0 : index
    %0 = vector.load %arg1[%c0, %c0_0, %c0_1, %c0_2] : memref<1x28x28x1xf32, #tpu.memory_space<vmem>>, vector<1x28x28x1xf32>
    %1 = vector.shape_cast %0 : vector<1x28x28x1xf32> to vector<28x28x1xf32>
    %c0_3 = arith.constant 0 : index
    %c0_4 = arith.constant 0 : index
    %2 = vector.load %arg2[%c0_3, %c0_4] : memref<9x32xf32, #tpu.memory_space<vmem>>, vector<9x32xf32>
    %cst = arith.constant 0.000000e+00 : f32
    %3 = vector.broadcast %cst : f32 to vector<26x26x32xf32>
    %4 = vector.extract_strided_slice %2 {offsets = [0, 0], sizes = [1, 32], strides = [1, 1]} : vector<9x32xf32> to vector<1x32xf32>
    %5 = vector.extract_strided_slice %1 {offsets = [0, 0, 0], sizes = [26, 26, 1], strides = [1, 1, 1]} : vector<28x28x1xf32> to vector<26x26x1xf32>
    %6 = vector.shape_cast %4 : vector<1x32xf32> to vector<1x1x32xf32>
    %7 = vector.broadcast %5 : vector<26x26x1xf32> to vector<26x26x32xf32>
    %8 = vector.broadcast %6 : vector<1x1x32xf32> to vector<26x26x32xf32>
    %9 = arith.mulf %7, %8 : vector<26x26x32xf32>
    %10 = arith.addf %3, %9 : vector<26x26x32xf32>
    %11 = vector.extract_strided_slice %2 {offsets = [1, 0], sizes = [1, 32], strides = [1, 1]} : vector<9x32xf32> to vector<1x32xf32>
    %12 = vector.extract_strided_slice %1 {offsets = [0, 1, 0], sizes = [26, 26, 1], strides = [1, 1, 1]} : vector<28x28x1xf32> to vector<26x26x1xf32>
    %13 = vector.shape_cast %11 : vector<1x32xf32> to vector<1x1x32xf32>
    %14 = vector.broadcast %12 : vector<26x26x1xf32> to vector<26x26x32xf32>
    %15 = vector.broadcast %13 : vector<1x1x32xf32> to vector<26x26x32xf32>
    %16 = arith.mulf %14, %15 : vector<26x26x32xf32>
    %17 = arith.addf %10, %16 : vector<26x26x32xf32>
    %18 = vector.extract_strided_slice %2 {offsets = [2, 0], sizes = [1, 32], strides = [1, 1]} : vector<9x32xf32> to vector<1x32xf32>
    %19 = vector.extract_strided_slice %1 {offsets = [0, 2, 0], sizes = [26, 26, 1], strides = [1, 1, 1]} : vector<28x28x1xf32> to vector<26x26x1xf32>
    %20 = vector.shape_cast %18 : vector<1x32xf32> to vector<1x1x32xf32>
    %21 = vector.broadcast %19 : vector<26x26x1xf32> to vector<26x26x32xf32>
    %22 = vector.broadcast %20 : vector<1x1x32xf32> to vector<26x26x32xf32>
    %23 = arith.mulf %21, %22 : vector<26x26x32xf32>
    %24 = arith.addf %17, %23 : vector<26x26x32xf32>
    %25 = vector.extract_strided_slice %2 {offsets = [3, 0], sizes = [1, 32], strides = [1, 1]} : vector<9x32xf32> to vector<1x32xf32>
    %26 = vector.extract_strided_slice %1 {offsets = [1, 0, 0], sizes = [26, 26, 1], strides = [1, 1, 1]} : vector<28x28x1xf32> to vector<26x26x1xf32>
    %27 = vector.shape_cast %25 : vector<1x32xf32> to vector<1x1x32xf32>
    %28 = vector.broadcast %26 : vector<26x26x1xf32> to vector<26x26x32xf32>
    %29 = vector.broadcast %27 : vector<1x1x32xf32> to vector<26x26x32xf32>
    %30 = arith.mulf %28, %29 : vector<26x26x32xf32>
    %31 = arith.addf %24, %30 : vector<26x26x32xf32>
    %32 = vector.extract_strided_slice %2 {offsets = [4, 0], sizes = [1, 32], strides = [1, 1]} : vector<9x32xf32> to vector<1x32xf32>
    %33 = vector.extract_strided_slice %1 {offsets = [1, 1, 0], sizes = [26, 26, 1], strides = [1, 1, 1]} : vector<28x28x1xf32> to vector<26x26x1xf32>
    %34 = vector.shape_cast %32 : vector<1x32xf32> to vector<1x1x32xf32>
    %35 = vector.broadcast %33 : vector<26x26x1xf32> to vector<26x26x32xf32>
    %36 = vector.broadcast %34 : vector<1x1x32xf32> to vector<26x26x32xf32>
    %37 = arith.mulf %35, %36 : vector<26x26x32xf32>
    %38 = arith.addf %31, %37 : vector<26x26x32xf32>
    %39 = vector.extract_strided_slice %2 {offsets = [5, 0], sizes = [1, 32], strides = [1, 1]} : vector<9x32xf32> to vector<1x32xf32>
    %40 = vector.extract_strided_slice %1 {offsets = [1, 2, 0], sizes = [26, 26, 1], strides = [1, 1, 1]} : vector<28x28x1xf32> to vector<26x26x1xf32>
    %41 = vector.shape_cast %39 : vector<1x32xf32> to vector<1x1x32xf32>
    %42 = vector.broadcast %40 : vector<26x26x1xf32> to vector<26x26x32xf32>
    %43 = vector.broadcast %41 : vector<1x1x32xf32> to vector<26x26x32xf32>
    %44 = arith.mulf %42, %43 : vector<26x26x32xf32>
    %45 = arith.addf %38, %44 : vector<26x26x32xf32>
    %46 = vector.extract_strided_slice %2 {offsets = [6, 0], sizes = [1, 32], strides = [1, 1]} : vector<9x32xf32> to vector<1x32xf32>
    %47 = vector.extract_strided_slice %1 {offsets = [2, 0, 0], sizes = [26, 26, 1], strides = [1, 1, 1]} : vector<28x28x1xf32> to vector<26x26x1xf32>
    %48 = vector.shape_cast %46 : vector<1x32xf32> to vector<1x1x32xf32>
    %49 = vector.broadcast %47 : vector<26x26x1xf32> to vector<26x26x32xf32>
    %50 = vector.broadcast %48 : vector<1x1x32xf32> to vector<26x26x32xf32>
    %51 = arith.mulf %49, %50 : vector<26x26x32xf32>
    %52 = arith.addf %45, %51 : vector<26x26x32xf32>
    %53 = vector.extract_strided_slice %2 {offsets = [7, 0], sizes = [1, 32], strides = [1, 1]} : vector<9x32xf32> to vector<1x32xf32>
    %54 = vector.extract_strided_slice %1 {offsets = [2, 1, 0], sizes = [26, 26, 1], strides = [1, 1, 1]} : vector<28x28x1xf32> to vector<26x26x1xf32>
    %55 = vector.shape_cast %53 : vector<1x32xf32> to vector<1x1x32xf32>
    %56 = vector.broadcast %54 : vector<26x26x1xf32> to vector<26x26x32xf32>
    %57 = vector.broadcast %55 : vector<1x1x32xf32> to vector<26x26x32xf32>
    %58 = arith.mulf %56, %57 : vector<26x26x32xf32>
    %59 = arith.addf %52, %58 : vector<26x26x32xf32>
    %60 = vector.extract_strided_slice %2 {offsets = [8, 0], sizes = [1, 32], strides = [1, 1]} : vector<9x32xf32> to vector<1x32xf32>
    %61 = vector.extract_strided_slice %1 {offsets = [2, 2, 0], sizes = [26, 26, 1], strides = [1, 1, 1]} : vector<28x28x1xf32> to vector<26x26x1xf32>
    %62 = vector.shape_cast %60 : vector<1x32xf32> to vector<1x1x32xf32>
    %63 = vector.broadcast %61 : vector<26x26x1xf32> to vector<26x26x32xf32>
    %64 = vector.broadcast %62 : vector<1x1x32xf32> to vector<26x26x32xf32>
    %65 = arith.mulf %63, %64 : vector<26x26x32xf32>
    %66 = arith.addf %59, %65 : vector<26x26x32xf32>
    %c0_5 = arith.constant 0 : index
    %c0_6 = arith.constant 0 : index
    %67 = vector.load %arg3[%c0_5, %c0_6] : memref<1x32xf32, #tpu.memory_space<vmem>>, vector<1x32xf32>
    %68 = vector.shape_cast %67 : vector<1x32xf32> to vector<1x1x32xf32>
    %69 = vector.broadcast %68 : vector<1x1x32xf32> to vector<26x26x32xf32>
    %70 = arith.addf %66, %69 : vector<26x26x32xf32>
    %cst_7 = arith.constant 0.000000e+00 : f32
    %71 = vector.broadcast %cst_7 : f32 to vector<26x26x32xf32>
    %72 = arith.maximumf %70, %71 : vector<26x26x32xf32>
    %73 = vector.shape_cast %72 : vector<26x26x32xf32> to vector<13x2x26x32xf32>
    %74 = vector.extract_strided_slice %73 {offsets = [0, 0, 0, 0], sizes = [13, 1, 26, 32], strides = [1, 1, 1, 1]} : vector<13x2x26x32xf32> to vector<13x1x26x32xf32>
    %75 = vector.shape_cast %74 : vector<13x1x26x32xf32> to vector<13x26x32xf32>
    %76 = vector.extract_strided_slice %73 {offsets = [0, 1, 0, 0], sizes = [13, 1, 26, 32], strides = [1, 1, 1, 1]} : vector<13x2x26x32xf32> to vector<13x1x26x32xf32>
    %77 = vector.shape_cast %76 : vector<13x1x26x32xf32> to vector<13x26x32xf32>
    %78 = arith.maximumf %75, %77 : vector<13x26x32xf32>
    %79 = vector.extract_strided_slice %78 {offsets = [0, 0, 0], sizes = [13, 1, 32], strides = [1, 1, 1]} : vector<13x26x32xf32> to vector<13x1x32xf32>
    %80 = vector.extract_strided_slice %78 {offsets = [0, 1, 0], sizes = [13, 1, 32], strides = [1, 1, 1]} : vector<13x26x32xf32> to vector<13x1x32xf32>
    %81 = arith.maximumf %79, %80 : vector<13x1x32xf32>
    %82 = vector.extract_strided_slice %78 {offsets = [0, 2, 0], sizes = [13, 1, 32], strides = [1, 1, 1]} : vector<13x26x32xf32> to vector<13x1x32xf32>
    %83 = vector.extract_strided_slice %78 {offsets = [0, 3, 0], sizes = [13, 1, 32], strides = [1, 1, 1]} : vector<13x26x32xf32> to vector<13x1x32xf32>
    %84 = arith.maximumf %82, %83 : vector<13x1x32xf32>
    %85 = vector.extract_strided_slice %78 {offsets = [0, 4, 0], sizes = [13, 1, 32], strides = [1, 1, 1]} : vector<13x26x32xf32> to vector<13x1x32xf32>
    %86 = vector.extract_strided_slice %78 {offsets = [0, 5, 0], sizes = [13, 1, 32], strides = [1, 1, 1]} : vector<13x26x32xf32> to vector<13x1x32xf32>
    %87 = arith.maximumf %85, %86 : vector<13x1x32xf32>
    %88 = vector.extract_strided_slice %78 {offsets = [0, 6, 0], sizes = [13, 1, 32], strides = [1, 1, 1]} : vector<13x26x32xf32> to vector<13x1x32xf32>
    %89 = vector.extract_strided_slice %78 {offsets = [0, 7, 0], sizes = [13, 1, 32], strides = [1, 1, 1]} : vector<13x26x32xf32> to vector<13x1x32xf32>
    %90 = arith.maximumf %88, %89 : vector<13x1x32xf32>
    %91 = vector.extract_strided_slice %78 {offsets = [0, 8, 0], sizes = [13, 1, 32], strides = [1, 1, 1]} : vector<13x26x32xf32> to vector<13x1x32xf32>
    %92 = vector.extract_strided_slice %78 {offsets = [0, 9, 0], sizes = [13, 1, 32], strides = [1, 1, 1]} : vector<13x26x32xf32> to vector<13x1x32xf32>
    %93 = arith.maximumf %91, %92 : vector<13x1x32xf32>
    %94 = vector.extract_strided_slice %78 {offsets = [0, 10, 0], sizes = [13, 1, 32], strides = [1, 1, 1]} : vector<13x26x32xf32> to vector<13x1x32xf32>
    %95 = vector.extract_strided_slice %78 {offsets = [0, 11, 0], sizes = [13, 1, 32], strides = [1, 1, 1]} : vector<13x26x32xf32> to vector<13x1x32xf32>
    %96 = arith.maximumf %94, %95 : vector<13x1x32xf32>
    %97 = vector.extract_strided_slice %78 {offsets = [0, 12, 0], sizes = [13, 1, 32], strides = [1, 1, 1]} : vector<13x26x32xf32> to vector<13x1x32xf32>
    %98 = vector.extract_strided_slice %78 {offsets = [0, 13, 0], sizes = [13, 1, 32], strides = [1, 1, 1]} : vector<13x26x32xf32> to vector<13x1x32xf32>
    %99 = arith.maximumf %97, %98 : vector<13x1x32xf32>
    %100 = vector.extract_strided_slice %78 {offsets = [0, 14, 0], sizes = [13, 1, 32], strides = [1, 1, 1]} : vector<13x26x32xf32> to vector<13x1x32xf32>
    %101 = vector.extract_strided_slice %78 {offsets = [0, 15, 0], sizes = [13, 1, 32], strides = [1, 1, 1]} : vector<13x26x32xf32> to vector<13x1x32xf32>
    %102 = arith.maximumf %100, %101 : vector<13x1x32xf32>
    %103 = vector.extract_strided_slice %78 {offsets = [0, 16, 0], sizes = [13, 1, 32], strides = [1, 1, 1]} : vector<13x26x32xf32> to vector<13x1x32xf32>
    %104 = vector.extract_strided_slice %78 {offsets = [0, 17, 0], sizes = [13, 1, 32], strides = [1, 1, 1]} : vector<13x26x32xf32> to vector<13x1x32xf32>
    %105 = arith.maximumf %103, %104 : vector<13x1x32xf32>
    %106 = vector.extract_strided_slice %78 {offsets = [0, 18, 0], sizes = [13, 1, 32], strides = [1, 1, 1]} : vector<13x26x32xf32> to vector<13x1x32xf32>
    %107 = vector.extract_strided_slice %78 {offsets = [0, 19, 0], sizes = [13, 1, 32], strides = [1, 1, 1]} : vector<13x26x32xf32> to vector<13x1x32xf32>
    %108 = arith.maximumf %106, %107 : vector<13x1x32xf32>
    %109 = vector.extract_strided_slice %78 {offsets = [0, 20, 0], sizes = [13, 1, 32], strides = [1, 1, 1]} : vector<13x26x32xf32> to vector<13x1x32xf32>
    %110 = vector.extract_strided_slice %78 {offsets = [0, 21, 0], sizes = [13, 1, 32], strides = [1, 1, 1]} : vector<13x26x32xf32> to vector<13x1x32xf32>
    %111 = arith.maximumf %109, %110 : vector<13x1x32xf32>
    %112 = vector.extract_strided_slice %78 {offsets = [0, 22, 0], sizes = [13, 1, 32], strides = [1, 1, 1]} : vector<13x26x32xf32> to vector<13x1x32xf32>
    %113 = vector.extract_strided_slice %78 {offsets = [0, 23, 0], sizes = [13, 1, 32], strides = [1, 1, 1]} : vector<13x26x32xf32> to vector<13x1x32xf32>
    %114 = arith.maximumf %112, %113 : vector<13x1x32xf32>
    %115 = vector.extract_strided_slice %78 {offsets = [0, 24, 0], sizes = [13, 1, 32], strides = [1, 1, 1]} : vector<13x26x32xf32> to vector<13x1x32xf32>
    %116 = vector.extract_strided_slice %78 {offsets = [0, 25, 0], sizes = [13, 1, 32], strides = [1, 1, 1]} : vector<13x26x32xf32> to vector<13x1x32xf32>
    %117 = arith.maximumf %115, %116 : vector<13x1x32xf32>
    %118 = tpu.concatenate %81, %84, %87, %90, %93, %96, %99, %102, %105, %108, %111, %114, %117 in 1 : vector<13x1x32xf32>, vector<13x1x32xf32>, vector<13x1x32xf32>, vector<13x1x32xf32>, vector<13x1x32xf32>, vector<13x1x32xf32>, vector<13x1x32xf32>, vector<13x1x32xf32>, vector<13x1x32xf32>, vector<13x1x32xf32>, vector<13x1x32xf32>, vector<13x1x32xf32>, vector<13x1x32xf32> -> vector<13x13x32xf32>
    %c0_8 = arith.constant 0 : index
    %c0_9 = arith.constant 0 : index
    %119 = vector.load %arg4[%c0_8, %c0_9] : memref<288x64xf32, #tpu.memory_space<vmem>>, vector<288x64xf32>
    %120 = vector.extract_strided_slice %118 {offsets = [0, 0, 0], sizes = [11, 11, 32], strides = [1, 1, 1]} : vector<13x13x32xf32> to vector<11x11x32xf32>
    %121 = vector.extract_strided_slice %118 {offsets = [0, 1, 0], sizes = [11, 11, 32], strides = [1, 1, 1]} : vector<13x13x32xf32> to vector<11x11x32xf32>
    %122 = vector.extract_strided_slice %118 {offsets = [0, 2, 0], sizes = [11, 11, 32], strides = [1, 1, 1]} : vector<13x13x32xf32> to vector<11x11x32xf32>
    %123 = vector.extract_strided_slice %118 {offsets = [1, 0, 0], sizes = [11, 11, 32], strides = [1, 1, 1]} : vector<13x13x32xf32> to vector<11x11x32xf32>
    %124 = vector.extract_strided_slice %118 {offsets = [1, 1, 0], sizes = [11, 11, 32], strides = [1, 1, 1]} : vector<13x13x32xf32> to vector<11x11x32xf32>
    %125 = vector.extract_strided_slice %118 {offsets = [1, 2, 0], sizes = [11, 11, 32], strides = [1, 1, 1]} : vector<13x13x32xf32> to vector<11x11x32xf32>
    %126 = vector.extract_strided_slice %118 {offsets = [2, 0, 0], sizes = [11, 11, 32], strides = [1, 1, 1]} : vector<13x13x32xf32> to vector<11x11x32xf32>
    %127 = vector.extract_strided_slice %118 {offsets = [2, 1, 0], sizes = [11, 11, 32], strides = [1, 1, 1]} : vector<13x13x32xf32> to vector<11x11x32xf32>
    %128 = vector.extract_strided_slice %118 {offsets = [2, 2, 0], sizes = [11, 11, 32], strides = [1, 1, 1]} : vector<13x13x32xf32> to vector<11x11x32xf32>
    %129 = tpu.concatenate %120, %121, %122, %123, %124, %125, %126, %127, %128 in 2 : vector<11x11x32xf32>, vector<11x11x32xf32>, vector<11x11x32xf32>, vector<11x11x32xf32>, vector<11x11x32xf32>, vector<11x11x32xf32>, vector<11x11x32xf32>, vector<11x11x32xf32>, vector<11x11x32xf32> -> vector<11x11x288xf32>
    %130 = vector.extract_strided_slice %129 {offsets = [0, 0, 0], sizes = [1, 11, 288], strides = [1, 1, 1]} : vector<11x11x288xf32> to vector<1x11x288xf32>
    %131 = vector.shape_cast %130 : vector<1x11x288xf32> to vector<11x288xf32>
    %cst_10 = arith.constant dense<0.000000e+00> : vector<11x64xf32>
    %132 = tpu.matmul %131, %119, %cst_10 {dimension_numbers = #tpu.dot_dimension_numbers<[1], [0], [0], [1], [0, 0, 1, 1], [], []>} : vector<11x288xf32>, vector<288x64xf32>, vector<11x64xf32> -> vector<11x64xf32>
    %133 = vector.shape_cast %132 : vector<11x64xf32> to vector<1x11x64xf32>
    %134 = vector.extract_strided_slice %129 {offsets = [1, 0, 0], sizes = [1, 11, 288], strides = [1, 1, 1]} : vector<11x11x288xf32> to vector<1x11x288xf32>
    %135 = vector.shape_cast %134 : vector<1x11x288xf32> to vector<11x288xf32>
    %cst_11 = arith.constant dense<0.000000e+00> : vector<11x64xf32>
    %136 = tpu.matmul %135, %119, %cst_11 {dimension_numbers = #tpu.dot_dimension_numbers<[1], [0], [0], [1], [0, 0, 1, 1], [], []>} : vector<11x288xf32>, vector<288x64xf32>, vector<11x64xf32> -> vector<11x64xf32>
    %137 = vector.shape_cast %136 : vector<11x64xf32> to vector<1x11x64xf32>
    %138 = vector.extract_strided_slice %129 {offsets = [2, 0, 0], sizes = [1, 11, 288], strides = [1, 1, 1]} : vector<11x11x288xf32> to vector<1x11x288xf32>
    %139 = vector.shape_cast %138 : vector<1x11x288xf32> to vector<11x288xf32>
    %cst_12 = arith.constant dense<0.000000e+00> : vector<11x64xf32>
    %140 = tpu.matmul %139, %119, %cst_12 {dimension_numbers = #tpu.dot_dimension_numbers<[1], [0], [0], [1], [0, 0, 1, 1], [], []>} : vector<11x288xf32>, vector<288x64xf32>, vector<11x64xf32> -> vector<11x64xf32>
    %141 = vector.shape_cast %140 : vector<11x64xf32> to vector<1x11x64xf32>
    %142 = vector.extract_strided_slice %129 {offsets = [3, 0, 0], sizes = [1, 11, 288], strides = [1, 1, 1]} : vector<11x11x288xf32> to vector<1x11x288xf32>
    %143 = vector.shape_cast %142 : vector<1x11x288xf32> to vector<11x288xf32>
    %cst_13 = arith.constant dense<0.000000e+00> : vector<11x64xf32>
    %144 = tpu.matmul %143, %119, %cst_13 {dimension_numbers = #tpu.dot_dimension_numbers<[1], [0], [0], [1], [0, 0, 1, 1], [], []>} : vector<11x288xf32>, vector<288x64xf32>, vector<11x64xf32> -> vector<11x64xf32>
    %145 = vector.shape_cast %144 : vector<11x64xf32> to vector<1x11x64xf32>
    %146 = vector.extract_strided_slice %129 {offsets = [4, 0, 0], sizes = [1, 11, 288], strides = [1, 1, 1]} : vector<11x11x288xf32> to vector<1x11x288xf32>
    %147 = vector.shape_cast %146 : vector<1x11x288xf32> to vector<11x288xf32>
    %cst_14 = arith.constant dense<0.000000e+00> : vector<11x64xf32>
    %148 = tpu.matmul %147, %119, %cst_14 {dimension_numbers = #tpu.dot_dimension_numbers<[1], [0], [0], [1], [0, 0, 1, 1], [], []>} : vector<11x288xf32>, vector<288x64xf32>, vector<11x64xf32> -> vector<11x64xf32>
    %149 = vector.shape_cast %148 : vector<11x64xf32> to vector<1x11x64xf32>
    %150 = vector.extract_strided_slice %129 {offsets = [5, 0, 0], sizes = [1, 11, 288], strides = [1, 1, 1]} : vector<11x11x288xf32> to vector<1x11x288xf32>
    %151 = vector.shape_cast %150 : vector<1x11x288xf32> to vector<11x288xf32>
    %cst_15 = arith.constant dense<0.000000e+00> : vector<11x64xf32>
    %152 = tpu.matmul %151, %119, %cst_15 {dimension_numbers = #tpu.dot_dimension_numbers<[1], [0], [0], [1], [0, 0, 1, 1], [], []>} : vector<11x288xf32>, vector<288x64xf32>, vector<11x64xf32> -> vector<11x64xf32>
    %153 = vector.shape_cast %152 : vector<11x64xf32> to vector<1x11x64xf32>
    %154 = vector.extract_strided_slice %129 {offsets = [6, 0, 0], sizes = [1, 11, 288], strides = [1, 1, 1]} : vector<11x11x288xf32> to vector<1x11x288xf32>
    %155 = vector.shape_cast %154 : vector<1x11x288xf32> to vector<11x288xf32>
    %cst_16 = arith.constant dense<0.000000e+00> : vector<11x64xf32>
    %156 = tpu.matmul %155, %119, %cst_16 {dimension_numbers = #tpu.dot_dimension_numbers<[1], [0], [0], [1], [0, 0, 1, 1], [], []>} : vector<11x288xf32>, vector<288x64xf32>, vector<11x64xf32> -> vector<11x64xf32>
    %157 = vector.shape_cast %156 : vector<11x64xf32> to vector<1x11x64xf32>
    %158 = vector.extract_strided_slice %129 {offsets = [7, 0, 0], sizes = [1, 11, 288], strides = [1, 1, 1]} : vector<11x11x288xf32> to vector<1x11x288xf32>
    %159 = vector.shape_cast %158 : vector<1x11x288xf32> to vector<11x288xf32>
    %cst_17 = arith.constant dense<0.000000e+00> : vector<11x64xf32>
    %160 = tpu.matmul %159, %119, %cst_17 {dimension_numbers = #tpu.dot_dimension_numbers<[1], [0], [0], [1], [0, 0, 1, 1], [], []>} : vector<11x288xf32>, vector<288x64xf32>, vector<11x64xf32> -> vector<11x64xf32>
    %161 = vector.shape_cast %160 : vector<11x64xf32> to vector<1x11x64xf32>
    %162 = vector.extract_strided_slice %129 {offsets = [8, 0, 0], sizes = [1, 11, 288], strides = [1, 1, 1]} : vector<11x11x288xf32> to vector<1x11x288xf32>
    %163 = vector.shape_cast %162 : vector<1x11x288xf32> to vector<11x288xf32>
    %cst_18 = arith.constant dense<0.000000e+00> : vector<11x64xf32>
    %164 = tpu.matmul %163, %119, %cst_18 {dimension_numbers = #tpu.dot_dimension_numbers<[1], [0], [0], [1], [0, 0, 1, 1], [], []>} : vector<11x288xf32>, vector<288x64xf32>, vector<11x64xf32> -> vector<11x64xf32>
    %165 = vector.shape_cast %164 : vector<11x64xf32> to vector<1x11x64xf32>
    %166 = vector.extract_strided_slice %129 {offsets = [9, 0, 0], sizes = [1, 11, 288], strides = [1, 1, 1]} : vector<11x11x288xf32> to vector<1x11x288xf32>
    %167 = vector.shape_cast %166 : vector<1x11x288xf32> to vector<11x288xf32>
    %cst_19 = arith.constant dense<0.000000e+00> : vector<11x64xf32>
    %168 = tpu.matmul %167, %119, %cst_19 {dimension_numbers = #tpu.dot_dimension_numbers<[1], [0], [0], [1], [0, 0, 1, 1], [], []>} : vector<11x288xf32>, vector<288x64xf32>, vector<11x64xf32> -> vector<11x64xf32>
    %169 = vector.shape_cast %168 : vector<11x64xf32> to vector<1x11x64xf32>
    %170 = vector.extract_strided_slice %129 {offsets = [10, 0, 0], sizes = [1, 11, 288], strides = [1, 1, 1]} : vector<11x11x288xf32> to vector<1x11x288xf32>
    %171 = vector.shape_cast %170 : vector<1x11x288xf32> to vector<11x288xf32>
    %cst_20 = arith.constant dense<0.000000e+00> : vector<11x64xf32>
    %172 = tpu.matmul %171, %119, %cst_20 {dimension_numbers = #tpu.dot_dimension_numbers<[1], [0], [0], [1], [0, 0, 1, 1], [], []>} : vector<11x288xf32>, vector<288x64xf32>, vector<11x64xf32> -> vector<11x64xf32>
    %173 = vector.shape_cast %172 : vector<11x64xf32> to vector<1x11x64xf32>
    %174 = tpu.concatenate %133, %137, %141, %145, %149, %153, %157, %161, %165, %169, %173 in 0 : vector<1x11x64xf32>, vector<1x11x64xf32>, vector<1x11x64xf32>, vector<1x11x64xf32>, vector<1x11x64xf32>, vector<1x11x64xf32>, vector<1x11x64xf32>, vector<1x11x64xf32>, vector<1x11x64xf32>, vector<1x11x64xf32>, vector<1x11x64xf32> -> vector<11x11x64xf32>
    %c0_21 = arith.constant 0 : index
    %c0_22 = arith.constant 0 : index
    %175 = vector.load %arg5[%c0_21, %c0_22] : memref<1x64xf32, #tpu.memory_space<vmem>>, vector<1x64xf32>
    %176 = vector.shape_cast %175 : vector<1x64xf32> to vector<1x1x64xf32>
    %177 = vector.broadcast %176 : vector<1x1x64xf32> to vector<11x11x64xf32>
    %178 = arith.addf %174, %177 : vector<11x11x64xf32>
    %cst_23 = arith.constant 0.000000e+00 : f32
    %179 = vector.broadcast %cst_23 : f32 to vector<11x11x64xf32>
    %180 = arith.maximumf %178, %179 : vector<11x11x64xf32>
    %181 = vector.extract_strided_slice %180 {offsets = [0, 0, 0], sizes = [10, 11, 64], strides = [1, 1, 1]} : vector<11x11x64xf32> to vector<10x11x64xf32>
    %182 = vector.shape_cast %181 : vector<10x11x64xf32> to vector<5x2x11x64xf32>
    %183 = vector.extract_strided_slice %182 {offsets = [0, 0, 0, 0], sizes = [5, 1, 11, 64], strides = [1, 1, 1, 1]} : vector<5x2x11x64xf32> to vector<5x1x11x64xf32>
    %184 = vector.shape_cast %183 : vector<5x1x11x64xf32> to vector<5x11x64xf32>
    %185 = vector.extract_strided_slice %182 {offsets = [0, 1, 0, 0], sizes = [5, 1, 11, 64], strides = [1, 1, 1, 1]} : vector<5x2x11x64xf32> to vector<5x1x11x64xf32>
    %186 = vector.shape_cast %185 : vector<5x1x11x64xf32> to vector<5x11x64xf32>
    %187 = arith.maximumf %184, %186 : vector<5x11x64xf32>
    %188 = vector.extract_strided_slice %187 {offsets = [0, 0, 0], sizes = [5, 1, 64], strides = [1, 1, 1]} : vector<5x11x64xf32> to vector<5x1x64xf32>
    %189 = vector.extract_strided_slice %187 {offsets = [0, 1, 0], sizes = [5, 1, 64], strides = [1, 1, 1]} : vector<5x11x64xf32> to vector<5x1x64xf32>
    %190 = arith.maximumf %188, %189 : vector<5x1x64xf32>
    %191 = vector.extract_strided_slice %187 {offsets = [0, 2, 0], sizes = [5, 1, 64], strides = [1, 1, 1]} : vector<5x11x64xf32> to vector<5x1x64xf32>
    %192 = vector.extract_strided_slice %187 {offsets = [0, 3, 0], sizes = [5, 1, 64], strides = [1, 1, 1]} : vector<5x11x64xf32> to vector<5x1x64xf32>
    %193 = arith.maximumf %191, %192 : vector<5x1x64xf32>
    %194 = vector.extract_strided_slice %187 {offsets = [0, 4, 0], sizes = [5, 1, 64], strides = [1, 1, 1]} : vector<5x11x64xf32> to vector<5x1x64xf32>
    %195 = vector.extract_strided_slice %187 {offsets = [0, 5, 0], sizes = [5, 1, 64], strides = [1, 1, 1]} : vector<5x11x64xf32> to vector<5x1x64xf32>
    %196 = arith.maximumf %194, %195 : vector<5x1x64xf32>
    %197 = vector.extract_strided_slice %187 {offsets = [0, 6, 0], sizes = [5, 1, 64], strides = [1, 1, 1]} : vector<5x11x64xf32> to vector<5x1x64xf32>
    %198 = vector.extract_strided_slice %187 {offsets = [0, 7, 0], sizes = [5, 1, 64], strides = [1, 1, 1]} : vector<5x11x64xf32> to vector<5x1x64xf32>
    %199 = arith.maximumf %197, %198 : vector<5x1x64xf32>
    %200 = vector.extract_strided_slice %187 {offsets = [0, 8, 0], sizes = [5, 1, 64], strides = [1, 1, 1]} : vector<5x11x64xf32> to vector<5x1x64xf32>
    %201 = vector.extract_strided_slice %187 {offsets = [0, 9, 0], sizes = [5, 1, 64], strides = [1, 1, 1]} : vector<5x11x64xf32> to vector<5x1x64xf32>
    %202 = arith.maximumf %200, %201 : vector<5x1x64xf32>
    %203 = tpu.concatenate %190, %193, %196, %199, %202 in 1 : vector<5x1x64xf32>, vector<5x1x64xf32>, vector<5x1x64xf32>, vector<5x1x64xf32>, vector<5x1x64xf32> -> vector<5x5x64xf32>
    %c0_24 = arith.constant 0 : index
    %c0_25 = arith.constant 0 : index
    %c0_26 = arith.constant 0 : index
    %c0_27 = arith.constant 0 : index
    %204 = vector.load %arg6[%c0_24, %c0_25, %c0_26, %c0_27] : memref<1x5x5x64xf32, #tpu.memory_space<vmem>>, vector<1x5x5x64xf32>
    %205 = vector.shape_cast %204 : vector<1x5x5x64xf32> to vector<5x5x64xf32>
    %206 = vector.shape_cast %203 : vector<5x5x64xf32> to vector<1x5x5x64xf32>
    tpu.vector_store %arg6[%c0_24, %c0_25, %c0_26, %c0_27], %206 {strides = array<i32>} : memref<1x5x5x64xf32, #tpu.memory_space<vmem>>, vector<1x5x5x64xf32>,
    return
  }
  func.func @transform_0(%arg0: i32) -> (i32, i32, i32, i32) {
    %c0_i32 = arith.constant 0 : i32
    %c0_i32_0 = arith.constant 0 : i32
    %c0_i32_1 = arith.constant 0 : i32
    %c0_i32_2 = arith.constant 0 : i32
    return %arg0, %c0_i32, %c0_i32_0, %c0_i32_1 : i32, i32, i32, i32
  }
  func.func @transform_1(%arg0: i32) -> (i32, i32) {
    %c0_i32 = arith.constant 0 : i32
    %c0_i32_0 = arith.constant 0 : i32
    %c0_i32_1 = arith.constant 0 : i32
    return %c0_i32, %c0_i32_0 : i32, i32
  }
  func.func @transform_2(%arg0: i32) -> (i32, i32) {
    %c0_i32 = arith.constant 0 : i32
    %c0_i32_0 = arith.constant 0 : i32
    %c0_i32_1 = arith.constant 0 : i32
    return %c0_i32, %c0_i32_0 : i32, i32
  }
  func.func @transform_3(%arg0: i32) -> (i32, i32) {
    %c0_i32 = arith.constant 0 : i32
    %c0_i32_0 = arith.constant 0 : i32
    %c0_i32_1 = arith.constant 0 : i32
    return %c0_i32, %c0_i32_0 : i32, i32
  }
  func.func @transform_4(%arg0: i32) -> (i32, i32) {
    %c0_i32 = arith.constant 0 : i32
    %c0_i32_0 = arith.constant 0 : i32
    %c0_i32_1 = arith.constant 0 : i32
    return %c0_i32, %c0_i32_0 : i32, i32
  }
  func.func @transform_5(%arg0: i32) -> (i32, i32, i32, i32) {
    %c0_i32 = arith.constant 0 : i32
    %c0_i32_0 = arith.constant 0 : i32
    %c0_i32_1 = arith.constant 0 : i32
    %c0_i32_2 = arith.constant 0 : i32
    return %arg0, %c0_i32, %c0_i32_0, %c0_i32_1 : i32, i32, i32, i32
  }
}

module attributes {stable_mosaic.version = 11 : i64} {
  func.func @_fc_kernel(%arg0: i32, %arg1: memref<2x1600xf32, #tpu.memory_space<vmem>>, %arg2: memref<1600x128xf32, #tpu.memory_space<vmem>>, %arg3: memref<1x128xf32, #tpu.memory_space<vmem>>, %arg4: memref<128x128xf32, #tpu.memory_space<vmem>>, %arg5: memref<1x128xf32, #tpu.memory_space<vmem>>, %arg6: memref<2x128xf32, #tpu.memory_space<vmem>>) attributes {dimension_semantics = [#tpu.dimension_semantics<parallel>], iteration_bounds = array<i64: 1>, scalar_prefetch = 0 : i64, scratch_operands = 0 : i64, tpu.core_type = #tpu.core_type<tc>, window_params = [{transform_indices = @transform_0, window_bounds = array<i64: 2, 1600>}, {pipeline_mode = #tpu.pipeline_mode<synchronous>, transform_indices = @transform_1, window_bounds = array<i64: 1600, 128>}, {pipeline_mode = #tpu.pipeline_mode<synchronous>, transform_indices = @transform_2, window_bounds = array<i64: 1, 128>}, {pipeline_mode = #tpu.pipeline_mode<synchronous>, transform_indices = @transform_3, window_bounds = array<i64: 128, 128>}, {pipeline_mode = #tpu.pipeline_mode<synchronous>, transform_indices = @transform_4, window_bounds = array<i64: 1, 128>}, {transform_indices = @transform_5, window_bounds = array<i64: 2, 128>}]} {
    %c0 = arith.constant 0 : index
    %c0_0 = arith.constant 0 : index
    %0 = vector.load %arg1[%c0, %c0_0] : memref<2x1600xf32, #tpu.memory_space<vmem>>, vector<2x1600xf32>
    %c0_1 = arith.constant 0 : index
    %c0_2 = arith.constant 0 : index
    %1 = vector.load %arg2[%c0_1, %c0_2] : memref<1600x128xf32, #tpu.memory_space<vmem>>, vector<1600x128xf32>
    %cst = arith.constant dense<0.000000e+00> : vector<2x128xf32>
    %2 = tpu.matmul %0, %1, %cst {dimension_numbers = #tpu.dot_dimension_numbers<[1], [0], [0], [1], [0, 0, 1, 1], [], []>} : vector<2x1600xf32>, vector<1600x128xf32>, vector<2x128xf32> -> vector<2x128xf32>
    %c0_3 = arith.constant 0 : index
    %c0_4 = arith.constant 0 : index
    %3 = vector.load %arg3[%c0_3, %c0_4] : memref<1x128xf32, #tpu.memory_space<vmem>>, vector<1x128xf32>
    %4 = vector.broadcast %3 : vector<1x128xf32> to vector<2x128xf32>
    %5 = arith.addf %2, %4 : vector<2x128xf32>
    %cst_5 = arith.constant 0.000000e+00 : f32
    %6 = vector.broadcast %cst_5 : f32 to vector<2x128xf32>
    %7 = arith.maximumf %5, %6 : vector<2x128xf32>
    %c0_6 = arith.constant 0 : index
    %c0_7 = arith.constant 0 : index
    %8 = vector.load %arg4[%c0_6, %c0_7] : memref<128x128xf32, #tpu.memory_space<vmem>>, vector<128x128xf32>
    %cst_8 = arith.constant dense<0.000000e+00> : vector<2x128xf32>
    %9 = tpu.matmul %7, %8, %cst_8 {dimension_numbers = #tpu.dot_dimension_numbers<[1], [0], [0], [1], [0, 0, 1, 1], [], []>} : vector<2x128xf32>, vector<128x128xf32>, vector<2x128xf32> -> vector<2x128xf32>
    %c0_9 = arith.constant 0 : index
    %c0_10 = arith.constant 0 : index
    %10 = vector.load %arg5[%c0_9, %c0_10] : memref<1x128xf32, #tpu.memory_space<vmem>>, vector<1x128xf32>
    %11 = vector.broadcast %10 : vector<1x128xf32> to vector<2x128xf32>
    %12 = arith.addf %9, %11 : vector<2x128xf32>
    %c0_11 = arith.constant 0 : index
    %c0_12 = arith.constant 0 : index
    %13 = vector.load %arg6[%c0_11, %c0_12] : memref<2x128xf32, #tpu.memory_space<vmem>>, vector<2x128xf32>
    tpu.vector_store %arg6[%c0_11, %c0_12], %12 {strides = array<i32>} : memref<2x128xf32, #tpu.memory_space<vmem>>, vector<2x128xf32>,
    return
  }
  func.func @transform_0(%arg0: i32) -> (i32, i32) {
    %c0_i32 = arith.constant 0 : i32
    %c0_i32_0 = arith.constant 0 : i32
    return %arg0, %c0_i32 : i32, i32
  }
  func.func @transform_1(%arg0: i32) -> (i32, i32) {
    %c0_i32 = arith.constant 0 : i32
    %c0_i32_0 = arith.constant 0 : i32
    %c0_i32_1 = arith.constant 0 : i32
    return %c0_i32, %c0_i32_0 : i32, i32
  }
  func.func @transform_2(%arg0: i32) -> (i32, i32) {
    %c0_i32 = arith.constant 0 : i32
    %c0_i32_0 = arith.constant 0 : i32
    %c0_i32_1 = arith.constant 0 : i32
    return %c0_i32, %c0_i32_0 : i32, i32
  }
  func.func @transform_3(%arg0: i32) -> (i32, i32) {
    %c0_i32 = arith.constant 0 : i32
    %c0_i32_0 = arith.constant 0 : i32
    %c0_i32_1 = arith.constant 0 : i32
    return %c0_i32, %c0_i32_0 : i32, i32
  }
  func.func @transform_4(%arg0: i32) -> (i32, i32) {
    %c0_i32 = arith.constant 0 : i32
    %c0_i32_0 = arith.constant 0 : i32
    %c0_i32_1 = arith.constant 0 : i32
    return %c0_i32, %c0_i32_0 : i32, i32
  }
  func.func @transform_5(%arg0: i32) -> (i32, i32) {
    %c0_i32 = arith.constant 0 : i32
    %c0_i32_0 = arith.constant 0 : i32
    return %arg0, %c0_i32 : i32, i32
  }
}

</mosaic_0001>

<llo_original>
// kernel: cnn_forward.3
$region0: #{cnn_forward.3}
  #allocation0 [shape = 'u32[]', space=smem, size = 0x4, offset = 0x4, fixed_abs, tag = 'smem constant byte address 0x4 - core index']
  #allocation1 [shape = 'u32[144,128]{1,0:T(1,128)}', space=vmem, size = 0x12000, scoped, tag = 'internal scratch']
  %s0 = inlined_call_operand.vmem [shape: f32[2,1600], index: 0, kind: input, shape index: {}]
  %s1 = inlined_call_operand.vmem [shape: f32[1600,128], index: 1, kind: input, shape index: {}]
  %s2 = inlined_call_operand.vmem [shape: f32[1,128], index: 2, kind: input, shape index: {}]
  %s3 = inlined_call_operand.vmem [shape: f32[128,128], index: 3, kind: input, shape index: {}]
  %s4 = inlined_call_operand.vmem [shape: f32[1,128], index: 4, kind: input, shape index: {}]
  %s5 = inlined_call_operand.hbm [shape: f32[2,128], index: 5, kind: output, shape index: {}]
  %s6 = sld [smem:[#allocation0]]
  $region30: #{cnn_forward.3} parent=0
    _
  %s8 = ssub.s32 1, %s6
  %s9 = scalar_select 0, %s8, %s6
  $region1: #{cnn_forward.3} parent=0
    #allocation2 [shape = 'u8[1024]{0}', space=vmem, size = 0x400, scoped, tag = 'output window, operand 0, single buffered']
    #allocation3 [shape = 's32[1]{0}', space=sflag, size = 0x4, scoped, tag = 'scoped memory for cnn_forward.3']
    %10 = vsyncpa [#allocation3], 0
    // Predicated region
    $region2: #{cnn_forward.3} parent=1 // pred_check
      _
    $region3: #{cnn_forward.3} parent=1 // pred_check_branch
      %12 = sbr.rel (0) target = $region5
    $region4: #{cnn_forward.3} parent=1 // pred_region
      _
    $region5: #{cnn_forward.3} parent=1 // pred_fallthru
      _
    // Predicated region
    $region6: #{cnn_forward.3} parent=1 // pred_check
      _
    $region7: #{cnn_forward.3} parent=1 // pred_check_branch
      %14 = sbr.rel (0) target = $region9
    $region8: #{cnn_forward.3} parent=1 // pred_region
      _
    $region9: #{cnn_forward.3} parent=1 // pred_fallthru
      _
    // Predicated region
    $region10: #{cnn_forward.3} parent=1 // pred_check
      _
    $region11: #{cnn_forward.3} parent=1 // pred_check_branch
      %16 = sbr.rel (0) target = $region13
    $region12: #{cnn_forward.3} parent=1 // pred_region
      _
    $region13: #{cnn_forward.3} parent=1 // pred_fallthru
      _
    // Predicated region
    $region14: #{cnn_forward.3} parent=1 // pred_check
      _
    $region15: #{cnn_forward.3} parent=1 // pred_check_branch
      %18 = sbr.rel (0) target = $region17
    $region16: #{cnn_forward.3} parent=1 // pred_region
      _
    $region17: #{cnn_forward.3} parent=1 // pred_fallthru
      _
    // Predicated region
    $region18: #{cnn_forward.3} parent=1 // pred_check
      _
    $region19: #{cnn_forward.3} parent=1 // pred_check_branch
      %20 = sbr.rel (0) target = $region21
    $region20: #{cnn_forward.3} parent=1 // pred_region
      _
    $region21: #{cnn_forward.3} parent=1 // pred_fallthru
      _
    %v21 = vld [vmem:[%s0] sm:$0xff]
    %v22 = vld [vmem:[%s0 + $0x8] sm:$0xff]
    %v23 = vld [vmem:[%s0 + $0x10] sm:$0xff]
    %v24 = vld [vmem:[%s0 + $0x18] sm:$0x3]
    %v25 = vld [vmem:[%s1] sm:$0xff]
    %v26 = vld [vmem:[%s1 + $0x8] sm:$0xff]
    %v27 = vld [vmem:[%s1 + $0x10] sm:$0xff]
    %v28 = vld [vmem:[%s1 + $0x18] sm:$0xff]
    %v29 = vld [vmem:[%s1 + $0x20] sm:$0xff]
    %v30 = vld [vmem:[%s1 + $0x28] sm:$0xff]
    %v31 = vld [vmem:[%s1 + $0x30] sm:$0xff]
    %v32 = vld [vmem:[%s1 + $0x38] sm:$0xff]
    %v33 = vld [vmem:[%s1 + $0x40] sm:$0xff]
    %v34 = vld [vmem:[%s1 + $0x48] sm:$0xff]
    %v35 = vld [vmem:[%s1 + $0x50] sm:$0xff]
    %v36 = vld [vmem:[%s1 + $0x58] sm:$0xff]
    %v37 = vld [vmem:[%s1 + $0x60] sm:$0xff]
    %v38 = vld [vmem:[%s1 + $0x68] sm:$0xff]
    %v39 = vld [vmem:[%s1 + $0x70] sm:$0xff]
    %v40 = vld [vmem:[%s1 + $0x78] sm:$0xff]
    %v41 = vld [vmem:[%s1 + $0x80] sm:$0xff]
    %v42 = vld [vmem:[%s1 + $0x88] sm:$0xff]
    %v43 = vld [vmem:[%s1 + $0x90] sm:$0xff]
    %v44 = vld [vmem:[%s1 + $0x98] sm:$0xff]
    %v45 = vld [vmem:[%s1 + $0xa0] sm:$0xff]
    %v46 = vld [vmem:[%s1 + $0xa8] sm:$0xff]
    %v47 = vld [vmem:[%s1 + $0xb0] sm:$0xff]
    %v48 = vld [vmem:[%s1 + $0xb8] sm:$0xff]
    %v49 = vld [vmem:[%s1 + $0xc0] sm:$0xff]
    %v50 = vld [vmem:[%s1 + $0xc8] sm:$0xff]
    %v51 = vld [vmem:[%s1 + $0xd0] sm:$0xff]
    %v52 = vld [vmem:[%s1 + $0xd8] sm:$0xff]
    %v53 = vld [vmem:[%s1 + $0xe0] sm:$0xff]
    %v54 = vld [vmem:[%s1 + $0xe8] sm:$0xff]
    %v55 = vld [vmem:[%s1 + $0xf0] sm:$0xff]
    %v56 = vld [vmem:[%s1 + $0xf8] sm:$0xff]
    %v57 = vld [vmem:[%s1 + $0x100] sm:$0xff]
    %v58 = vld [vmem:[%s1 + $0x108] sm:$0xff]
    %v59 = vld [vmem:[%s1 + $0x110] sm:$0xff]
    %v60 = vld [vmem:[%s1 + $0x118] sm:$0xff]
    %v61 = vld [vmem:[%s1 + $0x120] sm:$0xff]
    %v62 = vld [vmem:[%s1 + $0x128] sm:$0xff]
    %v63 = vld [vmem:[%s1 + $0x130] sm:$0xff]
    %v64 = vld [vmem:[%s1 + $0x138] sm:$0xff]
    %v65 = vld [vmem:[%s1 + $0x140] sm:$0xff]
    %v66 = vld [vmem:[%s1 + $0x148] sm:$0xff]
    %v67 = vld [vmem:[%s1 + $0x150] sm:$0xff]
    %v68 = vld [vmem:[%s1 + $0x158] sm:$0xff]
    %v69 = vld [vmem:[%s1 + $0x160] sm:$0xff]
    %v70 = vld [vmem:[%s1 + $0x168] sm:$0xff]
    %v71 = vld [vmem:[%s1 + $0x170] sm:$0xff]
    %v72 = vld [vmem:[%s1 + $0x178] sm:$0xff]
    %v73 = vld [vmem:[%s1 + $0x180] sm:$0xff]
    %v74 = vld [vmem:[%s1 + $0x188] sm:$0xff]
    %v75 = vld [vmem:[%s1 + $0x190] sm:$0xff]
    %v76 = vld [vmem:[%s1 + $0x198] sm:$0xff]
    %v77 = vld [vmem:[%s1 + $0x1a0] sm:$0xff]
    %v78 = vld [vmem:[%s1 + $0x1a8] sm:$0xff]
    %v79 = vld [vmem:[%s1 + $0x1b0] sm:$0xff]
    %v80 = vld [vmem:[%s1 + $0x1b8] sm:$0xff]
    %v81 = vld [vmem:[%s1 + $0x1c0] sm:$0xff]
    %v82 = vld [vmem:[%s1 + $0x1c8] sm:$0xff]
    %v83 = vld [vmem:[%s1 + $0x1d0] sm:$0xff]
    %v84 = vld [vmem:[%s1 + $0x1d8] sm:$0xff]
    %v85 = vld [vmem:[%s1 + $0x1e0] sm:$0xff]
    %v86 = vld [vmem:[%s1 + $0x1e8] sm:$0xff]
    %v87 = vld [vmem:[%s1 + $0x1f0] sm:$0xff]
    %v88 = vld [vmem:[%s1 + $0x1f8] sm:$0xff]
    %v89 = vld [vmem:[%s1 + $0x200] sm:$0xff]
    %v90 = vld [vmem:[%s1 + $0x208] sm:$0xff]
    %v91 = vld [vmem:[%s1 + $0x210] sm:$0xff]
    %v92 = vld [vmem:[%s1 + $0x218] sm:$0xff]
    %v93 = vld [vmem:[%s1 + $0x220] sm:$0xff]
    %v94 = vld [vmem:[%s1 + $0x228] sm:$0xff]
    %v95 = vld [vmem:[%s1 + $0x230] sm:$0xff]
    %v96 = vld [vmem:[%s1 + $0x238] sm:$0xff]
    %v97 = vld [vmem:[%s1 + $0x240] sm:$0xff]
    %v98 = vld [vmem:[%s1 + $0x248] sm:$0xff]
    %v99 = vld [vmem:[%s1 + $0x250] sm:$0xff]
    %v100 = vld [vmem:[%s1 + $0x258] sm:$0xff]
    %v101 = vld [vmem:[%s1 + $0x260] sm:$0xff]
    %v102 = vld [vmem:[%s1 + $0x268] sm:$0xff]
    %v103 = vld [vmem:[%s1 + $0x270] sm:$0xff]
    %v104 = vld [vmem:[%s1 + $0x278] sm:$0xff]
    %v105 = vld [vmem:[%s1 + $0x280] sm:$0xff]
    %v106 = vld [vmem:[%s1 + $0x288] sm:$0xff]
    %v107 = vld [vmem:[%s1 + $0x290] sm:$0xff]
    %v108 = vld [vmem:[%s1 + $0x298] sm:$0xff]
    %v109 = vld [vmem:[%s1 + $0x2a0] sm:$0xff]
    %v110 = vld [vmem:[%s1 + $0x2a8] sm:$0xff]
    %v111 = vld [vmem:[%s1 + $0x2b0] sm:$0xff]
    %v112 = vld [vmem:[%s1 + $0x2b8] sm:$0xff]
    %v113 = vld [vmem:[%s1 + $0x2c0] sm:$0xff]
    %v114 = vld [vmem:[%s1 + $0x2c8] sm:$0xff]
    %v115 = vld [vmem:[%s1 + $0x2d0] sm:$0xff]
    %v116 = vld [vmem:[%s1 + $0x2d8] sm:$0xff]
    %v117 = vld [vmem:[%s1 + $0x2e0] sm:$0xff]
    %v118 = vld [vmem:[%s1 + $0x2e8] sm:$0xff]
    %v119 = vld [vmem:[%s1 + $0x2f0] sm:$0xff]
    %v120 = vld [vmem:[%s1 + $0x2f8] sm:$0xff]
    %v121 = vld [vmem:[%s1 + $0x300] sm:$0xff]
    %v122 = vld [vmem:[%s1 + $0x308] sm:$0xff]
    %v123 = vld [vmem:[%s1 + $0x310] sm:$0xff]
    %v124 = vld [vmem:[%s1 + $0x318] sm:$0xff]
    %v125 = vld [vmem:[%s1 + $0x320] sm:$0xff]
    %v126 = vld [vmem:[%s1 + $0x328] sm:$0xff]
    %v127 = vld [vmem:[%s1 + $0x330] sm:$0xff]
    %v128 = vld [vmem:[%s1 + $0x338] sm:$0xff]
    %v129 = vld [vmem:[%s1 + $0x340] sm:$0xff]
    %v130 = vld [vmem:[%s1 + $0x348] sm:$0xff]
    %v131 = vld [vmem:[%s1 + $0x350] sm:$0xff]
    %v132 = vld [vmem:[%s1 + $0x358] sm:$0xff]
    %v133 = vld [vmem:[%s1 + $0x360] sm:$0xff]
    %v134 = vld [vmem:[%s1 + $0x368] sm:$0xff]
    %v135 = vld [vmem:[%s1 + $0x370] sm:$0xff]
    %v136 = vld [vmem:[%s1 + $0x378] sm:$0xff]
    %v137 = vld [vmem:[%s1 + $0x380] sm:$0xff]
    %v138 = vld [vmem:[%s1 + $0x388] sm:$0xff]
    %v139 = vld [vmem:[%s1 + $0x390] sm:$0xff]
    %v140 = vld [vmem:[%s1 + $0x398] sm:$0xff]
    %v141 = vld [vmem:[%s1 + $0x3a0] sm:$0xff]
    %v142 = vld [vmem:[%s1 + $0x3a8] sm:$0xff]
    %v143 = vld [vmem:[%s1 + $0x3b0] sm:$0xff]
    %v144 = vld [vmem:[%s1 + $0x3b8] sm:$0xff]
    %v145 = vld [vmem:[%s1 + $0x3c0] sm:$0xff]
    %v146 = vld [vmem:[%s1 + $0x3c8] sm:$0xff]
    %v147 = vld [vmem:[%s1 + $0x3d0] sm:$0xff]
    %v148 = vld [vmem:[%s1 + $0x3d8] sm:$0xff]
    %v149 = vld [vmem:[%s1 + $0x3e0] sm:$0xff]
    %v150 = vld [vmem:[%s1 + $0x3e8] sm:$0xff]
    %v151 = vld [vmem:[%s1 + $0x3f0] sm:$0xff]
    %v152 = vld [vmem:[%s1 + $0x3f8] sm:$0xff]
    %v153 = vld [vmem:[%s1 + $0x400] sm:$0xff]
    %v154 = vld [vmem:[%s1 + $0x408] sm:$0xff]
    %v155 = vld [vmem:[%s1 + $0x410] sm:$0xff]
    %v156 = vld [vmem:[%s1 + $0x418] sm:$0xff]
    %v157 = vld [vmem:[%s1 + $0x420] sm:$0xff]
    %v158 = vld [vmem:[%s1 + $0x428] sm:$0xff]
    %v159 = vld [vmem:[%s1 + $0x430] sm:$0xff]
    %v160 = vld [vmem:[%s1 + $0x438] sm:$0xff]
    %v161 = vld [vmem:[%s1 + $0x440] sm:$0xff]
    %v162 = vld [vmem:[%s1 + $0x448] sm:$0xff]
    %v163 = vld [vmem:[%s1 + $0x450] sm:$0xff]
    %v164 = vld [vmem:[%s1 + $0x458] sm:$0xff]
    %v165 = vld [vmem:[%s1 + $0x460] sm:$0xff]
    %v166 = vld [vmem:[%s1 + $0x468] sm:$0xff]
    %v167 = vld [vmem:[%s1 + $0x470] sm:$0xff]
    %v168 = vld [vmem:[%s1 + $0x478] sm:$0xff]
    %v169 = vld [vmem:[%s1 + $0x480] sm:$0xff]
    %v170 = vld [vmem:[%s1 + $0x488] sm:$0xff]
    %v171 = vld [vmem:[%s1 + $0x490] sm:$0xff]
    %v172 = vld [vmem:[%s1 + $0x498] sm:$0xff]
    %v173 = vld [vmem:[%s1 + $0x4a0] sm:$0xff]
    %v174 = vld [vmem:[%s1 + $0x4a8] sm:$0xff]
    %v175 = vld [vmem:[%s1 + $0x4b0] sm:$0xff]
    %v176 = vld [vmem:[%s1 + $0x4b8] sm:$0xff]
    %v177 = vld [vmem:[%s1 + $0x4c0] sm:$0xff]
    %v178 = vld [vmem:[%s1 + $0x4c8] sm:$0xff]
    %v179 = vld [vmem:[%s1 + $0x4d0] sm:$0xff]
    %v180 = vld [vmem:[%s1 + $0x4d8] sm:$0xff]
    %v181 = vld [vmem:[%s1 + $0x4e0] sm:$0xff]
    %v182 = vld [vmem:[%s1 + $0x4e8] sm:$0xff]
    %v183 = vld [vmem:[%s1 + $0x4f0] sm:$0xff]
    %v184 = vld [vmem:[%s1 + $0x4f8] sm:$0xff]
    %v185 = vld [vmem:[%s1 + $0x500] sm:$0xff]
    %v186 = vld [vmem:[%s1 + $0x508] sm:$0xff]
    %v187 = vld [vmem:[%s1 + $0x510] sm:$0xff]
    %v188 = vld [vmem:[%s1 + $0x518] sm:$0xff]
    %v189 = vld [vmem:[%s1 + $0x520] sm:$0xff]
    %v190 = vld [vmem:[%s1 + $0x528] sm:$0xff]
    %v191 = vld [vmem:[%s1 + $0x530] sm:$0xff]
    %v192 = vld [vmem:[%s1 + $0x538] sm:$0xff]
    %v193 = vld [vmem:[%s1 + $0x540] sm:$0xff]
    %v194 = vld [vmem:[%s1 + $0x548] sm:$0xff]
    %v195 = vld [vmem:[%s1 + $0x550] sm:$0xff]
    %v196 = vld [vmem:[%s1 + $0x558] sm:$0xff]
    %v197 = vld [vmem:[%s1 + $0x560] sm:$0xff]
    %v198 = vld [vmem:[%s1 + $0x568] sm:$0xff]
    %v199 = vld [vmem:[%s1 + $0x570] sm:$0xff]
    %v200 = vld [vmem:[%s1 + $0x578] sm:$0xff]
    %v201 = vld [vmem:[%s1 + $0x580] sm:$0xff]
    %v202 = vld [vmem:[%s1 + $0x588] sm:$0xff]
    %v203 = vld [vmem:[%s1 + $0x590] sm:$0xff]
    %v204 = vld [vmem:[%s1 + $0x598] sm:$0xff]
    %v205 = vld [vmem:[%s1 + $0x5a0] sm:$0xff]
    %v206 = vld [vmem:[%s1 + $0x5a8] sm:$0xff]
    %v207 = vld [vmem:[%s1 + $0x5b0] sm:$0xff]
    %v208 = vld [vmem:[%s1 + $0x5b8] sm:$0xff]
    %v209 = vld [vmem:[%s1 + $0x5c0] sm:$0xff]
    %v210 = vld [vmem:[%s1 + $0x5c8] sm:$0xff]
    %v211 = vld [vmem:[%s1 + $0x5d0] sm:$0xff]
    %v212 = vld [vmem:[%s1 + $0x5d8] sm:$0xff]
    %v213 = vld [vmem:[%s1 + $0x5e0] sm:$0xff]
    %v214 = vld [vmem:[%s1 + $0x5e8] sm:$0xff]
    %v215 = vld [vmem:[%s1 + $0x5f0] sm:$0xff]
    %v216 = vld [vmem:[%s1 + $0x5f8] sm:$0xff]
    %v217 = vld [vmem:[%s1 + $0x600] sm:$0xff]
    %v218 = vld [vmem:[%s1 + $0x608] sm:$0xff]
    %v219 = vld [vmem:[%s1 + $0x610] sm:$0xff]
    %v220 = vld [vmem:[%s1 + $0x618] sm:$0xff]
    %v221 = vld [vmem:[%s1 + $0x620] sm:$0xff]
    %v222 = vld [vmem:[%s1 + $0x628] sm:$0xff]
    %v223 = vld [vmem:[%s1 + $0x630] sm:$0xff]
    %v224 = vld [vmem:[%s1 + $0x638] sm:$0xff]
    %v225 = vld [vmem:[%s2] sm:$0x1]
    %v227 = vlaneseq
    %v228 = vshrl.u32 %v227, 7
    %v229 = vsub.s32 0, %v228
    %v230 = vrot.slane %v225, %v229
    %v236 = vcombine.high %v21, %v21
    %v238 = vunpack.c.l.s4 1983009808
    %v239 = vunpack.c.0.s8 %v238
    %v240 = vlaneseq
    %v241 = vshrl.u32 %v240, 7
    %v242 = vsub.s32 %v239, %v241
    %v243 = vrot.slane %v21, %v242
    %v245 = vunpack.c.l.s4 1983009808
    %v246 = vunpack.c.0.s8 %v245
    %v247 = vlaneseq
    %v248 = vshrl.u32 %v247, 7
    %v249 = vsub.s32 %v246, %v248
    %v250 = vrot.slane %v236, %v249
    %v251 = vcombine.high %v243, %v243
    %v252 = vcombine.high %v250, %v250
    %v253 = vcombine.high %v22, %v22
    %v255 = vunpack.c.l.s4 1983009808
    %v256 = vunpack.c.0.s8 %v255
    %v257 = vlaneseq
    %v258 = vshrl.u32 %v257, 7
    %v259 = vsub.s32 %v256, %v258
    %v260 = vrot.slane %v22, %v259
    %v262 = vunpack.c.l.s4 1983009808
    %v263 = vunpack.c.0.s8 %v262
    %v264 = vlaneseq
    %v265 = vshrl.u32 %v264, 7
    %v266 = vsub.s32 %v263, %v265
    %v267 = vrot.slane %v253, %v266
    %v268 = vcombine.high %v260, %v260
    %v269 = vcombine.high %v267, %v267
    %v270 = vcombine.high %v23, %v23
    %v272 = vunpack.c.l.s4 1983009808
    %v273 = vunpack.c.0.s8 %v272
    %v274 = vlaneseq
    %v275 = vshrl.u32 %v274, 7
    %v276 = vsub.s32 %v273, %v275
    %v277 = vrot.slane %v23, %v276
    %v279 = vunpack.c.l.s4 1983009808
    %v280 = vunpack.c.0.s8 %v279
    %v281 = vlaneseq
    %v282 = vshrl.u32 %v281, 7
    %v283 = vsub.s32 %v280, %v282
    %v284 = vrot.slane %v270, %v283
    %v285 = vcombine.high %v277, %v277
    %v286 = vcombine.high %v284, %v284
    %v288 = vunpack.c.l.s4 1983009808
    %v289 = vunpack.c.0.s8 %v288
    %v290 = vlaneseq
    %v291 = vshrl.u32 %v290, 7
    %v292 = vsub.s32 %v289, %v291
    %v293 = vrot.slane %v24, %v292
    %vm306 = vcmask 523264
    %v307 = vsel %vm306, %v293, 0
    %309 = vmatprep.subr.mxu0 0.0
    %310 = vmatpush1.msra.mxu0 %v25
    %311 = vmatprep.subr.mxu0 0.0
    %312 = vmatpush1.msra.mxu0 %v26
    %313 = vmatprep.subr.mxu0 0.0
    %314 = vmatpush1.msra.mxu0 %v27
    %315 = vmatprep.subr.mxu0 0.0
    %316 = vmatpush1.msra.mxu0 %v28
    %317 = vmatprep.subr.mxu0 0.0
    %318 = vmatpush1.msra.mxu0 %v29
    %319 = vmatprep.subr.mxu0 0.0
    %320 = vmatpush1.msra.mxu0 %v30
    %321 = vmatprep.subr.mxu0 0.0
    %322 = vmatpush1.msra.mxu0 %v31
    %323 = vmatprep.subr.mxu0 0.0
    %324 = vmatpush1.msra.mxu0 %v32
    %325 = vmatprep.subr.mxu0 0.0
    %326 = vmatpush1.msra.mxu0 %v33
    %327 = vmatprep.subr.mxu0 0.0
    %328 = vmatpush1.msra.mxu0 %v34
    %329 = vmatprep.subr.mxu0 0.0
    %330 = vmatpush1.msra.mxu0 %v35
    %331 = vmatprep.subr.mxu0 0.0
    %332 = vmatpush1.msra.mxu0 %v36
    %333 = vmatprep.subr.mxu0 0.0
    %334 = vmatpush1.msra.mxu0 %v37
    %335 = vmatprep.subr.mxu0 0.0
    %336 = vmatpush1.msra.mxu0 %v38
    %337 = vmatprep.subr.mxu0 0.0
    %338 = vmatpush1.msra.mxu0 %v39
    %339 = vmatprep.subr.mxu0 0.0
    %340 = vmatpush1.msra.mxu0 %v40
    %341 = vmatprep.subr.mxu0 0.0
    %342 = vmatpush1.msra.mxu0 %v41
    %343 = vmatprep.subr.mxu0 0.0
    %344 = vmatpush1.msra.mxu0 %v42
    %345 = vmatprep.subr.mxu0 0.0
    %346 = vmatpush1.msra.mxu0 %v43
    %347 = vmatprep.subr.mxu0 0.0
    %348 = vmatpush1.msra.mxu0 %v44
    %349 = vmatprep.subr.mxu0 0.0
    %350 = vmatpush1.msra.mxu0 %v45
    %351 = vmatprep.subr.mxu0 0.0
    %352 = vmatpush1.msra.mxu0 %v46
    %353 = vmatprep.subr.mxu0 0.0
    %354 = vmatpush1.msra.mxu0 %v47
    %355 = vmatprep.subr.mxu0 0.0
    %356 = vmatpush1.msra.mxu0 %v48
    %357 = vmatprep.subr.mxu0 0.0
    %358 = vmatpush1.msra.mxu0 %v49
    %359 = vmatprep.subr.mxu0 0.0
    %360 = vmatpush1.msra.mxu0 %v50
    %361 = vmatprep.subr.mxu0 0.0
    %362 = vmatpush1.msra.mxu0 %v51
    %363 = vmatprep.subr.mxu0 0.0
    %364 = vmatpush1.msra.mxu0 %v52
    %365 = vmatprep.subr.mxu0 0.0
    %366 = vmatpush1.msra.mxu0 %v53
    %367 = vmatprep.subr.mxu0 0.0
    %368 = vmatpush1.msra.mxu0 %v54
    %369 = vmatprep.subr.mxu0 0.0
    %370 = vmatpush1.msra.mxu0 %v55
    %371 = vmatprep.subr.mxu0 0.0
    %372 = vmatpush1.msra.mxu0 %v56
    %373 = vmatprep.mubr.f32.mxu0 %v251
    %374 = vmatmul.mubr.f32.gmra.mrb[0].mxu0 %v243
    %v375 = vpop.f32.mrb[0].mxu0
    %v376 = vadd.f32 %v230, %v375
    %v377 = vpop.f32.mrb[0].mxu0
    %378 = vdwg.mxu0
    %379 = vmatprep.subr.mxu0 0.0
    %380 = vmatpush1.msra.mxu0 %v57
    %381 = vmatprep.subr.mxu0 0.0
    %382 = vmatpush1.msra.mxu0 %v58
    %383 = vmatprep.subr.mxu0 0.0
    %384 = vmatpush1.msra.mxu0 %v59
    %385 = vmatprep.subr.mxu0 0.0
    %386 = vmatpush1.msra.mxu0 %v60
    %387 = vmatprep.subr.mxu0 0.0
    %388 = vmatpush1.msra.mxu0 %v61
    %389 = vmatprep.subr.mxu0 0.0
    %390 = vmatpush1.msra.mxu0 %v62
    %391 = vmatprep.subr.mxu0 0.0
    %392 = vmatpush1.msra.mxu0 %v63
    %393 = vmatprep.subr.mxu0 0.0
    %394 = vmatpush1.msra.mxu0 %v64
    %395 = vmatprep.subr.mxu0 0.0
    %396 = vmatpush1.msra.mxu0 %v65
    %397 = vmatprep.subr.mxu0 0.0
    %398 = vmatpush1.msra.mxu0 %v66
    %399 = vmatprep.subr.mxu0 0.0
    %400 = vmatpush1.msra.mxu0 %v67
    %401 = vmatprep.subr.mxu0 0.0
    %402 = vmatpush1.msra.mxu0 %v68
    %403 = vmatprep.subr.mxu0 0.0
    %404 = vmatpush1.msra.mxu0 %v69
    %405 = vmatprep.subr.mxu0 0.0
    %406 = vmatpush1.msra.mxu0 %v70
    %407 = vmatprep.subr.mxu0 0.0
    %408 = vmatpush1.msra.mxu0 %v71
    %409 = vmatprep.subr.mxu0 0.0
    %410 = vmatpush1.msra.mxu0 %v72
    %411 = vmatprep.subr.mxu0 0.0
    %412 = vmatpush1.msra.mxu0 %v73
    %413 = vmatprep.subr.mxu0 0.0
    %414 = vmatpush1.msra.mxu0 %v74
    %415 = vmatprep.subr.mxu0 0.0
    %416 = vmatpush1.msra.mxu0 %v75
    %417 = vmatprep.subr.mxu0 0.0
    %418 = vmatpush1.msra.mxu0 %v76
    %419 = vmatprep.subr.mxu0 0.0
    %420 = vmatpush1.msra.mxu0 %v77
    %421 = vmatprep.subr.mxu0 0.0
    %422 = vmatpush1.msra.mxu0 %v78
    %423 = vmatprep.subr.mxu0 0.0
    %424 = vmatpush1.msra.mxu0 %v79
    %425 = vmatprep.subr.mxu0 0.0
    %426 = vmatpush1.msra.mxu0 %v80
    %427 = vmatprep.subr.mxu0 0.0
    %428 = vmatpush1.msra.mxu0 %v81
    %429 = vmatprep.subr.mxu0 0.0
    %430 = vmatpush1.msra.mxu0 %v82
    %431 = vmatprep.subr.mxu0 0.0
    %432 = vmatpush1.msra.mxu0 %v83
    %433 = vmatprep.subr.mxu0 0.0
    %434 = vmatpush1.msra.mxu0 %v84
    %435 = vmatprep.subr.mxu0 0.0
    %436 = vmatpush1.msra.mxu0 %v85
    %437 = vmatprep.subr.mxu0 0.0
    %438 = vmatpush1.msra.mxu0 %v86
    %439 = vmatprep.subr.mxu0 0.0
    %440 = vmatpush1.msra.mxu0 %v87
    %441 = vmatprep.subr.mxu0 0.0
    %442 = vmatpush1.msra.mxu0 %v88
    %443 = vmatprep.mubr.f32.mxu0 %v252
    %444 = vmatmul.mubr.f32.gmra.mrb[0].mxu0 %v250
    %v445 = vpop.f32.mrb[0].mxu0
    %v446 = vadd.f32 %v376, %v445
    %v447 = vpop.f32.mrb[0].mxu0
    %448 = vdwg.mxu0
    %449 = vmatprep.subr.mxu0 0.0
    %450 = vmatpush1.msra.mxu0 %v89
    %451 = vmatprep.subr.mxu0 0.0
    %452 = vmatpush1.msra.mxu0 %v90
    %453 = vmatprep.subr.mxu0 0.0
    %454 = vmatpush1.msra.mxu0 %v91
    %455 = vmatprep.subr.mxu0 0.0
    %456 = vmatpush1.msra.mxu0 %v92
    %457 = vmatprep.subr.mxu0 0.0
    %458 = vmatpush1.msra.mxu0 %v93
    %459 = vmatprep.subr.mxu0 0.0
    %460 = vmatpush1.msra.mxu0 %v94
    %461 = vmatprep.subr.mxu0 0.0
    %462 = vmatpush1.msra.mxu0 %v95
    %463 = vmatprep.subr.mxu0 0.0
    %464 = vmatpush1.msra.mxu0 %v96
    %465 = vmatprep.subr.mxu0 0.0
    %466 = vmatpush1.msra.mxu0 %v97
    %467 = vmatprep.subr.mxu0 0.0
    %468 = vmatpush1.msra.mxu0 %v98
    %469 = vmatprep.subr.mxu0 0.0
    %470 = vmatpush1.msra.mxu0 %v99
    %471 = vmatprep.subr.mxu0 0.0
    %472 = vmatpush1.msra.mxu0 %v100
    %473 = vmatprep.subr.mxu0 0.0
    %474 = vmatpush1.msra.mxu0 %v101
    %475 = vmatprep.subr.mxu0 0.0
    %476 = vmatpush1.msra.mxu0 %v102
    %477 = vmatprep.subr.mxu0 0.0
    %478 = vmatpush1.msra.mxu0 %v103
    %479 = vmatprep.subr.mxu0 0.0
    %480 = vmatpush1.msra.mxu0 %v104
    %481 = vmatprep.subr.mxu0 0.0
    %482 = vmatpush1.msra.mxu0 %v105
    %483 = vmatprep.subr.mxu0 0.0
    %484 = vmatpush1.msra.mxu0 %v106
    %485 = vmatprep.subr.mxu0 0.0
    %486 = vmatpush1.msra.mxu0 %v107
    %487 = vmatprep.subr.mxu0 0.0
    %488 = vmatpush1.msra.mxu0 %v108
    %489 = vmatprep.subr.mxu0 0.0
    %490 = vmatpush1.msra.mxu0 %v109
    %491 = vmatprep.subr.mxu0 0.0
    %492 = vmatpush1.msra.mxu0 %v110
    %493 = vmatprep.subr.mxu0 0.0
    %494 = vmatpush1.msra.mxu0 %v111
    %495 = vmatprep.subr.mxu0 0.0
    %496 = vmatpush1.msra.mxu0 %v112
    %497 = vmatprep.subr.mxu0 0.0
    %498 = vmatpush1.msra.mxu0 %v113
    %499 = vmatprep.subr.mxu0 0.0
    %500 = vmatpush1.msra.mxu0 %v114
    %501 = vmatprep.subr.mxu0 0.0
    %502 = vmatpush1.msra.mxu0 %v115
    %503 = vmatprep.subr.mxu0 0.0
    %504 = vmatpush1.msra.mxu0 %v116
    %505 = vmatprep.subr.mxu0 0.0
    %506 = vmatpush1.msra.mxu0 %v117
    %507 = vmatprep.subr.mxu0 0.0
    %508 = vmatpush1.msra.mxu0 %v118
    %509 = vmatprep.subr.mxu0 0.0
    %510 = vmatpush1.msra.mxu0 %v119
    %511 = vmatprep.subr.mxu0 0.0
    %512 = vmatpush1.msra.mxu0 %v120
    %513 = vmatprep.mubr.f32.mxu0 %v268
    %514 = vmatmul.mubr.f32.gmra.mrb[0].mxu0 %v260
    %v515 = vpop.f32.mrb[0].mxu0
    %v516 = vadd.f32 %v446, %v515
    %v517 = vpop.f32.mrb[0].mxu0
    %518 = vdwg.mxu0
    %519 = vmatprep.subr.mxu0 0.0
    %520 = vmatpush1.msra.mxu0 %v121
    %521 = vmatprep.subr.mxu0 0.0
    %522 = vmatpush1.msra.mxu0 %v122
    %523 = vmatprep.subr.mxu0 0.0
    %524 = vmatpush1.msra.mxu0 %v123
    %525 = vmatprep.subr.mxu0 0.0
    %526 = vmatpush1.msra.mxu0 %v124
    %527 = vmatprep.subr.mxu0 0.0
    %528 = vmatpush1.msra.mxu0 %v125
    %529 = vmatprep.subr.mxu0 0.0
    %530 = vmatpush1.msra.mxu0 %v126
    %531 = vmatprep.subr.mxu0 0.0
    %532 = vmatpush1.msra.mxu0 %v127
    %533 = vmatprep.subr.mxu0 0.0
    %534 = vmatpush1.msra.mxu0 %v128
    %535 = vmatprep.subr.mxu0 0.0
    %536 = vmatpush1.msra.mxu0 %v129
    %537 = vmatprep.subr.mxu0 0.0
    %538 = vmatpush1.msra.mxu0 %v130
    %539 = vmatprep.subr.mxu0 0.0
    %540 = vmatpush1.msra.mxu0 %v131
    %541 = vmatprep.subr.mxu0 0.0
    %542 = vmatpush1.msra.mxu0 %v132
    %543 = vmatprep.subr.mxu0 0.0
    %544 = vmatpush1.msra.mxu0 %v133
    %545 = vmatprep.subr.mxu0 0.0
    %546 = vmatpush1.msra.mxu0 %v134
    %547 = vmatprep.subr.mxu0 0.0
    %548 = vmatpush1.msra.mxu0 %v135
    %549 = vmatprep.subr.mxu0 0.0
    %550 = vmatpush1.msra.mxu0 %v136
    %551 = vmatprep.subr.mxu0 0.0
    %552 = vmatpush1.msra.mxu0 %v137
    %553 = vmatprep.subr.mxu0 0.0
    %554 = vmatpush1.msra.mxu0 %v138
    %555 = vmatprep.subr.mxu0 0.0
    %556 = vmatpush1.msra.mxu0 %v139
    %557 = vmatprep.subr.mxu0 0.0
    %558 = vmatpush1.msra.mxu0 %v140
    %559 = vmatprep.subr.mxu0 0.0
    %560 = vmatpush1.msra.mxu0 %v141
    %561 = vmatprep.subr.mxu0 0.0
    %562 = vmatpush1.msra.mxu0 %v142
    %563 = vmatprep.subr.mxu0 0.0
    %564 = vmatpush1.msra.mxu0 %v143
    %565 = vmatprep.subr.mxu0 0.0
    %566 = vmatpush1.msra.mxu0 %v144
    %567 = vmatprep.subr.mxu0 0.0
    %568 = vmatpush1.msra.mxu0 %v145
    %569 = vmatprep.subr.mxu0 0.0
    %570 = vmatpush1.msra.mxu0 %v146
    %571 = vmatprep.subr.mxu0 0.0
    %572 = vmatpush1.msra.mxu0 %v147
    %573 = vmatprep.subr.mxu0 0.0
    %574 = vmatpush1.msra.mxu0 %v148
    %575 = vmatprep.subr.mxu0 0.0
    %576 = vmatpush1.msra.mxu0 %v149
    %577 = vmatprep.subr.mxu0 0.0
    %578 = vmatpush1.msra.mxu0 %v150
    %579 = vmatprep.subr.mxu0 0.0
    %580 = vmatpush1.msra.mxu0 %v151
    %581 = vmatprep.subr.mxu0 0.0
    %582 = vmatpush1.msra.mxu0 %v152
    %583 = vmatprep.mubr.f32.mxu0 %v269
    %584 = vmatmul.mubr.f32.gmra.mrb[0].mxu0 %v267
    %v585 = vpop.f32.mrb[0].mxu0
    %v586 = vadd.f32 %v516, %v585
    %v587 = vpop.f32.mrb[0].mxu0
    %588 = vdwg.mxu0
    %589 = vmatprep.subr.mxu0 0.0
    %590 = vmatpush1.msra.mxu0 %v153
    %591 = vmatprep.subr.mxu0 0.0
    %592 = vmatpush1.msra.mxu0 %v154
    %593 = vmatprep.subr.mxu0 0.0
    %594 = vmatpush1.msra.mxu0 %v155
    %595 = vmatprep.subr.mxu0 0.0
    %596 = vmatpush1.msra.mxu0 %v156
    %597 = vmatprep.subr.mxu0 0.0
    %598 = vmatpush1.msra.mxu0 %v157
    %599 = vmatprep.subr.mxu0 0.0
    %600 = vmatpush1.msra.mxu0 %v158
    %601 = vmatprep.subr.mxu0 0.0
    %602 = vmatpush1.msra.mxu0 %v159
    %603 = vmatprep.subr.mxu0 0.0
    %604 = vmatpush1.msra.mxu0 %v160
    %605 = vmatprep.subr.mxu0 0.0
    %606 = vmatpush1.msra.mxu0 %v161
    %607 = vmatprep.subr.mxu0 0.0
    %608 = vmatpush1.msra.mxu0 %v162
    %609 = vmatprep.subr.mxu0 0.0
    %610 = vmatpush1.msra.mxu0 %v163
    %611 = vmatprep.subr.mxu0 0.0
    %612 = vmatpush1.msra.mxu0 %v164
    %613 = vmatprep.subr.mxu0 0.0
    %614 = vmatpush1.msra.mxu0 %v165
    %615 = vmatprep.subr.mxu0 0.0
    %616 = vmatpush1.msra.mxu0 %v166
    %617 = vmatprep.subr.mxu0 0.0
    %618 = vmatpush1.msra.mxu0 %v167
    %619 = vmatprep.subr.mxu0 0.0
    %620 = vmatpush1.msra.mxu0 %v168
    %621 = vmatprep.subr.mxu0 0.0
    %622 = vmatpush1.msra.mxu0 %v169
    %623 = vmatprep.subr.mxu0 0.0
    %624 = vmatpush1.msra.mxu0 %v170
    %625 = vmatprep.subr.mxu0 0.0
    %626 = vmatpush1.msra.mxu0 %v171
    %627 = vmatprep.subr.mxu0 0.0
    %628 = vmatpush1.msra.mxu0 %v172
    %629 = vmatprep.subr.mxu0 0.0
    %630 = vmatpush1.msra.mxu0 %v173
    %631 = vmatprep.subr.mxu0 0.0
    %632 = vmatpush1.msra.mxu0 %v174
    %633 = vmatprep.subr.mxu0 0.0
    %634 = vmatpush1.msra.mxu0 %v175
    %635 = vmatprep.subr.mxu0 0.0
    %636 = vmatpush1.msra.mxu0 %v176
    %637 = vmatprep.subr.mxu0 0.0
    %638 = vmatpush1.msra.mxu0 %v177
    %639 = vmatprep.subr.mxu0 0.0
    %640 = vmatpush1.msra.mxu0 %v178
    %641 = vmatprep.subr.mxu0 0.0
    %642 = vmatpush1.msra.mxu0 %v179
    %643 = vmatprep.subr.mxu0 0.0
    %644 = vmatpush1.msra.mxu0 %v180
    %645 = vmatprep.subr.mxu0 0.0
    %646 = vmatpush1.msra.mxu0 %v181
    %647 = vmatprep.subr.mxu0 0.0
    %648 = vmatpush1.msra.mxu0 %v182
    %649 = vmatprep.subr.mxu0 0.0
    %650 = vmatpush1.msra.mxu0 %v183
    %651 = vmatprep.subr.mxu0 0.0
    %652 = vmatpush1.msra.mxu0 %v184
    %653 = vmatprep.mubr.f32.mxu0 %v285
    %654 = vmatmul.mubr.f32.gmra.mrb[0].mxu0 %v277
    %v655 = vpop.f32.mrb[0].mxu0
    %v656 = vadd.f32 %v586, %v655
    %v657 = vpop.f32.mrb[0].mxu0
    %658 = vdwg.mxu0
    %659 = vmatprep.subr.mxu0 0.0
    %660 = vmatpush1.msra.mxu0 %v185
    %661 = vmatprep.subr.mxu0 0.0
    %662 = vmatpush1.msra.mxu0 %v186
    %663 = vmatprep.subr.mxu0 0.0
    %664 = vmatpush1.msra.mxu0 %v187
    %665 = vmatprep.subr.mxu0 0.0
    %666 = vmatpush1.msra.mxu0 %v188
    %667 = vmatprep.subr.mxu0 0.0
    %668 = vmatpush1.msra.mxu0 %v189
    %669 = vmatprep.subr.mxu0 0.0
    %670 = vmatpush1.msra.mxu0 %v190
    %671 = vmatprep.subr.mxu0 0.0
    %672 = vmatpush1.msra.mxu0 %v191
    %673 = vmatprep.subr.mxu0 0.0
    %674 = vmatpush1.msra.mxu0 %v192
    %675 = vmatprep.subr.mxu0 0.0
    %676 = vmatpush1.msra.mxu0 %v193
    %677 = vmatprep.subr.mxu0 0.0
    %678 = vmatpush1.msra.mxu0 %v194
    %679 = vmatprep.subr.mxu0 0.0
    %680 = vmatpush1.msra.mxu0 %v195
    %681 = vmatprep.subr.mxu0 0.0
    %682 = vmatpush1.msra.mxu0 %v196
    %683 = vmatprep.subr.mxu0 0.0
    %684 = vmatpush1.msra.mxu0 %v197
    %685 = vmatprep.subr.mxu0 0.0
    %686 = vmatpush1.msra.mxu0 %v198
    %687 = vmatprep.subr.mxu0 0.0
    %688 = vmatpush1.msra.mxu0 %v199
    %689 = vmatprep.subr.mxu0 0.0
    %690 = vmatpush1.msra.mxu0 %v200
    %691 = vmatprep.subr.mxu0 0.0
    %692 = vmatpush1.msra.mxu0 %v201
    %693 = vmatprep.subr.mxu0 0.0
    %694 = vmatpush1.msra.mxu0 %v202
    %695 = vmatprep.subr.mxu0 0.0
    %696 = vmatpush1.msra.mxu0 %v203
    %697 = vmatprep.subr.mxu0 0.0
    %698 = vmatpush1.msra.mxu0 %v204
    %699 = vmatprep.subr.mxu0 0.0
    %700 = vmatpush1.msra.mxu0 %v205
    %701 = vmatprep.subr.mxu0 0.0
    %702 = vmatpush1.msra.mxu0 %v206
    %703 = vmatprep.subr.mxu0 0.0
    %704 = vmatpush1.msra.mxu0 %v207
    %705 = vmatprep.subr.mxu0 0.0
    %706 = vmatpush1.msra.mxu0 %v208
    %707 = vmatprep.subr.mxu0 0.0
    %708 = vmatpush1.msra.mxu0 %v209
    %709 = vmatprep.subr.mxu0 0.0
    %710 = vmatpush1.msra.mxu0 %v210
    %711 = vmatprep.subr.mxu0 0.0
    %712 = vmatpush1.msra.mxu0 %v211
    %713 = vmatprep.subr.mxu0 0.0
    %714 = vmatpush1.msra.mxu0 %v212
    %715 = vmatprep.subr.mxu0 0.0
    %716 = vmatpush1.msra.mxu0 %v213
    %717 = vmatprep.subr.mxu0 0.0
    %718 = vmatpush1.msra.mxu0 %v214
    %719 = vmatprep.subr.mxu0 0.0
    %720 = vmatpush1.msra.mxu0 %v215
    %721 = vmatprep.subr.mxu0 0.0
    %722 = vmatpush1.msra.mxu0 %v216
    %723 = vmatprep.mubr.f32.mxu0 %v286
    %724 = vmatmul.mubr.f32.gmra.mrb[0].mxu0 %v284
    %v725 = vpop.f32.mrb[0].mxu0
    %v726 = vadd.f32 %v656, %v725
    %v727 = vpop.f32.mrb[0].mxu0
    %728 = vdwg.mxu0
    %729 = vmatprep.subr.mxu0 0.0
    %730 = vmatpush1.msra.mxu0 %v217
    %731 = vmatprep.subr.mxu0 0.0
    %732 = vmatpush1.msra.mxu0 %v218
    %733 = vmatprep.subr.mxu0 0.0
    %734 = vmatpush1.msra.mxu0 %v219
    %735 = vmatprep.subr.mxu0 0.0
    %736 = vmatpush1.msra.mxu0 %v220
    %737 = vmatprep.subr.mxu0 0.0
    %738 = vmatpush1.msra.mxu0 %v221
    %739 = vmatprep.subr.mxu0 0.0
    %740 = vmatpush1.msra.mxu0 %v222
    %741 = vmatprep.subr.mxu0 0.0
    %742 = vmatpush1.msra.mxu0 %v223
    %743 = vmatprep.subr.mxu0 0.0
    %744 = vmatpush1.msra.mxu0 %v224
    %745 = vmatprep.subr.mxu0 0.0
    %746 = vmatpush1.msra.mxu0 0.0
    %747 = vmatprep.subr.mxu0 0.0
    %748 = vmatpush1.msra.mxu0 0.0
    %749 = vmatprep.subr.mxu0 0.0
    %750 = vmatpush1.msra.mxu0 0.0
    %751 = vmatprep.subr.mxu0 0.0
    %752 = vmatpush1.msra.mxu0 0.0
    %753 = vmatprep.subr.mxu0 0.0
    %754 = vmatpush1.msra.mxu0 0.0
    %755 = vmatprep.subr.mxu0 0.0
    %756 = vmatpush1.msra.mxu0 0.0
    %757 = vmatprep.subr.mxu0 0.0
    %758 = vmatpush1.msra.mxu0 0.0
    %759 = vmatprep.subr.mxu0 0.0
    %760 = vmatpush1.msra.mxu0 0.0
    %761 = vmatprep.subr.mxu0 0.0
    %762 = vmatpush1.msra.mxu0 0.0
    %763 = vmatprep.subr.mxu0 0.0
    %764 = vmatpush1.msra.mxu0 0.0
    %765 = vmatprep.subr.mxu0 0.0
    %766 = vmatpush1.msra.mxu0 0.0
    %767 = vmatprep.subr.mxu0 0.0
    %768 = vmatpush1.msra.mxu0 0.0
    %769 = vmatprep.subr.mxu0 0.0
    %770 = vmatpush1.msra.mxu0 0.0
    %771 = vmatprep.subr.mxu0 0.0
    %772 = vmatpush1.msra.mxu0 0.0
    %773 = vmatprep.subr.mxu0 0.0
    %774 = vmatpush1.msra.mxu0 0.0
    %775 = vmatprep.subr.mxu0 0.0
    %776 = vmatpush1.msra.mxu0 0.0
    %777 = vmatprep.subr.mxu0 0.0
    %778 = vmatpush1.msra.mxu0 0.0
    %779 = vmatprep.subr.mxu0 0.0
    %780 = vmatpush1.msra.mxu0 0.0
    %781 = vmatprep.subr.mxu0 0.0
    %782 = vmatpush1.msra.mxu0 0.0
    %783 = vmatprep.subr.mxu0 0.0
    %784 = vmatpush1.msra.mxu0 0.0
    %785 = vmatprep.subr.mxu0 0.0
    %786 = vmatpush1.msra.mxu0 0.0
    %787 = vmatprep.subr.mxu0 0.0
    %788 = vmatpush1.msra.mxu0 0.0
    %789 = vmatprep.subr.mxu0 0.0
    %790 = vmatpush1.msra.mxu0 0.0
    %791 = vmatprep.subr.mxu0 0.0
    %792 = vmatpush1.msra.mxu0 0.0
    %793 = vmatprep.mubr.f32.mxu0 0.0
    %794 = vmatmul.mubr.f32.gmra.mrb[0].mxu0 %v307
    %v795 = vpop.f32.mrb[0].mxu0
    %v796 = vadd.f32 %v726, %v795
    %v797 = vpop.f32.mrb[0].mxu0
    %798 = vdwg.mxu0
    %v799 = vmax.f32 %v796, 0.0
    %v800 = vld [vmem:[%s3] sm:$0xff]
    %v801 = vld [vmem:[%s3 + $0x8] sm:$0xff]
    %v802 = vld [vmem:[%s3 + $0x10] sm:$0xff]
    %v803 = vld [vmem:[%s3 + $0x18] sm:$0xff]
    %v804 = vld [vmem:[%s3 + $0x20] sm:$0xff]
    %v805 = vld [vmem:[%s3 + $0x28] sm:$0xff]
    %v806 = vld [vmem:[%s3 + $0x30] sm:$0xff]
    %v807 = vld [vmem:[%s3 + $0x38] sm:$0xff]
    %v808 = vld [vmem:[%s3 + $0x40] sm:$0xff]
    %v809 = vld [vmem:[%s3 + $0x48] sm:$0xff]
    %v810 = vld [vmem:[%s3 + $0x50] sm:$0xff]
    %v811 = vld [vmem:[%s3 + $0x58] sm:$0xff]
    %v812 = vld [vmem:[%s3 + $0x60] sm:$0xff]
    %v813 = vld [vmem:[%s3 + $0x68] sm:$0xff]
    %v814 = vld [vmem:[%s3 + $0x70] sm:$0xff]
    %v815 = vld [vmem:[%s3 + $0x78] sm:$0xff]
    %v816 = vld [vmem:[%s4] sm:$0x1]
    %v818 = vlaneseq
    %v819 = vshrl.u32 %v818, 7
    %v820 = vsub.s32 0, %v819
    %v821 = vrot.slane %v816, %v820
    %823 = vmatprep.subr.mxu0 0.0
    %824 = vmatpush1.msra.mxu0 %v800
    %825 = vmatprep.subr.mxu0 0.0
    %826 = vmatpush1.msra.mxu0 %v801
    %827 = vmatprep.subr.mxu0 0.0
    %828 = vmatpush1.msra.mxu0 %v802
    %829 = vmatprep.subr.mxu0 0.0
    %830 = vmatpush1.msra.mxu0 %v803
    %831 = vmatprep.subr.mxu0 0.0
    %832 = vmatpush1.msra.mxu0 %v804
    %833 = vmatprep.subr.mxu0 0.0
    %834 = vmatpush1.msra.mxu0 %v805
    %835 = vmatprep.subr.mxu0 0.0
    %836 = vmatpush1.msra.mxu0 %v806
    %837 = vmatprep.subr.mxu0 0.0
    %838 = vmatpush1.msra.mxu0 %v807
    %839 = vmatprep.subr.mxu0 0.0
    %840 = vmatpush1.msra.mxu0 %v808
    %841 = vmatprep.subr.mxu0 0.0
    %842 = vmatpush1.msra.mxu0 %v809
    %843 = vmatprep.subr.mxu0 0.0
    %844 = vmatpush1.msra.mxu0 %v810
    %845 = vmatprep.subr.mxu0 0.0
    %846 = vmatpush1.msra.mxu0 %v811
    %847 = vmatprep.subr.mxu0 0.0
    %848 = vmatpush1.msra.mxu0 %v812
    %849 = vmatprep.subr.mxu0 0.0
    %850 = vmatpush1.msra.mxu0 %v813
    %851 = vmatprep.subr.mxu0 0.0
    %852 = vmatpush1.msra.mxu0 %v814
    %853 = vmatprep.subr.mxu0 0.0
    %854 = vmatpush1.msra.mxu0 %v815
    %855 = vmatprep.subr.mxu0 0.0
    %856 = vmatpush1.msra.mxu0 0.0
    %857 = vmatprep.subr.mxu0 0.0
    %858 = vmatpush1.msra.mxu0 0.0
    %859 = vmatprep.subr.mxu0 0.0
    %860 = vmatpush1.msra.mxu0 0.0
    %861 = vmatprep.subr.mxu0 0.0
    %862 = vmatpush1.msra.mxu0 0.0
    %863 = vmatprep.subr.mxu0 0.0
    %864 = vmatpush1.msra.mxu0 0.0
    %865 = vmatprep.subr.mxu0 0.0
    %866 = vmatpush1.msra.mxu0 0.0
    %867 = vmatprep.subr.mxu0 0.0
    %868 = vmatpush1.msra.mxu0 0.0
    %869 = vmatprep.subr.mxu0 0.0
    %870 = vmatpush1.msra.mxu0 0.0
    %871 = vmatprep.subr.mxu0 0.0
    %872 = vmatpush1.msra.mxu0 0.0
    %873 = vmatprep.subr.mxu0 0.0
    %874 = vmatpush1.msra.mxu0 0.0
    %875 = vmatprep.subr.mxu0 0.0
    %876 = vmatpush1.msra.mxu0 0.0
    %877 = vmatprep.subr.mxu0 0.0
    %878 = vmatpush1.msra.mxu0 0.0
    %879 = vmatprep.subr.mxu0 0.0
    %880 = vmatpush1.msra.mxu0 0.0
    %881 = vmatprep.subr.mxu0 0.0
    %882 = vmatpush1.msra.mxu0 0.0
    %883 = vmatprep.subr.mxu0 0.0
    %884 = vmatpush1.msra.mxu0 0.0
    %885 = vmatprep.subr.mxu0 0.0
    %886 = vmatpush1.msra.mxu0 0.0
    %887 = vmatprep.mubr.f32.mxu0 0.0
    %888 = vmatmul.mubr.f32.gmra.mrb[0].mxu0 %v799
    %v889 = vpop.f32.mrb[0].mxu0
    %v890 = vadd.f32 %v821, %v889
    %v891 = vpop.f32.mrb[0].mxu0
    %892 = vdwg.mxu0
    %893 = vst [vmem:[#allocation2] sm:$0x3] %v890
    // Predicated region
    $region22: #{cnn_forward.3} parent=1 // pred_check
      _
    $region23: #{cnn_forward.3} parent=1 // pred_check_branch
      %895 = sbr.rel (0) target = $region25
    $region24: #{cnn_forward.3} parent=1 // pred_region
      %s897 = ssub.s32 32, 32
      %898 = vsyncadd [#allocation3], %s897
      %s900 = sshll.u32 [#allocation2], 4
      %s901 = int_to_ptr.vmem [resolvable:$true] %s900
      %903 = dma.vmem_to_hbm [thread:$0]  %s901, 32, %s5, [#allocation3]
    $region25: #{cnn_forward.3} parent=1 // pred_fallthru
      _
    // Predicated region
    $region26: #{cnn_forward.3} parent=1 // pred_check
      _
    $region27: #{cnn_forward.3} parent=1 // pred_check_branch
      %905 = sbr.rel (0) target = $region29
    $region28: #{cnn_forward.3} parent=1 // pred_region
      %906 = dma.done [#allocation3], 32
    $region29: #{cnn_forward.3} parent=1 // pred_fallthru
      _
    %907 = vsyncpa [#allocation3], 1

// kernel: cnn_forward.2
$region0: #{cnn_forward.2}
  #allocation0 [shape = 'u32[]', space=smem, size = 0x4, offset = 0x4, fixed_abs, tag = 'smem constant byte address 0x4 - core index']
  #allocation1 [shape = 'u32[144,128]{1,0:T(1,128)}', space=vmem, size = 0x12000, scoped, tag = 'internal scratch']
  %s0 = inlined_call_operand.vmem [shape: f32[2,28,28,1], index: 0, kind: input, shape index: {}]
  %s1 = inlined_call_operand.vmem [shape: f32[9,32], index: 1, kind: input, shape index: {}]
  %s2 = inlined_call_operand.vmem [shape: f32[1,32], index: 2, kind: input, shape index: {}]
  %s3 = inlined_call_operand.vmem [shape: f32[288,64], index: 3, kind: input, shape index: {}]
  %s4 = inlined_call_operand.vmem [shape: f32[1,64], index: 4, kind: input, shape index: {}]
  %s5 = inlined_call_operand.vmem [shape: f32[2,5,5,64], index: 5, kind: output, shape index: {}]
  %s6 = sld [smem:[#allocation0]]
  $region53: #{cnn_forward.2} parent=0
    _
  %s8 = ssub.s32 1, %s6
  %s9 = scalar_select 0, %s8, %s6
  loop: start=0, step=1, limit=4
  $region2: #{cnn_forward.2} parent=0 // loop_pre_header
    _
  $region3: #{cnn_forward.2} parent=0 // loop_header
    %s11 = sphi 0, %s15
    %p12 = scmp.ge.s32.totalorder %s11, 4
    %s21 = sphi 0, %s23
    %s24 = sphi 0, %s21
    %s25 = sphi 0, %s24
    %s41 = sphi 0, %s25
    %s45 = sphi 0, %s45
    %s47 = sphi 0, %s45
    %s48 = sphi 0, %s47
    %s62 = sphi 0, %s48
    %s66 = sphi 0, %s66
    %s68 = sphi 0, %s66
    %s69 = sphi 0, %s68
    %s83 = sphi 0, %s69
    %s87 = sphi 0, %s87
    %s89 = sphi 0, %s87
    %s90 = sphi 0, %s89
    %s104 = sphi 0, %s90
    %s108 = sphi 0, %s108
    %s110 = sphi 0, %s108
    %s111 = sphi 0, %s110
    %s125 = sphi 0, %s111
    %s131 = sphi 0, %s133
    %s134 = sphi 0, %s131
    %s135 = sphi 0, %s134
    %s151 = sphi 0, %s135
  $region4: #{cnn_forward.2} parent=0 // loop_header_branch
    %14 = sbr.rel (%p12) target = $region8
  $region5: #{cnn_forward.2} parent=0 // loop_body
    %s16 = ssub.s32 %s11, 1
    %s17 = ssub.s32 %s11, 2
    %s18 = sadd.s32 %s11, 1
    %s19 = ssub.s32 %s11, %s18
    %p20 = scmp.eq.s32.totalorder %s19, 0
    %s22 = sadd.s32 %s21, 1
    %s23 = scalar_select %p20, %s21, %s22
    %p26 = pneg %p20
    %p27 = scmp.eq.s32.totalorder %s11, 1
    %p28 = por %p26, %p27
    %p29 = scmp.ne.s32.totalorder %s21, %s24
    %p30 = scmp.eq.s32.totalorder %s11, 0
    %p31 = por %p29, %p30
    %p32 = scmp.ne.s32.totalorder %s21, %s24
    %p33 = scmp.eq.s32.totalorder %s16, 1
    %p34 = por %p32, %p33
    %p35 = scmp.ne.s32.totalorder %s24, %s25
    %p36 = scmp.eq.s32.totalorder %s16, 0
    %p37 = por %p35, %p36
    %p38 = scmp.ne.s32.totalorder %s24, %s25
    %p39 = scmp.eq.s32.totalorder %s17, 1
    %p40 = por %p38, %p39
    %p42 = scmp.ne.s32.totalorder %s25, %s41
    %p43 = scmp.eq.s32.totalorder %s17, 0
    %p44 = por %p42, %p43
    %s46 = sadd.s32 %s45, 1
    %p49 = scmp.eq.s32.totalorder %s11, 1
    %p50 = scmp.ne.s32.totalorder %s45, %s47
    %p51 = scmp.eq.s32.totalorder %s11, 0
    %p52 = por %p50, %p51
    %p53 = scmp.ne.s32.totalorder %s45, %s47
    %p54 = scmp.eq.s32.totalorder %s16, 1
    %p55 = por %p53, %p54
    %p56 = scmp.ne.s32.totalorder %s47, %s48
    %p57 = scmp.eq.s32.totalorder %s16, 0
    %p58 = por %p56, %p57
    %p59 = scmp.ne.s32.totalorder %s47, %s48
    %p60 = scmp.eq.s32.totalorder %s17, 1
    %p61 = por %p59, %p60
    %p63 = scmp.ne.s32.totalorder %s48, %s62
    %p64 = scmp.eq.s32.totalorder %s17, 0
    %p65 = por %p63, %p64
    %s67 = sadd.s32 %s66, 1
    %p70 = scmp.eq.s32.totalorder %s11, 1
    %p71 = scmp.ne.s32.totalorder %s66, %s68
    %p72 = scmp.eq.s32.totalorder %s11, 0
    %p73 = por %p71, %p72
    %p74 = scmp.ne.s32.totalorder %s66, %s68
    %p75 = scmp.eq.s32.totalorder %s16, 1
    %p76 = por %p74, %p75
    %p77 = scmp.ne.s32.totalorder %s68, %s69
    %p78 = scmp.eq.s32.totalorder %s16, 0
    %p79 = por %p77, %p78
    %p80 = scmp.ne.s32.totalorder %s68, %s69
    %p81 = scmp.eq.s32.totalorder %s17, 1
    %p82 = por %p80, %p81
    %p84 = scmp.ne.s32.totalorder %s69, %s83
    %p85 = scmp.eq.s32.totalorder %s17, 0
    %p86 = por %p84, %p85
    %s88 = sadd.s32 %s87, 1
    %p91 = scmp.eq.s32.totalorder %s11, 1
    %p92 = scmp.ne.s32.totalorder %s87, %s89
    %p93 = scmp.eq.s32.totalorder %s11, 0
    %p94 = por %p92, %p93
    %p95 = scmp.ne.s32.totalorder %s87, %s89
    %p96 = scmp.eq.s32.totalorder %s16, 1
    %p97 = por %p95, %p96
    %p98 = scmp.ne.s32.totalorder %s89, %s90
    %p99 = scmp.eq.s32.totalorder %s16, 0
    %p100 = por %p98, %p99
    %p101 = scmp.ne.s32.totalorder %s89, %s90
    %p102 = scmp.eq.s32.totalorder %s17, 1
    %p103 = por %p101, %p102
    %p105 = scmp.ne.s32.totalorder %s90, %s104
    %p106 = scmp.eq.s32.totalorder %s17, 0
    %p107 = por %p105, %p106
    %s109 = sadd.s32 %s108, 1
    %p112 = scmp.eq.s32.totalorder %s11, 1
    %p113 = scmp.ne.s32.totalorder %s108, %s110
    %p114 = scmp.eq.s32.totalorder %s11, 0
    %p115 = por %p113, %p114
    %p116 = scmp.ne.s32.totalorder %s108, %s110
    %p117 = scmp.eq.s32.totalorder %s16, 1
    %p118 = por %p116, %p117
    %p119 = scmp.ne.s32.totalorder %s110, %s111
    %p120 = scmp.eq.s32.totalorder %s16, 0
    %p121 = por %p119, %p120
    %p122 = scmp.ne.s32.totalorder %s110, %s111
    %p123 = scmp.eq.s32.totalorder %s17, 1
    %p124 = por %p122, %p123
    %p126 = scmp.ne.s32.totalorder %s111, %s125
    %p127 = scmp.eq.s32.totalorder %s17, 0
    %p128 = por %p126, %p127
    %s129 = ssub.s32 %s11, %s18
    %p130 = scmp.eq.s32.totalorder %s129, 0
    %s132 = sadd.s32 %s131, 1
    %s133 = scalar_select %p130, %s131, %s132
    %p136 = pneg %p130
    %p137 = scmp.eq.s32.totalorder %s11, 1
    %p138 = por %p136, %p137
    %p139 = scmp.ne.s32.totalorder %s131, %s134
    %p140 = scmp.eq.s32.totalorder %s11, 0
    %p141 = por %p139, %p140
    %p142 = scmp.ne.s32.totalorder %s131, %s134
    %p143 = scmp.eq.s32.totalorder %s16, 1
    %p144 = por %p142, %p143
    %p145 = scmp.ne.s32.totalorder %s134, %s135
    %p146 = scmp.eq.s32.totalorder %s16, 0
    %p147 = por %p145, %p146
    %p148 = scmp.ne.s32.totalorder %s134, %s135
    %p149 = scmp.eq.s32.totalorder %s17, 1
    %p150 = por %p148, %p149
    %p152 = scmp.ne.s32.totalorder %s135, %s151
    %p153 = scmp.eq.s32.totalorder %s17, 0
    %p154 = por %p152, %p153
    %p155 = scmp.le.s32.totalorder 1, %s11
    %p156 = scmp.lt.s32.totalorder %s11, 3
    %p157 = pnand %p155, %p156
    %p158 = pneg %p157
    // Predicated region
    $region9: #{cnn_forward.2} parent=5 // pred_check
      _
    $region10: #{cnn_forward.2} parent=5 // pred_check_branch
      %160 = sbr.rel (%p157) target = $region12
    $region11: #{cnn_forward.2} parent=5 // pred_region
      %s161 = ssub.s32 %s11, 1
      // Predicated region
      $region13: #{cnn_forward.2} parent=11 // pred_check
        %p162 = pneg %p58
      $region14: #{cnn_forward.2} parent=11 // pred_check_branch
        %164 = sbr.rel (%p162) target = $region16
      $region15: #{cnn_forward.2} parent=11 // pred_region
        _
      $region16: #{cnn_forward.2} parent=11 // pred_fallthru
        _
      // Predicated region
      $region17: #{cnn_forward.2} parent=11 // pred_check
        %p165 = pneg %p79
      $region18: #{cnn_forward.2} parent=11 // pred_check_branch
        %167 = sbr.rel (%p165) target = $region20
      $region19: #{cnn_forward.2} parent=11 // pred_region
        _
      $region20: #{cnn_forward.2} parent=11 // pred_fallthru
        _
      // Predicated region
      $region21: #{cnn_forward.2} parent=11 // pred_check
        %p168 = pneg %p100
      $region22: #{cnn_forward.2} parent=11 // pred_check_branch
        %170 = sbr.rel (%p168) target = $region24
      $region23: #{cnn_forward.2} parent=11 // pred_region
        _
      $region24: #{cnn_forward.2} parent=11 // pred_fallthru
        _
      // Predicated region
      $region25: #{cnn_forward.2} parent=11 // pred_check
        %p171 = pneg %p121
      $region26: #{cnn_forward.2} parent=11 // pred_check_branch
        %173 = sbr.rel (%p171) target = $region28
      $region27: #{cnn_forward.2} parent=11 // pred_region
        _
      $region28: #{cnn_forward.2} parent=11 // pred_fallthru
        _
    $region12: #{cnn_forward.2} parent=5 // pred_fallthru
      _
    %p174 = scmp.lt.s32.totalorder %s11, 2
    // Predicated region
    $region29: #{cnn_forward.2} parent=5 // pred_check
      %p175 = pneg %p174
    $region30: #{cnn_forward.2} parent=5 // pred_check_branch
      %177 = sbr.rel (%p175) target = $region32
    $region31: #{cnn_forward.2} parent=5 // pred_region
      // Predicated region
      $region33: #{cnn_forward.2} parent=31 // pred_check
        %p178 = pneg %p31
      $region34: #{cnn_forward.2} parent=31 // pred_check_branch
        %180 = sbr.rel (%p178) target = $region36
      $region35: #{cnn_forward.2} parent=31 // pred_region
        %p181 = scmp.lt.s32.totalorder %s11, 1
        %s182 = scalar_select %p181, %s11, 1
        %s183 = smul.addr %s182, 112
        %s184 = smul.addr %s183, 8
        %s185 = scalar_lea.vmem %s0, %s184
      $region36: #{cnn_forward.2} parent=31 // pred_fallthru
        _
    $region32: #{cnn_forward.2} parent=5 // pred_fallthru
      _
    %p186 = scmp.le.s32.totalorder 1, %s11
    %p187 = scmp.lt.s32.totalorder %s11, 3
    %p188 = pnand %p186, %p187
    %p189 = pneg %p188
    // Predicated region
    $region37: #{cnn_forward.2} parent=5 // pred_check
      _
    $region38: #{cnn_forward.2} parent=5 // pred_check_branch
      %191 = sbr.rel (%p188) target = $region40
    $region39: #{cnn_forward.2} parent=5 // pred_region
      %s192 = ssub.s32 %s11, 1
      %p193 = scmp.lt.s32.totalorder %s16, 1
      %s194 = scalar_select %p193, %s16, 1
      %s195 = smul.addr %s194, 112
      %s196 = smul.addr %s195, 8
      %s197 = scalar_lea.vmem %s0, %s196
      %p198 = pneg %p37
      %p199 = pneg %p34
      %p200 = pneg %p58
      %p201 = pneg %p55
      %p202 = pneg %p79
      %p203 = pneg %p76
      %p204 = pneg %p100
      %p205 = pneg %p97
      %p206 = pneg %p121
      %p207 = pneg %p118
      %p208 = pneg %p147
      %p209 = pneg %p144
      %p210 = scmp.lt.s32.totalorder %s16, 1
      %s211 = scalar_select %p210, %s16, 1
      %s212 = smul.addr %s211, 5
      %s213 = smul.addr %s212, 8
      %s214 = scalar_lea.vmem %s5, %s213
      %p215 = scmp.lt.s32.totalorder %s16, 1
      %s216 = scalar_select %p215, %s16, 1
      %s217 = smul.addr %s216, 112
      %s218 = smul.addr %s217, 8
      %s219 = scalar_lea.vmem %s0, %s218
      %p220 = scmp.lt.s32.totalorder %s16, 1
      %s221 = scalar_select %p220, %s16, 1
      %s222 = smul.addr %s221, 5
      %s223 = smul.addr %s222, 8
      %s224 = scalar_lea.vmem %s5, %s223
      %v225 = vld [vmem:[%s219] sm:$0xff]
      %v226 = vld [vmem:[%s219 + $0x8] sm:$0xff]
      %v227 = vld [vmem:[%s219 + $0x10] sm:$0xff]
      %v228 = vld [vmem:[%s219 + $0x18] sm:$0xf]
      %v229 = vld [vmem:[%s219 + $0x20] sm:$0xff]
      %v230 = vld [vmem:[%s219 + $0x28] sm:$0xff]
      %v231 = vld [vmem:[%s219 + $0x30] sm:$0xff]
      %v232 = vld [vmem:[%s219 + $0x38] sm:$0xf]
      %v233 = vld [vmem:[%s219 + $0x40] sm:$0xff]
      %v234 = vld [vmem:[%s219 + $0x48] sm:$0xff]
      %v235 = vld [vmem:[%s219 + $0x50] sm:$0xff]
      %v236 = vld [vmem:[%s219 + $0x58] sm:$0xf]
      %v237 = vld [vmem:[%s219 + $0x60] sm:$0xff]
      %v238 = vld [vmem:[%s219 + $0x68] sm:$0xff]
      %v239 = vld [vmem:[%s219 + $0x70] sm:$0xff]
      %v240 = vld [vmem:[%s219 + $0x78] sm:$0xf]
      %v241 = vld [vmem:[%s219 + $0x80] sm:$0xff]
      %v242 = vld [vmem:[%s219 + $0x88] sm:$0xff]
      %v243 = vld [vmem:[%s219 + $0x90] sm:$0xff]
      %v244 = vld [vmem:[%s219 + $0x98] sm:$0xf]
      %v245 = vld [vmem:[%s219 + $0xa0] sm:$0xff]
      %v246 = vld [vmem:[%s219 + $0xa8] sm:$0xff]
      %v247 = vld [vmem:[%s219 + $0xb0] sm:$0xff]
      %v248 = vld [vmem:[%s219 + $0xb8] sm:$0xf]
      %v249 = vld [vmem:[%s219 + $0xc0] sm:$0xff]
      %v250 = vld [vmem:[%s219 + $0xc8] sm:$0xff]
      %v251 = vld [vmem:[%s219 + $0xd0] sm:$0xff]
      %v252 = vld [vmem:[%s219 + $0xd8] sm:$0xf]
      %v253 = vld [vmem:[%s219 + $0xe0] sm:$0xff]
      %v254 = vld [vmem:[%s219 + $0xe8] sm:$0xff]
      %v255 = vld [vmem:[%s219 + $0xf0] sm:$0xff]
      %v256 = vld [vmem:[%s219 + $0xf8] sm:$0xf]
      %v257 = vld [vmem:[%s219 + $0x100] sm:$0xff]
      %v258 = vld [vmem:[%s219 + $0x108] sm:$0xff]
      %v259 = vld [vmem:[%s219 + $0x110] sm:$0xff]
      %v260 = vld [vmem:[%s219 + $0x118] sm:$0xf]
      %v261 = vld [vmem:[%s219 + $0x120] sm:$0xff]
      %v262 = vld [vmem:[%s219 + $0x128] sm:$0xff]
      %v263 = vld [vmem:[%s219 + $0x130] sm:$0xff]
      %v264 = vld [vmem:[%s219 + $0x138] sm:$0xf]
      %v265 = vld [vmem:[%s219 + $0x140] sm:$0xff]
      %v266 = vld [vmem:[%s219 + $0x148] sm:$0xff]
      %v267 = vld [vmem:[%s219 + $0x150] sm:$0xff]
      %v268 = vld [vmem:[%s219 + $0x158] sm:$0xf]
      %v269 = vld [vmem:[%s219 + $0x160] sm:$0xff]
      %v270 = vld [vmem:[%s219 + $0x168] sm:$0xff]
      %v271 = vld [vmem:[%s219 + $0x170] sm:$0xff]
      %v272 = vld [vmem:[%s219 + $0x178] sm:$0xf]
      %v273 = vld [vmem:[%s219 + $0x180] sm:$0xff]
      %v274 = vld [vmem:[%s219 + $0x188] sm:$0xff]
      %v275 = vld [vmem:[%s219 + $0x190] sm:$0xff]
      %v276 = vld [vmem:[%s219 + $0x198] sm:$0xf]
      %v277 = vld [vmem:[%s219 + $0x1a0] sm:$0xff]
      %v278 = vld [vmem:[%s219 + $0x1a8] sm:$0xff]
      %v279 = vld [vmem:[%s219 + $0x1b0] sm:$0xff]
      %v280 = vld [vmem:[%s219 + $0x1b8] sm:$0xf]
      %v281 = vld [vmem:[%s219 + $0x1c0] sm:$0xff]
      %v282 = vld [vmem:[%s219 + $0x1c8] sm:$0xff]
      %v283 = vld [vmem:[%s219 + $0x1d0] sm:$0xff]
      %v284 = vld [vmem:[%s219 + $0x1d8] sm:$0xf]
      %v285 = vld [vmem:[%s219 + $0x1e0] sm:$0xff]
      %v286 = vld [vmem:[%s219 + $0x1e8] sm:$0xff]
      %v287 = vld [vmem:[%s219 + $0x1f0] sm:$0xff]
      %v288 = vld [vmem:[%s219 + $0x1f8] sm:$0xf]
      %v289 = vld [vmem:[%s219 + $0x200] sm:$0xff]
      %v290 = vld [vmem:[%s219 + $0x208] sm:$0xff]
      %v291 = vld [vmem:[%s219 + $0x210] sm:$0xff]
      %v292 = vld [vmem:[%s219 + $0x218] sm:$0xf]
      %v293 = vld [vmem:[%s219 + $0x220] sm:$0xff]
      %v294 = vld [vmem:[%s219 + $0x228] sm:$0xff]
      %v295 = vld [vmem:[%s219 + $0x230] sm:$0xff]
      %v296 = vld [vmem:[%s219 + $0x238] sm:$0xf]
      %v297 = vld [vmem:[%s219 + $0x240] sm:$0xff]
      %v298 = vld [vmem:[%s219 + $0x248] sm:$0xff]
      %v299 = vld [vmem:[%s219 + $0x250] sm:$0xff]
      %v300 = vld [vmem:[%s219 + $0x258] sm:$0xf]
      %v301 = vld [vmem:[%s219 + $0x260] sm:$0xff]
      %v302 = vld [vmem:[%s219 + $0x268] sm:$0xff]
      %v303 = vld [vmem:[%s219 + $0x270] sm:$0xff]
      %v304 = vld [vmem:[%s219 + $0x278] sm:$0xf]
      %v305 = vld [vmem:[%s219 + $0x280] sm:$0xff]
      %v306 = vld [vmem:[%s219 + $0x288] sm:$0xff]
      %v307 = vld [vmem:[%s219 + $0x290] sm:$0xff]
      %v308 = vld [vmem:[%s219 + $0x298] sm:$0xf]
      %v309 = vld [vmem:[%s219 + $0x2a0] sm:$0xff]
      %v310 = vld [vmem:[%s219 + $0x2a8] sm:$0xff]
      %v311 = vld [vmem:[%s219 + $0x2b0] sm:$0xff]
      %v312 = vld [vmem:[%s219 + $0x2b8] sm:$0xf]
      %v313 = vld [vmem:[%s219 + $0x2c0] sm:$0xff]
      %v314 = vld [vmem:[%s219 + $0x2c8] sm:$0xff]
      %v315 = vld [vmem:[%s219 + $0x2d0] sm:$0xff]
      %v316 = vld [vmem:[%s219 + $0x2d8] sm:$0xf]
      %v317 = vld [vmem:[%s219 + $0x2e0] sm:$0xff]
      %v318 = vld [vmem:[%s219 + $0x2e8] sm:$0xff]
      %v319 = vld [vmem:[%s219 + $0x2f0] sm:$0xff]
      %v320 = vld [vmem:[%s219 + $0x2f8] sm:$0xf]
      %v321 = vld [vmem:[%s219 + $0x300] sm:$0xff]
      %v322 = vld [vmem:[%s219 + $0x308] sm:$0xff]
      %v323 = vld [vmem:[%s219 + $0x310] sm:$0xff]
      %v324 = vld [vmem:[%s219 + $0x318] sm:$0xf]
      %v325 = vld [vmem:[%s219 + $0x320] sm:$0xff]
      %v326 = vld [vmem:[%s219 + $0x328] sm:$0xff]
      %v327 = vld [vmem:[%s219 + $0x330] sm:$0xff]
      %v328 = vld [vmem:[%s219 + $0x338] sm:$0xf]
      %v329 = vld [vmem:[%s1] sm:$0xff]
      %v330 = vld [vmem:[%s1 + $0x8] sm:$0x1]
      %332 = vset.pattern.permute.xlu0 0
      %333 = vperm.xlu0 %332, %v225
      %v334 = vpop.permute.xlu0 %333
      %337 = vset.pattern.permute.xlu0 0
      %338 = vperm.xlu0 %337, %v226
      %v339 = vpop.permute.xlu0 %338
      %342 = vset.pattern.permute.xlu0 0
      %343 = vperm.xlu0 %342, %v227
      %v344 = vpop.permute.xlu0 %343
      %347 = vset.pattern.permute.xlu0 0
      %348 = vperm.xlu0 %347, %v228
      %v349 = vpop.permute.xlu0 %348
      %352 = vset.pattern.permute.xlu0 0
      %353 = vperm.xlu0 %352, %v229
      %v354 = vpop.permute.xlu0 %353
      %357 = vset.pattern.permute.xlu0 0
      %358 = vperm.xlu0 %357, %v230
      %v359 = vpop.permute.xlu0 %358
      %362 = vset.pattern.permute.xlu0 0
      %363 = vperm.xlu0 %362, %v231
      %v364 = vpop.permute.xlu0 %363
      %367 = vset.pattern.permute.xlu0 0
      %368 = vperm.xlu0 %367, %v232
      %v369 = vpop.permute.xlu0 %368
      %372 = vset.pattern.permute.xlu0 0
      %373 = vperm.xlu0 %372, %v233
      %v374 = vpop.permute.xlu0 %373
      %377 = vset.pattern.permute.xlu0 0
      %378 = vperm.xlu0 %377, %v234
      %v379 = vpop.permute.xlu0 %378
      %382 = vset.pattern.permute.xlu0 0
      %383 = vperm.xlu0 %382, %v235
      %v384 = vpop.permute.xlu0 %383
      %387 = vset.pattern.permute.xlu0 0
      %388 = vperm.xlu0 %387, %v236
      %v389 = vpop.permute.xlu0 %388
      %392 = vset.pattern.permute.xlu0 0
      %393 = vperm.xlu0 %392, %v237
      %v394 = vpop.permute.xlu0 %393
      %397 = vset.pattern.permute.xlu0 0
      %398 = vperm.xlu0 %397, %v238
      %v399 = vpop.permute.xlu0 %398
      %402 = vset.pattern.permute.xlu0 0
      %403 = vperm.xlu0 %402, %v239
      %v404 = vpop.permute.xlu0 %403
      %407 = vset.pattern.permute.xlu0 0
      %408 = vperm.xlu0 %407, %v240
      %v409 = vpop.permute.xlu0 %408
      %412 = vset.pattern.permute.xlu0 0
      %413 = vperm.xlu0 %412, %v241
      %v414 = vpop.permute.xlu0 %413
      %417 = vset.pattern.permute.xlu0 0
      %418 = vperm.xlu0 %417, %v242
      %v419 = vpop.permute.xlu0 %418
      %422 = vset.pattern.permute.xlu0 0
      %423 = vperm.xlu0 %422, %v243
      %v424 = vpop.permute.xlu0 %423
      %427 = vset.pattern.permute.xlu0 0
      %428 = vperm.xlu0 %427, %v244
      %v429 = vpop.permute.xlu0 %428
      %432 = vset.pattern.permute.xlu0 0
      %433 = vperm.xlu0 %432, %v245
      %v434 = vpop.permute.xlu0 %433
      %437 = vset.pattern.permute.xlu0 0
      %438 = vperm.xlu0 %437, %v246
      %v439 = vpop.permute.xlu0 %438
      %442 = vset.pattern.permute.xlu0 0
      %443 = vperm.xlu0 %442, %v247
      %v444 = vpop.permute.xlu0 %443
      %447 = vset.pattern.permute.xlu0 0
      %448 = vperm.xlu0 %447, %v248
      %v449 = vpop.permute.xlu0 %448
      %452 = vset.pattern.permute.xlu0 0
      %453 = vperm.xlu0 %452, %v249
      %v454 = vpop.permute.xlu0 %453
      %457 = vset.pattern.permute.xlu0 0
      %458 = vperm.xlu0 %457, %v250
      %v459 = vpop.permute.xlu0 %458
      %462 = vset.pattern.permute.xlu0 0
      %463 = vperm.xlu0 %462, %v251
      %v464 = vpop.permute.xlu0 %463
      %467 = vset.pattern.permute.xlu0 0
      %468 = vperm.xlu0 %467, %v252
      %v469 = vpop.permute.xlu0 %468
      %472 = vset.pattern.permute.xlu0 0
      %473 = vperm.xlu0 %472, %v253
      %v474 = vpop.permute.xlu0 %473
      %477 = vset.pattern.permute.xlu0 0
      %478 = vperm.xlu0 %477, %v254
      %v479 = vpop.permute.xlu0 %478
      %482 = vset.pattern.permute.xlu0 0
      %483 = vperm.xlu0 %482, %v255
      %v484 = vpop.permute.xlu0 %483
      %487 = vset.pattern.permute.xlu0 0
      %488 = vperm.xlu0 %487, %v256
      %v489 = vpop.permute.xlu0 %488
      %492 = vset.pattern.permute.xlu0 0
      %493 = vperm.xlu0 %492, %v257
      %v494 = vpop.permute.xlu0 %493
      %497 = vset.pattern.permute.xlu0 0
      %498 = vperm.xlu0 %497, %v258
      %v499 = vpop.permute.xlu0 %498
      %502 = vset.pattern.permute.xlu0 0
      %503 = vperm.xlu0 %502, %v259
      %v504 = vpop.permute.xlu0 %503
      %507 = vset.pattern.permute.xlu0 0
      %508 = vperm.xlu0 %507, %v260
      %v509 = vpop.permute.xlu0 %508
      %512 = vset.pattern.permute.xlu0 0
      %513 = vperm.xlu0 %512, %v261
      %v514 = vpop.permute.xlu0 %513
      %517 = vset.pattern.permute.xlu0 0
      %518 = vperm.xlu0 %517, %v262
      %v519 = vpop.permute.xlu0 %518
      %522 = vset.pattern.permute.xlu0 0
      %523 = vperm.xlu0 %522, %v263
      %v524 = vpop.permute.xlu0 %523
      %527 = vset.pattern.permute.xlu0 0
      %528 = vperm.xlu0 %527, %v264
      %v529 = vpop.permute.xlu0 %528
      %532 = vset.pattern.permute.xlu0 0
      %533 = vperm.xlu0 %532, %v265
      %v534 = vpop.permute.xlu0 %533
      %537 = vset.pattern.permute.xlu0 0
      %538 = vperm.xlu0 %537, %v266
      %v539 = vpop.permute.xlu0 %538
      %542 = vset.pattern.permute.xlu0 0
      %543 = vperm.xlu0 %542, %v267
      %v544 = vpop.permute.xlu0 %543
      %547 = vset.pattern.permute.xlu0 0
      %548 = vperm.xlu0 %547, %v268
      %v549 = vpop.permute.xlu0 %548
      %552 = vset.pattern.permute.xlu0 0
      %553 = vperm.xlu0 %552, %v269
      %v554 = vpop.permute.xlu0 %553
      %557 = vset.pattern.permute.xlu0 0
      %558 = vperm.xlu0 %557, %v270
      %v559 = vpop.permute.xlu0 %558
      %562 = vset.pattern.permute.xlu0 0
      %563 = vperm.xlu0 %562, %v271
      %v564 = vpop.permute.xlu0 %563
      %567 = vset.pattern.permute.xlu0 0
      %568 = vperm.xlu0 %567, %v272
      %v569 = vpop.permute.xlu0 %568
      %572 = vset.pattern.permute.xlu0 0
      %573 = vperm.xlu0 %572, %v273
      %v574 = vpop.permute.xlu0 %573
      %577 = vset.pattern.permute.xlu0 0
      %578 = vperm.xlu0 %577, %v274
      %v579 = vpop.permute.xlu0 %578
      %582 = vset.pattern.permute.xlu0 0
      %583 = vperm.xlu0 %582, %v275
      %v584 = vpop.permute.xlu0 %583
      %587 = vset.pattern.permute.xlu0 0
      %588 = vperm.xlu0 %587, %v276
      %v589 = vpop.permute.xlu0 %588
      %592 = vset.pattern.permute.xlu0 0
      %593 = vperm.xlu0 %592, %v277
      %v594 = vpop.permute.xlu0 %593
      %597 = vset.pattern.permute.xlu0 0
      %598 = vperm.xlu0 %597, %v278
      %v599 = vpop.permute.xlu0 %598
      %602 = vset.pattern.permute.xlu0 0
      %603 = vperm.xlu0 %602, %v279
      %v604 = vpop.permute.xlu0 %603
      %607 = vset.pattern.permute.xlu0 0
      %608 = vperm.xlu0 %607, %v280
      %v609 = vpop.permute.xlu0 %608
      %612 = vset.pattern.permute.xlu0 0
      %613 = vperm.xlu0 %612, %v281
      %v614 = vpop.permute.xlu0 %613
      %617 = vset.pattern.permute.xlu0 0
      %618 = vperm.xlu0 %617, %v282
      %v619 = vpop.permute.xlu0 %618
      %622 = vset.pattern.permute.xlu0 0
      %623 = vperm.xlu0 %622, %v283
      %v624 = vpop.permute.xlu0 %623
      %627 = vset.pattern.permute.xlu0 0
      %628 = vperm.xlu0 %627, %v284
      %v629 = vpop.permute.xlu0 %628
      %632 = vset.pattern.permute.xlu0 0
      %633 = vperm.xlu0 %632, %v285
      %v634 = vpop.permute.xlu0 %633
      %637 = vset.pattern.permute.xlu0 0
      %638 = vperm.xlu0 %637, %v286
      %v639 = vpop.permute.xlu0 %638
      %642 = vset.pattern.permute.xlu0 0
      %643 = vperm.xlu0 %642, %v287
      %v644 = vpop.permute.xlu0 %643
      %647 = vset.pattern.permute.xlu0 0
      %648 = vperm.xlu0 %647, %v288
      %v649 = vpop.permute.xlu0 %648
      %652 = vset.pattern.permute.xlu0 0
      %653 = vperm.xlu0 %652, %v289
      %v654 = vpop.permute.xlu0 %653
      %657 = vset.pattern.permute.xlu0 0
      %658 = vperm.xlu0 %657, %v290
      %v659 = vpop.permute.xlu0 %658
      %662 = vset.pattern.permute.xlu0 0
      %663 = vperm.xlu0 %662, %v291
      %v664 = vpop.permute.xlu0 %663
      %667 = vset.pattern.permute.xlu0 0
      %668 = vperm.xlu0 %667, %v292
      %v669 = vpop.permute.xlu0 %668
      %672 = vset.pattern.permute.xlu0 0
      %673 = vperm.xlu0 %672, %v293
      %v674 = vpop.permute.xlu0 %673
      %677 = vset.pattern.permute.xlu0 0
      %678 = vperm.xlu0 %677, %v294
      %v679 = vpop.permute.xlu0 %678
      %682 = vset.pattern.permute.xlu0 0
      %683 = vperm.xlu0 %682, %v295
      %v684 = vpop.permute.xlu0 %683
      %687 = vset.pattern.permute.xlu0 0
      %688 = vperm.xlu0 %687, %v296
      %v689 = vpop.permute.xlu0 %688
      %692 = vset.pattern.permute.xlu0 0
      %693 = vperm.xlu0 %692, %v297
      %v694 = vpop.permute.xlu0 %693
      %697 = vset.pattern.permute.xlu0 0
      %698 = vperm.xlu0 %697, %v298
      %v699 = vpop.permute.xlu0 %698
      %702 = vset.pattern.permute.xlu0 0
      %703 = vperm.xlu0 %702, %v299
      %v704 = vpop.permute.xlu0 %703
      %707 = vset.pattern.permute.xlu0 0
      %708 = vperm.xlu0 %707, %v300
      %v709 = vpop.permute.xlu0 %708
      %712 = vset.pattern.permute.xlu0 0
      %713 = vperm.xlu0 %712, %v301
      %v714 = vpop.permute.xlu0 %713
      %717 = vset.pattern.permute.xlu0 0
      %718 = vperm.xlu0 %717, %v302
      %v719 = vpop.permute.xlu0 %718
      %722 = vset.pattern.permute.xlu0 0
      %723 = vperm.xlu0 %722, %v303
      %v724 = vpop.permute.xlu0 %723
      %727 = vset.pattern.permute.xlu0 0
      %728 = vperm.xlu0 %727, %v304
      %v729 = vpop.permute.xlu0 %728
      %732 = vset.pattern.permute.xlu0 0
      %733 = vperm.xlu0 %732, %v305
      %v734 = vpop.permute.xlu0 %733
      %737 = vset.pattern.permute.xlu0 0
      %738 = vperm.xlu0 %737, %v306
      %v739 = vpop.permute.xlu0 %738
      %742 = vset.pattern.permute.xlu0 0
      %743 = vperm.xlu0 %742, %v307
      %v744 = vpop.permute.xlu0 %743
      %747 = vset.pattern.permute.xlu0 0
      %748 = vperm.xlu0 %747, %v308
      %v749 = vpop.permute.xlu0 %748
      %752 = vset.pattern.permute.xlu0 0
      %753 = vperm.xlu0 %752, %v309
      %v754 = vpop.permute.xlu0 %753
      %757 = vset.pattern.permute.xlu0 0
      %758 = vperm.xlu0 %757, %v310
      %v759 = vpop.permute.xlu0 %758
      %762 = vset.pattern.permute.xlu0 0
      %763 = vperm.xlu0 %762, %v311
      %v764 = vpop.permute.xlu0 %763
      %767 = vset.pattern.permute.xlu0 0
      %768 = vperm.xlu0 %767, %v312
      %v769 = vpop.permute.xlu0 %768
      %772 = vset.pattern.permute.xlu0 0
      %773 = vperm.xlu0 %772, %v313
      %v774 = vpop.permute.xlu0 %773
      %777 = vset.pattern.permute.xlu0 0
      %778 = vperm.xlu0 %777, %v314
      %v779 = vpop.permute.xlu0 %778
      %782 = vset.pattern.permute.xlu0 0
      %783 = vperm.xlu0 %782, %v315
      %v784 = vpop.permute.xlu0 %783
      %787 = vset.pattern.permute.xlu0 0
      %788 = vperm.xlu0 %787, %v316
      %v789 = vpop.permute.xlu0 %788
      %792 = vset.pattern.permute.xlu0 0
      %793 = vperm.xlu0 %792, %v317
      %v794 = vpop.permute.xlu0 %793
      %797 = vset.pattern.permute.xlu0 0
      %798 = vperm.xlu0 %797, %v318
      %v799 = vpop.permute.xlu0 %798
      %802 = vset.pattern.permute.xlu0 0
      %803 = vperm.xlu0 %802, %v319
      %v804 = vpop.permute.xlu0 %803
      %807 = vset.pattern.permute.xlu0 0
      %808 = vperm.xlu0 %807, %v320
      %v809 = vpop.permute.xlu0 %808
      %v811 = vlaneseq
      %v812 = vshrl.u32 %v811, 7
      %v813 = vsub.s32 0, %v812
      %v814 = vrot.slane %v329, %v813
      %v815 = vmul.f32 %v334, %v814
      %v816 = vmul.f32 %v339, %v814
      %v817 = vmul.f32 %v344, %v814
      %v818 = vmul.f32 %v349, %v814
      %v819 = vmul.f32 %v354, %v814
      %v820 = vmul.f32 %v359, %v814
      %v821 = vmul.f32 %v364, %v814
      %v822 = vmul.f32 %v369, %v814
      %v823 = vmul.f32 %v374, %v814
      %v824 = vmul.f32 %v379, %v814
      %v825 = vmul.f32 %v384, %v814
      %v826 = vmul.f32 %v389, %v814
      %v827 = vmul.f32 %v394, %v814
      %v828 = vmul.f32 %v399, %v814
      %v829 = vmul.f32 %v404, %v814
      %v830 = vmul.f32 %v409, %v814
      %v831 = vmul.f32 %v414, %v814
      %v832 = vmul.f32 %v419, %v814
      %v833 = vmul.f32 %v424, %v814
      %v834 = vmul.f32 %v429, %v814
      %v835 = vmul.f32 %v434, %v814
      %v836 = vmul.f32 %v439, %v814
      %v837 = vmul.f32 %v444, %v814
      %v838 = vmul.f32 %v449, %v814
      %v839 = vmul.f32 %v454, %v814
      %v840 = vmul.f32 %v459, %v814
      %v841 = vmul.f32 %v464, %v814
      %v842 = vmul.f32 %v469, %v814
      %v843 = vmul.f32 %v474, %v814
      %v844 = vmul.f32 %v479, %v814
      %v845 = vmul.f32 %v484, %v814
      %v846 = vmul.f32 %v489, %v814
      %v847 = vmul.f32 %v494, %v814
      %v848 = vmul.f32 %v499, %v814
      %v849 = vmul.f32 %v504, %v814
      %v850 = vmul.f32 %v509, %v814
      %v851 = vmul.f32 %v514, %v814
      %v852 = vmul.f32 %v519, %v814
      %v853 = vmul.f32 %v524, %v814
      %v854 = vmul.f32 %v529, %v814
      %v855 = vmul.f32 %v534, %v814
      %v856 = vmul.f32 %v539, %v814
      %v857 = vmul.f32 %v544, %v814
      %v858 = vmul.f32 %v549, %v814
      %v859 = vmul.f32 %v554, %v814
      %v860 = vmul.f32 %v559, %v814
      %v861 = vmul.f32 %v564, %v814
      %v862 = vmul.f32 %v569, %v814
      %v863 = vmul.f32 %v574, %v814
      %v864 = vmul.f32 %v579, %v814
      %v865 = vmul.f32 %v584, %v814
      %v866 = vmul.f32 %v589, %v814
      %v867 = vmul.f32 %v594, %v814
      %v868 = vmul.f32 %v599, %v814
      %v869 = vmul.f32 %v604, %v814
      %v870 = vmul.f32 %v609, %v814
      %v871 = vmul.f32 %v614, %v814
      %v872 = vmul.f32 %v619, %v814
      %v873 = vmul.f32 %v624, %v814
      %v874 = vmul.f32 %v629, %v814
      %v875 = vmul.f32 %v634, %v814
      %v876 = vmul.f32 %v639, %v814
      %v877 = vmul.f32 %v644, %v814
      %v878 = vmul.f32 %v649, %v814
      %v879 = vmul.f32 %v654, %v814
      %v880 = vmul.f32 %v659, %v814
      %v881 = vmul.f32 %v664, %v814
      %v882 = vmul.f32 %v669, %v814
      %v883 = vmul.f32 %v674, %v814
      %v884 = vmul.f32 %v679, %v814
      %v885 = vmul.f32 %v684, %v814
      %v886 = vmul.f32 %v689, %v814
      %v887 = vmul.f32 %v694, %v814
      %v888 = vmul.f32 %v699, %v814
      %v889 = vmul.f32 %v704, %v814
      %v890 = vmul.f32 %v709, %v814
      %v891 = vmul.f32 %v714, %v814
      %v892 = vmul.f32 %v719, %v814
      %v893 = vmul.f32 %v724, %v814
      %v894 = vmul.f32 %v729, %v814
      %v895 = vmul.f32 %v734, %v814
      %v896 = vmul.f32 %v739, %v814
      %v897 = vmul.f32 %v744, %v814
      %v898 = vmul.f32 %v749, %v814
      %v899 = vmul.f32 %v754, %v814
      %v900 = vmul.f32 %v759, %v814
      %v901 = vmul.f32 %v764, %v814
      %v902 = vmul.f32 %v769, %v814
      %v903 = vmul.f32 %v774, %v814
      %v904 = vmul.f32 %v779, %v814
      %v905 = vmul.f32 %v784, %v814
      %v906 = vmul.f32 %v789, %v814
      %v907 = vmul.f32 %v794, %v814
      %v908 = vmul.f32 %v799, %v814
      %v909 = vmul.f32 %v804, %v814
      %v910 = vmul.f32 %v809, %v814
      %v911 = vadd.f32 %v815, 0.0
      %v912 = vadd.f32 %v816, 0.0
      %v913 = vadd.f32 %v817, 0.0
      %v914 = vadd.f32 %v818, 0.0
      %v915 = vadd.f32 %v819, 0.0
      %v916 = vadd.f32 %v820, 0.0
      %v917 = vadd.f32 %v821, 0.0
      %v918 = vadd.f32 %v822, 0.0
      %v919 = vadd.f32 %v823, 0.0
      %v920 = vadd.f32 %v824, 0.0
      %v921 = vadd.f32 %v825, 0.0
      %v922 = vadd.f32 %v826, 0.0
      %v923 = vadd.f32 %v827, 0.0
      %v924 = vadd.f32 %v828, 0.0
      %v925 = vadd.f32 %v829, 0.0
      %v926 = vadd.f32 %v830, 0.0
      %v927 = vadd.f32 %v831, 0.0
      %v928 = vadd.f32 %v832, 0.0
      %v929 = vadd.f32 %v833, 0.0
      %v930 = vadd.f32 %v834, 0.0
      %v931 = vadd.f32 %v835, 0.0
      %v932 = vadd.f32 %v836, 0.0
      %v933 = vadd.f32 %v837, 0.0
      %v934 = vadd.f32 %v838, 0.0
      %v935 = vadd.f32 %v839, 0.0
      %v936 = vadd.f32 %v840, 0.0
      %v937 = vadd.f32 %v841, 0.0
      %v938 = vadd.f32 %v842, 0.0
      %v939 = vadd.f32 %v843, 0.0
      %v940 = vadd.f32 %v844, 0.0
      %v941 = vadd.f32 %v845, 0.0
      %v942 = vadd.f32 %v846, 0.0
      %v943 = vadd.f32 %v847, 0.0
      %v944 = vadd.f32 %v848, 0.0
      %v945 = vadd.f32 %v849, 0.0
      %v946 = vadd.f32 %v850, 0.0
      %v947 = vadd.f32 %v851, 0.0
      %v948 = vadd.f32 %v852, 0.0
      %v949 = vadd.f32 %v853, 0.0
      %v950 = vadd.f32 %v854, 0.0
      %v951 = vadd.f32 %v855, 0.0
      %v952 = vadd.f32 %v856, 0.0
      %v953 = vadd.f32 %v857, 0.0
      %v954 = vadd.f32 %v858, 0.0
      %v955 = vadd.f32 %v859, 0.0
      %v956 = vadd.f32 %v860, 0.0
      %v957 = vadd.f32 %v861, 0.0
      %v958 = vadd.f32 %v862, 0.0
      %v959 = vadd.f32 %v863, 0.0
      %v960 = vadd.f32 %v864, 0.0
      %v961 = vadd.f32 %v865, 0.0
      %v962 = vadd.f32 %v866, 0.0
      %v963 = vadd.f32 %v867, 0.0
      %v964 = vadd.f32 %v868, 0.0
      %v965 = vadd.f32 %v869, 0.0
      %v966 = vadd.f32 %v870, 0.0
      %v967 = vadd.f32 %v871, 0.0
      %v968 = vadd.f32 %v872, 0.0
      %v969 = vadd.f32 %v873, 0.0
      %v970 = vadd.f32 %v874, 0.0
      %v971 = vadd.f32 %v875, 0.0
      %v972 = vadd.f32 %v876, 0.0
      %v973 = vadd.f32 %v877, 0.0
      %v974 = vadd.f32 %v878, 0.0
      %v975 = vadd.f32 %v879, 0.0
      %v976 = vadd.f32 %v880, 0.0
      %v977 = vadd.f32 %v881, 0.0
      %v978 = vadd.f32 %v882, 0.0
      %v979 = vadd.f32 %v883, 0.0
      %v980 = vadd.f32 %v884, 0.0
      %v981 = vadd.f32 %v885, 0.0
      %v982 = vadd.f32 %v886, 0.0
      %v983 = vadd.f32 %v887, 0.0
      %v984 = vadd.f32 %v888, 0.0
      %v985 = vadd.f32 %v889, 0.0
      %v986 = vadd.f32 %v890, 0.0
      %v987 = vadd.f32 %v891, 0.0
      %v988 = vadd.f32 %v892, 0.0
      %v989 = vadd.f32 %v893, 0.0
      %v990 = vadd.f32 %v894, 0.0
      %v991 = vadd.f32 %v895, 0.0
      %v992 = vadd.f32 %v896, 0.0
      %v993 = vadd.f32 %v897, 0.0
      %v994 = vadd.f32 %v898, 0.0
      %v995 = vadd.f32 %v899, 0.0
      %v996 = vadd.f32 %v900, 0.0
      %v997 = vadd.f32 %v901, 0.0
      %v998 = vadd.f32 %v902, 0.0
      %v999 = vadd.f32 %v903, 0.0
      %v1000 = vadd.f32 %v904, 0.0
      %v1001 = vadd.f32 %v905, 0.0
      %v1002 = vadd.f32 %v906, 0.0
      %v1003 = vadd.f32 %v907, 0.0
      %v1004 = vadd.f32 %v908, 0.0
      %v1005 = vadd.f32 %v909, 0.0
      %v1006 = vadd.f32 %v910, 0.0
      %v1007 = vlaneseq
      %v1008 = vshrl.u32 %v1007, 7
      %v1009 = vsub.s32 1, %v1008
      %v1010 = vrot.slane %v329, %v1009
      %v1011 = vmul.f32 %v334, %v1010
      %v1012 = vmul.f32 %v339, %v1010
      %v1013 = vmul.f32 %v344, %v1010
      %v1014 = vmul.f32 %v349, %v1010
      %v1015 = vmul.f32 %v354, %v1010
      %v1016 = vmul.f32 %v359, %v1010
      %v1017 = vmul.f32 %v364, %v1010
      %v1018 = vmul.f32 %v369, %v1010
      %v1019 = vmul.f32 %v374, %v1010
      %v1020 = vmul.f32 %v379, %v1010
      %v1021 = vmul.f32 %v384, %v1010
      %v1022 = vmul.f32 %v389, %v1010
      %v1023 = vmul.f32 %v394, %v1010
      %v1024 = vmul.f32 %v399, %v1010
      %v1025 = vmul.f32 %v404, %v1010
      %v1026 = vmul.f32 %v409, %v1010
      %v1027 = vmul.f32 %v414, %v1010
      %v1028 = vmul.f32 %v419, %v1010
      %v1029 = vmul.f32 %v424, %v1010
      %v1030 = vmul.f32 %v429, %v1010
      %v1031 = vmul.f32 %v434, %v1010
      %v1032 = vmul.f32 %v439, %v1010
      %v1033 = vmul.f32 %v444, %v1010
      %v1034 = vmul.f32 %v449, %v1010
      %v1035 = vmul.f32 %v454, %v1010
      %v1036 = vmul.f32 %v459, %v1010
      %v1037 = vmul.f32 %v464, %v1010
      %v1038 = vmul.f32 %v469, %v1010
      %v1039 = vmul.f32 %v474, %v1010
      %v1040 = vmul.f32 %v479, %v1010
      %v1041 = vmul.f32 %v484, %v1010
      %v1042 = vmul.f32 %v489, %v1010
      %v1043 = vmul.f32 %v494, %v1010
      %v1044 = vmul.f32 %v499, %v1010
      %v1045 = vmul.f32 %v504, %v1010
      %v1046 = vmul.f32 %v509, %v1010
      %v1047 = vmul.f32 %v514, %v1010
      %v1048 = vmul.f32 %v519, %v1010
      %v1049 = vmul.f32 %v524, %v1010
      %v1050 = vmul.f32 %v529, %v1010
      %v1051 = vmul.f32 %v534, %v1010
      %v1052 = vmul.f32 %v539, %v1010
      %v1053 = vmul.f32 %v544, %v1010
      %v1054 = vmul.f32 %v549, %v1010
      %v1055 = vmul.f32 %v554, %v1010
      %v1056 = vmul.f32 %v559, %v1010
      %v1057 = vmul.f32 %v564, %v1010
      %v1058 = vmul.f32 %v569, %v1010
      %v1059 = vmul.f32 %v574, %v1010
      %v1060 = vmul.f32 %v579, %v1010
      %v1061 = vmul.f32 %v584, %v1010
      %v1062 = vmul.f32 %v589, %v1010
      %v1063 = vmul.f32 %v594, %v1010
      %v1064 = vmul.f32 %v599, %v1010
      %v1065 = vmul.f32 %v604, %v1010
      %v1066 = vmul.f32 %v609, %v1010
      %v1067 = vmul.f32 %v614, %v1010
      %v1068 = vmul.f32 %v619, %v1010
      %v1069 = vmul.f32 %v624, %v1010
      %v1070 = vmul.f32 %v629, %v1010
      %v1071 = vmul.f32 %v634, %v1010
      %v1072 = vmul.f32 %v639, %v1010
      %v1073 = vmul.f32 %v644, %v1010
      %v1074 = vmul.f32 %v649, %v1010
      %v1075 = vmul.f32 %v654, %v1010
      %v1076 = vmul.f32 %v659, %v1010
      %v1077 = vmul.f32 %v664, %v1010
      %v1078 = vmul.f32 %v669, %v1010
      %v1079 = vmul.f32 %v674, %v1010
      %v1080 = vmul.f32 %v679, %v1010
      %v1081 = vmul.f32 %v684, %v1010
      %v1082 = vmul.f32 %v689, %v1010
      %v1083 = vmul.f32 %v694, %v1010
      %v1084 = vmul.f32 %v699, %v1010
      %v1085 = vmul.f32 %v704, %v1010
      %v1086 = vmul.f32 %v709, %v1010
      %v1087 = vmul.f32 %v714, %v1010
      %v1088 = vmul.f32 %v719, %v1010
      %v1089 = vmul.f32 %v724, %v1010
      %v1090 = vmul.f32 %v729, %v1010
      %v1091 = vmul.f32 %v734, %v1010
      %v1092 = vmul.f32 %v739, %v1010
      %v1093 = vmul.f32 %v744, %v1010
      %v1094 = vmul.f32 %v749, %v1010
      %v1095 = vmul.f32 %v754, %v1010
      %v1096 = vmul.f32 %v759, %v1010
      %v1097 = vmul.f32 %v764, %v1010
      %v1098 = vmul.f32 %v769, %v1010
      %v1099 = vmul.f32 %v774, %v1010
      %v1100 = vmul.f32 %v779, %v1010
      %v1101 = vmul.f32 %v784, %v1010
      %v1102 = vmul.f32 %v789, %v1010
      %v1103 = vmul.f32 %v794, %v1010
      %v1104 = vmul.f32 %v799, %v1010
      %v1105 = vmul.f32 %v804, %v1010
      %v1106 = vmul.f32 %v809, %v1010
      %vm1203 = vcmask 1046528
      %v1204 = vrot.slane %v1011, 1
      %v1205 = vrot.slane %v1012, 1
      %v1206 = vsel %vm1203, %v1204, %v1205
      %v1207 = vrot.slane %v1013, 1
      %v1208 = vsel %vm1203, %v1205, %v1207
      %v1209 = vrot.slane %v1014, 1
      %v1210 = vsel %vm1203, %v1207, %v1209
      %v1211 = vrot.slane %v1015, 1
      %v1212 = vrot.slane %v1016, 1
      %v1213 = vsel %vm1203, %v1211, %v1212
      %v1214 = vrot.slane %v1017, 1
      %v1215 = vsel %vm1203, %v1212, %v1214
      %v1216 = vrot.slane %v1018, 1
      %v1217 = vsel %vm1203, %v1214, %v1216
      %v1218 = vrot.slane %v1019, 1
      %v1219 = vrot.slane %v1020, 1
      %v1220 = vsel %vm1203, %v1218, %v1219
      %v1221 = vrot.slane %v1021, 1
      %v1222 = vsel %vm1203, %v1219, %v1221
      %v1223 = vrot.slane %v1022, 1
      %v1224 = vsel %vm1203, %v1221, %v1223
      %v1225 = vrot.slane %v1023, 1
      %v1226 = vrot.slane %v1024, 1
      %v1227 = vsel %vm1203, %v1225, %v1226
      %v1228 = vrot.slane %v1025, 1
      %v1229 = vsel %vm1203, %v1226, %v1228
      %v1230 = vrot.slane %v1026, 1
      %v1231 = vsel %vm1203, %v1228, %v1230
      %v1232 = vrot.slane %v1027, 1
      %v1233 = vrot.slane %v1028, 1
      %v1234 = vsel %vm1203, %v1232, %v1233
      %v1235 = vrot.slane %v1029, 1
      %v1236 = vsel %vm1203, %v1233, %v1235
      %v1237 = vrot.slane %v1030, 1
      %v1238 = vsel %vm1203, %v1235, %v1237
      %v1239 = vrot.slane %v1031, 1
      %v1240 = vrot.slane %v1032, 1
      %v1241 = vsel %vm1203, %v1239, %v1240
      %v1242 = vrot.slane %v1033, 1
      %v1243 = vsel %vm1203, %v1240, %v1242
      %v1244 = vrot.slane %v1034, 1
      %v1245 = vsel %vm1203, %v1242, %v1244
      %v1246 = vrot.slane %v1035, 1
      %v1247 = vrot.slane %v1036, 1
      %v1248 = vsel %vm1203, %v1246, %v1247
      %v1249 = vrot.slane %v1037, 1
      %v1250 = vsel %vm1203, %v1247, %v1249
      %v1251 = vrot.slane %v1038, 1
      %v1252 = vsel %vm1203, %v1249, %v1251
      %v1253 = vrot.slane %v1039, 1
      %v1254 = vrot.slane %v1040, 1
      %v1255 = vsel %vm1203, %v1253, %v1254
      %v1256 = vrot.slane %v1041, 1
      %v1257 = vsel %vm1203, %v1254, %v1256
      %v1258 = vrot.slane %v1042, 1
      %v1259 = vsel %vm1203, %v1256, %v1258
      %v1260 = vrot.slane %v1043, 1
      %v1261 = vrot.slane %v1044, 1
      %v1262 = vsel %vm1203, %v1260, %v1261
      %v1263 = vrot.slane %v1045, 1
      %v1264 = vsel %vm1203, %v1261, %v1263
      %v1265 = vrot.slane %v1046, 1
      %v1266 = vsel %vm1203, %v1263, %v1265
      %v1267 = vrot.slane %v1047, 1
      %v1268 = vrot.slane %v1048, 1
      %v1269 = vsel %vm1203, %v1267, %v1268
      %v1270 = vrot.slane %v1049, 1
      %v1271 = vsel %vm1203, %v1268, %v1270
      %v1272 = vrot.slane %v1050, 1
      %v1273 = vsel %vm1203, %v1270, %v1272
      %v1274 = vrot.slane %v1051, 1
      %v1275 = vrot.slane %v1052, 1
      %v1276 = vsel %vm1203, %v1274, %v1275
      %v1277 = vrot.slane %v1053, 1
      %v1278 = vsel %vm1203, %v1275, %v1277
      %v1279 = vrot.slane %v1054, 1
      %v1280 = vsel %vm1203, %v1277, %v1279
      %v1281 = vrot.slane %v1055, 1
      %v1282 = vrot.slane %v1056, 1
      %v1283 = vsel %vm1203, %v1281, %v1282
      %v1284 = vrot.slane %v1057, 1
      %v1285 = vsel %vm1203, %v1282, %v1284
      %v1286 = vrot.slane %v1058, 1
      %v1287 = vsel %vm1203, %v1284, %v1286
      %v1288 = vrot.slane %v1059, 1
      %v1289 = vrot.slane %v1060, 1
      %v1290 = vsel %vm1203, %v1288, %v1289
      %v1291 = vrot.slane %v1061, 1
      %v1292 = vsel %vm1203, %v1289, %v1291
      %v1293 = vrot.slane %v1062, 1
      %v1294 = vsel %vm1203, %v1291, %v1293
      %v1295 = vrot.slane %v1063, 1
      %v1296 = vrot.slane %v1064, 1
      %v1297 = vsel %vm1203, %v1295, %v1296
      %v1298 = vrot.slane %v1065, 1
      %v1299 = vsel %vm1203, %v1296, %v1298
      %v1300 = vrot.slane %v1066, 1
      %v1301 = vsel %vm1203, %v1298, %v1300
      %v1302 = vrot.slane %v1067, 1
      %v1303 = vrot.slane %v1068, 1
      %v1304 = vsel %vm1203, %v1302, %v1303
      %v1305 = vrot.slane %v1069, 1
      %v1306 = vsel %vm1203, %v1303, %v1305
      %v1307 = vrot.slane %v1070, 1
      %v1308 = vsel %vm1203, %v1305, %v1307
      %v1309 = vrot.slane %v1071, 1
      %v1310 = vrot.slane %v1072, 1
      %v1311 = vsel %vm1203, %v1309, %v1310
      %v1312 = vrot.slane %v1073, 1
      %v1313 = vsel %vm1203, %v1310, %v1312
      %v1314 = vrot.slane %v1074, 1
      %v1315 = vsel %vm1203, %v1312, %v1314
      %v1316 = vrot.slane %v1075, 1
      %v1317 = vrot.slane %v1076, 1
      %v1318 = vsel %vm1203, %v1316, %v1317
      %v1319 = vrot.slane %v1077, 1
      %v1320 = vsel %vm1203, %v1317, %v1319
      %v1321 = vrot.slane %v1078, 1
      %v1322 = vsel %vm1203, %v1319, %v1321
      %v1323 = vrot.slane %v1079, 1
      %v1324 = vrot.slane %v1080, 1
      %v1325 = vsel %vm1203, %v1323, %v1324
      %v1326 = vrot.slane %v1081, 1
      %v1327 = vsel %vm1203, %v1324, %v1326
      %v1328 = vrot.slane %v1082, 1
      %v1329 = vsel %vm1203, %v1326, %v1328
      %v1330 = vrot.slane %v1083, 1
      %v1331 = vrot.slane %v1084, 1
      %v1332 = vsel %vm1203, %v1330, %v1331
      %v1333 = vrot.slane %v1085, 1
      %v1334 = vsel %vm1203, %v1331, %v1333
      %v1335 = vrot.slane %v1086, 1
      %v1336 = vsel %vm1203, %v1333, %v1335
      %v1337 = vrot.slane %v1087, 1
      %v1338 = vrot.slane %v1088, 1
      %v1339 = vsel %vm1203, %v1337, %v1338
      %v1340 = vrot.slane %v1089, 1
      %v1341 = vsel %vm1203, %v1338, %v1340
      %v1342 = vrot.slane %v1090, 1
      %v1343 = vsel %vm1203, %v1340, %v1342
      %v1344 = vrot.slane %v1091, 1
      %v1345 = vrot.slane %v1092, 1
      %v1346 = vsel %vm1203, %v1344, %v1345
      %v1347 = vrot.slane %v1093, 1
      %v1348 = vsel %vm1203, %v1345, %v1347
      %v1349 = vrot.slane %v1094, 1
      %v1350 = vsel %vm1203, %v1347, %v1349
      %v1351 = vrot.slane %v1095, 1
      %v1352 = vrot.slane %v1096, 1
      %v1353 = vsel %vm1203, %v1351, %v1352
      %v1354 = vrot.slane %v1097, 1
      %v1355 = vsel %vm1203, %v1352, %v1354
      %v1356 = vrot.slane %v1098, 1
      %v1357 = vsel %vm1203, %v1354, %v1356
      %v1358 = vrot.slane %v1099, 1
      %v1359 = vrot.slane %v1100, 1
      %v1360 = vsel %vm1203, %v1358, %v1359
      %v1361 = vrot.slane %v1101, 1
      %v1362 = vsel %vm1203, %v1359, %v1361
      %v1363 = vrot.slane %v1102, 1
      %v1364 = vsel %vm1203, %v1361, %v1363
      %v1365 = vrot.slane %v1103, 1
      %v1366 = vrot.slane %v1104, 1
      %v1367 = vsel %vm1203, %v1365, %v1366
      %v1368 = vrot.slane %v1105, 1
      %v1369 = vsel %vm1203, %v1366, %v1368
      %v1370 = vrot.slane %v1106, 1
      %v1371 = vsel %vm1203, %v1368, %v1370
      %v1468 = vadd.f32 %v911, %v1206
      %v1469 = vadd.f32 %v912, %v1208
      %v1470 = vadd.f32 %v913, %v1210
      %v1471 = vadd.f32 %v914, %v1209
      %v1472 = vadd.f32 %v915, %v1213
      %v1473 = vadd.f32 %v916, %v1215
      %v1474 = vadd.f32 %v917, %v1217
      %v1475 = vadd.f32 %v918, %v1216
      %v1476 = vadd.f32 %v919, %v1220
      %v1477 = vadd.f32 %v920, %v1222
      %v1478 = vadd.f32 %v921, %v1224
      %v1479 = vadd.f32 %v922, %v1223
      %v1480 = vadd.f32 %v923, %v1227
      %v1481 = vadd.f32 %v924, %v1229
      %v1482 = vadd.f32 %v925, %v1231
      %v1483 = vadd.f32 %v926, %v1230
      %v1484 = vadd.f32 %v927, %v1234
      %v1485 = vadd.f32 %v928, %v1236
      %v1486 = vadd.f32 %v929, %v1238
      %v1487 = vadd.f32 %v930, %v1237
      %v1488 = vadd.f32 %v931, %v1241
      %v1489 = vadd.f32 %v932, %v1243
      %v1490 = vadd.f32 %v933, %v1245
      %v1491 = vadd.f32 %v934, %v1244
      %v1492 = vadd.f32 %v935, %v1248
      %v1493 = vadd.f32 %v936, %v1250
      %v1494 = vadd.f32 %v937, %v1252
      %v1495 = vadd.f32 %v938, %v1251
      %v1496 = vadd.f32 %v939, %v1255
      %v1497 = vadd.f32 %v940, %v1257
      %v1498 = vadd.f32 %v941, %v1259
      %v1499 = vadd.f32 %v942, %v1258
      %v1500 = vadd.f32 %v943, %v1262
      %v1501 = vadd.f32 %v944, %v1264
      %v1502 = vadd.f32 %v945, %v1266
      %v1503 = vadd.f32 %v946, %v1265
      %v1504 = vadd.f32 %v947, %v1269
      %v1505 = vadd.f32 %v948, %v1271
      %v1506 = vadd.f32 %v949, %v1273
      %v1507 = vadd.f32 %v950, %v1272
      %v1508 = vadd.f32 %v951, %v1276
      %v1509 = vadd.f32 %v952, %v1278
      %v1510 = vadd.f32 %v953, %v1280
      %v1511 = vadd.f32 %v954, %v1279
      %v1512 = vadd.f32 %v955, %v1283
      %v1513 = vadd.f32 %v956, %v1285
      %v1514 = vadd.f32 %v957, %v1287
      %v1515 = vadd.f32 %v958, %v1286
      %v1516 = vadd.f32 %v959, %v1290
      %v1517 = vadd.f32 %v960, %v1292
      %v1518 = vadd.f32 %v961, %v1294
      %v1519 = vadd.f32 %v962, %v1293
      %v1520 = vadd.f32 %v963, %v1297
      %v1521 = vadd.f32 %v964, %v1299
      %v1522 = vadd.f32 %v965, %v1301
      %v1523 = vadd.f32 %v966, %v1300
      %v1524 = vadd.f32 %v967, %v1304
      %v1525 = vadd.f32 %v968, %v1306
      %v1526 = vadd.f32 %v969, %v1308
      %v1527 = vadd.f32 %v970, %v1307
      %v1528 = vadd.f32 %v971, %v1311
      %v1529 = vadd.f32 %v972, %v1313
      %v1530 = vadd.f32 %v973, %v1315
      %v1531 = vadd.f32 %v974, %v1314
      %v1532 = vadd.f32 %v975, %v1318
      %v1533 = vadd.f32 %v976, %v1320
      %v1534 = vadd.f32 %v977, %v1322
      %v1535 = vadd.f32 %v978, %v1321
      %v1536 = vadd.f32 %v979, %v1325
      %v1537 = vadd.f32 %v980, %v1327
      %v1538 = vadd.f32 %v981, %v1329
      %v1539 = vadd.f32 %v982, %v1328
      %v1540 = vadd.f32 %v983, %v1332
      %v1541 = vadd.f32 %v984, %v1334
      %v1542 = vadd.f32 %v985, %v1336
      %v1543 = vadd.f32 %v986, %v1335
      %v1544 = vadd.f32 %v987, %v1339
      %v1545 = vadd.f32 %v988, %v1341
      %v1546 = vadd.f32 %v989, %v1343
      %v1547 = vadd.f32 %v990, %v1342
      %v1548 = vadd.f32 %v991, %v1346
      %v1549 = vadd.f32 %v992, %v1348
      %v1550 = vadd.f32 %v993, %v1350
      %v1551 = vadd.f32 %v994, %v1349
      %v1552 = vadd.f32 %v995, %v1353
      %v1553 = vadd.f32 %v996, %v1355
      %v1554 = vadd.f32 %v997, %v1357
      %v1555 = vadd.f32 %v998, %v1356
      %v1556 = vadd.f32 %v999, %v1360
      %v1557 = vadd.f32 %v1000, %v1362
      %v1558 = vadd.f32 %v1001, %v1364
      %v1559 = vadd.f32 %v1002, %v1363
      %v1560 = vadd.f32 %v1003, %v1367
      %v1561 = vadd.f32 %v1004, %v1369
      %v1562 = vadd.f32 %v1005, %v1371
      %v1563 = vadd.f32 %v1006, %v1370
      %v1564 = vlaneseq
      %v1565 = vshrl.u32 %v1564, 7
      %v1566 = vsub.s32 2, %v1565
      %v1567 = vrot.slane %v329, %v1566
      %v1568 = vmul.f32 %v334, %v1567
      %v1569 = vmul.f32 %v339, %v1567
      %v1570 = vmul.f32 %v344, %v1567
      %v1571 = vmul.f32 %v349, %v1567
      %v1572 = vmul.f32 %v354, %v1567
      %v1573 = vmul.f32 %v359, %v1567
      %v1574 = vmul.f32 %v364, %v1567
      %v1575 = vmul.f32 %v369, %v1567
      %v1576 = vmul.f32 %v374, %v1567
      %v1577 = vmul.f32 %v379, %v1567
      %v1578 = vmul.f32 %v384, %v1567
      %v1579 = vmul.f32 %v389, %v1567
      %v1580 = vmul.f32 %v394, %v1567
      %v1581 = vmul.f32 %v399, %v1567
      %v1582 = vmul.f32 %v404, %v1567
      %v1583 = vmul.f32 %v409, %v1567
      %v1584 = vmul.f32 %v414, %v1567
      %v1585 = vmul.f32 %v419, %v1567
      %v1586 = vmul.f32 %v424, %v1567
      %v1587 = vmul.f32 %v429, %v1567
      %v1588 = vmul.f32 %v434, %v1567
      %v1589 = vmul.f32 %v439, %v1567
      %v1590 = vmul.f32 %v444, %v1567
      %v1591 = vmul.f32 %v449, %v1567
      %v1592 = vmul.f32 %v454, %v1567
      %v1593 = vmul.f32 %v459, %v1567
      %v1594 = vmul.f32 %v464, %v1567
      %v1595 = vmul.f32 %v469, %v1567
      %v1596 = vmul.f32 %v474, %v1567
      %v1597 = vmul.f32 %v479, %v1567
      %v1598 = vmul.f32 %v484, %v1567
      %v1599 = vmul.f32 %v489, %v1567
      %v1600 = vmul.f32 %v494, %v1567
      %v1601 = vmul.f32 %v499, %v1567
      %v1602 = vmul.f32 %v504, %v1567
      %v1603 = vmul.f32 %v509, %v1567
      %v1604 = vmul.f32 %v514, %v1567
      %v1605 = vmul.f32 %v519, %v1567
      %v1606 = vmul.f32 %v524, %v1567
      %v1607 = vmul.f32 %v529, %v1567
      %v1608 = vmul.f32 %v534, %v1567
      %v1609 = vmul.f32 %v539, %v1567
      %v1610 = vmul.f32 %v544, %v1567
      %v1611 = vmul.f32 %v549, %v1567
      %v1612 = vmul.f32 %v554, %v1567
      %v1613 = vmul.f32 %v559, %v1567
      %v1614 = vmul.f32 %v564, %v1567
      %v1615 = vmul.f32 %v569, %v1567
      %v1616 = vmul.f32 %v574, %v1567
      %v1617 = vmul.f32 %v579, %v1567
      %v1618 = vmul.f32 %v584, %v1567
      %v1619 = vmul.f32 %v589, %v1567
      %v1620 = vmul.f32 %v594, %v1567
      %v1621 = vmul.f32 %v599, %v1567
      %v1622 = vmul.f32 %v604, %v1567
      %v1623 = vmul.f32 %v609, %v1567
      %v1624 = vmul.f32 %v614, %v1567
      %v1625 = vmul.f32 %v619, %v1567
      %v1626 = vmul.f32 %v624, %v1567
      %v1627 = vmul.f32 %v629, %v1567
      %v1628 = vmul.f32 %v634, %v1567
      %v1629 = vmul.f32 %v639, %v1567
      %v1630 = vmul.f32 %v644, %v1567
      %v1631 = vmul.f32 %v649, %v1567
      %v1632 = vmul.f32 %v654, %v1567
      %v1633 = vmul.f32 %v659, %v1567
      %v1634 = vmul.f32 %v664, %v1567
      %v1635 = vmul.f32 %v669, %v1567
      %v1636 = vmul.f32 %v674, %v1567
      %v1637 = vmul.f32 %v679, %v1567
      %v1638 = vmul.f32 %v684, %v1567
      %v1639 = vmul.f32 %v689, %v1567
      %v1640 = vmul.f32 %v694, %v1567
      %v1641 = vmul.f32 %v699, %v1567
      %v1642 = vmul.f32 %v704, %v1567
      %v1643 = vmul.f32 %v709, %v1567
      %v1644 = vmul.f32 %v714, %v1567
      %v1645 = vmul.f32 %v719, %v1567
      %v1646 = vmul.f32 %v724, %v1567
      %v1647 = vmul.f32 %v729, %v1567
      %v1648 = vmul.f32 %v734, %v1567
      %v1649 = vmul.f32 %v739, %v1567
      %v1650 = vmul.f32 %v744, %v1567
      %v1651 = vmul.f32 %v749, %v1567
      %v1652 = vmul.f32 %v754, %v1567
      %v1653 = vmul.f32 %v759, %v1567
      %v1654 = vmul.f32 %v764, %v1567
      %v1655 = vmul.f32 %v769, %v1567
      %v1656 = vmul.f32 %v774, %v1567
      %v1657 = vmul.f32 %v779, %v1567
      %v1658 = vmul.f32 %v784, %v1567
      %v1659 = vmul.f32 %v789, %v1567
      %v1660 = vmul.f32 %v794, %v1567
      %v1661 = vmul.f32 %v799, %v1567
      %v1662 = vmul.f32 %v804, %v1567
      %v1663 = vmul.f32 %v809, %v1567
      %vm1760 = vcmask 1045504
      %v1761 = vrot.slane %v1568, 2
      %v1762 = vrot.slane %v1569, 2
      %v1763 = vsel %vm1760, %v1761, %v1762
      %v1764 = vrot.slane %v1570, 2
      %v1765 = vsel %vm1760, %v1762, %v1764
      %v1766 = vrot.slane %v1571, 2
      %v1767 = vsel %vm1760, %v1764, %v1766
      %v1768 = vrot.slane %v1572, 2
      %v1769 = vrot.slane %v1573, 2
      %v1770 = vsel %vm1760, %v1768, %v1769
      %v1771 = vrot.slane %v1574, 2
      %v1772 = vsel %vm1760, %v1769, %v1771
      %v1773 = vrot.slane %v1575, 2
      %v1774 = vsel %vm1760, %v1771, %v1773
      %v1775 = vrot.slane %v1576, 2
      %v1776 = vrot.slane %v1577, 2
      %v1777 = vsel %vm1760, %v1775, %v1776
      %v1778 = vrot.slane %v1578, 2
      %v1779 = vsel %vm1760, %v1776, %v1778
      %v1780 = vrot.slane %v1579, 2
      %v1781 = vsel %vm1760, %v1778, %v1780
      %v1782 = vrot.slane %v1580, 2
      %v1783 = vrot.slane %v1581, 2
      %v1784 = vsel %vm1760, %v1782, %v1783
      %v1785 = vrot.slane %v1582, 2
      %v1786 = vsel %vm1760, %v1783, %v1785
      %v1787 = vrot.slane %v1583, 2
      %v1788 = vsel %vm1760, %v1785, %v1787
      %v1789 = vrot.slane %v1584, 2
      %v1790 = vrot.slane %v1585, 2
      %v1791 = vsel %vm1760, %v1789, %v1790
      %v1792 = vrot.slane %v1586, 2
      %v1793 = vsel %vm1760, %v1790, %v1792
      %v1794 = vrot.slane %v1587, 2
      %v1795 = vsel %vm1760, %v1792, %v1794
      %v1796 = vrot.slane %v1588, 2
      %v1797 = vrot.slane %v1589, 2
      %v1798 = vsel %vm1760, %v1796, %v1797
      %v1799 = vrot.slane %v1590, 2
      %v1800 = vsel %vm1760, %v1797, %v1799
      %v1801 = vrot.slane %v1591, 2
      %v1802 = vsel %vm1760, %v1799, %v1801
      %v1803 = vrot.slane %v1592, 2
      %v1804 = vrot.slane %v1593, 2
      %v1805 = vsel %vm1760, %v1803, %v1804
      %v1806 = vrot.slane %v1594, 2
      %v1807 = vsel %vm1760, %v1804, %v1806
      %v1808 = vrot.slane %v1595, 2
      %v1809 = vsel %vm1760, %v1806, %v1808
      %v1810 = vrot.slane %v1596, 2
      %v1811 = vrot.slane %v1597, 2
      %v1812 = vsel %vm1760, %v1810, %v1811
      %v1813 = vrot.slane %v1598, 2
      %v1814 = vsel %vm1760, %v1811, %v1813
      %v1815 = vrot.slane %v1599, 2
      %v1816 = vsel %vm1760, %v1813, %v1815
      %v1817 = vrot.slane %v1600, 2
      %v1818 = vrot.slane %v1601, 2
      %v1819 = vsel %vm1760, %v1817, %v1818
      %v1820 = vrot.slane %v1602, 2
      %v1821 = vsel %vm1760, %v1818, %v1820
      %v1822 = vrot.slane %v1603, 2
      %v1823 = vsel %vm1760, %v1820, %v1822
      %v1824 = vrot.slane %v1604, 2
      %v1825 = vrot.slane %v1605, 2
      %v1826 = vsel %vm1760, %v1824, %v1825
      %v1827 = vrot.slane %v1606, 2
      %v1828 = vsel %vm1760, %v1825, %v1827
      %v1829 = vrot.slane %v1607, 2
      %v1830 = vsel %vm1760, %v1827, %v1829
      %v1831 = vrot.slane %v1608, 2
      %v1832 = vrot.slane %v1609, 2
      %v1833 = vsel %vm1760, %v1831, %v1832
      %v1834 = vrot.slane %v1610, 2
      %v1835 = vsel %vm1760, %v1832, %v1834
      %v1836 = vrot.slane %v1611, 2
      %v1837 = vsel %vm1760, %v1834, %v1836
      %v1838 = vrot.slane %v1612, 2
      %v1839 = vrot.slane %v1613, 2
      %v1840 = vsel %vm1760, %v1838, %v1839
      %v1841 = vrot.slane %v1614, 2
      %v1842 = vsel %vm1760, %v1839, %v1841
      %v1843 = vrot.slane %v1615, 2
      %v1844 = vsel %vm1760, %v1841, %v1843
      %v1845 = vrot.slane %v1616, 2
      %v1846 = vrot.slane %v1617, 2
      %v1847 = vsel %vm1760, %v1845, %v1846
      %v1848 = vrot.slane %v1618, 2
      %v1849 = vsel %vm1760, %v1846, %v1848
      %v1850 = vrot.slane %v1619, 2
      %v1851 = vsel %vm1760, %v1848, %v1850
      %v1852 = vrot.slane %v1620, 2
      %v1853 = vrot.slane %v1621, 2
      %v1854 = vsel %vm1760, %v1852, %v1853
      %v1855 = vrot.slane %v1622, 2
      %v1856 = vsel %vm1760, %v1853, %v1855
      %v1857 = vrot.slane %v1623, 2
      %v1858 = vsel %vm1760, %v1855, %v1857
      %v1859 = vrot.slane %v1624, 2
      %v1860 = vrot.slane %v1625, 2
      %v1861 = vsel %vm1760, %v1859, %v1860
      %v1862 = vrot.slane %v1626, 2
      %v1863 = vsel %vm1760, %v1860, %v1862
      %v1864 = vrot.slane %v1627, 2
      %v1865 = vsel %vm1760, %v1862, %v1864
      %v1866 = vrot.slane %v1628, 2
      %v1867 = vrot.slane %v1629, 2
      %v1868 = vsel %vm1760, %v1866, %v1867
      %v1869 = vrot.slane %v1630, 2
      %v1870 = vsel %vm1760, %v1867, %v1869
      %v1871 = vrot.slane %v1631, 2
      %v1872 = vsel %vm1760, %v1869, %v1871
      %v1873 = vrot.slane %v1632, 2
      %v1874 = vrot.slane %v1633, 2
      %v1875 = vsel %vm1760, %v1873, %v1874
      %v1876 = vrot.slane %v1634, 2
      %v1877 = vsel %vm1760, %v1874, %v1876
      %v1878 = vrot.slane %v1635, 2
      %v1879 = vsel %vm1760, %v1876, %v1878
      %v1880 = vrot.slane %v1636, 2
      %v1881 = vrot.slane %v1637, 2
      %v1882 = vsel %vm1760, %v1880, %v1881
      %v1883 = vrot.slane %v1638, 2
      %v1884 = vsel %vm1760, %v1881, %v1883
      %v1885 = vrot.slane %v1639, 2
      %v1886 = vsel %vm1760, %v1883, %v1885
      %v1887 = vrot.slane %v1640, 2
      %v1888 = vrot.slane %v1641, 2
      %v1889 = vsel %vm1760, %v1887, %v1888
      %v1890 = vrot.slane %v1642, 2
      %v1891 = vsel %vm1760, %v1888, %v1890
      %v1892 = vrot.slane %v1643, 2
      %v1893 = vsel %vm1760, %v1890, %v1892
      %v1894 = vrot.slane %v1644, 2
      %v1895 = vrot.slane %v1645, 2
      %v1896 = vsel %vm1760, %v1894, %v1895
      %v1897 = vrot.slane %v1646, 2
      %v1898 = vsel %vm1760, %v1895, %v1897
      %v1899 = vrot.slane %v1647, 2
      %v1900 = vsel %vm1760, %v1897, %v1899
      %v1901 = vrot.slane %v1648, 2
      %v1902 = vrot.slane %v1649, 2
      %v1903 = vsel %vm1760, %v1901, %v1902
      %v1904 = vrot.slane %v1650, 2
      %v1905 = vsel %vm1760, %v1902, %v1904
      %v1906 = vrot.slane %v1651, 2
      %v1907 = vsel %vm1760, %v1904, %v1906
      %v1908 = vrot.slane %v1652, 2
      %v1909 = vrot.slane %v1653, 2
      %v1910 = vsel %vm1760, %v1908, %v1909
      %v1911 = vrot.slane %v1654, 2
      %v1912 = vsel %vm1760, %v1909, %v1911
      %v1913 = vrot.slane %v1655, 2
      %v1914 = vsel %vm1760, %v1911, %v1913
      %v1915 = vrot.slane %v1656, 2
      %v1916 = vrot.slane %v1657, 2
      %v1917 = vsel %vm1760, %v1915, %v1916
      %v1918 = vrot.slane %v1658, 2
      %v1919 = vsel %vm1760, %v1916, %v1918
      %v1920 = vrot.slane %v1659, 2
      %v1921 = vsel %vm1760, %v1918, %v1920
      %v1922 = vrot.slane %v1660, 2
      %v1923 = vrot.slane %v1661, 2
      %v1924 = vsel %vm1760, %v1922, %v1923
      %v1925 = vrot.slane %v1662, 2
      %v1926 = vsel %vm1760, %v1923, %v1925
      %v1927 = vrot.slane %v1663, 2
      %v1928 = vsel %vm1760, %v1925, %v1927
      %v2025 = vadd.f32 %v1468, %v1763
      %v2026 = vadd.f32 %v1469, %v1765
      %v2027 = vadd.f32 %v1470, %v1767
      %v2028 = vadd.f32 %v1471, %v1766
      %v2029 = vadd.f32 %v1472, %v1770
      %v2030 = vadd.f32 %v1473, %v1772
      %v2031 = vadd.f32 %v1474, %v1774
      %v2032 = vadd.f32 %v1475, %v1773
      %v2033 = vadd.f32 %v1476, %v1777
      %v2034 = vadd.f32 %v1477, %v1779
      %v2035 = vadd.f32 %v1478, %v1781
      %v2036 = vadd.f32 %v1479, %v1780
      %v2037 = vadd.f32 %v1480, %v1784
      %v2038 = vadd.f32 %v1481, %v1786
      %v2039 = vadd.f32 %v1482, %v1788
      %v2040 = vadd.f32 %v1483, %v1787
      %v2041 = vadd.f32 %v1484, %v1791
      %v2042 = vadd.f32 %v1485, %v1793
      %v2043 = vadd.f32 %v1486, %v1795
      %v2044 = vadd.f32 %v1487, %v1794
      %v2045 = vadd.f32 %v1488, %v1798
      %v2046 = vadd.f32 %v1489, %v1800
      %v2047 = vadd.f32 %v1490, %v1802
      %v2048 = vadd.f32 %v1491, %v1801
      %v2049 = vadd.f32 %v1492, %v1805
      %v2050 = vadd.f32 %v1493, %v1807
      %v2051 = vadd.f32 %v1494, %v1809
      %v2052 = vadd.f32 %v1495, %v1808
      %v2053 = vadd.f32 %v1496, %v1812
      %v2054 = vadd.f32 %v1497, %v1814
      %v2055 = vadd.f32 %v1498, %v1816
      %v2056 = vadd.f32 %v1499, %v1815
      %v2057 = vadd.f32 %v1500, %v1819
      %v2058 = vadd.f32 %v1501, %v1821
      %v2059 = vadd.f32 %v1502, %v1823
      %v2060 = vadd.f32 %v1503, %v1822
      %v2061 = vadd.f32 %v1504, %v1826
      %v2062 = vadd.f32 %v1505, %v1828
      %v2063 = vadd.f32 %v1506, %v1830
      %v2064 = vadd.f32 %v1507, %v1829
      %v2065 = vadd.f32 %v1508, %v1833
      %v2066 = vadd.f32 %v1509, %v1835
      %v2067 = vadd.f32 %v1510, %v1837
      %v2068 = vadd.f32 %v1511, %v1836
      %v2069 = vadd.f32 %v1512, %v1840
      %v2070 = vadd.f32 %v1513, %v1842
      %v2071 = vadd.f32 %v1514, %v1844
      %v2072 = vadd.f32 %v1515, %v1843
      %v2073 = vadd.f32 %v1516, %v1847
      %v2074 = vadd.f32 %v1517, %v1849
      %v2075 = vadd.f32 %v1518, %v1851
      %v2076 = vadd.f32 %v1519, %v1850
      %v2077 = vadd.f32 %v1520, %v1854
      %v2078 = vadd.f32 %v1521, %v1856
      %v2079 = vadd.f32 %v1522, %v1858
      %v2080 = vadd.f32 %v1523, %v1857
      %v2081 = vadd.f32 %v1524, %v1861
      %v2082 = vadd.f32 %v1525, %v1863
      %v2083 = vadd.f32 %v1526, %v1865
      %v2084 = vadd.f32 %v1527, %v1864
      %v2085 = vadd.f32 %v1528, %v1868
      %v2086 = vadd.f32 %v1529, %v1870
      %v2087 = vadd.f32 %v1530, %v1872
      %v2088 = vadd.f32 %v1531, %v1871
      %v2089 = vadd.f32 %v1532, %v1875
      %v2090 = vadd.f32 %v1533, %v1877
      %v2091 = vadd.f32 %v1534, %v1879
      %v2092 = vadd.f32 %v1535, %v1878
      %v2093 = vadd.f32 %v1536, %v1882
      %v2094 = vadd.f32 %v1537, %v1884
      %v2095 = vadd.f32 %v1538, %v1886
      %v2096 = vadd.f32 %v1539, %v1885
      %v2097 = vadd.f32 %v1540, %v1889
      %v2098 = vadd.f32 %v1541, %v1891
      %v2099 = vadd.f32 %v1542, %v1893
      %v2100 = vadd.f32 %v1543, %v1892
      %v2101 = vadd.f32 %v1544, %v1896
      %v2102 = vadd.f32 %v1545, %v1898
      %v2103 = vadd.f32 %v1546, %v1900
      %v2104 = vadd.f32 %v1547, %v1899
      %v2105 = vadd.f32 %v1548, %v1903
      %v2106 = vadd.f32 %v1549, %v1905
      %v2107 = vadd.f32 %v1550, %v1907
      %v2108 = vadd.f32 %v1551, %v1906
      %v2109 = vadd.f32 %v1552, %v1910
      %v2110 = vadd.f32 %v1553, %v1912
      %v2111 = vadd.f32 %v1554, %v1914
      %v2112 = vadd.f32 %v1555, %v1913
      %v2113 = vadd.f32 %v1556, %v1917
      %v2114 = vadd.f32 %v1557, %v1919
      %v2115 = vadd.f32 %v1558, %v1921
      %v2116 = vadd.f32 %v1559, %v1920
      %v2117 = vadd.f32 %v1560, %v1924
      %v2118 = vadd.f32 %v1561, %v1926
      %v2119 = vadd.f32 %v1562, %v1928
      %v2120 = vadd.f32 %v1563, %v1927
      %2122 = vset.pattern.permute.xlu0 0
      %2123 = vperm.xlu0 %2122, %v321
      %v2124 = vpop.permute.xlu0 %2123
      %2127 = vset.pattern.permute.xlu0 0
      %2128 = vperm.xlu0 %2127, %v322
      %v2129 = vpop.permute.xlu0 %2128
      %2132 = vset.pattern.permute.xlu0 0
      %2133 = vperm.xlu0 %2132, %v323
      %v2134 = vpop.permute.xlu0 %2133
      %2137 = vset.pattern.permute.xlu0 0
      %2138 = vperm.xlu0 %2137, %v324
      %v2139 = vpop.permute.xlu0 %2138
      %v2141 = vlaneseq
      %v2142 = vshrl.u32 %v2141, 7
      %v2143 = vsub.s32 3, %v2142
      %v2144 = vrot.slane %v329, %v2143
      %v2145 = vmul.f32 %v354, %v2144
      %v2146 = vmul.f32 %v359, %v2144
      %v2147 = vmul.f32 %v364, %v2144
      %v2148 = vmul.f32 %v369, %v2144
      %v2149 = vmul.f32 %v374, %v2144
      %v2150 = vmul.f32 %v379, %v2144
      %v2151 = vmul.f32 %v384, %v2144
      %v2152 = vmul.f32 %v389, %v2144
      %v2153 = vmul.f32 %v394, %v2144
      %v2154 = vmul.f32 %v399, %v2144
      %v2155 = vmul.f32 %v404, %v2144
      %v2156 = vmul.f32 %v409, %v2144
      %v2157 = vmul.f32 %v414, %v2144
      %v2158 = vmul.f32 %v419, %v2144
      %v2159 = vmul.f32 %v424, %v2144
      %v2160 = vmul.f32 %v429, %v2144
      %v2161 = vmul.f32 %v434, %v2144
      %v2162 = vmul.f32 %v439, %v2144
      %v2163 = vmul.f32 %v444, %v2144
      %v2164 = vmul.f32 %v449, %v2144
      %v2165 = vmul.f32 %v454, %v2144
      %v2166 = vmul.f32 %v459, %v2144
      %v2167 = vmul.f32 %v464, %v2144
      %v2168 = vmul.f32 %v469, %v2144
      %v2169 = vmul.f32 %v474, %v2144
      %v2170 = vmul.f32 %v479, %v2144
      %v2171 = vmul.f32 %v484, %v2144
      %v2172 = vmul.f32 %v489, %v2144
      %v2173 = vmul.f32 %v494, %v2144
      %v2174 = vmul.f32 %v499, %v2144
      %v2175 = vmul.f32 %v504, %v2144
      %v2176 = vmul.f32 %v509, %v2144
      %v2177 = vmul.f32 %v514, %v2144
      %v2178 = vmul.f32 %v519, %v2144
      %v2179 = vmul.f32 %v524, %v2144
      %v2180 = vmul.f32 %v529, %v2144
      %v2181 = vmul.f32 %v534, %v2144
      %v2182 = vmul.f32 %v539, %v2144
      %v2183 = vmul.f32 %v544, %v2144
      %v2184 = vmul.f32 %v549, %v2144
      %v2185 = vmul.f32 %v554, %v2144
      %v2186 = vmul.f32 %v559, %v2144
      %v2187 = vmul.f32 %v564, %v2144
      %v2188 = vmul.f32 %v569, %v2144
      %v2189 = vmul.f32 %v574, %v2144
      %v2190 = vmul.f32 %v579, %v2144
      %v2191 = vmul.f32 %v584, %v2144
      %v2192 = vmul.f32 %v589, %v2144
      %v2193 = vmul.f32 %v594, %v2144
      %v2194 = vmul.f32 %v599, %v2144
      %v2195 = vmul.f32 %v604, %v2144
      %v2196 = vmul.f32 %v609, %v2144
      %v2197 = vmul.f32 %v614, %v2144
      %v2198 = vmul.f32 %v619, %v2144
      %v2199 = vmul.f32 %v624, %v2144
      %v2200 = vmul.f32 %v629, %v2144
      %v2201 = vmul.f32 %v634, %v2144
      %v2202 = vmul.f32 %v639, %v2144
      %v2203 = vmul.f32 %v644, %v2144
      %v2204 = vmul.f32 %v649, %v2144
      %v2205 = vmul.f32 %v654, %v2144
      %v2206 = vmul.f32 %v659, %v2144
      %v2207 = vmul.f32 %v664, %v2144
      %v2208 = vmul.f32 %v669, %v2144
      %v2209 = vmul.f32 %v674, %v2144
      %v2210 = vmul.f32 %v679, %v2144
      %v2211 = vmul.f32 %v684, %v2144
      %v2212 = vmul.f32 %v689, %v2144
      %v2213 = vmul.f32 %v694, %v2144
      %v2214 = vmul.f32 %v699, %v2144
      %v2215 = vmul.f32 %v704, %v2144
      %v2216 = vmul.f32 %v709, %v2144
      %v2217 = vmul.f32 %v714, %v2144
      %v2218 = vmul.f32 %v719, %v2144
      %v2219 = vmul.f32 %v724, %v2144
      %v2220 = vmul.f32 %v729, %v2144
      %v2221 = vmul.f32 %v734, %v2144
      %v2222 = vmul.f32 %v739, %v2144
      %v2223 = vmul.f32 %v744, %v2144
      %v2224 = vmul.f32 %v749, %v2144
      %v2225 = vmul.f32 %v754, %v2144
      %v2226 = vmul.f32 %v759, %v2144
      %v2227 = vmul.f32 %v764, %v2144
      %v2228 = vmul.f32 %v769, %v2144
      %v2229 = vmul.f32 %v774, %v2144
      %v2230 = vmul.f32 %v779, %v2144
      %v2231 = vmul.f32 %v784, %v2144
      %v2232 = vmul.f32 %v789, %v2144
      %v2233 = vmul.f32 %v794, %v2144
      %v2234 = vmul.f32 %v799, %v2144
      %v2235 = vmul.f32 %v804, %v2144
      %v2236 = vmul.f32 %v809, %v2144
      %v2237 = vmul.f32 %v2124, %v2144
      %v2238 = vmul.f32 %v2129, %v2144
      %v2239 = vmul.f32 %v2134, %v2144
      %v2240 = vmul.f32 %v2139, %v2144
      %v2241 = vadd.f32 %v2025, %v2145
      %v2242 = vadd.f32 %v2026, %v2146
      %v2243 = vadd.f32 %v2027, %v2147
      %v2244 = vadd.f32 %v2028, %v2148
      %v2245 = vadd.f32 %v2029, %v2149
      %v2246 = vadd.f32 %v2030, %v2150
      %v2247 = vadd.f32 %v2031, %v2151
      %v2248 = vadd.f32 %v2032, %v2152
      %v2249 = vadd.f32 %v2033, %v2153
      %v2250 = vadd.f32 %v2034, %v2154
      %v2251 = vadd.f32 %v2035, %v2155
      %v2252 = vadd.f32 %v2036, %v2156
      %v2253 = vadd.f32 %v2037, %v2157
      %v2254 = vadd.f32 %v2038, %v2158
      %v2255 = vadd.f32 %v2039, %v2159
      %v2256 = vadd.f32 %v2040, %v2160
      %v2257 = vadd.f32 %v2041, %v2161
      %v2258 = vadd.f32 %v2042, %v2162
      %v2259 = vadd.f32 %v2043, %v2163
      %v2260 = vadd.f32 %v2044, %v2164
      %v2261 = vadd.f32 %v2045, %v2165
      %v2262 = vadd.f32 %v2046, %v2166
      %v2263 = vadd.f32 %v2047, %v2167
      %v2264 = vadd.f32 %v2048, %v2168
      %v2265 = vadd.f32 %v2049, %v2169
      %v2266 = vadd.f32 %v2050, %v2170
      %v2267 = vadd.f32 %v2051, %v2171
      %v2268 = vadd.f32 %v2052, %v2172
      %v2269 = vadd.f32 %v2053, %v2173
      %v2270 = vadd.f32 %v2054, %v2174
      %v2271 = vadd.f32 %v2055, %v2175
      %v2272 = vadd.f32 %v2056, %v2176
      %v2273 = vadd.f32 %v2057, %v2177
      %v2274 = vadd.f32 %v2058, %v2178
      %v2275 = vadd.f32 %v2059, %v2179
      %v2276 = vadd.f32 %v2060, %v2180
      %v2277 = vadd.f32 %v2061, %v2181
      %v2278 = vadd.f32 %v2062, %v2182
      %v2279 = vadd.f32 %v2063, %v2183
      %v2280 = vadd.f32 %v2064, %v2184
      %v2281 = vadd.f32 %v2065, %v2185
      %v2282 = vadd.f32 %v2066, %v2186
      %v2283 = vadd.f32 %v2067, %v2187
      %v2284 = vadd.f32 %v2068, %v2188
      %v2285 = vadd.f32 %v2069, %v2189
      %v2286 = vadd.f32 %v2070, %v2190
      %v2287 = vadd.f32 %v2071, %v2191
      %v2288 = vadd.f32 %v2072, %v2192
      %v2289 = vadd.f32 %v2073, %v2193
      %v2290 = vadd.f32 %v2074, %v2194
      %v2291 = vadd.f32 %v2075, %v2195
      %v2292 = vadd.f32 %v2076, %v2196
      %v2293 = vadd.f32 %v2077, %v2197
      %v2294 = vadd.f32 %v2078, %v2198
      %v2295 = vadd.f32 %v2079, %v2199
      %v2296 = vadd.f32 %v2080, %v2200
      %v2297 = vadd.f32 %v2081, %v2201
      %v2298 = vadd.f32 %v2082, %v2202
      %v2299 = vadd.f32 %v2083, %v2203
      %v2300 = vadd.f32 %v2084, %v2204
      %v2301 = vadd.f32 %v2085, %v2205
      %v2302 = vadd.f32 %v2086, %v2206
      %v2303 = vadd.f32 %v2087, %v2207
      %v2304 = vadd.f32 %v2088, %v2208
      %v2305 = vadd.f32 %v2089, %v2209
      %v2306 = vadd.f32 %v2090, %v2210
      %v2307 = vadd.f32 %v2091, %v2211
      %v2308 = vadd.f32 %v2092, %v2212
      %v2309 = vadd.f32 %v2093, %v2213
      %v2310 = vadd.f32 %v2094, %v2214
      %v2311 = vadd.f32 %v2095, %v2215
      %v2312 = vadd.f32 %v2096, %v2216
      %v2313 = vadd.f32 %v2097, %v2217
      %v2314 = vadd.f32 %v2098, %v2218
      %v2315 = vadd.f32 %v2099, %v2219
      %v2316 = vadd.f32 %v2100, %v2220
      %v2317 = vadd.f32 %v2101, %v2221
      %v2318 = vadd.f32 %v2102, %v2222
      %v2319 = vadd.f32 %v2103, %v2223
      %v2320 = vadd.f32 %v2104, %v2224
      %v2321 = vadd.f32 %v2105, %v2225
      %v2322 = vadd.f32 %v2106, %v2226
      %v2323 = vadd.f32 %v2107, %v2227
      %v2324 = vadd.f32 %v2108, %v2228
      %v2325 = vadd.f32 %v2109, %v2229
      %v2326 = vadd.f32 %v2110, %v2230
      %v2327 = vadd.f32 %v2111, %v2231
      %v2328 = vadd.f32 %v2112, %v2232
      %v2329 = vadd.f32 %v2113, %v2233
      %v2330 = vadd.f32 %v2114, %v2234
      %v2331 = vadd.f32 %v2115, %v2235
      %v2332 = vadd.f32 %v2116, %v2236
      %v2333 = vadd.f32 %v2117, %v2237
      %v2334 = vadd.f32 %v2118, %v2238
      %v2335 = vadd.f32 %v2119, %v2239
      %v2336 = vadd.f32 %v2120, %v2240
      %v2337 = vlaneseq
      %v2338 = vshrl.u32 %v2337, 7
      %v2339 = vsub.s32 4, %v2338
      %v2340 = vrot.slane %v329, %v2339
      %v2341 = vmul.f32 %v354, %v2340
      %v2342 = vmul.f32 %v359, %v2340
      %v2343 = vmul.f32 %v364, %v2340
      %v2344 = vmul.f32 %v369, %v2340
      %v2345 = vmul.f32 %v374, %v2340
      %v2346 = vmul.f32 %v379, %v2340
      %v2347 = vmul.f32 %v384, %v2340
      %v2348 = vmul.f32 %v389, %v2340
      %v2349 = vmul.f32 %v394, %v2340
      %v2350 = vmul.f32 %v399, %v2340
      %v2351 = vmul.f32 %v404, %v2340
      %v2352 = vmul.f32 %v409, %v2340
      %v2353 = vmul.f32 %v414, %v2340
      %v2354 = vmul.f32 %v419, %v2340
      %v2355 = vmul.f32 %v424, %v2340
      %v2356 = vmul.f32 %v429, %v2340
      %v2357 = vmul.f32 %v434, %v2340
      %v2358 = vmul.f32 %v439, %v2340
      %v2359 = vmul.f32 %v444, %v2340
      %v2360 = vmul.f32 %v449, %v2340
      %v2361 = vmul.f32 %v454, %v2340
      %v2362 = vmul.f32 %v459, %v2340
      %v2363 = vmul.f32 %v464, %v2340
      %v2364 = vmul.f32 %v469, %v2340
      %v2365 = vmul.f32 %v474, %v2340
      %v2366 = vmul.f32 %v479, %v2340
      %v2367 = vmul.f32 %v484, %v2340
      %v2368 = vmul.f32 %v489, %v2340
      %v2369 = vmul.f32 %v494, %v2340
      %v2370 = vmul.f32 %v499, %v2340
      %v2371 = vmul.f32 %v504, %v2340
      %v2372 = vmul.f32 %v509, %v2340
      %v2373 = vmul.f32 %v514, %v2340
      %v2374 = vmul.f32 %v519, %v2340
      %v2375 = vmul.f32 %v524, %v2340
      %v2376 = vmul.f32 %v529, %v2340
      %v2377 = vmul.f32 %v534, %v2340
      %v2378 = vmul.f32 %v539, %v2340
      %v2379 = vmul.f32 %v544, %v2340
      %v2380 = vmul.f32 %v549, %v2340
      %v2381 = vmul.f32 %v554, %v2340
      %v2382 = vmul.f32 %v559, %v2340
      %v2383 = vmul.f32 %v564, %v2340
      %v2384 = vmul.f32 %v569, %v2340
      %v2385 = vmul.f32 %v574, %v2340
      %v2386 = vmul.f32 %v579, %v2340
      %v2387 = vmul.f32 %v584, %v2340
      %v2388 = vmul.f32 %v589, %v2340
      %v2389 = vmul.f32 %v594, %v2340
      %v2390 = vmul.f32 %v599, %v2340
      %v2391 = vmul.f32 %v604, %v2340
      %v2392 = vmul.f32 %v609, %v2340
      %v2393 = vmul.f32 %v614, %v2340
      %v2394 = vmul.f32 %v619, %v2340
      %v2395 = vmul.f32 %v624, %v2340
      %v2396 = vmul.f32 %v629, %v2340
      %v2397 = vmul.f32 %v634, %v2340
      %v2398 = vmul.f32 %v639, %v2340
      %v2399 = vmul.f32 %v644, %v2340
      %v2400 = vmul.f32 %v649, %v2340
      %v2401 = vmul.f32 %v654, %v2340
      %v2402 = vmul.f32 %v659, %v2340
      %v2403 = vmul.f32 %v664, %v2340
      %v2404 = vmul.f32 %v669, %v2340
      %v2405 = vmul.f32 %v674, %v2340
      %v2406 = vmul.f32 %v679, %v2340
      %v2407 = vmul.f32 %v684, %v2340
      %v2408 = vmul.f32 %v689, %v2340
      %v2409 = vmul.f32 %v694, %v2340
      %v2410 = vmul.f32 %v699, %v2340
      %v2411 = vmul.f32 %v704, %v2340
      %v2412 = vmul.f32 %v709, %v2340
      %v2413 = vmul.f32 %v714, %v2340
      %v2414 = vmul.f32 %v719, %v2340
      %v2415 = vmul.f32 %v724, %v2340
      %v2416 = vmul.f32 %v729, %v2340
      %v2417 = vmul.f32 %v734, %v2340
      %v2418 = vmul.f32 %v739, %v2340
      %v2419 = vmul.f32 %v744, %v2340
      %v2420 = vmul.f32 %v749, %v2340
      %v2421 = vmul.f32 %v754, %v2340
      %v2422 = vmul.f32 %v759, %v2340
      %v2423 = vmul.f32 %v764, %v2340
      %v2424 = vmul.f32 %v769, %v2340
      %v2425 = vmul.f32 %v774, %v2340
      %v2426 = vmul.f32 %v779, %v2340
      %v2427 = vmul.f32 %v784, %v2340
      %v2428 = vmul.f32 %v789, %v2340
      %v2429 = vmul.f32 %v794, %v2340
      %v2430 = vmul.f32 %v799, %v2340
      %v2431 = vmul.f32 %v804, %v2340
      %v2432 = vmul.f32 %v809, %v2340
      %v2433 = vmul.f32 %v2124, %v2340
      %v2434 = vmul.f32 %v2129, %v2340
      %v2435 = vmul.f32 %v2134, %v2340
      %v2436 = vmul.f32 %v2139, %v2340
      %v2533 = vrot.slane %v2341, 1
      %v2534 = vrot.slane %v2342, 1
      %v2535 = vsel %vm1203, %v2533, %v2534
      %v2536 = vrot.slane %v2343, 1
      %v2537 = vsel %vm1203, %v2534, %v2536
      %v2538 = vrot.slane %v2344, 1
      %v2539 = vsel %vm1203, %v2536, %v2538
      %v2540 = vrot.slane %v2345, 1
      %v2541 = vrot.slane %v2346, 1
      %v2542 = vsel %vm1203, %v2540, %v2541
      %v2543 = vrot.slane %v2347, 1
      %v2544 = vsel %vm1203, %v2541, %v2543
      %v2545 = vrot.slane %v2348, 1
      %v2546 = vsel %vm1203, %v2543, %v2545
      %v2547 = vrot.slane %v2349, 1
      %v2548 = vrot.slane %v2350, 1
      %v2549 = vsel %vm1203, %v2547, %v2548
      %v2550 = vrot.slane %v2351, 1
      %v2551 = vsel %vm1203, %v2548, %v2550
      %v2552 = vrot.slane %v2352, 1
      %v2553 = vsel %vm1203, %v2550, %v2552
      %v2554 = vrot.slane %v2353, 1
      %v2555 = vrot.slane %v2354, 1
      %v2556 = vsel %vm1203, %v2554, %v2555
      %v2557 = vrot.slane %v2355, 1
      %v2558 = vsel %vm1203, %v2555, %v2557
      %v2559 = vrot.slane %v2356, 1
      %v2560 = vsel %vm1203, %v2557, %v2559
      %v2561 = vrot.slane %v2357, 1
      %v2562 = vrot.slane %v2358, 1
      %v2563 = vsel %vm1203, %v2561, %v2562
      %v2564 = vrot.slane %v2359, 1
      %v2565 = vsel %vm1203, %v2562, %v2564
      %v2566 = vrot.slane %v2360, 1
      %v2567 = vsel %vm1203, %v2564, %v2566
      %v2568 = vrot.slane %v2361, 1
      %v2569 = vrot.slane %v2362, 1
      %v2570 = vsel %vm1203, %v2568, %v2569
      %v2571 = vrot.slane %v2363, 1
      %v2572 = vsel %vm1203, %v2569, %v2571
      %v2573 = vrot.slane %v2364, 1
      %v2574 = vsel %vm1203, %v2571, %v2573
      %v2575 = vrot.slane %v2365, 1
      %v2576 = vrot.slane %v2366, 1
      %v2577 = vsel %vm1203, %v2575, %v2576
      %v2578 = vrot.slane %v2367, 1
      %v2579 = vsel %vm1203, %v2576, %v2578
      %v2580 = vrot.slane %v2368, 1
      %v2581 = vsel %vm1203, %v2578, %v2580
      %v2582 = vrot.slane %v2369, 1
      %v2583 = vrot.slane %v2370, 1
      %v2584 = vsel %vm1203, %v2582, %v2583
      %v2585 = vrot.slane %v2371, 1
      %v2586 = vsel %vm1203, %v2583, %v2585
      %v2587 = vrot.slane %v2372, 1
      %v2588 = vsel %vm1203, %v2585, %v2587
      %v2589 = vrot.slane %v2373, 1
      %v2590 = vrot.slane %v2374, 1
      %v2591 = vsel %vm1203, %v2589, %v2590
      %v2592 = vrot.slane %v2375, 1
      %v2593 = vsel %vm1203, %v2590, %v2592
      %v2594 = vrot.slane %v2376, 1
      %v2595 = vsel %vm1203, %v2592, %v2594
      %v2596 = vrot.slane %v2377, 1
      %v2597 = vrot.slane %v2378, 1
      %v2598 = vsel %vm1203, %v2596, %v2597
      %v2599 = vrot.slane %v2379, 1
      %v2600 = vsel %vm1203, %v2597, %v2599
      %v2601 = vrot.slane %v2380, 1
      %v2602 = vsel %vm1203, %v2599, %v2601
      %v2603 = vrot.slane %v2381, 1
      %v2604 = vrot.slane %v2382, 1
      %v2605 = vsel %vm1203, %v2603, %v2604
      %v2606 = vrot.slane %v2383, 1
      %v2607 = vsel %vm1203, %v2604, %v2606
      %v2608 = vrot.slane %v2384, 1
      %v2609 = vsel %vm1203, %v2606, %v2608
      %v2610 = vrot.slane %v2385, 1
      %v2611 = vrot.slane %v2386, 1
      %v2612 = vsel %vm1203, %v2610, %v2611
      %v2613 = vrot.slane %v2387, 1
      %v2614 = vsel %vm1203, %v2611, %v2613
      %v2615 = vrot.slane %v2388, 1
      %v2616 = vsel %vm1203, %v2613, %v2615
      %v2617 = vrot.slane %v2389, 1
      %v2618 = vrot.slane %v2390, 1
      %v2619 = vsel %vm1203, %v2617, %v2618
      %v2620 = vrot.slane %v2391, 1
      %v2621 = vsel %vm1203, %v2618, %v2620
      %v2622 = vrot.slane %v2392, 1
      %v2623 = vsel %vm1203, %v2620, %v2622
      %v2624 = vrot.slane %v2393, 1
      %v2625 = vrot.slane %v2394, 1
      %v2626 = vsel %vm1203, %v2624, %v2625
      %v2627 = vrot.slane %v2395, 1
      %v2628 = vsel %vm1203, %v2625, %v2627
      %v2629 = vrot.slane %v2396, 1
      %v2630 = vsel %vm1203, %v2627, %v2629
      %v2631 = vrot.slane %v2397, 1
      %v2632 = vrot.slane %v2398, 1
      %v2633 = vsel %vm1203, %v2631, %v2632
      %v2634 = vrot.slane %v2399, 1
      %v2635 = vsel %vm1203, %v2632, %v2634
      %v2636 = vrot.slane %v2400, 1
      %v2637 = vsel %vm1203, %v2634, %v2636
      %v2638 = vrot.slane %v2401, 1
      %v2639 = vrot.slane %v2402, 1
      %v2640 = vsel %vm1203, %v2638, %v2639
      %v2641 = vrot.slane %v2403, 1
      %v2642 = vsel %vm1203, %v2639, %v2641
      %v2643 = vrot.slane %v2404, 1
      %v2644 = vsel %vm1203, %v2641, %v2643
      %v2645 = vrot.slane %v2405, 1
      %v2646 = vrot.slane %v2406, 1
      %v2647 = vsel %vm1203, %v2645, %v2646
      %v2648 = vrot.slane %v2407, 1
      %v2649 = vsel %vm1203, %v2646, %v2648
      %v2650 = vrot.slane %v2408, 1
      %v2651 = vsel %vm1203, %v2648, %v2650
      %v2652 = vrot.slane %v2409, 1
      %v2653 = vrot.slane %v2410, 1
      %v2654 = vsel %vm1203, %v2652, %v2653
      %v2655 = vrot.slane %v2411, 1
      %v2656 = vsel %vm1203, %v2653, %v2655
      %v2657 = vrot.slane %v2412, 1
      %v2658 = vsel %vm1203, %v2655, %v2657
      %v2659 = vrot.slane %v2413, 1
      %v2660 = vrot.slane %v2414, 1
      %v2661 = vsel %vm1203, %v2659, %v2660
      %v2662 = vrot.slane %v2415, 1
      %v2663 = vsel %vm1203, %v2660, %v2662
      %v2664 = vrot.slane %v2416, 1
      %v2665 = vsel %vm1203, %v2662, %v2664
      %v2666 = vrot.slane %v2417, 1
      %v2667 = vrot.slane %v2418, 1
      %v2668 = vsel %vm1203, %v2666, %v2667
      %v2669 = vrot.slane %v2419, 1
      %v2670 = vsel %vm1203, %v2667, %v2669
      %v2671 = vrot.slane %v2420, 1
      %v2672 = vsel %vm1203, %v2669, %v2671
      %v2673 = vrot.slane %v2421, 1
      %v2674 = vrot.slane %v2422, 1
      %v2675 = vsel %vm1203, %v2673, %v2674
      %v2676 = vrot.slane %v2423, 1
      %v2677 = vsel %vm1203, %v2674, %v2676
      %v2678 = vrot.slane %v2424, 1
      %v2679 = vsel %vm1203, %v2676, %v2678
      %v2680 = vrot.slane %v2425, 1
      %v2681 = vrot.slane %v2426, 1
      %v2682 = vsel %vm1203, %v2680, %v2681
      %v2683 = vrot.slane %v2427, 1
      %v2684 = vsel %vm1203, %v2681, %v2683
      %v2685 = vrot.slane %v2428, 1
      %v2686 = vsel %vm1203, %v2683, %v2685
      %v2687 = vrot.slane %v2429, 1
      %v2688 = vrot.slane %v2430, 1
      %v2689 = vsel %vm1203, %v2687, %v2688
      %v2690 = vrot.slane %v2431, 1
      %v2691 = vsel %vm1203, %v2688, %v2690
      %v2692 = vrot.slane %v2432, 1
      %v2693 = vsel %vm1203, %v2690, %v2692
      %v2694 = vrot.slane %v2433, 1
      %v2695 = vrot.slane %v2434, 1
      %v2696 = vsel %vm1203, %v2694, %v2695
      %v2697 = vrot.slane %v2435, 1
      %v2698 = vsel %vm1203, %v2695, %v2697
      %v2699 = vrot.slane %v2436, 1
      %v2700 = vsel %vm1203, %v2697, %v2699
      %v2797 = vadd.f32 %v2241, %v2535
      %v2798 = vadd.f32 %v2242, %v2537
      %v2799 = vadd.f32 %v2243, %v2539
      %v2800 = vadd.f32 %v2244, %v2538
      %v2801 = vadd.f32 %v2245, %v2542
      %v2802 = vadd.f32 %v2246, %v2544
      %v2803 = vadd.f32 %v2247, %v2546
      %v2804 = vadd.f32 %v2248, %v2545
      %v2805 = vadd.f32 %v2249, %v2549
      %v2806 = vadd.f32 %v2250, %v2551
      %v2807 = vadd.f32 %v2251, %v2553
      %v2808 = vadd.f32 %v2252, %v2552
      %v2809 = vadd.f32 %v2253, %v2556
      %v2810 = vadd.f32 %v2254, %v2558
      %v2811 = vadd.f32 %v2255, %v2560
      %v2812 = vadd.f32 %v2256, %v2559
      %v2813 = vadd.f32 %v2257, %v2563
      %v2814 = vadd.f32 %v2258, %v2565
      %v2815 = vadd.f32 %v2259, %v2567
      %v2816 = vadd.f32 %v2260, %v2566
      %v2817 = vadd.f32 %v2261, %v2570
      %v2818 = vadd.f32 %v2262, %v2572
      %v2819 = vadd.f32 %v2263, %v2574
      %v2820 = vadd.f32 %v2264, %v2573
      %v2821 = vadd.f32 %v2265, %v2577
      %v2822 = vadd.f32 %v2266, %v2579
      %v2823 = vadd.f32 %v2267, %v2581
      %v2824 = vadd.f32 %v2268, %v2580
      %v2825 = vadd.f32 %v2269, %v2584
      %v2826 = vadd.f32 %v2270, %v2586
      %v2827 = vadd.f32 %v2271, %v2588
      %v2828 = vadd.f32 %v2272, %v2587
      %v2829 = vadd.f32 %v2273, %v2591
      %v2830 = vadd.f32 %v2274, %v2593
      %v2831 = vadd.f32 %v2275, %v2595
      %v2832 = vadd.f32 %v2276, %v2594
      %v2833 = vadd.f32 %v2277, %v2598
      %v2834 = vadd.f32 %v2278, %v2600
      %v2835 = vadd.f32 %v2279, %v2602
      %v2836 = vadd.f32 %v2280, %v2601
      %v2837 = vadd.f32 %v2281, %v2605
      %v2838 = vadd.f32 %v2282, %v2607
      %v2839 = vadd.f32 %v2283, %v2609
      %v2840 = vadd.f32 %v2284, %v2608
      %v2841 = vadd.f32 %v2285, %v2612
      %v2842 = vadd.f32 %v2286, %v2614
      %v2843 = vadd.f32 %v2287, %v2616
      %v2844 = vadd.f32 %v2288, %v2615
      %v2845 = vadd.f32 %v2289, %v2619
      %v2846 = vadd.f32 %v2290, %v2621
      %v2847 = vadd.f32 %v2291, %v2623
      %v2848 = vadd.f32 %v2292, %v2622
      %v2849 = vadd.f32 %v2293, %v2626
      %v2850 = vadd.f32 %v2294, %v2628
      %v2851 = vadd.f32 %v2295, %v2630
      %v2852 = vadd.f32 %v2296, %v2629
      %v2853 = vadd.f32 %v2297, %v2633
      %v2854 = vadd.f32 %v2298, %v2635
      %v2855 = vadd.f32 %v2299, %v2637
      %v2856 = vadd.f32 %v2300, %v2636
      %v2857 = vadd.f32 %v2301, %v2640
      %v2858 = vadd.f32 %v2302, %v2642
      %v2859 = vadd.f32 %v2303, %v2644
      %v2860 = vadd.f32 %v2304, %v2643
      %v2861 = vadd.f32 %v2305, %v2647
      %v2862 = vadd.f32 %v2306, %v2649
      %v2863 = vadd.f32 %v2307, %v2651
      %v2864 = vadd.f32 %v2308, %v2650
      %v2865 = vadd.f32 %v2309, %v2654
      %v2866 = vadd.f32 %v2310, %v2656
      %v2867 = vadd.f32 %v2311, %v2658
      %v2868 = vadd.f32 %v2312, %v2657
      %v2869 = vadd.f32 %v2313, %v2661
      %v2870 = vadd.f32 %v2314, %v2663
      %v2871 = vadd.f32 %v2315, %v2665
      %v2872 = vadd.f32 %v2316, %v2664
      %v2873 = vadd.f32 %v2317, %v2668
      %v2874 = vadd.f32 %v2318, %v2670
      %v2875 = vadd.f32 %v2319, %v2672
      %v2876 = vadd.f32 %v2320, %v2671
      %v2877 = vadd.f32 %v2321, %v2675
      %v2878 = vadd.f32 %v2322, %v2677
      %v2879 = vadd.f32 %v2323, %v2679
      %v2880 = vadd.f32 %v2324, %v2678
      %v2881 = vadd.f32 %v2325, %v2682
      %v2882 = vadd.f32 %v2326, %v2684
      %v2883 = vadd.f32 %v2327, %v2686
      %v2884 = vadd.f32 %v2328, %v2685
      %v2885 = vadd.f32 %v2329, %v2689
      %v2886 = vadd.f32 %v2330, %v2691
      %v2887 = vadd.f32 %v2331, %v2693
      %v2888 = vadd.f32 %v2332, %v2692
      %v2889 = vadd.f32 %v2333, %v2696
      %v2890 = vadd.f32 %v2334, %v2698
      %v2891 = vadd.f32 %v2335, %v2700
      %v2892 = vadd.f32 %v2336, %v2699
      %v2893 = vlaneseq
      %v2894 = vshrl.u32 %v2893, 7
      %v2895 = vsub.s32 5, %v2894
      %v2896 = vrot.slane %v329, %v2895
      %v2897 = vmul.f32 %v354, %v2896
      %v2898 = vmul.f32 %v359, %v2896
      %v2899 = vmul.f32 %v364, %v2896
      %v2900 = vmul.f32 %v369, %v2896
      %v2901 = vmul.f32 %v374, %v2896
      %v2902 = vmul.f32 %v379, %v2896
      %v2903 = vmul.f32 %v384, %v2896
      %v2904 = vmul.f32 %v389, %v2896
      %v2905 = vmul.f32 %v394, %v2896
      %v2906 = vmul.f32 %v399, %v2896
      %v2907 = vmul.f32 %v404, %v2896
      %v2908 = vmul.f32 %v409, %v2896
      %v2909 = vmul.f32 %v414, %v2896
      %v2910 = vmul.f32 %v419, %v2896
      %v2911 = vmul.f32 %v424, %v2896
      %v2912 = vmul.f32 %v429, %v2896
      %v2913 = vmul.f32 %v434, %v2896
      %v2914 = vmul.f32 %v439, %v2896
      %v2915 = vmul.f32 %v444, %v2896
      %v2916 = vmul.f32 %v449, %v2896
      %v2917 = vmul.f32 %v454, %v2896
      %v2918 = vmul.f32 %v459, %v2896
      %v2919 = vmul.f32 %v464, %v2896
      %v2920 = vmul.f32 %v469, %v2896
      %v2921 = vmul.f32 %v474, %v2896
      %v2922 = vmul.f32 %v479, %v2896
      %v2923 = vmul.f32 %v484, %v2896
      %v2924 = vmul.f32 %v489, %v2896
      %v2925 = vmul.f32 %v494, %v2896
      %v2926 = vmul.f32 %v499, %v2896
      %v2927 = vmul.f32 %v504, %v2896
      %v2928 = vmul.f32 %v509, %v2896
      %v2929 = vmul.f32 %v514, %v2896
      %v2930 = vmul.f32 %v519, %v2896
      %v2931 = vmul.f32 %v524, %v2896
      %v2932 = vmul.f32 %v529, %v2896
      %v2933 = vmul.f32 %v534, %v2896
      %v2934 = vmul.f32 %v539, %v2896
      %v2935 = vmul.f32 %v544, %v2896
      %v2936 = vmul.f32 %v549, %v2896
      %v2937 = vmul.f32 %v554, %v2896
      %v2938 = vmul.f32 %v559, %v2896
      %v2939 = vmul.f32 %v564, %v2896
      %v2940 = vmul.f32 %v569, %v2896
      %v2941 = vmul.f32 %v574, %v2896
      %v2942 = vmul.f32 %v579, %v2896
      %v2943 = vmul.f32 %v584, %v2896
      %v2944 = vmul.f32 %v589, %v2896
      %v2945 = vmul.f32 %v594, %v2896
      %v2946 = vmul.f32 %v599, %v2896
      %v2947 = vmul.f32 %v604, %v2896
      %v2948 = vmul.f32 %v609, %v2896
      %v2949 = vmul.f32 %v614, %v2896
      %v2950 = vmul.f32 %v619, %v2896
      %v2951 = vmul.f32 %v624, %v2896
      %v2952 = vmul.f32 %v629, %v2896
      %v2953 = vmul.f32 %v634, %v2896
      %v2954 = vmul.f32 %v639, %v2896
      %v2955 = vmul.f32 %v644, %v2896
      %v2956 = vmul.f32 %v649, %v2896
      %v2957 = vmul.f32 %v654, %v2896
      %v2958 = vmul.f32 %v659, %v2896
      %v2959 = vmul.f32 %v664, %v2896
      %v2960 = vmul.f32 %v669, %v2896
      %v2961 = vmul.f32 %v674, %v2896
      %v2962 = vmul.f32 %v679, %v2896
      %v2963 = vmul.f32 %v684, %v2896
      %v2964 = vmul.f32 %v689, %v2896
      %v2965 = vmul.f32 %v694, %v2896
      %v2966 = vmul.f32 %v699, %v2896
      %v2967 = vmul.f32 %v704, %v2896
      %v2968 = vmul.f32 %v709, %v2896
      %v2969 = vmul.f32 %v714, %v2896
      %v2970 = vmul.f32 %v719, %v2896
      %v2971 = vmul.f32 %v724, %v2896
      %v2972 = vmul.f32 %v729, %v2896
      %v2973 = vmul.f32 %v734, %v2896
      %v2974 = vmul.f32 %v739, %v2896
      %v2975 = vmul.f32 %v744, %v2896
      %v2976 = vmul.f32 %v749, %v2896
      %v2977 = vmul.f32 %v754, %v2896
      %v2978 = vmul.f32 %v759, %v2896
      %v2979 = vmul.f32 %v764, %v2896
      %v2980 = vmul.f32 %v769, %v2896
      %v2981 = vmul.f32 %v774, %v2896
      %v2982 = vmul.f32 %v779, %v2896
      %v2983 = vmul.f32 %v784, %v2896
      %v2984 = vmul.f32 %v789, %v2896
      %v2985 = vmul.f32 %v794, %v2896
      %v2986 = vmul.f32 %v799, %v2896
      %v2987 = vmul.f32 %v804, %v2896
      %v2988 = vmul.f32 %v809, %v2896
      %v2989 = vmul.f32 %v2124, %v2896
      %v2990 = vmul.f32 %v2129, %v2896
      %v2991 = vmul.f32 %v2134, %v2896
      %v2992 = vmul.f32 %v2139, %v2896
      %v3089 = vrot.slane %v2897, 2
      %v3090 = vrot.slane %v2898, 2
      %v3091 = vsel %vm1760, %v3089, %v3090
      %v3092 = vrot.slane %v2899, 2
      %v3093 = vsel %vm1760, %v3090, %v3092
      %v3094 = vrot.slane %v2900, 2
      %v3095 = vsel %vm1760, %v3092, %v3094
      %v3096 = vrot.slane %v2901, 2
      %v3097 = vrot.slane %v2902, 2
      %v3098 = vsel %vm1760, %v3096, %v3097
      %v3099 = vrot.slane %v2903, 2
      %v3100 = vsel %vm1760, %v3097, %v3099
      %v3101 = vrot.slane %v2904, 2
      %v3102 = vsel %vm1760, %v3099, %v3101
      %v3103 = vrot.slane %v2905, 2
      %v3104 = vrot.slane %v2906, 2
      %v3105 = vsel %vm1760, %v3103, %v3104
      %v3106 = vrot.slane %v2907, 2
      %v3107 = vsel %vm1760, %v3104, %v3106
      %v3108 = vrot.slane %v2908, 2
      %v3109 = vsel %vm1760, %v3106, %v3108
      %v3110 = vrot.slane %v2909, 2
      %v3111 = vrot.slane %v2910, 2
      %v3112 = vsel %vm1760, %v3110, %v3111
      %v3113 = vrot.slane %v2911, 2
      %v3114 = vsel %vm1760, %v3111, %v3113
      %v3115 = vrot.slane %v2912, 2
      %v3116 = vsel %vm1760, %v3113, %v3115
      %v3117 = vrot.slane %v2913, 2
      %v3118 = vrot.slane %v2914, 2
      %v3119 = vsel %vm1760, %v3117, %v3118
      %v3120 = vrot.slane %v2915, 2
      %v3121 = vsel %vm1760, %v3118, %v3120
      %v3122 = vrot.slane %v2916, 2
      %v3123 = vsel %vm1760, %v3120, %v3122
      %v3124 = vrot.slane %v2917, 2
      %v3125 = vrot.slane %v2918, 2
      %v3126 = vsel %vm1760, %v3124, %v3125
      %v3127 = vrot.slane %v2919, 2
      %v3128 = vsel %vm1760, %v3125, %v3127
      %v3129 = vrot.slane %v2920, 2
      %v3130 = vsel %vm1760, %v3127, %v3129
      %v3131 = vrot.slane %v2921, 2
      %v3132 = vrot.slane %v2922, 2
      %v3133 = vsel %vm1760, %v3131, %v3132
      %v3134 = vrot.slane %v2923, 2
      %v3135 = vsel %vm1760, %v3132, %v3134
      %v3136 = vrot.slane %v2924, 2
      %v3137 = vsel %vm1760, %v3134, %v3136
      %v3138 = vrot.slane %v2925, 2
      %v3139 = vrot.slane %v2926, 2
      %v3140 = vsel %vm1760, %v3138, %v3139
      %v3141 = vrot.slane %v2927, 2
      %v3142 = vsel %vm1760, %v3139, %v3141
      %v3143 = vrot.slane %v2928, 2
      %v3144 = vsel %vm1760, %v3141, %v3143
      %v3145 = vrot.slane %v2929, 2
      %v3146 = vrot.slane %v2930, 2
      %v3147 = vsel %vm1760, %v3145, %v3146
      %v3148 = vrot.slane %v2931, 2
      %v3149 = vsel %vm1760, %v3146, %v3148
      %v3150 = vrot.slane %v2932, 2
      %v3151 = vsel %vm1760, %v3148, %v3150
      %v3152 = vrot.slane %v2933, 2
      %v3153 = vrot.slane %v2934, 2
      %v3154 = vsel %vm1760, %v3152, %v3153
      %v3155 = vrot.slane %v2935, 2
      %v3156 = vsel %vm1760, %v3153, %v3155
      %v3157 = vrot.slane %v2936, 2
      %v3158 = vsel %vm1760, %v3155, %v3157
      %v3159 = vrot.slane %v2937, 2
      %v3160 = vrot.slane %v2938, 2
      %v3161 = vsel %vm1760, %v3159, %v3160
      %v3162 = vrot.slane %v2939, 2
      %v3163 = vsel %vm1760, %v3160, %v3162
      %v3164 = vrot.slane %v2940, 2
      %v3165 = vsel %vm1760, %v3162, %v3164
      %v3166 = vrot.slane %v2941, 2
      %v3167 = vrot.slane %v2942, 2
      %v3168 = vsel %vm1760, %v3166, %v3167
      %v3169 = vrot.slane %v2943, 2
      %v3170 = vsel %vm1760, %v3167, %v3169
      %v3171 = vrot.slane %v2944, 2
      %v3172 = vsel %vm1760, %v3169, %v3171
      %v3173 = vrot.slane %v2945, 2
      %v3174 = vrot.slane %v2946, 2
      %v3175 = vsel %vm1760, %v3173, %v3174
      %v3176 = vrot.slane %v2947, 2
      %v3177 = vsel %vm1760, %v3174, %v3176
      %v3178 = vrot.slane %v2948, 2
      %v3179 = vsel %vm1760, %v3176, %v3178
      %v3180 = vrot.slane %v2949, 2
      %v3181 = vrot.slane %v2950, 2
      %v3182 = vsel %vm1760, %v3180, %v3181
      %v3183 = vrot.slane %v2951, 2
      %v3184 = vsel %vm1760, %v3181, %v3183
      %v3185 = vrot.slane %v2952, 2
      %v3186 = vsel %vm1760, %v3183, %v3185
      %v3187 = vrot.slane %v2953, 2
      %v3188 = vrot.slane %v2954, 2
      %v3189 = vsel %vm1760, %v3187, %v3188
      %v3190 = vrot.slane %v2955, 2
      %v3191 = vsel %vm1760, %v3188, %v3190
      %v3192 = vrot.slane %v2956, 2
      %v3193 = vsel %vm1760, %v3190, %v3192
      %v3194 = vrot.slane %v2957, 2
      %v3195 = vrot.slane %v2958, 2
      %v3196 = vsel %vm1760, %v3194, %v3195
      %v3197 = vrot.slane %v2959, 2
      %v3198 = vsel %vm1760, %v3195, %v3197
      %v3199 = vrot.slane %v2960, 2
      %v3200 = vsel %vm1760, %v3197, %v3199
      %v3201 = vrot.slane %v2961, 2
      %v3202 = vrot.slane %v2962, 2
      %v3203 = vsel %vm1760, %v3201, %v3202
      %v3204 = vrot.slane %v2963, 2
      %v3205 = vsel %vm1760, %v3202, %v3204
      %v3206 = vrot.slane %v2964, 2
      %v3207 = vsel %vm1760, %v3204, %v3206
      %v3208 = vrot.slane %v2965, 2
      %v3209 = vrot.slane %v2966, 2
      %v3210 = vsel %vm1760, %v3208, %v3209
      %v3211 = vrot.slane %v2967, 2
      %v3212 = vsel %vm1760, %v3209, %v3211
      %v3213 = vrot.slane %v2968, 2
      %v3214 = vsel %vm1760, %v3211, %v3213
      %v3215 = vrot.slane %v2969, 2
      %v3216 = vrot.slane %v2970, 2
      %v3217 = vsel %vm1760, %v3215, %v3216
      %v3218 = vrot.slane %v2971, 2
      %v3219 = vsel %vm1760, %v3216, %v3218
      %v3220 = vrot.slane %v2972, 2
      %v3221 = vsel %vm1760, %v3218, %v3220
      %v3222 = vrot.slane %v2973, 2
      %v3223 = vrot.slane %v2974, 2
      %v3224 = vsel %vm1760, %v3222, %v3223
      %v3225 = vrot.slane %v2975, 2
      %v3226 = vsel %vm1760, %v3223, %v3225
      %v3227 = vrot.slane %v2976, 2
      %v3228 = vsel %vm1760, %v3225, %v3227
      %v3229 = vrot.slane %v2977, 2
      %v3230 = vrot.slane %v2978, 2
      %v3231 = vsel %vm1760, %v3229, %v3230
      %v3232 = vrot.slane %v2979, 2
      %v3233 = vsel %vm1760, %v3230, %v3232
      %v3234 = vrot.slane %v2980, 2
      %v3235 = vsel %vm1760, %v3232, %v3234
      %v3236 = vrot.slane %v2981, 2
      %v3237 = vrot.slane %v2982, 2
      %v3238 = vsel %vm1760, %v3236, %v3237
      %v3239 = vrot.slane %v2983, 2
      %v3240 = vsel %vm1760, %v3237, %v3239
      %v3241 = vrot.slane %v2984, 2
      %v3242 = vsel %vm1760, %v3239, %v3241
      %v3243 = vrot.slane %v2985, 2
      %v3244 = vrot.slane %v2986, 2
      %v3245 = vsel %vm1760, %v3243, %v3244
      %v3246 = vrot.slane %v2987, 2
      %v3247 = vsel %vm1760, %v3244, %v3246
      %v3248 = vrot.slane %v2988, 2
      %v3249 = vsel %vm1760, %v3246, %v3248
      %v3250 = vrot.slane %v2989, 2
      %v3251 = vrot.slane %v2990, 2
      %v3252 = vsel %vm1760, %v3250, %v3251
      %v3253 = vrot.slane %v2991, 2
      %v3254 = vsel %vm1760, %v3251, %v3253
      %v3255 = vrot.slane %v2992, 2
      %v3256 = vsel %vm1760, %v3253, %v3255
      %v3353 = vadd.f32 %v2797, %v3091
      %v3354 = vadd.f32 %v2798, %v3093
      %v3355 = vadd.f32 %v2799, %v3095
      %v3356 = vadd.f32 %v2800, %v3094
      %v3357 = vadd.f32 %v2801, %v3098
      %v3358 = vadd.f32 %v2802, %v3100
      %v3359 = vadd.f32 %v2803, %v3102
      %v3360 = vadd.f32 %v2804, %v3101
      %v3361 = vadd.f32 %v2805, %v3105
      %v3362 = vadd.f32 %v2806, %v3107
      %v3363 = vadd.f32 %v2807, %v3109
      %v3364 = vadd.f32 %v2808, %v3108
      %v3365 = vadd.f32 %v2809, %v3112
      %v3366 = vadd.f32 %v2810, %v3114
      %v3367 = vadd.f32 %v2811, %v3116
      %v3368 = vadd.f32 %v2812, %v3115
      %v3369 = vadd.f32 %v2813, %v3119
      %v3370 = vadd.f32 %v2814, %v3121
      %v3371 = vadd.f32 %v2815, %v3123
      %v3372 = vadd.f32 %v2816, %v3122
      %v3373 = vadd.f32 %v2817, %v3126
      %v3374 = vadd.f32 %v2818, %v3128
      %v3375 = vadd.f32 %v2819, %v3130
      %v3376 = vadd.f32 %v2820, %v3129
      %v3377 = vadd.f32 %v2821, %v3133
      %v3378 = vadd.f32 %v2822, %v3135
      %v3379 = vadd.f32 %v2823, %v3137
      %v3380 = vadd.f32 %v2824, %v3136
      %v3381 = vadd.f32 %v2825, %v3140
      %v3382 = vadd.f32 %v2826, %v3142
      %v3383 = vadd.f32 %v2827, %v3144
      %v3384 = vadd.f32 %v2828, %v3143
      %v3385 = vadd.f32 %v2829, %v3147
      %v3386 = vadd.f32 %v2830, %v3149
      %v3387 = vadd.f32 %v2831, %v3151
      %v3388 = vadd.f32 %v2832, %v3150
      %v3389 = vadd.f32 %v2833, %v3154
      %v3390 = vadd.f32 %v2834, %v3156
      %v3391 = vadd.f32 %v2835, %v3158
      %v3392 = vadd.f32 %v2836, %v3157
      %v3393 = vadd.f32 %v2837, %v3161
      %v3394 = vadd.f32 %v2838, %v3163
      %v3395 = vadd.f32 %v2839, %v3165
      %v3396 = vadd.f32 %v2840, %v3164
      %v3397 = vadd.f32 %v2841, %v3168
      %v3398 = vadd.f32 %v2842, %v3170
      %v3399 = vadd.f32 %v2843, %v3172
      %v3400 = vadd.f32 %v2844, %v3171
      %v3401 = vadd.f32 %v2845, %v3175
      %v3402 = vadd.f32 %v2846, %v3177
      %v3403 = vadd.f32 %v2847, %v3179
      %v3404 = vadd.f32 %v2848, %v3178
      %v3405 = vadd.f32 %v2849, %v3182
      %v3406 = vadd.f32 %v2850, %v3184
      %v3407 = vadd.f32 %v2851, %v3186
      %v3408 = vadd.f32 %v2852, %v3185
      %v3409 = vadd.f32 %v2853, %v3189
      %v3410 = vadd.f32 %v2854, %v3191
      %v3411 = vadd.f32 %v2855, %v3193
      %v3412 = vadd.f32 %v2856, %v3192
      %v3413 = vadd.f32 %v2857, %v3196
      %v3414 = vadd.f32 %v2858, %v3198
      %v3415 = vadd.f32 %v2859, %v3200
      %v3416 = vadd.f32 %v2860, %v3199
      %v3417 = vadd.f32 %v2861, %v3203
      %v3418 = vadd.f32 %v2862, %v3205
      %v3419 = vadd.f32 %v2863, %v3207
      %v3420 = vadd.f32 %v2864, %v3206
      %v3421 = vadd.f32 %v2865, %v3210
      %v3422 = vadd.f32 %v2866, %v3212
      %v3423 = vadd.f32 %v2867, %v3214
      %v3424 = vadd.f32 %v2868, %v3213
      %v3425 = vadd.f32 %v2869, %v3217
      %v3426 = vadd.f32 %v2870, %v3219
      %v3427 = vadd.f32 %v2871, %v3221
      %v3428 = vadd.f32 %v2872, %v3220
      %v3429 = vadd.f32 %v2873, %v3224
      %v3430 = vadd.f32 %v2874, %v3226
      %v3431 = vadd.f32 %v2875, %v3228
      %v3432 = vadd.f32 %v2876, %v3227
      %v3433 = vadd.f32 %v2877, %v3231
      %v3434 = vadd.f32 %v2878, %v3233
      %v3435 = vadd.f32 %v2879, %v3235
      %v3436 = vadd.f32 %v2880, %v3234
      %v3437 = vadd.f32 %v2881, %v3238
      %v3438 = vadd.f32 %v2882, %v3240
      %v3439 = vadd.f32 %v2883, %v3242
      %v3440 = vadd.f32 %v2884, %v3241
      %v3441 = vadd.f32 %v2885, %v3245
      %v3442 = vadd.f32 %v2886, %v3247
      %v3443 = vadd.f32 %v2887, %v3249
      %v3444 = vadd.f32 %v2888, %v3248
      %v3445 = vadd.f32 %v2889, %v3252
      %v3446 = vadd.f32 %v2890, %v3254
      %v3447 = vadd.f32 %v2891, %v3256
      %v3448 = vadd.f32 %v2892, %v3255
      %3450 = vset.pattern.permute.xlu0 0
      %3451 = vperm.xlu0 %3450, %v325
      %v3452 = vpop.permute.xlu0 %3451
      %3455 = vset.pattern.permute.xlu0 0
      %3456 = vperm.xlu0 %3455, %v326
      %v3457 = vpop.permute.xlu0 %3456
      %3460 = vset.pattern.permute.xlu0 0
      %3461 = vperm.xlu0 %3460, %v327
      %v3462 = vpop.permute.xlu0 %3461
      %3465 = vset.pattern.permute.xlu0 0
      %3466 = vperm.xlu0 %3465, %v328
      %v3467 = vpop.permute.xlu0 %3466
      %v3469 = vlaneseq
      %v3470 = vshrl.u32 %v3469, 7
      %v3471 = vsub.s32 6, %v3470
      %v3472 = vrot.slane %v329, %v3471
      %v3473 = vmul.f32 %v374, %v3472
      %v3474 = vmul.f32 %v379, %v3472
      %v3475 = vmul.f32 %v384, %v3472
      %v3476 = vmul.f32 %v389, %v3472
      %v3477 = vmul.f32 %v394, %v3472
      %v3478 = vmul.f32 %v399, %v3472
      %v3479 = vmul.f32 %v404, %v3472
      %v3480 = vmul.f32 %v409, %v3472
      %v3481 = vmul.f32 %v414, %v3472
      %v3482 = vmul.f32 %v419, %v3472
      %v3483 = vmul.f32 %v424, %v3472
      %v3484 = vmul.f32 %v429, %v3472
      %v3485 = vmul.f32 %v434, %v3472
      %v3486 = vmul.f32 %v439, %v3472
      %v3487 = vmul.f32 %v444, %v3472
      %v3488 = vmul.f32 %v449, %v3472
      %v3489 = vmul.f32 %v454, %v3472
      %v3490 = vmul.f32 %v459, %v3472
      %v3491 = vmul.f32 %v464, %v3472
      %v3492 = vmul.f32 %v469, %v3472
      %v3493 = vmul.f32 %v474, %v3472
      %v3494 = vmul.f32 %v479, %v3472
      %v3495 = vmul.f32 %v484, %v3472
      %v3496 = vmul.f32 %v489, %v3472
      %v3497 = vmul.f32 %v494, %v3472
      %v3498 = vmul.f32 %v499, %v3472
      %v3499 = vmul.f32 %v504, %v3472
      %v3500 = vmul.f32 %v509, %v3472
      %v3501 = vmul.f32 %v514, %v3472
      %v3502 = vmul.f32 %v519, %v3472
      %v3503 = vmul.f32 %v524, %v3472
      %v3504 = vmul.f32 %v529, %v3472
      %v3505 = vmul.f32 %v534, %v3472
      %v3506 = vmul.f32 %v539, %v3472
      %v3507 = vmul.f32 %v544, %v3472
      %v3508 = vmul.f32 %v549, %v3472
      %v3509 = vmul.f32 %v554, %v3472
      %v3510 = vmul.f32 %v559, %v3472
      %v3511 = vmul.f32 %v564, %v3472
      %v3512 = vmul.f32 %v569, %v3472
      %v3513 = vmul.f32 %v574, %v3472
      %v3514 = vmul.f32 %v579, %v3472
      %v3515 = vmul.f32 %v584, %v3472
      %v3516 = vmul.f32 %v589, %v3472
      %v3517 = vmul.f32 %v594, %v3472
      %v3518 = vmul.f32 %v599, %v3472
      %v3519 = vmul.f32 %v604, %v3472
      %v3520 = vmul.f32 %v609, %v3472
      %v3521 = vmul.f32 %v614, %v3472
      %v3522 = vmul.f32 %v619, %v3472
      %v3523 = vmul.f32 %v624, %v3472
      %v3524 = vmul.f32 %v629, %v3472
      %v3525 = vmul.f32 %v634, %v3472
      %v3526 = vmul.f32 %v639, %v3472
      %v3527 = vmul.f32 %v644, %v3472
      %v3528 = vmul.f32 %v649, %v3472
      %v3529 = vmul.f32 %v654, %v3472
      %v3530 = vmul.f32 %v659, %v3472
      %v3531 = vmul.f32 %v664, %v3472
      %v3532 = vmul.f32 %v669, %v3472
      %v3533 = vmul.f32 %v674, %v3472
      %v3534 = vmul.f32 %v679, %v3472
      %v3535 = vmul.f32 %v684, %v3472
      %v3536 = vmul.f32 %v689, %v3472
      %v3537 = vmul.f32 %v694, %v3472
      %v3538 = vmul.f32 %v699, %v3472
      %v3539 = vmul.f32 %v704, %v3472
      %v3540 = vmul.f32 %v709, %v3472
      %v3541 = vmul.f32 %v714, %v3472
      %v3542 = vmul.f32 %v719, %v3472
      %v3543 = vmul.f32 %v724, %v3472
      %v3544 = vmul.f32 %v729, %v3472
      %v3545 = vmul.f32 %v734, %v3472
      %v3546 = vmul.f32 %v739, %v3472
      %v3547 = vmul.f32 %v744, %v3472
      %v3548 = vmul.f32 %v749, %v3472
      %v3549 = vmul.f32 %v754, %v3472
      %v3550 = vmul.f32 %v759, %v3472
      %v3551 = vmul.f32 %v764, %v3472
      %v3552 = vmul.f32 %v769, %v3472
      %v3553 = vmul.f32 %v774, %v3472
      %v3554 = vmul.f32 %v779, %v3472
      %v3555 = vmul.f32 %v784, %v3472
      %v3556 = vmul.f32 %v789, %v3472
      %v3557 = vmul.f32 %v794, %v3472
      %v3558 = vmul.f32 %v799, %v3472
      %v3559 = vmul.f32 %v804, %v3472
      %v3560 = vmul.f32 %v809, %v3472
      %v3561 = vmul.f32 %v2124, %v3472
      %v3562 = vmul.f32 %v2129, %v3472
      %v3563 = vmul.f32 %v2134, %v3472
      %v3564 = vmul.f32 %v2139, %v3472
      %v3565 = vmul.f32 %v3452, %v3472
      %v3566 = vmul.f32 %v3457, %v3472
      %v3567 = vmul.f32 %v3462, %v3472
      %v3568 = vmul.f32 %v3467, %v3472
      %v3569 = vadd.f32 %v3353, %v3473
      %v3570 = vadd.f32 %v3354, %v3474
      %v3571 = vadd.f32 %v3355, %v3475
      %v3572 = vadd.f32 %v3356, %v3476
      %v3573 = vadd.f32 %v3357, %v3477
      %v3574 = vadd.f32 %v3358, %v3478
      %v3575 = vadd.f32 %v3359, %v3479
      %v3576 = vadd.f32 %v3360, %v3480
      %v3577 = vadd.f32 %v3361, %v3481
      %v3578 = vadd.f32 %v3362, %v3482
      %v3579 = vadd.f32 %v3363, %v3483
      %v3580 = vadd.f32 %v3364, %v3484
      %v3581 = vadd.f32 %v3365, %v3485
      %v3582 = vadd.f32 %v3366, %v3486
      %v3583 = vadd.f32 %v3367, %v3487
      %v3584 = vadd.f32 %v3368, %v3488
      %v3585 = vadd.f32 %v3369, %v3489
      %v3586 = vadd.f32 %v3370, %v3490
      %v3587 = vadd.f32 %v3371, %v3491
      %v3588 = vadd.f32 %v3372, %v3492
      %v3589 = vadd.f32 %v3373, %v3493
      %v3590 = vadd.f32 %v3374, %v3494
      %v3591 = vadd.f32 %v3375, %v3495
      %v3592 = vadd.f32 %v3376, %v3496
      %v3593 = vadd.f32 %v3377, %v3497
      %v3594 = vadd.f32 %v3378, %v3498
      %v3595 = vadd.f32 %v3379, %v3499
      %v3596 = vadd.f32 %v3380, %v3500
      %v3597 = vadd.f32 %v3381, %v3501
      %v3598 = vadd.f32 %v3382, %v3502
      %v3599 = vadd.f32 %v3383, %v3503
      %v3600 = vadd.f32 %v3384, %v3504
      %v3601 = vadd.f32 %v3385, %v3505
      %v3602 = vadd.f32 %v3386, %v3506
      %v3603 = vadd.f32 %v3387, %v3507
      %v3604 = vadd.f32 %v3388, %v3508
      %v3605 = vadd.f32 %v3389, %v3509
      %v3606 = vadd.f32 %v3390, %v3510
      %v3607 = vadd.f32 %v3391, %v3511
      %v3608 = vadd.f32 %v3392, %v3512
      %v3609 = vadd.f32 %v3393, %v3513
      %v3610 = vadd.f32 %v3394, %v3514
      %v3611 = vadd.f32 %v3395, %v3515
      %v3612 = vadd.f32 %v3396, %v3516
      %v3613 = vadd.f32 %v3397, %v3517
      %v3614 = vadd.f32 %v3398, %v3518
      %v3615 = vadd.f32 %v3399, %v3519
      %v3616 = vadd.f32 %v3400, %v3520
      %v3617 = vadd.f32 %v3401, %v3521
      %v3618 = vadd.f32 %v3402, %v3522
      %v3619 = vadd.f32 %v3403, %v3523
      %v3620 = vadd.f32 %v3404, %v3524
      %v3621 = vadd.f32 %v3405, %v3525
      %v3622 = vadd.f32 %v3406, %v3526
      %v3623 = vadd.f32 %v3407, %v3527
      %v3624 = vadd.f32 %v3408, %v3528
      %v3625 = vadd.f32 %v3409, %v3529
      %v3626 = vadd.f32 %v3410, %v3530
      %v3627 = vadd.f32 %v3411, %v3531
      %v3628 = vadd.f32 %v3412, %v3532
      %v3629 = vadd.f32 %v3413, %v3533
      %v3630 = vadd.f32 %v3414, %v3534
      %v3631 = vadd.f32 %v3415, %v3535
      %v3632 = vadd.f32 %v3416, %v3536
      %v3633 = vadd.f32 %v3417, %v3537
      %v3634 = vadd.f32 %v3418, %v3538
      %v3635 = vadd.f32 %v3419, %v3539
      %v3636 = vadd.f32 %v3420, %v3540
      %v3637 = vadd.f32 %v3421, %v3541
      %v3638 = vadd.f32 %v3422, %v3542
      %v3639 = vadd.f32 %v3423, %v3543
      %v3640 = vadd.f32 %v3424, %v3544
      %v3641 = vadd.f32 %v3425, %v3545
      %v3642 = vadd.f32 %v3426, %v3546
      %v3643 = vadd.f32 %v3427, %v3547
      %v3644 = vadd.f32 %v3428, %v3548
      %v3645 = vadd.f32 %v3429, %v3549
      %v3646 = vadd.f32 %v3430, %v3550
      %v3647 = vadd.f32 %v3431, %v3551
      %v3648 = vadd.f32 %v3432, %v3552
      %v3649 = vadd.f32 %v3433, %v3553
      %v3650 = vadd.f32 %v3434, %v3554
      %v3651 = vadd.f32 %v3435, %v3555
      %v3652 = vadd.f32 %v3436, %v3556
      %v3653 = vadd.f32 %v3437, %v3557
      %v3654 = vadd.f32 %v3438, %v3558
      %v3655 = vadd.f32 %v3439, %v3559
      %v3656 = vadd.f32 %v3440, %v3560
      %v3657 = vadd.f32 %v3441, %v3561
      %v3658 = vadd.f32 %v3442, %v3562
      %v3659 = vadd.f32 %v3443, %v3563
      %v3660 = vadd.f32 %v3444, %v3564
      %v3661 = vadd.f32 %v3445, %v3565
      %v3662 = vadd.f32 %v3446, %v3566
      %v3663 = vadd.f32 %v3447, %v3567
      %v3664 = vadd.f32 %v3448, %v3568
      %v3665 = vlaneseq
      %v3666 = vshrl.u32 %v3665, 7
      %v3667 = vsub.s32 7, %v3666
      %v3668 = vrot.slane %v329, %v3667
      %v3669 = vmul.f32 %v374, %v3668
      %v3670 = vmul.f32 %v379, %v3668
      %v3671 = vmul.f32 %v384, %v3668
      %v3672 = vmul.f32 %v389, %v3668
      %v3673 = vmul.f32 %v394, %v3668
      %v3674 = vmul.f32 %v399, %v3668
      %v3675 = vmul.f32 %v404, %v3668
      %v3676 = vmul.f32 %v409, %v3668
      %v3677 = vmul.f32 %v414, %v3668
      %v3678 = vmul.f32 %v419, %v3668
      %v3679 = vmul.f32 %v424, %v3668
      %v3680 = vmul.f32 %v429, %v3668
      %v3681 = vmul.f32 %v434, %v3668
      %v3682 = vmul.f32 %v439, %v3668
      %v3683 = vmul.f32 %v444, %v3668
      %v3684 = vmul.f32 %v449, %v3668
      %v3685 = vmul.f32 %v454, %v3668
      %v3686 = vmul.f32 %v459, %v3668
      %v3687 = vmul.f32 %v464, %v3668
      %v3688 = vmul.f32 %v469, %v3668
      %v3689 = vmul.f32 %v474, %v3668
      %v3690 = vmul.f32 %v479, %v3668
      %v3691 = vmul.f32 %v484, %v3668
      %v3692 = vmul.f32 %v489, %v3668
      %v3693 = vmul.f32 %v494, %v3668
      %v3694 = vmul.f32 %v499, %v3668
      %v3695 = vmul.f32 %v504, %v3668
      %v3696 = vmul.f32 %v509, %v3668
      %v3697 = vmul.f32 %v514, %v3668
      %v3698 = vmul.f32 %v519, %v3668
      %v3699 = vmul.f32 %v524, %v3668
      %v3700 = vmul.f32 %v529, %v3668
      %v3701 = vmul.f32 %v534, %v3668
      %v3702 = vmul.f32 %v539, %v3668
      %v3703 = vmul.f32 %v544, %v3668
      %v3704 = vmul.f32 %v549, %v3668
      %v3705 = vmul.f32 %v554, %v3668
      %v3706 = vmul.f32 %v559, %v3668
      %v3707 = vmul.f32 %v564, %v3668
      %v3708 = vmul.f32 %v569, %v3668
      %v3709 = vmul.f32 %v574, %v3668
      %v3710 = vmul.f32 %v579, %v3668
      %v3711 = vmul.f32 %v584, %v3668
      %v3712 = vmul.f32 %v589, %v3668
      %v3713 = vmul.f32 %v594, %v3668
      %v3714 = vmul.f32 %v599, %v3668
      %v3715 = vmul.f32 %v604, %v3668
      %v3716 = vmul.f32 %v609, %v3668
      %v3717 = vmul.f32 %v614, %v3668
      %v3718 = vmul.f32 %v619, %v3668
      %v3719 = vmul.f32 %v624, %v3668
      %v3720 = vmul.f32 %v629, %v3668
      %v3721 = vmul.f32 %v634, %v3668
      %v3722 = vmul.f32 %v639, %v3668
      %v3723 = vmul.f32 %v644, %v3668
      %v3724 = vmul.f32 %v649, %v3668
      %v3725 = vmul.f32 %v654, %v3668
      %v3726 = vmul.f32 %v659, %v3668
      %v3727 = vmul.f32 %v664, %v3668
      %v3728 = vmul.f32 %v669, %v3668
      %v3729 = vmul.f32 %v674, %v3668
      %v3730 = vmul.f32 %v679, %v3668
      %v3731 = vmul.f32 %v684, %v3668
      %v3732 = vmul.f32 %v689, %v3668
      %v3733 = vmul.f32 %v694, %v3668
      %v3734 = vmul.f32 %v699, %v3668
      %v3735 = vmul.f32 %v704, %v3668
      %v3736 = vmul.f32 %v709, %v3668
      %v3737 = vmul.f32 %v714, %v3668
      %v3738 = vmul.f32 %v719, %v3668
      %v3739 = vmul.f32 %v724, %v3668
      %v3740 = vmul.f32 %v729, %v3668
      %v3741 = vmul.f32 %v734, %v3668
      %v3742 = vmul.f32 %v739, %v3668
      %v3743 = vmul.f32 %v744, %v3668
      %v3744 = vmul.f32 %v749, %v3668
      %v3745 = vmul.f32 %v754, %v3668
      %v3746 = vmul.f32 %v759, %v3668
      %v3747 = vmul.f32 %v764, %v3668
      %v3748 = vmul.f32 %v769, %v3668
      %v3749 = vmul.f32 %v774, %v3668
      %v3750 = vmul.f32 %v779, %v3668
      %v3751 = vmul.f32 %v784, %v3668
      %v3752 = vmul.f32 %v789, %v3668
      %v3753 = vmul.f32 %v794, %v3668
      %v3754 = vmul.f32 %v799, %v3668
      %v3755 = vmul.f32 %v804, %v3668
      %v3756 = vmul.f32 %v809, %v3668
      %v3757 = vmul.f32 %v2124, %v3668
      %v3758 = vmul.f32 %v2129, %v3668
      %v3759 = vmul.f32 %v2134, %v3668
      %v3760 = vmul.f32 %v2139, %v3668
      %v3761 = vmul.f32 %v3452, %v3668
      %v3762 = vmul.f32 %v3457, %v3668
      %v3763 = vmul.f32 %v3462, %v3668
      %v3764 = vmul.f32 %v3467, %v3668
      %v3861 = vrot.slane %v3669, 1
      %v3862 = vrot.slane %v3670, 1
      %v3863 = vsel %vm1203, %v3861, %v3862
      %v3864 = vrot.slane %v3671, 1
      %v3865 = vsel %vm1203, %v3862, %v3864
      %v3866 = vrot.slane %v3672, 1
      %v3867 = vsel %vm1203, %v3864, %v3866
      %v3868 = vrot.slane %v3673, 1
      %v3869 = vrot.slane %v3674, 1
      %v3870 = vsel %vm1203, %v3868, %v3869
      %v3871 = vrot.slane %v3675, 1
      %v3872 = vsel %vm1203, %v3869, %v3871
      %v3873 = vrot.slane %v3676, 1
      %v3874 = vsel %vm1203, %v3871, %v3873
      %v3875 = vrot.slane %v3677, 1
      %v3876 = vrot.slane %v3678, 1
      %v3877 = vsel %vm1203, %v3875, %v3876
      %v3878 = vrot.slane %v3679, 1
      %v3879 = vsel %vm1203, %v3876, %v3878
      %v3880 = vrot.slane %v3680, 1
      %v3881 = vsel %vm1203, %v3878, %v3880
      %v3882 = vrot.slane %v3681, 1
      %v3883 = vrot.slane %v3682, 1
      %v3884 = vsel %vm1203, %v3882, %v3883
      %v3885 = vrot.slane %v3683, 1
      %v3886 = vsel %vm1203, %v3883, %v3885
      %v3887 = vrot.slane %v3684, 1
      %v3888 = vsel %vm1203, %v3885, %v3887
      %v3889 = vrot.slane %v3685, 1
      %v3890 = vrot.slane %v3686, 1
      %v3891 = vsel %vm1203, %v3889, %v3890
      %v3892 = vrot.slane %v3687, 1
      %v3893 = vsel %vm1203, %v3890, %v3892
      %v3894 = vrot.slane %v3688, 1
      %v3895 = vsel %vm1203, %v3892, %v3894
      %v3896 = vrot.slane %v3689, 1
      %v3897 = vrot.slane %v3690, 1
      %v3898 = vsel %vm1203, %v3896, %v3897
      %v3899 = vrot.slane %v3691, 1
      %v3900 = vsel %vm1203, %v3897, %v3899
      %v3901 = vrot.slane %v3692, 1
      %v3902 = vsel %vm1203, %v3899, %v3901
      %v3903 = vrot.slane %v3693, 1
      %v3904 = vrot.slane %v3694, 1
      %v3905 = vsel %vm1203, %v3903, %v3904
      %v3906 = vrot.slane %v3695, 1
      %v3907 = vsel %vm1203, %v3904, %v3906
      %v3908 = vrot.slane %v3696, 1
      %v3909 = vsel %vm1203, %v3906, %v3908
      %v3910 = vrot.slane %v3697, 1
      %v3911 = vrot.slane %v3698, 1
      %v3912 = vsel %vm1203, %v3910, %v3911
      %v3913 = vrot.slane %v3699, 1
      %v3914 = vsel %vm1203, %v3911, %v3913
      %v3915 = vrot.slane %v3700, 1
      %v3916 = vsel %vm1203, %v3913, %v3915
      %v3917 = vrot.slane %v3701, 1
      %v3918 = vrot.slane %v3702, 1
      %v3919 = vsel %vm1203, %v3917, %v3918
      %v3920 = vrot.slane %v3703, 1
      %v3921 = vsel %vm1203, %v3918, %v3920
      %v3922 = vrot.slane %v3704, 1
      %v3923 = vsel %vm1203, %v3920, %v3922
      %v3924 = vrot.slane %v3705, 1
      %v3925 = vrot.slane %v3706, 1
      %v3926 = vsel %vm1203, %v3924, %v3925
      %v3927 = vrot.slane %v3707, 1
      %v3928 = vsel %vm1203, %v3925, %v3927
      %v3929 = vrot.slane %v3708, 1
      %v3930 = vsel %vm1203, %v3927, %v3929
      %v3931 = vrot.slane %v3709, 1
      %v3932 = vrot.slane %v3710, 1
      %v3933 = vsel %vm1203, %v3931, %v3932
      %v3934 = vrot.slane %v3711, 1
      %v3935 = vsel %vm1203, %v3932, %v3934
      %v3936 = vrot.slane %v3712, 1
      %v3937 = vsel %vm1203, %v3934, %v3936
      %v3938 = vrot.slane %v3713, 1
      %v3939 = vrot.slane %v3714, 1
      %v3940 = vsel %vm1203, %v3938, %v3939
      %v3941 = vrot.slane %v3715, 1
      %v3942 = vsel %vm1203, %v3939, %v3941
      %v3943 = vrot.slane %v3716, 1
      %v3944 = vsel %vm1203, %v3941, %v3943
      %v3945 = vrot.slane %v3717, 1
      %v3946 = vrot.slane %v3718, 1
      %v3947 = vsel %vm1203, %v3945, %v3946
      %v3948 = vrot.slane %v3719, 1
      %v3949 = vsel %vm1203, %v3946, %v3948
      %v3950 = vrot.slane %v3720, 1
      %v3951 = vsel %vm1203, %v3948, %v3950
      %v3952 = vrot.slane %v3721, 1
      %v3953 = vrot.slane %v3722, 1
      %v3954 = vsel %vm1203, %v3952, %v3953
      %v3955 = vrot.slane %v3723, 1
      %v3956 = vsel %vm1203, %v3953, %v3955
      %v3957 = vrot.slane %v3724, 1
      %v3958 = vsel %vm1203, %v3955, %v3957
      %v3959 = vrot.slane %v3725, 1
      %v3960 = vrot.slane %v3726, 1
      %v3961 = vsel %vm1203, %v3959, %v3960
      %v3962 = vrot.slane %v3727, 1
      %v3963 = vsel %vm1203, %v3960, %v3962
      %v3964 = vrot.slane %v3728, 1
      %v3965 = vsel %vm1203, %v3962, %v3964
      %v3966 = vrot.slane %v3729, 1
      %v3967 = vrot.slane %v3730, 1
      %v3968 = vsel %vm1203, %v3966, %v3967
      %v3969 = vrot.slane %v3731, 1
      %v3970 = vsel %vm1203, %v3967, %v3969
      %v3971 = vrot.slane %v3732, 1
      %v3972 = vsel %vm1203, %v3969, %v3971
      %v3973 = vrot.slane %v3733, 1
      %v3974 = vrot.slane %v3734, 1
      %v3975 = vsel %vm1203, %v3973, %v3974
      %v3976 = vrot.slane %v3735, 1
      %v3977 = vsel %vm1203, %v3974, %v3976
      %v3978 = vrot.slane %v3736, 1
      %v3979 = vsel %vm1203, %v3976, %v3978
      %v3980 = vrot.slane %v3737, 1
      %v3981 = vrot.slane %v3738, 1
      %v3982 = vsel %vm1203, %v3980, %v3981
      %v3983 = vrot.slane %v3739, 1
      %v3984 = vsel %vm1203, %v3981, %v3983
      %v3985 = vrot.slane %v3740, 1
      %v3986 = vsel %vm1203, %v3983, %v3985
      %v3987 = vrot.slane %v3741, 1
      %v3988 = vrot.slane %v3742, 1
      %v3989 = vsel %vm1203, %v3987, %v3988
      %v3990 = vrot.slane %v3743, 1
      %v3991 = vsel %vm1203, %v3988, %v3990
      %v3992 = vrot.slane %v3744, 1
      %v3993 = vsel %vm1203, %v3990, %v3992
      %v3994 = vrot.slane %v3745, 1
      %v3995 = vrot.slane %v3746, 1
      %v3996 = vsel %vm1203, %v3994, %v3995
      %v3997 = vrot.slane %v3747, 1
      %v3998 = vsel %vm1203, %v3995, %v3997
      %v3999 = vrot.slane %v3748, 1
      %v4000 = vsel %vm1203, %v3997, %v3999
      %v4001 = vrot.slane %v3749, 1
      %v4002 = vrot.slane %v3750, 1
      %v4003 = vsel %vm1203, %v4001, %v4002
      %v4004 = vrot.slane %v3751, 1
      %v4005 = vsel %vm1203, %v4002, %v4004
      %v4006 = vrot.slane %v3752, 1
      %v4007 = vsel %vm1203, %v4004, %v4006
      %v4008 = vrot.slane %v3753, 1
      %v4009 = vrot.slane %v3754, 1
      %v4010 = vsel %vm1203, %v4008, %v4009
      %v4011 = vrot.slane %v3755, 1
      %v4012 = vsel %vm1203, %v4009, %v4011
      %v4013 = vrot.slane %v3756, 1
      %v4014 = vsel %vm1203, %v4011, %v4013
      %v4015 = vrot.slane %v3757, 1
      %v4016 = vrot.slane %v3758, 1
      %v4017 = vsel %vm1203, %v4015, %v4016
      %v4018 = vrot.slane %v3759, 1
      %v4019 = vsel %vm1203, %v4016, %v4018
      %v4020 = vrot.slane %v3760, 1
      %v4021 = vsel %vm1203, %v4018, %v4020
      %v4022 = vrot.slane %v3761, 1
      %v4023 = vrot.slane %v3762, 1
      %v4024 = vsel %vm1203, %v4022, %v4023
      %v4025 = vrot.slane %v3763, 1
      %v4026 = vsel %vm1203, %v4023, %v4025
      %v4027 = vrot.slane %v3764, 1
      %v4028 = vsel %vm1203, %v4025, %v4027
      %v4125 = vadd.f32 %v3569, %v3863
      %v4126 = vadd.f32 %v3570, %v3865
      %v4127 = vadd.f32 %v3571, %v3867
      %v4128 = vadd.f32 %v3572, %v3866
      %v4129 = vadd.f32 %v3573, %v3870
      %v4130 = vadd.f32 %v3574, %v3872
      %v4131 = vadd.f32 %v3575, %v3874
      %v4132 = vadd.f32 %v3576, %v3873
      %v4133 = vadd.f32 %v3577, %v3877
      %v4134 = vadd.f32 %v3578, %v3879
      %v4135 = vadd.f32 %v3579, %v3881
      %v4136 = vadd.f32 %v3580, %v3880
      %v4137 = vadd.f32 %v3581, %v3884
      %v4138 = vadd.f32 %v3582, %v3886
      %v4139 = vadd.f32 %v3583, %v3888
      %v4140 = vadd.f32 %v3584, %v3887
      %v4141 = vadd.f32 %v3585, %v3891
      %v4142 = vadd.f32 %v3586, %v3893
      %v4143 = vadd.f32 %v3587, %v3895
      %v4144 = vadd.f32 %v3588, %v3894
      %v4145 = vadd.f32 %v3589, %v3898
      %v4146 = vadd.f32 %v3590, %v3900
      %v4147 = vadd.f32 %v3591, %v3902
      %v4148 = vadd.f32 %v3592, %v3901
      %v4149 = vadd.f32 %v3593, %v3905
      %v4150 = vadd.f32 %v3594, %v3907
      %v4151 = vadd.f32 %v3595, %v3909
      %v4152 = vadd.f32 %v3596, %v3908
      %v4153 = vadd.f32 %v3597, %v3912
      %v4154 = vadd.f32 %v3598, %v3914
      %v4155 = vadd.f32 %v3599, %v3916
      %v4156 = vadd.f32 %v3600, %v3915
      %v4157 = vadd.f32 %v3601, %v3919
      %v4158 = vadd.f32 %v3602, %v3921
      %v4159 = vadd.f32 %v3603, %v3923
      %v4160 = vadd.f32 %v3604, %v3922
      %v4161 = vadd.f32 %v3605, %v3926
      %v4162 = vadd.f32 %v3606, %v3928
      %v4163 = vadd.f32 %v3607, %v3930
      %v4164 = vadd.f32 %v3608, %v3929
      %v4165 = vadd.f32 %v3609, %v3933
      %v4166 = vadd.f32 %v3610, %v3935
      %v4167 = vadd.f32 %v3611, %v3937
      %v4168 = vadd.f32 %v3612, %v3936
      %v4169 = vadd.f32 %v3613, %v3940
      %v4170 = vadd.f32 %v3614, %v3942
      %v4171 = vadd.f32 %v3615, %v3944
      %v4172 = vadd.f32 %v3616, %v3943
      %v4173 = vadd.f32 %v3617, %v3947
      %v4174 = vadd.f32 %v3618, %v3949
      %v4175 = vadd.f32 %v3619, %v3951
      %v4176 = vadd.f32 %v3620, %v3950
      %v4177 = vadd.f32 %v3621, %v3954
      %v4178 = vadd.f32 %v3622, %v3956
      %v4179 = vadd.f32 %v3623, %v3958
      %v4180 = vadd.f32 %v3624, %v3957
      %v4181 = vadd.f32 %v3625, %v3961
      %v4182 = vadd.f32 %v3626, %v3963
      %v4183 = vadd.f32 %v3627, %v3965
      %v4184 = vadd.f32 %v3628, %v3964
      %v4185 = vadd.f32 %v3629, %v3968
      %v4186 = vadd.f32 %v3630, %v3970
      %v4187 = vadd.f32 %v3631, %v3972
      %v4188 = vadd.f32 %v3632, %v3971
      %v4189 = vadd.f32 %v3633, %v3975
      %v4190 = vadd.f32 %v3634, %v3977
      %v4191 = vadd.f32 %v3635, %v3979
      %v4192 = vadd.f32 %v3636, %v3978
      %v4193 = vadd.f32 %v3637, %v3982
      %v4194 = vadd.f32 %v3638, %v3984
      %v4195 = vadd.f32 %v3639, %v3986
      %v4196 = vadd.f32 %v3640, %v3985
      %v4197 = vadd.f32 %v3641, %v3989
      %v4198 = vadd.f32 %v3642, %v3991
      %v4199 = vadd.f32 %v3643, %v3993
      %v4200 = vadd.f32 %v3644, %v3992
      %v4201 = vadd.f32 %v3645, %v3996
      %v4202 = vadd.f32 %v3646, %v3998
      %v4203 = vadd.f32 %v3647, %v4000
      %v4204 = vadd.f32 %v3648, %v3999
      %v4205 = vadd.f32 %v3649, %v4003
      %v4206 = vadd.f32 %v3650, %v4005
      %v4207 = vadd.f32 %v3651, %v4007
      %v4208 = vadd.f32 %v3652, %v4006
      %v4209 = vadd.f32 %v3653, %v4010
      %v4210 = vadd.f32 %v3654, %v4012
      %v4211 = vadd.f32 %v3655, %v4014
      %v4212 = vadd.f32 %v3656, %v4013
      %v4213 = vadd.f32 %v3657, %v4017
      %v4214 = vadd.f32 %v3658, %v4019
      %v4215 = vadd.f32 %v3659, %v4021
      %v4216 = vadd.f32 %v3660, %v4020
      %v4217 = vadd.f32 %v3661, %v4024
      %v4218 = vadd.f32 %v3662, %v4026
      %v4219 = vadd.f32 %v3663, %v4028
      %v4220 = vadd.f32 %v3664, %v4027
      %v4221 = vlaneseq
      %v4222 = vshrl.u32 %v4221, 7
      %v4223 = vsub.s32 0, %v4222
      %v4224 = vrot.slane %v330, %v4223
      %v4225 = vmul.f32 %v374, %v4224
      %v4226 = vmul.f32 %v379, %v4224
      %v4227 = vmul.f32 %v384, %v4224
      %v4228 = vmul.f32 %v389, %v4224
      %v4229 = vmul.f32 %v394, %v4224
      %v4230 = vmul.f32 %v399, %v4224
      %v4231 = vmul.f32 %v404, %v4224
      %v4232 = vmul.f32 %v409, %v4224
      %v4233 = vmul.f32 %v414, %v4224
      %v4234 = vmul.f32 %v419, %v4224
      %v4235 = vmul.f32 %v424, %v4224
      %v4236 = vmul.f32 %v429, %v4224
      %v4237 = vmul.f32 %v434, %v4224
      %v4238 = vmul.f32 %v439, %v4224
      %v4239 = vmul.f32 %v444, %v4224
      %v4240 = vmul.f32 %v449, %v4224
      %v4241 = vmul.f32 %v454, %v4224
      %v4242 = vmul.f32 %v459, %v4224
      %v4243 = vmul.f32 %v464, %v4224
      %v4244 = vmul.f32 %v469, %v4224
      %v4245 = vmul.f32 %v474, %v4224
      %v4246 = vmul.f32 %v479, %v4224
      %v4247 = vmul.f32 %v484, %v4224
      %v4248 = vmul.f32 %v489, %v4224
      %v4249 = vmul.f32 %v494, %v4224
      %v4250 = vmul.f32 %v499, %v4224
      %v4251 = vmul.f32 %v504, %v4224
      %v4252 = vmul.f32 %v509, %v4224
      %v4253 = vmul.f32 %v514, %v4224
      %v4254 = vmul.f32 %v519, %v4224
      %v4255 = vmul.f32 %v524, %v4224
      %v4256 = vmul.f32 %v529, %v4224
      %v4257 = vmul.f32 %v534, %v4224
      %v4258 = vmul.f32 %v539, %v4224
      %v4259 = vmul.f32 %v544, %v4224
      %v4260 = vmul.f32 %v549, %v4224
      %v4261 = vmul.f32 %v554, %v4224
      %v4262 = vmul.f32 %v559, %v4224
      %v4263 = vmul.f32 %v564, %v4224
      %v4264 = vmul.f32 %v569, %v4224
      %v4265 = vmul.f32 %v574, %v4224
      %v4266 = vmul.f32 %v579, %v4224
      %v4267 = vmul.f32 %v584, %v4224
      %v4268 = vmul.f32 %v589, %v4224
      %v4269 = vmul.f32 %v594, %v4224
      %v4270 = vmul.f32 %v599, %v4224
      %v4271 = vmul.f32 %v604, %v4224
      %v4272 = vmul.f32 %v609, %v4224
      %v4273 = vmul.f32 %v614, %v4224
      %v4274 = vmul.f32 %v619, %v4224
      %v4275 = vmul.f32 %v624, %v4224
      %v4276 = vmul.f32 %v629, %v4224
      %v4277 = vmul.f32 %v634, %v4224
      %v4278 = vmul.f32 %v639, %v4224
      %v4279 = vmul.f32 %v644, %v4224
      %v4280 = vmul.f32 %v649, %v4224
      %v4281 = vmul.f32 %v654, %v4224
      %v4282 = vmul.f32 %v659, %v4224
      %v4283 = vmul.f32 %v664, %v4224
      %v4284 = vmul.f32 %v669, %v4224
      %v4285 = vmul.f32 %v674, %v4224
      %v4286 = vmul.f32 %v679, %v4224
      %v4287 = vmul.f32 %v684, %v4224
      %v4288 = vmul.f32 %v689, %v4224
      %v4289 = vmul.f32 %v694, %v4224
      %v4290 = vmul.f32 %v699, %v4224
      %v4291 = vmul.f32 %v704, %v4224
      %v4292 = vmul.f32 %v709, %v4224
      %v4293 = vmul.f32 %v714, %v4224
      %v4294 = vmul.f32 %v719, %v4224
      %v4295 = vmul.f32 %v724, %v4224
      %v4296 = vmul.f32 %v729, %v4224
      %v4297 = vmul.f32 %v734, %v4224
      %v4298 = vmul.f32 %v739, %v4224
      %v4299 = vmul.f32 %v744, %v4224
      %v4300 = vmul.f32 %v749, %v4224
      %v4301 = vmul.f32 %v754, %v4224
      %v4302 = vmul.f32 %v759, %v4224
      %v4303 = vmul.f32 %v764, %v4224
      %v4304 = vmul.f32 %v769, %v4224
      %v4305 = vmul.f32 %v774, %v4224
      %v4306 = vmul.f32 %v779, %v4224
      %v4307 = vmul.f32 %v784, %v4224
      %v4308 = vmul.f32 %v789, %v4224
      %v4309 = vmul.f32 %v794, %v4224
      %v4310 = vmul.f32 %v799, %v4224
      %v4311 = vmul.f32 %v804, %v4224
      %v4312 = vmul.f32 %v809, %v4224
      %v4313 = vmul.f32 %v2124, %v4224
      %v4314 = vmul.f32 %v2129, %v4224
      %v4315 = vmul.f32 %v2134, %v4224
      %v4316 = vmul.f32 %v2139, %v4224
      %v4317 = vmul.f32 %v3452, %v4224
      %v4318 = vmul.f32 %v3457, %v4224
      %v4319 = vmul.f32 %v3462, %v4224
      %v4320 = vmul.f32 %v3467, %v4224
      %v4417 = vrot.slane %v4225, 2
      %v4418 = vrot.slane %v4226, 2
      %v4419 = vsel %vm1760, %v4417, %v4418
      %v4420 = vrot.slane %v4227, 2
      %v4421 = vsel %vm1760, %v4418, %v4420
      %v4422 = vrot.slane %v4228, 2
      %v4423 = vsel %vm1760, %v4420, %v4422
      %v4424 = vrot.slane %v4229, 2
      %v4425 = vrot.slane %v4230, 2
      %v4426 = vsel %vm1760, %v4424, %v4425
      %v4427 = vrot.slane %v4231, 2
      %v4428 = vsel %vm1760, %v4425, %v4427
      %v4429 = vrot.slane %v4232, 2
      %v4430 = vsel %vm1760, %v4427, %v4429
      %v4431 = vrot.slane %v4233, 2
      %v4432 = vrot.slane %v4234, 2
      %v4433 = vsel %vm1760, %v4431, %v4432
      %v4434 = vrot.slane %v4235, 2
      %v4435 = vsel %vm1760, %v4432, %v4434
      %v4436 = vrot.slane %v4236, 2
      %v4437 = vsel %vm1760, %v4434, %v4436
      %v4438 = vrot.slane %v4237, 2
      %v4439 = vrot.slane %v4238, 2
      %v4440 = vsel %vm1760, %v4438, %v4439
      %v4441 = vrot.slane %v4239, 2
      %v4442 = vsel %vm1760, %v4439, %v4441
      %v4443 = vrot.slane %v4240, 2
      %v4444 = vsel %vm1760, %v4441, %v4443
      %v4445 = vrot.slane %v4241, 2
      %v4446 = vrot.slane %v4242, 2
      %v4447 = vsel %vm1760, %v4445, %v4446
      %v4448 = vrot.slane %v4243, 2
      %v4449 = vsel %vm1760, %v4446, %v4448
      %v4450 = vrot.slane %v4244, 2
      %v4451 = vsel %vm1760, %v4448, %v4450
      %v4452 = vrot.slane %v4245, 2
      %v4453 = vrot.slane %v4246, 2
      %v4454 = vsel %vm1760, %v4452, %v4453
      %v4455 = vrot.slane %v4247, 2
      %v4456 = vsel %vm1760, %v4453, %v4455
      %v4457 = vrot.slane %v4248, 2
      %v4458 = vsel %vm1760, %v4455, %v4457
      %v4459 = vrot.slane %v4249, 2
      %v4460 = vrot.slane %v4250, 2
      %v4461 = vsel %vm1760, %v4459, %v4460
      %v4462 = vrot.slane %v4251, 2
      %v4463 = vsel %vm1760, %v4460, %v4462
      %v4464 = vrot.slane %v4252, 2
      %v4465 = vsel %vm1760, %v4462, %v4464
      %v4466 = vrot.slane %v4253, 2
      %v4467 = vrot.slane %v4254, 2
      %v4468 = vsel %vm1760, %v4466, %v4467
      %v4469 = vrot.slane %v4255, 2
      %v4470 = vsel %vm1760, %v4467, %v4469
      %v4471 = vrot.slane %v4256, 2
      %v4472 = vsel %vm1760, %v4469, %v4471
      %v4473 = vrot.slane %v4257, 2
      %v4474 = vrot.slane %v4258, 2
      %v4475 = vsel %vm1760, %v4473, %v4474
      %v4476 = vrot.slane %v4259, 2
      %v4477 = vsel %vm1760, %v4474, %v4476
      %v4478 = vrot.slane %v4260, 2
      %v4479 = vsel %vm1760, %v4476, %v4478
      %v4480 = vrot.slane %v4261, 2
      %v4481 = vrot.slane %v4262, 2
      %v4482 = vsel %vm1760, %v4480, %v4481
      %v4483 = vrot.slane %v4263, 2
      %v4484 = vsel %vm1760, %v4481, %v4483
      %v4485 = vrot.slane %v4264, 2
      %v4486 = vsel %vm1760, %v4483, %v4485
      %v4487 = vrot.slane %v4265, 2
      %v4488 = vrot.slane %v4266, 2
      %v4489 = vsel %vm1760, %v4487, %v4488
      %v4490 = vrot.slane %v4267, 2
      %v4491 = vsel %vm1760, %v4488, %v4490
      %v4492 = vrot.slane %v4268, 2
      %v4493 = vsel %vm1760, %v4490, %v4492
      %v4494 = vrot.slane %v4269, 2
      %v4495 = vrot.slane %v4270, 2
      %v4496 = vsel %vm1760, %v4494, %v4495
      %v4497 = vrot.slane %v4271, 2
      %v4498 = vsel %vm1760, %v4495, %v4497
      %v4499 = vrot.slane %v4272, 2
      %v4500 = vsel %vm1760, %v4497, %v4499
      %v4501 = vrot.slane %v4273, 2
      %v4502 = vrot.slane %v4274, 2
      %v4503 = vsel %vm1760, %v4501, %v4502
      %v4504 = vrot.slane %v4275, 2
      %v4505 = vsel %vm1760, %v4502, %v4504
      %v4506 = vrot.slane %v4276, 2
      %v4507 = vsel %vm1760, %v4504, %v4506
      %v4508 = vrot.slane %v4277, 2
      %v4509 = vrot.slane %v4278, 2
      %v4510 = vsel %vm1760, %v4508, %v4509
      %v4511 = vrot.slane %v4279, 2
      %v4512 = vsel %vm1760, %v4509, %v4511
      %v4513 = vrot.slane %v4280, 2
      %v4514 = vsel %vm1760, %v4511, %v4513
      %v4515 = vrot.slane %v4281, 2
      %v4516 = vrot.slane %v4282, 2
      %v4517 = vsel %vm1760, %v4515, %v4516
      %v4518 = vrot.slane %v4283, 2
      %v4519 = vsel %vm1760, %v4516, %v4518
      %v4520 = vrot.slane %v4284, 2
      %v4521 = vsel %vm1760, %v4518, %v4520
      %v4522 = vrot.slane %v4285, 2
      %v4523 = vrot.slane %v4286, 2
      %v4524 = vsel %vm1760, %v4522, %v4523
      %v4525 = vrot.slane %v4287, 2
      %v4526 = vsel %vm1760, %v4523, %v4525
      %v4527 = vrot.slane %v4288, 2
      %v4528 = vsel %vm1760, %v4525, %v4527
      %v4529 = vrot.slane %v4289, 2
      %v4530 = vrot.slane %v4290, 2
      %v4531 = vsel %vm1760, %v4529, %v4530
      %v4532 = vrot.slane %v4291, 2
      %v4533 = vsel %vm1760, %v4530, %v4532
      %v4534 = vrot.slane %v4292, 2
      %v4535 = vsel %vm1760, %v4532, %v4534
      %v4536 = vrot.slane %v4293, 2
      %v4537 = vrot.slane %v4294, 2
      %v4538 = vsel %vm1760, %v4536, %v4537
      %v4539 = vrot.slane %v4295, 2
      %v4540 = vsel %vm1760, %v4537, %v4539
      %v4541 = vrot.slane %v4296, 2
      %v4542 = vsel %vm1760, %v4539, %v4541
      %v4543 = vrot.slane %v4297, 2
      %v4544 = vrot.slane %v4298, 2
      %v4545 = vsel %vm1760, %v4543, %v4544
      %v4546 = vrot.slane %v4299, 2
      %v4547 = vsel %vm1760, %v4544, %v4546
      %v4548 = vrot.slane %v4300, 2
      %v4549 = vsel %vm1760, %v4546, %v4548
      %v4550 = vrot.slane %v4301, 2
      %v4551 = vrot.slane %v4302, 2
      %v4552 = vsel %vm1760, %v4550, %v4551
      %v4553 = vrot.slane %v4303, 2
      %v4554 = vsel %vm1760, %v4551, %v4553
      %v4555 = vrot.slane %v4304, 2
      %v4556 = vsel %vm1760, %v4553, %v4555
      %v4557 = vrot.slane %v4305, 2
      %v4558 = vrot.slane %v4306, 2
      %v4559 = vsel %vm1760, %v4557, %v4558
      %v4560 = vrot.slane %v4307, 2
      %v4561 = vsel %vm1760, %v4558, %v4560
      %v4562 = vrot.slane %v4308, 2
      %v4563 = vsel %vm1760, %v4560, %v4562
      %v4564 = vrot.slane %v4309, 2
      %v4565 = vrot.slane %v4310, 2
      %v4566 = vsel %vm1760, %v4564, %v4565
      %v4567 = vrot.slane %v4311, 2
      %v4568 = vsel %vm1760, %v4565, %v4567
      %v4569 = vrot.slane %v4312, 2
      %v4570 = vsel %vm1760, %v4567, %v4569
      %v4571 = vrot.slane %v4313, 2
      %v4572 = vrot.slane %v4314, 2
      %v4573 = vsel %vm1760, %v4571, %v4572
      %v4574 = vrot.slane %v4315, 2
      %v4575 = vsel %vm1760, %v4572, %v4574
      %v4576 = vrot.slane %v4316, 2
      %v4577 = vsel %vm1760, %v4574, %v4576
      %v4578 = vrot.slane %v4317, 2
      %v4579 = vrot.slane %v4318, 2
      %v4580 = vsel %vm1760, %v4578, %v4579
      %v4581 = vrot.slane %v4319, 2
      %v4582 = vsel %vm1760, %v4579, %v4581
      %v4583 = vrot.slane %v4320, 2
      %v4584 = vsel %vm1760, %v4581, %v4583
      %v4681 = vadd.f32 %v4125, %v4419
      %v4682 = vadd.f32 %v4126, %v4421
      %v4683 = vadd.f32 %v4127, %v4423
      %v4684 = vadd.f32 %v4128, %v4422
      %v4685 = vadd.f32 %v4129, %v4426
      %v4686 = vadd.f32 %v4130, %v4428
      %v4687 = vadd.f32 %v4131, %v4430
      %v4688 = vadd.f32 %v4132, %v4429
      %v4689 = vadd.f32 %v4133, %v4433
      %v4690 = vadd.f32 %v4134, %v4435
      %v4691 = vadd.f32 %v4135, %v4437
      %v4692 = vadd.f32 %v4136, %v4436
      %v4693 = vadd.f32 %v4137, %v4440
      %v4694 = vadd.f32 %v4138, %v4442
      %v4695 = vadd.f32 %v4139, %v4444
      %v4696 = vadd.f32 %v4140, %v4443
      %v4697 = vadd.f32 %v4141, %v4447
      %v4698 = vadd.f32 %v4142, %v4449
      %v4699 = vadd.f32 %v4143, %v4451
      %v4700 = vadd.f32 %v4144, %v4450
      %v4701 = vadd.f32 %v4145, %v4454
      %v4702 = vadd.f32 %v4146, %v4456
      %v4703 = vadd.f32 %v4147, %v4458
      %v4704 = vadd.f32 %v4148, %v4457
      %v4705 = vadd.f32 %v4149, %v4461
      %v4706 = vadd.f32 %v4150, %v4463
      %v4707 = vadd.f32 %v4151, %v4465
      %v4708 = vadd.f32 %v4152, %v4464
      %v4709 = vadd.f32 %v4153, %v4468
      %v4710 = vadd.f32 %v4154, %v4470
      %v4711 = vadd.f32 %v4155, %v4472
      %v4712 = vadd.f32 %v4156, %v4471
      %v4713 = vadd.f32 %v4157, %v4475
      %v4714 = vadd.f32 %v4158, %v4477
      %v4715 = vadd.f32 %v4159, %v4479
      %v4716 = vadd.f32 %v4160, %v4478
      %v4717 = vadd.f32 %v4161, %v4482
      %v4718 = vadd.f32 %v4162, %v4484
      %v4719 = vadd.f32 %v4163, %v4486
      %v4720 = vadd.f32 %v4164, %v4485
      %v4721 = vadd.f32 %v4165, %v4489
      %v4722 = vadd.f32 %v4166, %v4491
      %v4723 = vadd.f32 %v4167, %v4493
      %v4724 = vadd.f32 %v4168, %v4492
      %v4725 = vadd.f32 %v4169, %v4496
      %v4726 = vadd.f32 %v4170, %v4498
      %v4727 = vadd.f32 %v4171, %v4500
      %v4728 = vadd.f32 %v4172, %v4499
      %v4729 = vadd.f32 %v4173, %v4503
      %v4730 = vadd.f32 %v4174, %v4505
      %v4731 = vadd.f32 %v4175, %v4507
      %v4732 = vadd.f32 %v4176, %v4506
      %v4733 = vadd.f32 %v4177, %v4510
      %v4734 = vadd.f32 %v4178, %v4512
      %v4735 = vadd.f32 %v4179, %v4514
      %v4736 = vadd.f32 %v4180, %v4513
      %v4737 = vadd.f32 %v4181, %v4517
      %v4738 = vadd.f32 %v4182, %v4519
      %v4739 = vadd.f32 %v4183, %v4521
      %v4740 = vadd.f32 %v4184, %v4520
      %v4741 = vadd.f32 %v4185, %v4524
      %v4742 = vadd.f32 %v4186, %v4526
      %v4743 = vadd.f32 %v4187, %v4528
      %v4744 = vadd.f32 %v4188, %v4527
      %v4745 = vadd.f32 %v4189, %v4531
      %v4746 = vadd.f32 %v4190, %v4533
      %v4747 = vadd.f32 %v4191, %v4535
      %v4748 = vadd.f32 %v4192, %v4534
      %v4749 = vadd.f32 %v4193, %v4538
      %v4750 = vadd.f32 %v4194, %v4540
      %v4751 = vadd.f32 %v4195, %v4542
      %v4752 = vadd.f32 %v4196, %v4541
      %v4753 = vadd.f32 %v4197, %v4545
      %v4754 = vadd.f32 %v4198, %v4547
      %v4755 = vadd.f32 %v4199, %v4549
      %v4756 = vadd.f32 %v4200, %v4548
      %v4757 = vadd.f32 %v4201, %v4552
      %v4758 = vadd.f32 %v4202, %v4554
      %v4759 = vadd.f32 %v4203, %v4556
      %v4760 = vadd.f32 %v4204, %v4555
      %v4761 = vadd.f32 %v4205, %v4559
      %v4762 = vadd.f32 %v4206, %v4561
      %v4763 = vadd.f32 %v4207, %v4563
      %v4764 = vadd.f32 %v4208, %v4562
      %v4765 = vadd.f32 %v4209, %v4566
      %v4766 = vadd.f32 %v4210, %v4568
      %v4767 = vadd.f32 %v4211, %v4570
      %v4768 = vadd.f32 %v4212, %v4569
      %v4769 = vadd.f32 %v4213, %v4573
      %v4770 = vadd.f32 %v4214, %v4575
      %v4771 = vadd.f32 %v4215, %v4577
      %v4772 = vadd.f32 %v4216, %v4576
      %v4773 = vadd.f32 %v4217, %v4580
      %v4774 = vadd.f32 %v4218, %v4582
      %v4775 = vadd.f32 %v4219, %v4584
      %v4776 = vadd.f32 %v4220, %v4583
      %v4777 = vld [vmem:[%s2] sm:$0x1]
      %v4779 = vlaneseq
      %v4780 = vshrl.u32 %v4779, 7
      %v4781 = vsub.s32 0, %v4780
      %v4782 = vrot.slane %v4777, %v4781
      %v4784 = vadd.f32 %v4681, %v4782
      %v4785 = vadd.f32 %v4682, %v4782
      %v4786 = vadd.f32 %v4683, %v4782
      %v4787 = vadd.f32 %v4684, %v4782
      %v4788 = vadd.f32 %v4685, %v4782
      %v4789 = vadd.f32 %v4686, %v4782
      %v4790 = vadd.f32 %v4687, %v4782
      %v4791 = vadd.f32 %v4688, %v4782
      %v4792 = vadd.f32 %v4689, %v4782
      %v4793 = vadd.f32 %v4690, %v4782
      %v4794 = vadd.f32 %v4691, %v4782
      %v4795 = vadd.f32 %v4692, %v4782
      %v4796 = vadd.f32 %v4693, %v4782
      %v4797 = vadd.f32 %v4694, %v4782
      %v4798 = vadd.f32 %v4695, %v4782
      %v4799 = vadd.f32 %v4696, %v4782
      %v4800 = vadd.f32 %v4697, %v4782
      %v4801 = vadd.f32 %v4698, %v4782
      %v4802 = vadd.f32 %v4699, %v4782
      %v4803 = vadd.f32 %v4700, %v4782
      %v4804 = vadd.f32 %v4701, %v4782
      %v4805 = vadd.f32 %v4702, %v4782
      %v4806 = vadd.f32 %v4703, %v4782
      %v4807 = vadd.f32 %v4704, %v4782
      %v4808 = vadd.f32 %v4705, %v4782
      %v4809 = vadd.f32 %v4706, %v4782
      %v4810 = vadd.f32 %v4707, %v4782
      %v4811 = vadd.f32 %v4708, %v4782
      %v4812 = vadd.f32 %v4709, %v4782
      %v4813 = vadd.f32 %v4710, %v4782
      %v4814 = vadd.f32 %v4711, %v4782
      %v4815 = vadd.f32 %v4712, %v4782
      %v4816 = vadd.f32 %v4713, %v4782
      %v4817 = vadd.f32 %v4714, %v4782
      %v4818 = vadd.f32 %v4715, %v4782
      %v4819 = vadd.f32 %v4716, %v4782
      %v4820 = vadd.f32 %v4717, %v4782
      %v4821 = vadd.f32 %v4718, %v4782
      %v4822 = vadd.f32 %v4719, %v4782
      %v4823 = vadd.f32 %v4720, %v4782
      %v4824 = vadd.f32 %v4721, %v4782
      %v4825 = vadd.f32 %v4722, %v4782
      %v4826 = vadd.f32 %v4723, %v4782
      %v4827 = vadd.f32 %v4724, %v4782
      %v4828 = vadd.f32 %v4725, %v4782
      %v4829 = vadd.f32 %v4726, %v4782
      %v4830 = vadd.f32 %v4727, %v4782
      %v4831 = vadd.f32 %v4728, %v4782
      %v4832 = vadd.f32 %v4729, %v4782
      %v4833 = vadd.f32 %v4730, %v4782
      %v4834 = vadd.f32 %v4731, %v4782
      %v4835 = vadd.f32 %v4732, %v4782
      %v4836 = vadd.f32 %v4733, %v4782
      %v4837 = vadd.f32 %v4734, %v4782
      %v4838 = vadd.f32 %v4735, %v4782
      %v4839 = vadd.f32 %v4736, %v4782
      %v4840 = vadd.f32 %v4737, %v4782
      %v4841 = vadd.f32 %v4738, %v4782
      %v4842 = vadd.f32 %v4739, %v4782
      %v4843 = vadd.f32 %v4740, %v4782
      %v4844 = vadd.f32 %v4741, %v4782
      %v4845 = vadd.f32 %v4742, %v4782
      %v4846 = vadd.f32 %v4743, %v4782
      %v4847 = vadd.f32 %v4744, %v4782
      %v4848 = vadd.f32 %v4745, %v4782
      %v4849 = vadd.f32 %v4746, %v4782
      %v4850 = vadd.f32 %v4747, %v4782
      %v4851 = vadd.f32 %v4748, %v4782
      %v4852 = vadd.f32 %v4749, %v4782
      %v4853 = vadd.f32 %v4750, %v4782
      %v4854 = vadd.f32 %v4751, %v4782
      %v4855 = vadd.f32 %v4752, %v4782
      %v4856 = vadd.f32 %v4753, %v4782
      %v4857 = vadd.f32 %v4754, %v4782
      %v4858 = vadd.f32 %v4755, %v4782
      %v4859 = vadd.f32 %v4756, %v4782
      %v4860 = vadd.f32 %v4757, %v4782
      %v4861 = vadd.f32 %v4758, %v4782
      %v4862 = vadd.f32 %v4759, %v4782
      %v4863 = vadd.f32 %v4760, %v4782
      %v4864 = vadd.f32 %v4761, %v4782
      %v4865 = vadd.f32 %v4762, %v4782
      %v4866 = vadd.f32 %v4763, %v4782
      %v4867 = vadd.f32 %v4764, %v4782
      %v4868 = vadd.f32 %v4765, %v4782
      %v4869 = vadd.f32 %v4766, %v4782
      %v4870 = vadd.f32 %v4767, %v4782
      %v4871 = vadd.f32 %v4768, %v4782
      %v4872 = vadd.f32 %v4769, %v4782
      %v4873 = vadd.f32 %v4770, %v4782
      %v4874 = vadd.f32 %v4771, %v4782
      %v4875 = vadd.f32 %v4772, %v4782
      %v4876 = vadd.f32 %v4773, %v4782
      %v4877 = vadd.f32 %v4774, %v4782
      %v4878 = vadd.f32 %v4775, %v4782
      %v4879 = vadd.f32 %v4776, %v4782
      %v4880 = vmax.f32 %v4784, 0.0
      %v4881 = vmax.f32 %v4785, 0.0
      %v4882 = vmax.f32 %v4786, 0.0
      %v4883 = vmax.f32 %v4787, 0.0
      %v4884 = vmax.f32 %v4788, 0.0
      %v4885 = vmax.f32 %v4789, 0.0
      %v4886 = vmax.f32 %v4790, 0.0
      %v4887 = vmax.f32 %v4791, 0.0
      %v4888 = vmax.f32 %v4792, 0.0
      %v4889 = vmax.f32 %v4793, 0.0
      %v4890 = vmax.f32 %v4794, 0.0
      %v4891 = vmax.f32 %v4795, 0.0
      %v4892 = vmax.f32 %v4796, 0.0
      %v4893 = vmax.f32 %v4797, 0.0
      %v4894 = vmax.f32 %v4798, 0.0
      %v4895 = vmax.f32 %v4799, 0.0
      %v4896 = vmax.f32 %v4800, 0.0
      %v4897 = vmax.f32 %v4801, 0.0
      %v4898 = vmax.f32 %v4802, 0.0
      %v4899 = vmax.f32 %v4803, 0.0
      %v4900 = vmax.f32 %v4804, 0.0
      %v4901 = vmax.f32 %v4805, 0.0
      %v4902 = vmax.f32 %v4806, 0.0
      %v4903 = vmax.f32 %v4807, 0.0
      %v4904 = vmax.f32 %v4808, 0.0
      %v4905 = vmax.f32 %v4809, 0.0
      %v4906 = vmax.f32 %v4810, 0.0
      %v4907 = vmax.f32 %v4811, 0.0
      %v4908 = vmax.f32 %v4812, 0.0
      %v4909 = vmax.f32 %v4813, 0.0
      %v4910 = vmax.f32 %v4814, 0.0
      %v4911 = vmax.f32 %v4815, 0.0
      %v4912 = vmax.f32 %v4816, 0.0
      %v4913 = vmax.f32 %v4817, 0.0
      %v4914 = vmax.f32 %v4818, 0.0
      %v4915 = vmax.f32 %v4819, 0.0
      %v4916 = vmax.f32 %v4820, 0.0
      %v4917 = vmax.f32 %v4821, 0.0
      %v4918 = vmax.f32 %v4822, 0.0
      %v4919 = vmax.f32 %v4823, 0.0
      %v4920 = vmax.f32 %v4824, 0.0
      %v4921 = vmax.f32 %v4825, 0.0
      %v4922 = vmax.f32 %v4826, 0.0
      %v4923 = vmax.f32 %v4827, 0.0
      %v4924 = vmax.f32 %v4828, 0.0
      %v4925 = vmax.f32 %v4829, 0.0
      %v4926 = vmax.f32 %v4830, 0.0
      %v4927 = vmax.f32 %v4831, 0.0
      %v4928 = vmax.f32 %v4832, 0.0
      %v4929 = vmax.f32 %v4833, 0.0
      %v4930 = vmax.f32 %v4834, 0.0
      %v4931 = vmax.f32 %v4835, 0.0
      %v4932 = vmax.f32 %v4836, 0.0
      %v4933 = vmax.f32 %v4837, 0.0
      %v4934 = vmax.f32 %v4838, 0.0
      %v4935 = vmax.f32 %v4839, 0.0
      %v4936 = vmax.f32 %v4840, 0.0
      %v4937 = vmax.f32 %v4841, 0.0
      %v4938 = vmax.f32 %v4842, 0.0
      %v4939 = vmax.f32 %v4843, 0.0
      %v4940 = vmax.f32 %v4844, 0.0
      %v4941 = vmax.f32 %v4845, 0.0
      %v4942 = vmax.f32 %v4846, 0.0
      %v4943 = vmax.f32 %v4847, 0.0
      %v4944 = vmax.f32 %v4848, 0.0
      %v4945 = vmax.f32 %v4849, 0.0
      %v4946 = vmax.f32 %v4850, 0.0
      %v4947 = vmax.f32 %v4851, 0.0
      %v4948 = vmax.f32 %v4852, 0.0
      %v4949 = vmax.f32 %v4853, 0.0
      %v4950 = vmax.f32 %v4854, 0.0
      %v4951 = vmax.f32 %v4855, 0.0
      %v4952 = vmax.f32 %v4856, 0.0
      %v4953 = vmax.f32 %v4857, 0.0
      %v4954 = vmax.f32 %v4858, 0.0
      %v4955 = vmax.f32 %v4859, 0.0
      %v4956 = vmax.f32 %v4860, 0.0
      %v4957 = vmax.f32 %v4861, 0.0
      %v4958 = vmax.f32 %v4862, 0.0
      %v4959 = vmax.f32 %v4863, 0.0
      %v4960 = vmax.f32 %v4864, 0.0
      %v4961 = vmax.f32 %v4865, 0.0
      %v4962 = vmax.f32 %v4866, 0.0
      %v4963 = vmax.f32 %v4867, 0.0
      %v4964 = vmax.f32 %v4868, 0.0
      %v4965 = vmax.f32 %v4869, 0.0
      %v4966 = vmax.f32 %v4870, 0.0
      %v4967 = vmax.f32 %v4871, 0.0
      %v4968 = vmax.f32 %v4872, 0.0
      %v4969 = vmax.f32 %v4873, 0.0
      %v4970 = vmax.f32 %v4874, 0.0
      %v4971 = vmax.f32 %v4875, 0.0
      %v4972 = vmax.f32 %v4876, 0.0
      %v4973 = vmax.f32 %v4877, 0.0
      %v4974 = vmax.f32 %v4878, 0.0
      %v4975 = vmax.f32 %v4879, 0.0
      %v4976 = vmax.f32 %v4880, %v4884
      %v4977 = vmax.f32 %v4881, %v4885
      %v4978 = vmax.f32 %v4882, %v4886
      %v4979 = vmax.f32 %v4883, %v4887
      %v4980 = vmax.f32 %v4888, %v4892
      %v4981 = vmax.f32 %v4889, %v4893
      %v4982 = vmax.f32 %v4890, %v4894
      %v4983 = vmax.f32 %v4891, %v4895
      %v4984 = vmax.f32 %v4896, %v4900
      %v4985 = vmax.f32 %v4897, %v4901
      %v4986 = vmax.f32 %v4898, %v4902
      %v4987 = vmax.f32 %v4899, %v4903
      %v4988 = vmax.f32 %v4904, %v4908
      %v4989 = vmax.f32 %v4905, %v4909
      %v4990 = vmax.f32 %v4906, %v4910
      %v4991 = vmax.f32 %v4907, %v4911
      %v4992 = vmax.f32 %v4912, %v4916
      %v4993 = vmax.f32 %v4913, %v4917
      %v4994 = vmax.f32 %v4914, %v4918
      %v4995 = vmax.f32 %v4915, %v4919
      %v4996 = vmax.f32 %v4920, %v4924
      %v4997 = vmax.f32 %v4921, %v4925
      %v4998 = vmax.f32 %v4922, %v4926
      %v4999 = vmax.f32 %v4923, %v4927
      %v5000 = vmax.f32 %v4928, %v4932
      %v5001 = vmax.f32 %v4929, %v4933
      %v5002 = vmax.f32 %v4930, %v4934
      %v5003 = vmax.f32 %v4931, %v4935
      %v5004 = vmax.f32 %v4936, %v4940
      %v5005 = vmax.f32 %v4937, %v4941
      %v5006 = vmax.f32 %v4938, %v4942
      %v5007 = vmax.f32 %v4939, %v4943
      %v5008 = vmax.f32 %v4944, %v4948
      %v5009 = vmax.f32 %v4945, %v4949
      %v5010 = vmax.f32 %v4946, %v4950
      %v5011 = vmax.f32 %v4947, %v4951
      %v5012 = vmax.f32 %v4952, %v4956
      %v5013 = vmax.f32 %v4953, %v4957
      %v5014 = vmax.f32 %v4954, %v4958
      %v5015 = vmax.f32 %v4955, %v4959
      %v5016 = vmax.f32 %v4960, %v4964
      %v5017 = vmax.f32 %v4961, %v4965
      %v5018 = vmax.f32 %v4962, %v4966
      %v5019 = vmax.f32 %v4963, %v4967
      %v5020 = vmax.f32 %v4968, %v4972
      %v5021 = vmax.f32 %v4969, %v4973
      %v5022 = vmax.f32 %v4970, %v4974
      %v5023 = vmax.f32 %v4971, %v4975
      %v5036 = vrot.slane %v4976, 1
      %v5037 = vrot.slane %v4980, 1
      %v5038 = vrot.slane %v4984, 1
      %v5039 = vrot.slane %v4988, 1
      %v5040 = vrot.slane %v4992, 1
      %v5041 = vrot.slane %v4996, 1
      %v5042 = vrot.slane %v5000, 1
      %v5043 = vrot.slane %v5004, 1
      %v5044 = vrot.slane %v5008, 1
      %v5045 = vrot.slane %v5012, 1
      %v5046 = vrot.slane %v5016, 1
      %v5047 = vrot.slane %v5020, 1
      %v5060 = vmax.f32 %v4976, %v5036
      %v5061 = vmax.f32 %v4980, %v5037
      %v5062 = vmax.f32 %v4984, %v5038
      %v5063 = vmax.f32 %v4988, %v5039
      %v5064 = vmax.f32 %v4992, %v5040
      %v5065 = vmax.f32 %v4996, %v5041
      %v5066 = vmax.f32 %v5000, %v5042
      %v5067 = vmax.f32 %v5004, %v5043
      %v5068 = vmax.f32 %v5008, %v5044
      %v5069 = vmax.f32 %v5012, %v5045
      %v5070 = vmax.f32 %v5016, %v5046
      %v5071 = vmax.f32 %v5020, %v5047
      %v5084 = vrot.slane %v4977, 1
      %v5085 = vrot.slane %v4981, 1
      %v5086 = vrot.slane %v4985, 1
      %v5087 = vrot.slane %v4989, 1
      %v5088 = vrot.slane %v4993, 1
      %v5089 = vrot.slane %v4997, 1
      %v5090 = vrot.slane %v5001, 1
      %v5091 = vrot.slane %v5005, 1
      %v5092 = vrot.slane %v5009, 1
      %v5093 = vrot.slane %v5013, 1
      %v5094 = vrot.slane %v5017, 1
      %v5095 = vrot.slane %v5021, 1
      %v5108 = vmax.f32 %v4977, %v5084
      %v5109 = vmax.f32 %v4981, %v5085
      %v5110 = vmax.f32 %v4985, %v5086
      %v5111 = vmax.f32 %v4989, %v5087
      %v5112 = vmax.f32 %v4993, %v5088
      %v5113 = vmax.f32 %v4997, %v5089
      %v5114 = vmax.f32 %v5001, %v5090
      %v5115 = vmax.f32 %v5005, %v5091
      %v5116 = vmax.f32 %v5009, %v5092
      %v5117 = vmax.f32 %v5013, %v5093
      %v5118 = vmax.f32 %v5017, %v5094
      %v5119 = vmax.f32 %v5021, %v5095
      %v5132 = vrot.slane %v4978, 1
      %v5133 = vrot.slane %v4982, 1
      %v5134 = vrot.slane %v4986, 1
      %v5135 = vrot.slane %v4990, 1
      %v5136 = vrot.slane %v4994, 1
      %v5137 = vrot.slane %v4998, 1
      %v5138 = vrot.slane %v5002, 1
      %v5139 = vrot.slane %v5006, 1
      %v5140 = vrot.slane %v5010, 1
      %v5141 = vrot.slane %v5014, 1
      %v5142 = vrot.slane %v5018, 1
      %v5143 = vrot.slane %v5022, 1
      %v5156 = vmax.f32 %v4978, %v5132
      %v5157 = vmax.f32 %v4982, %v5133
      %v5158 = vmax.f32 %v4986, %v5134
      %v5159 = vmax.f32 %v4990, %v5135
      %v5160 = vmax.f32 %v4994, %v5136
      %v5161 = vmax.f32 %v4998, %v5137
      %v5162 = vmax.f32 %v5002, %v5138
      %v5163 = vmax.f32 %v5006, %v5139
      %v5164 = vmax.f32 %v5010, %v5140
      %v5165 = vmax.f32 %v5014, %v5141
      %v5166 = vmax.f32 %v5018, %v5142
      %v5167 = vmax.f32 %v5022, %v5143
      %v5180 = vrot.slane %v4979, 1
      %v5181 = vrot.slane %v4983, 1
      %v5182 = vrot.slane %v4987, 1
      %v5183 = vrot.slane %v4991, 1
      %v5184 = vrot.slane %v4995, 1
      %v5185 = vrot.slane %v4999, 1
      %v5186 = vrot.slane %v5003, 1
      %v5187 = vrot.slane %v5007, 1
      %v5188 = vrot.slane %v5011, 1
      %v5189 = vrot.slane %v5015, 1
      %v5190 = vrot.slane %v5019, 1
      %v5191 = vrot.slane %v5023, 1
      %v5204 = vmax.f32 %v4979, %v5180
      %v5205 = vmax.f32 %v4983, %v5181
      %v5206 = vmax.f32 %v4987, %v5182
      %v5207 = vmax.f32 %v4991, %v5183
      %v5208 = vmax.f32 %v4995, %v5184
      %v5209 = vmax.f32 %v4999, %v5185
      %v5210 = vmax.f32 %v5003, %v5186
      %v5211 = vmax.f32 %v5007, %v5187
      %v5212 = vmax.f32 %v5011, %v5188
      %v5213 = vmax.f32 %v5015, %v5189
      %v5214 = vmax.f32 %v5019, %v5190
      %v5215 = vmax.f32 %v5023, %v5191
      %v5228 = vrot.slane %v5060, 1
      %v5229 = vrot.slane %v5061, 1
      %v5230 = vrot.slane %v5062, 1
      %v5231 = vrot.slane %v5063, 1
      %v5232 = vrot.slane %v5064, 1
      %v5233 = vrot.slane %v5065, 1
      %v5234 = vrot.slane %v5066, 1
      %v5235 = vrot.slane %v5067, 1
      %v5236 = vrot.slane %v5068, 1
      %v5237 = vrot.slane %v5069, 1
      %v5238 = vrot.slane %v5070, 1
      %v5239 = vrot.slane %v5071, 1
      %v5252 = vrot.slane %v5060, 2
      %v5253 = vrot.slane %v5061, 2
      %v5254 = vrot.slane %v5062, 2
      %v5255 = vrot.slane %v5063, 2
      %v5256 = vrot.slane %v5064, 2
      %v5257 = vrot.slane %v5065, 2
      %v5258 = vrot.slane %v5066, 2
      %v5259 = vrot.slane %v5067, 2
      %v5260 = vrot.slane %v5068, 2
      %v5261 = vrot.slane %v5069, 2
      %v5262 = vrot.slane %v5070, 2
      %v5263 = vrot.slane %v5071, 2
      %v5276 = vrot.slane %v5060, 3
      %v5277 = vrot.slane %v5061, 3
      %v5278 = vrot.slane %v5062, 3
      %v5279 = vrot.slane %v5063, 3
      %v5280 = vrot.slane %v5064, 3
      %v5281 = vrot.slane %v5065, 3
      %v5282 = vrot.slane %v5066, 3
      %v5283 = vrot.slane %v5067, 3
      %v5284 = vrot.slane %v5068, 3
      %v5285 = vrot.slane %v5069, 3
      %v5286 = vrot.slane %v5070, 3
      %v5287 = vrot.slane %v5071, 3
      %v5312 = vrot.slane %v5108, 4
      %v5313 = vrot.slane %v5109, 4
      %v5314 = vrot.slane %v5110, 4
      %v5315 = vrot.slane %v5111, 4
      %v5316 = vrot.slane %v5112, 4
      %v5317 = vrot.slane %v5113, 4
      %v5318 = vrot.slane %v5114, 4
      %v5319 = vrot.slane %v5115, 4
      %v5320 = vrot.slane %v5116, 4
      %v5321 = vrot.slane %v5117, 4
      %v5322 = vrot.slane %v5118, 4
      %v5323 = vrot.slane %v5119, 4
      %v5336 = vrot.slane %v5108, 5
      %v5337 = vrot.slane %v5109, 5
      %v5338 = vrot.slane %v5110, 5
      %v5339 = vrot.slane %v5111, 5
      %v5340 = vrot.slane %v5112, 5
      %v5341 = vrot.slane %v5113, 5
      %v5342 = vrot.slane %v5114, 5
      %v5343 = vrot.slane %v5115, 5
      %v5344 = vrot.slane %v5116, 5
      %v5345 = vrot.slane %v5117, 5
      %v5346 = vrot.slane %v5118, 5
      %v5347 = vrot.slane %v5119, 5
      %v5360 = vrot.slane %v5108, 6
      %v5361 = vrot.slane %v5109, 6
      %v5362 = vrot.slane %v5110, 6
      %v5363 = vrot.slane %v5111, 6
      %v5364 = vrot.slane %v5112, 6
      %v5365 = vrot.slane %v5113, 6
      %v5366 = vrot.slane %v5114, 6
      %v5367 = vrot.slane %v5115, 6
      %v5368 = vrot.slane %v5116, 6
      %v5369 = vrot.slane %v5117, 6
      %v5370 = vrot.slane %v5118, 6
      %v5371 = vrot.slane %v5119, 6
      %v5384 = vrot.slane %v5108, 7
      %v5385 = vrot.slane %v5109, 7
      %v5386 = vrot.slane %v5110, 7
      %v5387 = vrot.slane %v5111, 7
      %v5388 = vrot.slane %v5112, 7
      %v5389 = vrot.slane %v5113, 7
      %v5390 = vrot.slane %v5114, 7
      %v5391 = vrot.slane %v5115, 7
      %v5392 = vrot.slane %v5116, 7
      %v5393 = vrot.slane %v5117, 7
      %v5394 = vrot.slane %v5118, 7
      %v5395 = vrot.slane %v5119, 7
      %v5420 = vrot.slane %v5156, 1
      %v5421 = vrot.slane %v5157, 1
      %v5422 = vrot.slane %v5158, 1
      %v5423 = vrot.slane %v5159, 1
      %v5424 = vrot.slane %v5160, 1
      %v5425 = vrot.slane %v5161, 1
      %v5426 = vrot.slane %v5162, 1
      %v5427 = vrot.slane %v5163, 1
      %v5428 = vrot.slane %v5164, 1
      %v5429 = vrot.slane %v5165, 1
      %v5430 = vrot.slane %v5166, 1
      %v5431 = vrot.slane %v5167, 1
      %v5444 = vrot.slane %v5156, 2
      %v5445 = vrot.slane %v5157, 2
      %v5446 = vrot.slane %v5158, 2
      %v5447 = vrot.slane %v5159, 2
      %v5448 = vrot.slane %v5160, 2
      %v5449 = vrot.slane %v5161, 2
      %v5450 = vrot.slane %v5162, 2
      %v5451 = vrot.slane %v5163, 2
      %v5452 = vrot.slane %v5164, 2
      %v5453 = vrot.slane %v5165, 2
      %v5454 = vrot.slane %v5166, 2
      %v5455 = vrot.slane %v5167, 2
      %v5468 = vrot.slane %v5156, 3
      %v5469 = vrot.slane %v5157, 3
      %v5470 = vrot.slane %v5158, 3
      %v5471 = vrot.slane %v5159, 3
      %v5472 = vrot.slane %v5160, 3
      %v5473 = vrot.slane %v5161, 3
      %v5474 = vrot.slane %v5162, 3
      %v5475 = vrot.slane %v5163, 3
      %v5476 = vrot.slane %v5164, 3
      %v5477 = vrot.slane %v5165, 3
      %v5478 = vrot.slane %v5166, 3
      %v5479 = vrot.slane %v5167, 3
      %v5504 = vrot.slane %v5204, 4
      %v5505 = vrot.slane %v5205, 4
      %v5506 = vrot.slane %v5206, 4
      %v5507 = vrot.slane %v5207, 4
      %v5508 = vrot.slane %v5208, 4
      %v5509 = vrot.slane %v5209, 4
      %v5510 = vrot.slane %v5210, 4
      %v5511 = vrot.slane %v5211, 4
      %v5512 = vrot.slane %v5212, 4
      %v5513 = vrot.slane %v5213, 4
      %v5514 = vrot.slane %v5214, 4
      %v5515 = vrot.slane %v5215, 4
      %vm5528 = vcmask 1040384
      %v5529 = vsel %vm5528, %v5060, %v5228
      %v5530 = vsel %vm5528, %v5061, %v5229
      %v5531 = vsel %vm5528, %v5062, %v5230
      %v5532 = vsel %vm5528, %v5063, %v5231
      %v5533 = vsel %vm5528, %v5064, %v5232
      %v5534 = vsel %vm5528, %v5065, %v5233
      %v5535 = vsel %vm5528, %v5066, %v5234
      %v5536 = vsel %vm5528, %v5067, %v5235
      %v5537 = vsel %vm5528, %v5068, %v5236
      %v5538 = vsel %vm5528, %v5069, %v5237
      %v5539 = vsel %vm5528, %v5070, %v5238
      %v5540 = vsel %vm5528, %v5071, %v5239
      %vm5541 = vcmask 1041408
      %v5542 = vsel %vm5541, %v5529, %v5252
      %v5543 = vsel %vm5541, %v5530, %v5253
      %v5544 = vsel %vm5541, %v5531, %v5254
      %v5545 = vsel %vm5541, %v5532, %v5255
      %v5546 = vsel %vm5541, %v5533, %v5256
      %v5547 = vsel %vm5541, %v5534, %v5257
      %v5548 = vsel %vm5541, %v5535, %v5258
      %v5549 = vsel %vm5541, %v5536, %v5259
      %v5550 = vsel %vm5541, %v5537, %v5260
      %v5551 = vsel %vm5541, %v5538, %v5261
      %v5552 = vsel %vm5541, %v5539, %v5262
      %v5553 = vsel %vm5541, %v5540, %v5263
      %vm5554 = vcmask 1042432
      %v5555 = vsel %vm5554, %v5542, %v5276
      %v5556 = vsel %vm5554, %v5543, %v5277
      %v5557 = vsel %vm5554, %v5544, %v5278
      %v5558 = vsel %vm5554, %v5545, %v5279
      %v5559 = vsel %vm5554, %v5546, %v5280
      %v5560 = vsel %vm5554, %v5547, %v5281
      %v5561 = vsel %vm5554, %v5548, %v5282
      %v5562 = vsel %vm5554, %v5549, %v5283
      %v5563 = vsel %vm5554, %v5550, %v5284
      %v5564 = vsel %vm5554, %v5551, %v5285
      %v5565 = vsel %vm5554, %v5552, %v5286
      %v5566 = vsel %vm5554, %v5553, %v5287
      %vm5567 = vcmask 1043456
      %v5568 = vsel %vm5567, %v5555, %v5312
      %v5569 = vsel %vm5567, %v5556, %v5313
      %v5570 = vsel %vm5567, %v5557, %v5314
      %v5571 = vsel %vm5567, %v5558, %v5315
      %v5572 = vsel %vm5567, %v5559, %v5316
      %v5573 = vsel %vm5567, %v5560, %v5317
      %v5574 = vsel %vm5567, %v5561, %v5318
      %v5575 = vsel %vm5567, %v5562, %v5319
      %v5576 = vsel %vm5567, %v5563, %v5320
      %v5577 = vsel %vm5567, %v5564, %v5321
      %v5578 = vsel %vm5567, %v5565, %v5322
      %v5579 = vsel %vm5567, %v5566, %v5323
      %vm5580 = vcmask 1044480
      %v5581 = vsel %vm5580, %v5568, %v5336
      %v5582 = vsel %vm5580, %v5569, %v5337
      %v5583 = vsel %vm5580, %v5570, %v5338
      %v5584 = vsel %vm5580, %v5571, %v5339
      %v5585 = vsel %vm5580, %v5572, %v5340
      %v5586 = vsel %vm5580, %v5573, %v5341
      %v5587 = vsel %vm5580, %v5574, %v5342
      %v5588 = vsel %vm5580, %v5575, %v5343
      %v5589 = vsel %vm5580, %v5576, %v5344
      %v5590 = vsel %vm5580, %v5577, %v5345
      %v5591 = vsel %vm5580, %v5578, %v5346
      %v5592 = vsel %vm5580, %v5579, %v5347
      %v5593 = vsel %vm1760, %v5581, %v5360
      %v5594 = vsel %vm1760, %v5582, %v5361
      %v5595 = vsel %vm1760, %v5583, %v5362
      %v5596 = vsel %vm1760, %v5584, %v5363
      %v5597 = vsel %vm1760, %v5585, %v5364
      %v5598 = vsel %vm1760, %v5586, %v5365
      %v5599 = vsel %vm1760, %v5587, %v5366
      %v5600 = vsel %vm1760, %v5588, %v5367
      %v5601 = vsel %vm1760, %v5589, %v5368
      %v5602 = vsel %vm1760, %v5590, %v5369
      %v5603 = vsel %vm1760, %v5591, %v5370
      %v5604 = vsel %vm1760, %v5592, %v5371
      %v5605 = vsel %vm1203, %v5593, %v5384
      %v5606 = vsel %vm1203, %v5594, %v5385
      %v5607 = vsel %vm1203, %v5595, %v5386
      %v5608 = vsel %vm1203, %v5596, %v5387
      %v5609 = vsel %vm1203, %v5597, %v5388
      %v5610 = vsel %vm1203, %v5598, %v5389
      %v5611 = vsel %vm1203, %v5599, %v5390
      %v5612 = vsel %vm1203, %v5600, %v5391
      %v5613 = vsel %vm1203, %v5601, %v5392
      %v5614 = vsel %vm1203, %v5602, %v5393
      %v5615 = vsel %vm1203, %v5603, %v5394
      %v5616 = vsel %vm1203, %v5604, %v5395
      %v5617 = vsel %vm5528, %v5156, %v5420
      %v5618 = vsel %vm5528, %v5157, %v5421
      %v5619 = vsel %vm5528, %v5158, %v5422
      %v5620 = vsel %vm5528, %v5159, %v5423
      %v5621 = vsel %vm5528, %v5160, %v5424
      %v5622 = vsel %vm5528, %v5161, %v5425
      %v5623 = vsel %vm5528, %v5162, %v5426
      %v5624 = vsel %vm5528, %v5163, %v5427
      %v5625 = vsel %vm5528, %v5164, %v5428
      %v5626 = vsel %vm5528, %v5165, %v5429
      %v5627 = vsel %vm5528, %v5166, %v5430
      %v5628 = vsel %vm5528, %v5167, %v5431
      %v5629 = vsel %vm5541, %v5617, %v5444
      %v5630 = vsel %vm5541, %v5618, %v5445
      %v5631 = vsel %vm5541, %v5619, %v5446
      %v5632 = vsel %vm5541, %v5620, %v5447
      %v5633 = vsel %vm5541, %v5621, %v5448
      %v5634 = vsel %vm5541, %v5622, %v5449
      %v5635 = vsel %vm5541, %v5623, %v5450
      %v5636 = vsel %vm5541, %v5624, %v5451
      %v5637 = vsel %vm5541, %v5625, %v5452
      %v5638 = vsel %vm5541, %v5626, %v5453
      %v5639 = vsel %vm5541, %v5627, %v5454
      %v5640 = vsel %vm5541, %v5628, %v5455
      %v5641 = vsel %vm5554, %v5629, %v5468
      %v5642 = vsel %vm5554, %v5630, %v5469
      %v5643 = vsel %vm5554, %v5631, %v5470
      %v5644 = vsel %vm5554, %v5632, %v5471
      %v5645 = vsel %vm5554, %v5633, %v5472
      %v5646 = vsel %vm5554, %v5634, %v5473
      %v5647 = vsel %vm5554, %v5635, %v5474
      %v5648 = vsel %vm5554, %v5636, %v5475
      %v5649 = vsel %vm5554, %v5637, %v5476
      %v5650 = vsel %vm5554, %v5638, %v5477
      %v5651 = vsel %vm5554, %v5639, %v5478
      %v5652 = vsel %vm5554, %v5640, %v5479
      %v5653 = vsel %vm5567, %v5641, %v5504
      %v5654 = vsel %vm5567, %v5642, %v5505
      %v5655 = vsel %vm5567, %v5643, %v5506
      %v5656 = vsel %vm5567, %v5644, %v5507
      %v5657 = vsel %vm5567, %v5645, %v5508
      %v5658 = vsel %vm5567, %v5646, %v5509
      %v5659 = vsel %vm5567, %v5647, %v5510
      %v5660 = vsel %vm5567, %v5648, %v5511
      %v5661 = vsel %vm5567, %v5649, %v5512
      %v5662 = vsel %vm5567, %v5650, %v5513
      %v5663 = vsel %vm5567, %v5651, %v5514
      %v5664 = vsel %vm5567, %v5652, %v5515
      %v5665 = vld [vmem:[%s3] sm:$0xff]
      %v5666 = vld [vmem:[%s3 + $0x8] sm:$0xff]
      %v5667 = vld [vmem:[%s3 + $0x10] sm:$0xff]
      %v5668 = vld [vmem:[%s3 + $0x18] sm:$0xff]
      %v5669 = vld [vmem:[%s3 + $0x20] sm:$0xff]
      %v5670 = vld [vmem:[%s3 + $0x28] sm:$0xff]
      %v5671 = vld [vmem:[%s3 + $0x30] sm:$0xff]
      %v5672 = vld [vmem:[%s3 + $0x38] sm:$0xff]
      %v5673 = vld [vmem:[%s3 + $0x40] sm:$0xff]
      %v5674 = vld [vmem:[%s3 + $0x48] sm:$0xff]
      %v5675 = vld [vmem:[%s3 + $0x50] sm:$0xff]
      %v5676 = vld [vmem:[%s3 + $0x58] sm:$0xff]
      %v5677 = vld [vmem:[%s3 + $0x60] sm:$0xff]
      %v5678 = vld [vmem:[%s3 + $0x68] sm:$0xff]
      %v5679 = vld [vmem:[%s3 + $0x70] sm:$0xff]
      %v5680 = vld [vmem:[%s3 + $0x78] sm:$0xff]
      %v5681 = vld [vmem:[%s3 + $0x80] sm:$0xff]
      %v5682 = vld [vmem:[%s3 + $0x88] sm:$0xff]
      %v5683 = vld [vmem:[%s3 + $0x90] sm:$0xff]
      %v5684 = vld [vmem:[%s3 + $0x98] sm:$0xff]
      %v5685 = vld [vmem:[%s3 + $0xa0] sm:$0xff]
      %v5686 = vld [vmem:[%s3 + $0xa8] sm:$0xff]
      %v5687 = vld [vmem:[%s3 + $0xb0] sm:$0xff]
      %v5688 = vld [vmem:[%s3 + $0xb8] sm:$0xff]
      %v5689 = vld [vmem:[%s3 + $0xc0] sm:$0xff]
      %v5690 = vld [vmem:[%s3 + $0xc8] sm:$0xff]
      %v5691 = vld [vmem:[%s3 + $0xd0] sm:$0xff]
      %v5692 = vld [vmem:[%s3 + $0xd8] sm:$0xff]
      %v5693 = vld [vmem:[%s3 + $0xe0] sm:$0xff]
      %v5694 = vld [vmem:[%s3 + $0xe8] sm:$0xff]
      %v5695 = vld [vmem:[%s3 + $0xf0] sm:$0xff]
      %v5696 = vld [vmem:[%s3 + $0xf8] sm:$0xff]
      %v5697 = vld [vmem:[%s3 + $0x100] sm:$0xff]
      %v5698 = vld [vmem:[%s3 + $0x108] sm:$0xff]
      %v5699 = vld [vmem:[%s3 + $0x110] sm:$0xff]
      %v5700 = vld [vmem:[%s3 + $0x118] sm:$0xff]
      %v5721 = vrot.slane %v5605, 1
      %v5722 = vrot.slane %v5653, 1
      %v5723 = vsel %vm1203, %v5721, %v5722
      %v5724 = vrot.slane %v5606, 1
      %v5725 = vrot.slane %v5654, 1
      %v5726 = vsel %vm1203, %v5724, %v5725
      %v5727 = vrot.slane %v5607, 1
      %v5728 = vrot.slane %v5655, 1
      %v5729 = vsel %vm1203, %v5727, %v5728
      %v5730 = vrot.slane %v5608, 1
      %v5731 = vrot.slane %v5656, 1
      %v5732 = vsel %vm1203, %v5730, %v5731
      %v5733 = vrot.slane %v5609, 1
      %v5734 = vrot.slane %v5657, 1
      %v5735 = vsel %vm1203, %v5733, %v5734
      %v5736 = vrot.slane %v5610, 1
      %v5737 = vrot.slane %v5658, 1
      %v5738 = vsel %vm1203, %v5736, %v5737
      %v5739 = vrot.slane %v5611, 1
      %v5740 = vrot.slane %v5659, 1
      %v5741 = vsel %vm1203, %v5739, %v5740
      %v5742 = vrot.slane %v5612, 1
      %v5743 = vrot.slane %v5660, 1
      %v5744 = vsel %vm1203, %v5742, %v5743
      %v5745 = vrot.slane %v5613, 1
      %v5746 = vrot.slane %v5661, 1
      %v5747 = vsel %vm1203, %v5745, %v5746
      %v5748 = vrot.slane %v5614, 1
      %v5749 = vrot.slane %v5662, 1
      %v5750 = vsel %vm1203, %v5748, %v5749
      %5751 = vrot.lane.b32.xlu0 %v5723, 32
      %v5752 = vpop.permute.xlu0 %5751
      %5753 = vrot.lane.b32.xlu0 %v5722, 32
      %v5754 = vpop.permute.xlu0 %5753
      %5755 = vrot.lane.b32.xlu0 %v5726, 32
      %v5756 = vpop.permute.xlu0 %5755
      %5757 = vrot.lane.b32.xlu0 %v5725, 32
      %v5758 = vpop.permute.xlu0 %5757
      %5759 = vrot.lane.b32.xlu0 %v5729, 32
      %v5760 = vpop.permute.xlu0 %5759
      %5761 = vrot.lane.b32.xlu0 %v5728, 32
      %v5762 = vpop.permute.xlu0 %5761
      %5763 = vrot.lane.b32.xlu0 %v5732, 32
      %v5764 = vpop.permute.xlu0 %5763
      %5765 = vrot.lane.b32.xlu0 %v5731, 32
      %v5766 = vpop.permute.xlu0 %5765
      %5767 = vrot.lane.b32.xlu0 %v5735, 32
      %v5768 = vpop.permute.xlu0 %5767
      %5769 = vrot.lane.b32.xlu0 %v5734, 32
      %v5770 = vpop.permute.xlu0 %5769
      %5771 = vrot.lane.b32.xlu0 %v5738, 32
      %v5772 = vpop.permute.xlu0 %5771
      %5773 = vrot.lane.b32.xlu0 %v5737, 32
      %v5774 = vpop.permute.xlu0 %5773
      %5775 = vrot.lane.b32.xlu0 %v5741, 32
      %v5776 = vpop.permute.xlu0 %5775
      %5777 = vrot.lane.b32.xlu0 %v5740, 32
      %v5778 = vpop.permute.xlu0 %5777
      %5779 = vrot.lane.b32.xlu0 %v5744, 32
      %v5780 = vpop.permute.xlu0 %5779
      %5781 = vrot.lane.b32.xlu0 %v5743, 32
      %v5782 = vpop.permute.xlu0 %5781
      %5783 = vrot.lane.b32.xlu0 %v5747, 32
      %v5784 = vpop.permute.xlu0 %5783
      %5785 = vrot.lane.b32.xlu0 %v5746, 32
      %v5786 = vpop.permute.xlu0 %5785
      %5787 = vrot.lane.b32.xlu0 %v5750, 32
      %v5788 = vpop.permute.xlu0 %5787
      %5789 = vrot.lane.b32.xlu0 %v5749, 32
      %v5790 = vpop.permute.xlu0 %5789
      %v5811 = vrot.slane %v5605, 2
      %v5812 = vrot.slane %v5653, 2
      %v5813 = vsel %vm1760, %v5811, %v5812
      %v5814 = vrot.slane %v5606, 2
      %v5815 = vrot.slane %v5654, 2
      %v5816 = vsel %vm1760, %v5814, %v5815
      %v5817 = vrot.slane %v5607, 2
      %v5818 = vrot.slane %v5655, 2
      %v5819 = vsel %vm1760, %v5817, %v5818
      %v5820 = vrot.slane %v5608, 2
      %v5821 = vrot.slane %v5656, 2
      %v5822 = vsel %vm1760, %v5820, %v5821
      %v5823 = vrot.slane %v5609, 2
      %v5824 = vrot.slane %v5657, 2
      %v5825 = vsel %vm1760, %v5823, %v5824
      %v5826 = vrot.slane %v5610, 2
      %v5827 = vrot.slane %v5658, 2
      %v5828 = vsel %vm1760, %v5826, %v5827
      %v5829 = vrot.slane %v5611, 2
      %v5830 = vrot.slane %v5659, 2
      %v5831 = vsel %vm1760, %v5829, %v5830
      %v5832 = vrot.slane %v5612, 2
      %v5833 = vrot.slane %v5660, 2
      %v5834 = vsel %vm1760, %v5832, %v5833
      %v5835 = vrot.slane %v5613, 2
      %v5836 = vrot.slane %v5661, 2
      %v5837 = vsel %vm1760, %v5835, %v5836
      %v5838 = vrot.slane %v5614, 2
      %v5839 = vrot.slane %v5662, 2
      %v5840 = vsel %vm1760, %v5838, %v5839
      %5841 = vrot.lane.b32.xlu0 %v5813, 64
      %v5842 = vpop.permute.xlu0 %5841
      %5843 = vrot.lane.b32.xlu0 %v5812, 64
      %v5844 = vpop.permute.xlu0 %5843
      %5845 = vrot.lane.b32.xlu0 %v5816, 64
      %v5846 = vpop.permute.xlu0 %5845
      %5847 = vrot.lane.b32.xlu0 %v5815, 64
      %v5848 = vpop.permute.xlu0 %5847
      %5849 = vrot.lane.b32.xlu0 %v5819, 64
      %v5850 = vpop.permute.xlu0 %5849
      %5851 = vrot.lane.b32.xlu0 %v5818, 64
      %v5852 = vpop.permute.xlu0 %5851
      %5853 = vrot.lane.b32.xlu0 %v5822, 64
      %v5854 = vpop.permute.xlu0 %5853
      %5855 = vrot.lane.b32.xlu0 %v5821, 64
      %v5856 = vpop.permute.xlu0 %5855
      %5857 = vrot.lane.b32.xlu0 %v5825, 64
      %v5858 = vpop.permute.xlu0 %5857
      %5859 = vrot.lane.b32.xlu0 %v5824, 64
      %v5860 = vpop.permute.xlu0 %5859
      %5861 = vrot.lane.b32.xlu0 %v5828, 64
      %v5862 = vpop.permute.xlu0 %5861
      %5863 = vrot.lane.b32.xlu0 %v5827, 64
      %v5864 = vpop.permute.xlu0 %5863
      %5865 = vrot.lane.b32.xlu0 %v5831, 64
      %v5866 = vpop.permute.xlu0 %5865
      %5867 = vrot.lane.b32.xlu0 %v5830, 64
      %v5868 = vpop.permute.xlu0 %5867
      %5869 = vrot.lane.b32.xlu0 %v5834, 64
      %v5870 = vpop.permute.xlu0 %5869
      %5871 = vrot.lane.b32.xlu0 %v5833, 64
      %v5872 = vpop.permute.xlu0 %5871
      %5873 = vrot.lane.b32.xlu0 %v5837, 64
      %v5874 = vpop.permute.xlu0 %5873
      %5875 = vrot.lane.b32.xlu0 %v5836, 64
      %v5876 = vpop.permute.xlu0 %5875
      %5877 = vrot.lane.b32.xlu0 %v5840, 64
      %v5878 = vpop.permute.xlu0 %5877
      %5879 = vrot.lane.b32.xlu0 %v5839, 64
      %v5880 = vpop.permute.xlu0 %5879
      %5903 = vrot.lane.b32.xlu0 %v5606, 96
      %v5904 = vpop.permute.xlu0 %5903
      %5905 = vrot.lane.b32.xlu0 %v5654, 96
      %v5906 = vpop.permute.xlu0 %5905
      %5907 = vrot.lane.b32.xlu0 %v5607, 96
      %v5908 = vpop.permute.xlu0 %5907
      %5909 = vrot.lane.b32.xlu0 %v5655, 96
      %v5910 = vpop.permute.xlu0 %5909
      %5911 = vrot.lane.b32.xlu0 %v5608, 96
      %v5912 = vpop.permute.xlu0 %5911
      %5913 = vrot.lane.b32.xlu0 %v5656, 96
      %v5914 = vpop.permute.xlu0 %5913
      %5915 = vrot.lane.b32.xlu0 %v5609, 96
      %v5916 = vpop.permute.xlu0 %5915
      %5917 = vrot.lane.b32.xlu0 %v5657, 96
      %v5918 = vpop.permute.xlu0 %5917
      %5919 = vrot.lane.b32.xlu0 %v5610, 96
      %v5920 = vpop.permute.xlu0 %5919
      %5921 = vrot.lane.b32.xlu0 %v5658, 96
      %v5922 = vpop.permute.xlu0 %5921
      %5923 = vrot.lane.b32.xlu0 %v5611, 96
      %v5924 = vpop.permute.xlu0 %5923
      %5925 = vrot.lane.b32.xlu0 %v5659, 96
      %v5926 = vpop.permute.xlu0 %5925
      %5927 = vrot.lane.b32.xlu0 %v5612, 96
      %v5928 = vpop.permute.xlu0 %5927
      %5929 = vrot.lane.b32.xlu0 %v5660, 96
      %v5930 = vpop.permute.xlu0 %5929
      %5931 = vrot.lane.b32.xlu0 %v5613, 96
      %v5932 = vpop.permute.xlu0 %5931
      %5933 = vrot.lane.b32.xlu0 %v5661, 96
      %v5934 = vpop.permute.xlu0 %5933
      %5935 = vrot.lane.b32.xlu0 %v5614, 96
      %v5936 = vpop.permute.xlu0 %5935
      %5937 = vrot.lane.b32.xlu0 %v5662, 96
      %v5938 = vpop.permute.xlu0 %5937
      %5939 = vrot.lane.b32.xlu0 %v5615, 96
      %v5940 = vpop.permute.xlu0 %5939
      %5941 = vrot.lane.b32.xlu0 %v5663, 96
      %v5942 = vpop.permute.xlu0 %5941
      %v5963 = vrot.slane %v5615, 1
      %v5964 = vrot.slane %v5663, 1
      %v5965 = vsel %vm1203, %v5963, %v5964
      %v5986 = vrot.slane %v5615, 2
      %v5987 = vrot.slane %v5663, 2
      %v5988 = vsel %vm1760, %v5986, %v5987
      %5989 = vrot.lane.b32.xlu0 %v5816, 32
      %v5990 = vpop.permute.xlu0 %5989
      %5991 = vrot.lane.b32.xlu0 %v5815, 32
      %v5992 = vpop.permute.xlu0 %5991
      %5993 = vrot.lane.b32.xlu0 %v5819, 32
      %v5994 = vpop.permute.xlu0 %5993
      %5995 = vrot.lane.b32.xlu0 %v5818, 32
      %v5996 = vpop.permute.xlu0 %5995
      %5997 = vrot.lane.b32.xlu0 %v5822, 32
      %v5998 = vpop.permute.xlu0 %5997
      %5999 = vrot.lane.b32.xlu0 %v5821, 32
      %v6000 = vpop.permute.xlu0 %5999
      %6001 = vrot.lane.b32.xlu0 %v5825, 32
      %v6002 = vpop.permute.xlu0 %6001
      %6003 = vrot.lane.b32.xlu0 %v5824, 32
      %v6004 = vpop.permute.xlu0 %6003
      %6005 = vrot.lane.b32.xlu0 %v5828, 32
      %v6006 = vpop.permute.xlu0 %6005
      %6007 = vrot.lane.b32.xlu0 %v5827, 32
      %v6008 = vpop.permute.xlu0 %6007
      %6009 = vrot.lane.b32.xlu0 %v5831, 32
      %v6010 = vpop.permute.xlu0 %6009
      %6011 = vrot.lane.b32.xlu0 %v5830, 32
      %v6012 = vpop.permute.xlu0 %6011
      %6013 = vrot.lane.b32.xlu0 %v5834, 32
      %v6014 = vpop.permute.xlu0 %6013
      %6015 = vrot.lane.b32.xlu0 %v5833, 32
      %v6016 = vpop.permute.xlu0 %6015
      %6017 = vrot.lane.b32.xlu0 %v5837, 32
      %v6018 = vpop.permute.xlu0 %6017
      %6019 = vrot.lane.b32.xlu0 %v5836, 32
      %v6020 = vpop.permute.xlu0 %6019
      %6021 = vrot.lane.b32.xlu0 %v5840, 32
      %v6022 = vpop.permute.xlu0 %6021
      %6023 = vrot.lane.b32.xlu0 %v5839, 32
      %v6024 = vpop.permute.xlu0 %6023
      %6025 = vrot.lane.b32.xlu0 %v5988, 32
      %v6026 = vpop.permute.xlu0 %6025
      %6027 = vrot.lane.b32.xlu0 %v5987, 32
      %v6028 = vpop.permute.xlu0 %6027
      %6051 = vrot.lane.b32.xlu0 %v5607, 64
      %v6052 = vpop.permute.xlu0 %6051
      %6053 = vrot.lane.b32.xlu0 %v5655, 64
      %v6054 = vpop.permute.xlu0 %6053
      %6055 = vrot.lane.b32.xlu0 %v5608, 64
      %v6056 = vpop.permute.xlu0 %6055
      %6057 = vrot.lane.b32.xlu0 %v5656, 64
      %v6058 = vpop.permute.xlu0 %6057
      %6059 = vrot.lane.b32.xlu0 %v5609, 64
      %v6060 = vpop.permute.xlu0 %6059
      %6061 = vrot.lane.b32.xlu0 %v5657, 64
      %v6062 = vpop.permute.xlu0 %6061
      %6063 = vrot.lane.b32.xlu0 %v5610, 64
      %v6064 = vpop.permute.xlu0 %6063
      %6065 = vrot.lane.b32.xlu0 %v5658, 64
      %v6066 = vpop.permute.xlu0 %6065
      %6067 = vrot.lane.b32.xlu0 %v5611, 64
      %v6068 = vpop.permute.xlu0 %6067
      %6069 = vrot.lane.b32.xlu0 %v5659, 64
      %v6070 = vpop.permute.xlu0 %6069
      %6071 = vrot.lane.b32.xlu0 %v5612, 64
      %v6072 = vpop.permute.xlu0 %6071
      %6073 = vrot.lane.b32.xlu0 %v5660, 64
      %v6074 = vpop.permute.xlu0 %6073
      %6075 = vrot.lane.b32.xlu0 %v5613, 64
      %v6076 = vpop.permute.xlu0 %6075
      %6077 = vrot.lane.b32.xlu0 %v5661, 64
      %v6078 = vpop.permute.xlu0 %6077
      %6079 = vrot.lane.b32.xlu0 %v5614, 64
      %v6080 = vpop.permute.xlu0 %6079
      %6081 = vrot.lane.b32.xlu0 %v5662, 64
      %v6082 = vpop.permute.xlu0 %6081
      %6083 = vrot.lane.b32.xlu0 %v5615, 64
      %v6084 = vpop.permute.xlu0 %6083
      %6085 = vrot.lane.b32.xlu0 %v5663, 64
      %v6086 = vpop.permute.xlu0 %6085
      %6087 = vrot.lane.b32.xlu0 %v5616, 64
      %v6088 = vpop.permute.xlu0 %6087
      %6089 = vrot.lane.b32.xlu0 %v5664, 64
      %v6090 = vpop.permute.xlu0 %6089
      %v6111 = vrot.slane %v5616, 1
      %v6112 = vrot.slane %v5664, 1
      %v6113 = vsel %vm1203, %v6111, %v6112
      %6114 = vrot.lane.b32.xlu0 %v5729, 96
      %v6115 = vpop.permute.xlu0 %6114
      %6116 = vrot.lane.b32.xlu0 %v5728, 96
      %v6117 = vpop.permute.xlu0 %6116
      %6118 = vrot.lane.b32.xlu0 %v5732, 96
      %v6119 = vpop.permute.xlu0 %6118
      %6120 = vrot.lane.b32.xlu0 %v5731, 96
      %v6121 = vpop.permute.xlu0 %6120
      %6122 = vrot.lane.b32.xlu0 %v5735, 96
      %v6123 = vpop.permute.xlu0 %6122
      %6124 = vrot.lane.b32.xlu0 %v5734, 96
      %v6125 = vpop.permute.xlu0 %6124
      %6126 = vrot.lane.b32.xlu0 %v5738, 96
      %v6127 = vpop.permute.xlu0 %6126
      %6128 = vrot.lane.b32.xlu0 %v5737, 96
      %v6129 = vpop.permute.xlu0 %6128
      %6130 = vrot.lane.b32.xlu0 %v5741, 96
      %v6131 = vpop.permute.xlu0 %6130
      %6132 = vrot.lane.b32.xlu0 %v5740, 96
      %v6133 = vpop.permute.xlu0 %6132
      %6134 = vrot.lane.b32.xlu0 %v5744, 96
      %v6135 = vpop.permute.xlu0 %6134
      %6136 = vrot.lane.b32.xlu0 %v5743, 96
      %v6137 = vpop.permute.xlu0 %6136
      %6138 = vrot.lane.b32.xlu0 %v5747, 96
      %v6139 = vpop.permute.xlu0 %6138
      %6140 = vrot.lane.b32.xlu0 %v5746, 96
      %v6141 = vpop.permute.xlu0 %6140
      %6142 = vrot.lane.b32.xlu0 %v5750, 96
      %v6143 = vpop.permute.xlu0 %6142
      %6144 = vrot.lane.b32.xlu0 %v5749, 96
      %v6145 = vpop.permute.xlu0 %6144
      %6146 = vrot.lane.b32.xlu0 %v5965, 96
      %v6147 = vpop.permute.xlu0 %6146
      %6148 = vrot.lane.b32.xlu0 %v5964, 96
      %v6149 = vpop.permute.xlu0 %6148
      %6150 = vrot.lane.b32.xlu0 %v6113, 96
      %v6151 = vpop.permute.xlu0 %6150
      %6152 = vrot.lane.b32.xlu0 %v6112, 96
      %v6153 = vpop.permute.xlu0 %6152
      %v6174 = vrot.slane %v5616, 2
      %v6175 = vrot.slane %v5664, 2
      %v6176 = vsel %vm1760, %v6174, %v6175
      %vm6177 = vcmask 261120
      %v6178 = vsel %vm6177, %v5605, %v5752
      %v6179 = vsel %vm6177, %v5653, %v5754
      %v6180 = vsel %vm6177, %v5606, %v5756
      %v6181 = vsel %vm6177, %v5654, %v5758
      %v6182 = vsel %vm6177, %v5607, %v5760
      %v6183 = vsel %vm6177, %v5655, %v5762
      %v6184 = vsel %vm6177, %v5608, %v5764
      %v6185 = vsel %vm6177, %v5656, %v5766
      %v6186 = vsel %vm6177, %v5609, %v5768
      %v6187 = vsel %vm6177, %v5657, %v5770
      %v6188 = vsel %vm6177, %v5610, %v5772
      %v6189 = vsel %vm6177, %v5658, %v5774
      %v6190 = vsel %vm6177, %v5611, %v5776
      %v6191 = vsel %vm6177, %v5659, %v5778
      %v6192 = vsel %vm6177, %v5612, %v5780
      %v6193 = vsel %vm6177, %v5660, %v5782
      %v6194 = vsel %vm6177, %v5613, %v5784
      %v6195 = vsel %vm6177, %v5661, %v5786
      %v6196 = vsel %vm6177, %v5614, %v5788
      %v6197 = vsel %vm6177, %v5662, %v5790
      %vm6198 = vcmask 523264
      %v6199 = vsel %vm6198, %v6178, %v5842
      %v6200 = vsel %vm6198, %v6179, %v5844
      %v6201 = vsel %vm6198, %v6180, %v5846
      %v6202 = vsel %vm6198, %v6181, %v5848
      %v6203 = vsel %vm6198, %v6182, %v5850
      %v6204 = vsel %vm6198, %v6183, %v5852
      %v6205 = vsel %vm6198, %v6184, %v5854
      %v6206 = vsel %vm6198, %v6185, %v5856
      %v6207 = vsel %vm6198, %v6186, %v5858
      %v6208 = vsel %vm6198, %v6187, %v5860
      %v6209 = vsel %vm6198, %v6188, %v5862
      %v6210 = vsel %vm6198, %v6189, %v5864
      %v6211 = vsel %vm6198, %v6190, %v5866
      %v6212 = vsel %vm6198, %v6191, %v5868
      %v6213 = vsel %vm6198, %v6192, %v5870
      %v6214 = vsel %vm6198, %v6193, %v5872
      %v6215 = vsel %vm6198, %v6194, %v5874
      %v6216 = vsel %vm6198, %v6195, %v5876
      %v6217 = vsel %vm6198, %v6196, %v5878
      %v6218 = vsel %vm6198, %v6197, %v5880
      %vm6219 = vcmask 785408
      %v6220 = vsel %vm6219, %v6199, %v5904
      %v6221 = vsel %vm6219, %v6200, %v5906
      %v6222 = vsel %vm6219, %v6201, %v5908
      %v6223 = vsel %vm6219, %v6202, %v5910
      %v6224 = vsel %vm6219, %v6203, %v5912
      %v6225 = vsel %vm6219, %v6204, %v5914
      %v6226 = vsel %vm6219, %v6205, %v5916
      %v6227 = vsel %vm6219, %v6206, %v5918
      %v6228 = vsel %vm6219, %v6207, %v5920
      %v6229 = vsel %vm6219, %v6208, %v5922
      %v6230 = vsel %vm6219, %v6209, %v5924
      %v6231 = vsel %vm6219, %v6210, %v5926
      %v6232 = vsel %vm6219, %v6211, %v5928
      %v6233 = vsel %vm6219, %v6212, %v5930
      %v6234 = vsel %vm6219, %v6213, %v5932
      %v6235 = vsel %vm6219, %v6214, %v5934
      %v6236 = vsel %vm6219, %v6215, %v5936
      %v6237 = vsel %vm6219, %v6216, %v5938
      %v6238 = vsel %vm6219, %v6217, %v5940
      %v6239 = vsel %vm6219, %v6218, %v5942
      %v6240 = vsel %vm6177, %v5726, %v5990
      %v6241 = vsel %vm6177, %v5725, %v5992
      %v6242 = vsel %vm6177, %v5729, %v5994
      %v6243 = vsel %vm6177, %v5728, %v5996
      %v6244 = vsel %vm6177, %v5732, %v5998
      %v6245 = vsel %vm6177, %v5731, %v6000
      %v6246 = vsel %vm6177, %v5735, %v6002
      %v6247 = vsel %vm6177, %v5734, %v6004
      %v6248 = vsel %vm6177, %v5738, %v6006
      %v6249 = vsel %vm6177, %v5737, %v6008
      %v6250 = vsel %vm6177, %v5741, %v6010
      %v6251 = vsel %vm6177, %v5740, %v6012
      %v6252 = vsel %vm6177, %v5744, %v6014
      %v6253 = vsel %vm6177, %v5743, %v6016
      %v6254 = vsel %vm6177, %v5747, %v6018
      %v6255 = vsel %vm6177, %v5746, %v6020
      %v6256 = vsel %vm6177, %v5750, %v6022
      %v6257 = vsel %vm6177, %v5749, %v6024
      %v6258 = vsel %vm6177, %v5965, %v6026
      %v6259 = vsel %vm6177, %v5964, %v6028
      %v6260 = vsel %vm6198, %v6240, %v6052
      %v6261 = vsel %vm6198, %v6241, %v6054
      %v6262 = vsel %vm6198, %v6242, %v6056
      %v6263 = vsel %vm6198, %v6243, %v6058
      %v6264 = vsel %vm6198, %v6244, %v6060
      %v6265 = vsel %vm6198, %v6245, %v6062
      %v6266 = vsel %vm6198, %v6246, %v6064
      %v6267 = vsel %vm6198, %v6247, %v6066
      %v6268 = vsel %vm6198, %v6248, %v6068
      %v6269 = vsel %vm6198, %v6249, %v6070
      %v6270 = vsel %vm6198, %v6250, %v6072
      %v6271 = vsel %vm6198, %v6251, %v6074
      %v6272 = vsel %vm6198, %v6252, %v6076
      %v6273 = vsel %vm6198, %v6253, %v6078
      %v6274 = vsel %vm6198, %v6254, %v6080
      %v6275 = vsel %vm6198, %v6255, %v6082
      %v6276 = vsel %vm6198, %v6256, %v6084
      %v6277 = vsel %vm6198, %v6257, %v6086
      %v6278 = vsel %vm6198, %v6258, %v6088
      %v6279 = vsel %vm6198, %v6259, %v6090
      %v6280 = vsel %vm6219, %v6260, %v6115
      %v6281 = vsel %vm6219, %v6261, %v6117
      %v6282 = vsel %vm6219, %v6262, %v6119
      %v6283 = vsel %vm6219, %v6263, %v6121
      %v6284 = vsel %vm6219, %v6264, %v6123
      %v6285 = vsel %vm6219, %v6265, %v6125
      %v6286 = vsel %vm6219, %v6266, %v6127
      %v6287 = vsel %vm6219, %v6267, %v6129
      %v6288 = vsel %vm6219, %v6268, %v6131
      %v6289 = vsel %vm6219, %v6269, %v6133
      %v6290 = vsel %vm6219, %v6270, %v6135
      %v6291 = vsel %vm6219, %v6271, %v6137
      %v6292 = vsel %vm6219, %v6272, %v6139
      %v6293 = vsel %vm6219, %v6273, %v6141
      %v6294 = vsel %vm6219, %v6274, %v6143
      %v6295 = vsel %vm6219, %v6275, %v6145
      %v6296 = vsel %vm6219, %v6276, %v6147
      %v6297 = vsel %vm6219, %v6277, %v6149
      %v6298 = vsel %vm6219, %v6278, %v6151
      %v6299 = vsel %vm6219, %v6279, %v6153
      %v6300 = vsel %vm6177, %v5819, 0
      %v6302 = vsel %vm6177, %v5818, 0
      %6304 = vmatprep.subr.mxu0 0.0
      %6305 = vmatpush1.msra.mxu0 %v5665
      %6306 = vmatprep.subr.mxu0 0.0
      %6307 = vmatpush1.msra.mxu0 %v5666
      %6308 = vmatprep.subr.mxu0 0.0
      %6309 = vmatpush1.msra.mxu0 %v5667
      %6310 = vmatprep.subr.mxu0 0.0
      %6311 = vmatpush1.msra.mxu0 %v5668
      %6312 = vmatprep.subr.mxu0 0.0
      %6313 = vmatpush1.msra.mxu0 %v5669
      %6314 = vmatprep.subr.mxu0 0.0
      %6315 = vmatpush1.msra.mxu0 %v5670
      %6316 = vmatprep.subr.mxu0 0.0
      %6317 = vmatpush1.msra.mxu0 %v5671
      %6318 = vmatprep.subr.mxu0 0.0
      %6319 = vmatpush1.msra.mxu0 %v5672
      %6320 = vmatprep.subr.mxu0 0.0
      %6321 = vmatpush1.msra.mxu0 %v5673
      %6322 = vmatprep.subr.mxu0 0.0
      %6323 = vmatpush1.msra.mxu0 %v5674
      %6324 = vmatprep.subr.mxu0 0.0
      %6325 = vmatpush1.msra.mxu0 %v5675
      %6326 = vmatprep.subr.mxu0 0.0
      %6327 = vmatpush1.msra.mxu0 %v5676
      %6328 = vmatprep.subr.mxu0 0.0
      %6329 = vmatpush1.msra.mxu0 %v5677
      %6330 = vmatprep.subr.mxu0 0.0
      %6331 = vmatpush1.msra.mxu0 %v5678
      %6332 = vmatprep.subr.mxu0 0.0
      %6333 = vmatpush1.msra.mxu0 %v5679
      %6334 = vmatprep.subr.mxu0 0.0
      %6335 = vmatpush1.msra.mxu0 %v5680
      %6336 = vmatprep.subr.mxu0 0.0
      %6337 = vmatpush1.msra.mxu0 %v5681
      %6338 = vmatprep.subr.mxu0 0.0
      %6339 = vmatpush1.msra.mxu0 %v5682
      %6340 = vmatprep.subr.mxu0 0.0
      %6341 = vmatpush1.msra.mxu0 %v5683
      %6342 = vmatprep.subr.mxu0 0.0
      %6343 = vmatpush1.msra.mxu0 %v5684
      %6344 = vmatprep.subr.mxu0 0.0
      %6345 = vmatpush1.msra.mxu0 %v5685
      %6346 = vmatprep.subr.mxu0 0.0
      %6347 = vmatpush1.msra.mxu0 %v5686
      %6348 = vmatprep.subr.mxu0 0.0
      %6349 = vmatpush1.msra.mxu0 %v5687
      %6350 = vmatprep.subr.mxu0 0.0
      %6351 = vmatpush1.msra.mxu0 %v5688
      %6352 = vmatprep.subr.mxu0 0.0
      %6353 = vmatpush1.msra.mxu0 %v5689
      %6354 = vmatprep.subr.mxu0 0.0
      %6355 = vmatpush1.msra.mxu0 %v5690
      %6356 = vmatprep.subr.mxu0 0.0
      %6357 = vmatpush1.msra.mxu0 %v5691
      %6358 = vmatprep.subr.mxu0 0.0
      %6359 = vmatpush1.msra.mxu0 %v5692
      %6360 = vmatprep.subr.mxu0 0.0
      %6361 = vmatpush1.msra.mxu0 %v5693
      %6362 = vmatprep.subr.mxu0 0.0
      %6363 = vmatpush1.msra.mxu0 %v5694
      %6364 = vmatprep.subr.mxu0 0.0
      %6365 = vmatpush1.msra.mxu0 %v5695
      %6366 = vmatprep.subr.mxu0 0.0
      %6367 = vmatpush1.msra.mxu0 %v5696
      %6368 = vmatprep.mubr.f32.mxu0 %v6280
      %6369 = vmatmul.mubr.f32.gmra.mrb[0].mxu0 %v6220
      %v6370 = vpop.f32.mrb[0].mxu0
      %v6371 = vadd.f32 0.0, %v6370
      %v6372 = vpop.f32.mrb[0].mxu0
      %6373 = vmatprep.mubr.f32.mxu0 %v6281
      %6374 = vmatmul.mubr.f32.gmra.mrb[0].mxu0 %v6221
      %v6375 = vpop.f32.mrb[0].mxu0
      %v6376 = vadd.f32 0.0, %v6375
      %v6377 = vpop.f32.mrb[0].mxu0
      %6378 = vdwg.mxu0
      %6379 = vmatprep.subr.mxu0 0.0
      %6380 = vmatpush1.msra.mxu0 %v5697
      %6381 = vmatprep.subr.mxu0 0.0
      %6382 = vmatpush1.msra.mxu0 %v5698
      %6383 = vmatprep.subr.mxu0 0.0
      %6384 = vmatpush1.msra.mxu0 %v5699
      %6385 = vmatprep.subr.mxu0 0.0
      %6386 = vmatpush1.msra.mxu0 %v5700
      %6387 = vmatprep.subr.mxu0 0.0
      %6388 = vmatpush1.msra.mxu0 0.0
      %6389 = vmatprep.subr.mxu0 0.0
      %6390 = vmatpush1.msra.mxu0 0.0
      %6391 = vmatprep.subr.mxu0 0.0
      %6392 = vmatpush1.msra.mxu0 0.0
      %6393 = vmatprep.subr.mxu0 0.0
      %6394 = vmatpush1.msra.mxu0 0.0
      %6395 = vmatprep.subr.mxu0 0.0
      %6396 = vmatpush1.msra.mxu0 0.0
      %6397 = vmatprep.subr.mxu0 0.0
      %6398 = vmatpush1.msra.mxu0 0.0
      %6399 = vmatprep.subr.mxu0 0.0
      %6400 = vmatpush1.msra.mxu0 0.0
      %6401 = vmatprep.subr.mxu0 0.0
      %6402 = vmatpush1.msra.mxu0 0.0
      %6403 = vmatprep.subr.mxu0 0.0
      %6404 = vmatpush1.msra.mxu0 0.0
      %6405 = vmatprep.subr.mxu0 0.0
      %6406 = vmatpush1.msra.mxu0 0.0
      %6407 = vmatprep.subr.mxu0 0.0
      %6408 = vmatpush1.msra.mxu0 0.0
      %6409 = vmatprep.subr.mxu0 0.0
      %6410 = vmatpush1.msra.mxu0 0.0
      %6411 = vmatprep.subr.mxu0 0.0
      %6412 = vmatpush1.msra.mxu0 0.0
      %6413 = vmatprep.subr.mxu0 0.0
      %6414 = vmatpush1.msra.mxu0 0.0
      %6415 = vmatprep.subr.mxu0 0.0
      %6416 = vmatpush1.msra.mxu0 0.0
      %6417 = vmatprep.subr.mxu0 0.0
      %6418 = vmatpush1.msra.mxu0 0.0
      %6419 = vmatprep.subr.mxu0 0.0
      %6420 = vmatpush1.msra.mxu0 0.0
      %6421 = vmatprep.subr.mxu0 0.0
      %6422 = vmatpush1.msra.mxu0 0.0
      %6423 = vmatprep.subr.mxu0 0.0
      %6424 = vmatpush1.msra.mxu0 0.0
      %6425 = vmatprep.subr.mxu0 0.0
      %6426 = vmatpush1.msra.mxu0 0.0
      %6427 = vmatprep.subr.mxu0 0.0
      %6428 = vmatpush1.msra.mxu0 0.0
      %6429 = vmatprep.subr.mxu0 0.0
      %6430 = vmatpush1.msra.mxu0 0.0
      %6431 = vmatprep.subr.mxu0 0.0
      %6432 = vmatpush1.msra.mxu0 0.0
      %6433 = vmatprep.subr.mxu0 0.0
      %6434 = vmatpush1.msra.mxu0 0.0
      %6435 = vmatprep.subr.mxu0 0.0
      %6436 = vmatpush1.msra.mxu0 0.0
      %6437 = vmatprep.subr.mxu0 0.0
      %6438 = vmatpush1.msra.mxu0 0.0
      %6439 = vmatprep.subr.mxu0 0.0
      %6440 = vmatpush1.msra.mxu0 0.0
      %6441 = vmatprep.subr.mxu0 0.0
      %6442 = vmatpush1.msra.mxu0 0.0
      %6443 = vmatprep.mubr.f32.mxu0 0.0
      %6444 = vmatmul.mubr.f32.gmra.mrb[0].mxu0 %v6300
      %v6445 = vpop.f32.mrb[0].mxu0
      %v6446 = vadd.f32 %v6371, %v6445
      %v6447 = vpop.f32.mrb[0].mxu0
      %6448 = vmatprep.mubr.f32.mxu0 0.0
      %6449 = vmatmul.mubr.f32.gmra.mrb[0].mxu0 %v6302
      %v6450 = vpop.f32.mrb[0].mxu0
      %v6451 = vadd.f32 %v6376, %v6450
      %v6452 = vpop.f32.mrb[0].mxu0
      %6453 = vdwg.mxu0
      %v6454 = vsel %vm6177, %v5822, 0
      %v6456 = vsel %vm6177, %v5821, 0
      %6458 = vmatprep.subr.mxu0 0.0
      %6459 = vmatpush1.msra.mxu0 %v5665
      %6460 = vmatprep.subr.mxu0 0.0
      %6461 = vmatpush1.msra.mxu0 %v5666
      %6462 = vmatprep.subr.mxu0 0.0
      %6463 = vmatpush1.msra.mxu0 %v5667
      %6464 = vmatprep.subr.mxu0 0.0
      %6465 = vmatpush1.msra.mxu0 %v5668
      %6466 = vmatprep.subr.mxu0 0.0
      %6467 = vmatpush1.msra.mxu0 %v5669
      %6468 = vmatprep.subr.mxu0 0.0
      %6469 = vmatpush1.msra.mxu0 %v5670
      %6470 = vmatprep.subr.mxu0 0.0
      %6471 = vmatpush1.msra.mxu0 %v5671
      %6472 = vmatprep.subr.mxu0 0.0
      %6473 = vmatpush1.msra.mxu0 %v5672
      %6474 = vmatprep.subr.mxu0 0.0
      %6475 = vmatpush1.msra.mxu0 %v5673
      %6476 = vmatprep.subr.mxu0 0.0
      %6477 = vmatpush1.msra.mxu0 %v5674
      %6478 = vmatprep.subr.mxu0 0.0
      %6479 = vmatpush1.msra.mxu0 %v5675
      %6480 = vmatprep.subr.mxu0 0.0
      %6481 = vmatpush1.msra.mxu0 %v5676
      %6482 = vmatprep.subr.mxu0 0.0
      %6483 = vmatpush1.msra.mxu0 %v5677
      %6484 = vmatprep.subr.mxu0 0.0
      %6485 = vmatpush1.msra.mxu0 %v5678
      %6486 = vmatprep.subr.mxu0 0.0
      %6487 = vmatpush1.msra.mxu0 %v5679
      %6488 = vmatprep.subr.mxu0 0.0
      %6489 = vmatpush1.msra.mxu0 %v5680
      %6490 = vmatprep.subr.mxu0 0.0
      %6491 = vmatpush1.msra.mxu0 %v5681
      %6492 = vmatprep.subr.mxu0 0.0
      %6493 = vmatpush1.msra.mxu0 %v5682
      %6494 = vmatprep.subr.mxu0 0.0
      %6495 = vmatpush1.msra.mxu0 %v5683
      %6496 = vmatprep.subr.mxu0 0.0
      %6497 = vmatpush1.msra.mxu0 %v5684
      %6498 = vmatprep.subr.mxu0 0.0
      %6499 = vmatpush1.msra.mxu0 %v5685
      %6500 = vmatprep.subr.mxu0 0.0
      %6501 = vmatpush1.msra.mxu0 %v5686
      %6502 = vmatprep.subr.mxu0 0.0
      %6503 = vmatpush1.msra.mxu0 %v5687
      %6504 = vmatprep.subr.mxu0 0.0
      %6505 = vmatpush1.msra.mxu0 %v5688
      %6506 = vmatprep.subr.mxu0 0.0
      %6507 = vmatpush1.msra.mxu0 %v5689
      %6508 = vmatprep.subr.mxu0 0.0
      %6509 = vmatpush1.msra.mxu0 %v5690
      %6510 = vmatprep.subr.mxu0 0.0
      %6511 = vmatpush1.msra.mxu0 %v5691
      %6512 = vmatprep.subr.mxu0 0.0
      %6513 = vmatpush1.msra.mxu0 %v5692
      %6514 = vmatprep.subr.mxu0 0.0
      %6515 = vmatpush1.msra.mxu0 %v5693
      %6516 = vmatprep.subr.mxu0 0.0
      %6517 = vmatpush1.msra.mxu0 %v5694
      %6518 = vmatprep.subr.mxu0 0.0
      %6519 = vmatpush1.msra.mxu0 %v5695
      %6520 = vmatprep.subr.mxu0 0.0
      %6521 = vmatpush1.msra.mxu0 %v5696
      %6522 = vmatprep.mubr.f32.mxu0 %v6282
      %6523 = vmatmul.mubr.f32.gmra.mrb[0].mxu0 %v6222
      %v6524 = vpop.f32.mrb[0].mxu0
      %v6525 = vadd.f32 0.0, %v6524
      %v6526 = vpop.f32.mrb[0].mxu0
      %6527 = vmatprep.mubr.f32.mxu0 %v6283
      %6528 = vmatmul.mubr.f32.gmra.mrb[0].mxu0 %v6223
      %v6529 = vpop.f32.mrb[0].mxu0
      %v6530 = vadd.f32 0.0, %v6529
      %v6531 = vpop.f32.mrb[0].mxu0
      %6532 = vdwg.mxu0
      %6533 = vmatprep.subr.mxu0 0.0
      %6534 = vmatpush1.msra.mxu0 %v5697
      %6535 = vmatprep.subr.mxu0 0.0
      %6536 = vmatpush1.msra.mxu0 %v5698
      %6537 = vmatprep.subr.mxu0 0.0
      %6538 = vmatpush1.msra.mxu0 %v5699
      %6539 = vmatprep.subr.mxu0 0.0
      %6540 = vmatpush1.msra.mxu0 %v5700
      %6541 = vmatprep.subr.mxu0 0.0
      %6542 = vmatpush1.msra.mxu0 0.0
      %6543 = vmatprep.subr.mxu0 0.0
      %6544 = vmatpush1.msra.mxu0 0.0
      %6545 = vmatprep.subr.mxu0 0.0
      %6546 = vmatpush1.msra.mxu0 0.0
      %6547 = vmatprep.subr.mxu0 0.0
      %6548 = vmatpush1.msra.mxu0 0.0
      %6549 = vmatprep.subr.mxu0 0.0
      %6550 = vmatpush1.msra.mxu0 0.0
      %6551 = vmatprep.subr.mxu0 0.0
      %6552 = vmatpush1.msra.mxu0 0.0
      %6553 = vmatprep.subr.mxu0 0.0
      %6554 = vmatpush1.msra.mxu0 0.0
      %6555 = vmatprep.subr.mxu0 0.0
      %6556 = vmatpush1.msra.mxu0 0.0
      %6557 = vmatprep.subr.mxu0 0.0
      %6558 = vmatpush1.msra.mxu0 0.0
      %6559 = vmatprep.subr.mxu0 0.0
      %6560 = vmatpush1.msra.mxu0 0.0
      %6561 = vmatprep.subr.mxu0 0.0
      %6562 = vmatpush1.msra.mxu0 0.0
      %6563 = vmatprep.subr.mxu0 0.0
      %6564 = vmatpush1.msra.mxu0 0.0
      %6565 = vmatprep.subr.mxu0 0.0
      %6566 = vmatpush1.msra.mxu0 0.0
      %6567 = vmatprep.subr.mxu0 0.0
      %6568 = vmatpush1.msra.mxu0 0.0
      %6569 = vmatprep.subr.mxu0 0.0
      %6570 = vmatpush1.msra.mxu0 0.0
      %6571 = vmatprep.subr.mxu0 0.0
      %6572 = vmatpush1.msra.mxu0 0.0
      %6573 = vmatprep.subr.mxu0 0.0
      %6574 = vmatpush1.msra.mxu0 0.0
      %6575 = vmatprep.subr.mxu0 0.0
      %6576 = vmatpush1.msra.mxu0 0.0
      %6577 = vmatprep.subr.mxu0 0.0
      %6578 = vmatpush1.msra.mxu0 0.0
      %6579 = vmatprep.subr.mxu0 0.0
      %6580 = vmatpush1.msra.mxu0 0.0
      %6581 = vmatprep.subr.mxu0 0.0
      %6582 = vmatpush1.msra.mxu0 0.0
      %6583 = vmatprep.subr.mxu0 0.0
      %6584 = vmatpush1.msra.mxu0 0.0
      %6585 = vmatprep.subr.mxu0 0.0
      %6586 = vmatpush1.msra.mxu0 0.0
      %6587 = vmatprep.subr.mxu0 0.0
      %6588 = vmatpush1.msra.mxu0 0.0
      %6589 = vmatprep.subr.mxu0 0.0
      %6590 = vmatpush1.msra.mxu0 0.0
      %6591 = vmatprep.subr.mxu0 0.0
      %6592 = vmatpush1.msra.mxu0 0.0
      %6593 = vmatprep.subr.mxu0 0.0
      %6594 = vmatpush1.msra.mxu0 0.0
      %6595 = vmatprep.subr.mxu0 0.0
      %6596 = vmatpush1.msra.mxu0 0.0
      %6597 = vmatprep.mubr.f32.mxu0 0.0
      %6598 = vmatmul.mubr.f32.gmra.mrb[0].mxu0 %v6454
      %v6599 = vpop.f32.mrb[0].mxu0
      %v6600 = vadd.f32 %v6525, %v6599
      %v6601 = vpop.f32.mrb[0].mxu0
      %6602 = vmatprep.mubr.f32.mxu0 0.0
      %6603 = vmatmul.mubr.f32.gmra.mrb[0].mxu0 %v6456
      %v6604 = vpop.f32.mrb[0].mxu0
      %v6605 = vadd.f32 %v6530, %v6604
      %v6606 = vpop.f32.mrb[0].mxu0
      %6607 = vdwg.mxu0
      %v6608 = vsel %vm6177, %v5825, 0
      %v6610 = vsel %vm6177, %v5824, 0
      %6612 = vmatprep.subr.mxu0 0.0
      %6613 = vmatpush1.msra.mxu0 %v5665
      %6614 = vmatprep.subr.mxu0 0.0
      %6615 = vmatpush1.msra.mxu0 %v5666
      %6616 = vmatprep.subr.mxu0 0.0
      %6617 = vmatpush1.msra.mxu0 %v5667
      %6618 = vmatprep.subr.mxu0 0.0
      %6619 = vmatpush1.msra.mxu0 %v5668
      %6620 = vmatprep.subr.mxu0 0.0
      %6621 = vmatpush1.msra.mxu0 %v5669
      %6622 = vmatprep.subr.mxu0 0.0
      %6623 = vmatpush1.msra.mxu0 %v5670
      %6624 = vmatprep.subr.mxu0 0.0
      %6625 = vmatpush1.msra.mxu0 %v5671
      %6626 = vmatprep.subr.mxu0 0.0
      %6627 = vmatpush1.msra.mxu0 %v5672
      %6628 = vmatprep.subr.mxu0 0.0
      %6629 = vmatpush1.msra.mxu0 %v5673
      %6630 = vmatprep.subr.mxu0 0.0
      %6631 = vmatpush1.msra.mxu0 %v5674
      %6632 = vmatprep.subr.mxu0 0.0
      %6633 = vmatpush1.msra.mxu0 %v5675
      %6634 = vmatprep.subr.mxu0 0.0
      %6635 = vmatpush1.msra.mxu0 %v5676
      %6636 = vmatprep.subr.mxu0 0.0
      %6637 = vmatpush1.msra.mxu0 %v5677
      %6638 = vmatprep.subr.mxu0 0.0
      %6639 = vmatpush1.msra.mxu0 %v5678
      %6640 = vmatprep.subr.mxu0 0.0
      %6641 = vmatpush1.msra.mxu0 %v5679
      %6642 = vmatprep.subr.mxu0 0.0
      %6643 = vmatpush1.msra.mxu0 %v5680
      %6644 = vmatprep.subr.mxu0 0.0
      %6645 = vmatpush1.msra.mxu0 %v5681
      %6646 = vmatprep.subr.mxu0 0.0
      %6647 = vmatpush1.msra.mxu0 %v5682
      %6648 = vmatprep.subr.mxu0 0.0
      %6649 = vmatpush1.msra.mxu0 %v5683
      %6650 = vmatprep.subr.mxu0 0.0
      %6651 = vmatpush1.msra.mxu0 %v5684
      %6652 = vmatprep.subr.mxu0 0.0
      %6653 = vmatpush1.msra.mxu0 %v5685
      %6654 = vmatprep.subr.mxu0 0.0
      %6655 = vmatpush1.msra.mxu0 %v5686
      %6656 = vmatprep.subr.mxu0 0.0
      %6657 = vmatpush1.msra.mxu0 %v5687
      %6658 = vmatprep.subr.mxu0 0.0
      %6659 = vmatpush1.msra.mxu0 %v5688
      %6660 = vmatprep.subr.mxu0 0.0
      %6661 = vmatpush1.msra.mxu0 %v5689
      %6662 = vmatprep.subr.mxu0 0.0
      %6663 = vmatpush1.msra.mxu0 %v5690
      %6664 = vmatprep.subr.mxu0 0.0
      %6665 = vmatpush1.msra.mxu0 %v5691
      %6666 = vmatprep.subr.mxu0 0.0
      %6667 = vmatpush1.msra.mxu0 %v5692
      %6668 = vmatprep.subr.mxu0 0.0
      %6669 = vmatpush1.msra.mxu0 %v5693
      %6670 = vmatprep.subr.mxu0 0.0
      %6671 = vmatpush1.msra.mxu0 %v5694
      %6672 = vmatprep.subr.mxu0 0.0
      %6673 = vmatpush1.msra.mxu0 %v5695
      %6674 = vmatprep.subr.mxu0 0.0
      %6675 = vmatpush1.msra.mxu0 %v5696
      %6676 = vmatprep.mubr.f32.mxu0 %v6284
      %6677 = vmatmul.mubr.f32.gmra.mrb[0].mxu0 %v6224
      %v6678 = vpop.f32.mrb[0].mxu0
      %v6679 = vadd.f32 0.0, %v6678
      %v6680 = vpop.f32.mrb[0].mxu0
      %6681 = vmatprep.mubr.f32.mxu0 %v6285
      %6682 = vmatmul.mubr.f32.gmra.mrb[0].mxu0 %v6225
      %v6683 = vpop.f32.mrb[0].mxu0
      %v6684 = vadd.f32 0.0, %v6683
      %v6685 = vpop.f32.mrb[0].mxu0
      %6686 = vdwg.mxu0
      %6687 = vmatprep.subr.mxu0 0.0
      %6688 = vmatpush1.msra.mxu0 %v5697
      %6689 = vmatprep.subr.mxu0 0.0
      %6690 = vmatpush1.msra.mxu0 %v5698
      %6691 = vmatprep.subr.mxu0 0.0
      %6692 = vmatpush1.msra.mxu0 %v5699
      %6693 = vmatprep.subr.mxu0 0.0
      %6694 = vmatpush1.msra.mxu0 %v5700
      %6695 = vmatprep.subr.mxu0 0.0
      %6696 = vmatpush1.msra.mxu0 0.0
      %6697 = vmatprep.subr.mxu0 0.0
      %6698 = vmatpush1.msra.mxu0 0.0
      %6699 = vmatprep.subr.mxu0 0.0
      %6700 = vmatpush1.msra.mxu0 0.0
      %6701 = vmatprep.subr.mxu0 0.0
      %6702 = vmatpush1.msra.mxu0 0.0
      %6703 = vmatprep.subr.mxu0 0.0
      %6704 = vmatpush1.msra.mxu0 0.0
      %6705 = vmatprep.subr.mxu0 0.0
      %6706 = vmatpush1.msra.mxu0 0.0
      %6707 = vmatprep.subr.mxu0 0.0
      %6708 = vmatpush1.msra.mxu0 0.0
      %6709 = vmatprep.subr.mxu0 0.0
      %6710 = vmatpush1.msra.mxu0 0.0
      %6711 = vmatprep.subr.mxu0 0.0
      %6712 = vmatpush1.msra.mxu0 0.0
      %6713 = vmatprep.subr.mxu0 0.0
      %6714 = vmatpush1.msra.mxu0 0.0
      %6715 = vmatprep.subr.mxu0 0.0
      %6716 = vmatpush1.msra.mxu0 0.0
      %6717 = vmatprep.subr.mxu0 0.0
      %6718 = vmatpush1.msra.mxu0 0.0
      %6719 = vmatprep.subr.mxu0 0.0
      %6720 = vmatpush1.msra.mxu0 0.0
      %6721 = vmatprep.subr.mxu0 0.0
      %6722 = vmatpush1.msra.mxu0 0.0
      %6723 = vmatprep.subr.mxu0 0.0
      %6724 = vmatpush1.msra.mxu0 0.0
      %6725 = vmatprep.subr.mxu0 0.0
      %6726 = vmatpush1.msra.mxu0 0.0
      %6727 = vmatprep.subr.mxu0 0.0
      %6728 = vmatpush1.msra.mxu0 0.0
      %6729 = vmatprep.subr.mxu0 0.0
      %6730 = vmatpush1.msra.mxu0 0.0
      %6731 = vmatprep.subr.mxu0 0.0
      %6732 = vmatpush1.msra.mxu0 0.0
      %6733 = vmatprep.subr.mxu0 0.0
      %6734 = vmatpush1.msra.mxu0 0.0
      %6735 = vmatprep.subr.mxu0 0.0
      %6736 = vmatpush1.msra.mxu0 0.0
      %6737 = vmatprep.subr.mxu0 0.0
      %6738 = vmatpush1.msra.mxu0 0.0
      %6739 = vmatprep.subr.mxu0 0.0
      %6740 = vmatpush1.msra.mxu0 0.0
      %6741 = vmatprep.subr.mxu0 0.0
      %6742 = vmatpush1.msra.mxu0 0.0
      %6743 = vmatprep.subr.mxu0 0.0
      %6744 = vmatpush1.msra.mxu0 0.0
      %6745 = vmatprep.subr.mxu0 0.0
      %6746 = vmatpush1.msra.mxu0 0.0
      %6747 = vmatprep.subr.mxu0 0.0
      %6748 = vmatpush1.msra.mxu0 0.0
      %6749 = vmatprep.subr.mxu0 0.0
      %6750 = vmatpush1.msra.mxu0 0.0
      %6751 = vmatprep.mubr.f32.mxu0 0.0
      %6752 = vmatmul.mubr.f32.gmra.mrb[0].mxu0 %v6608
      %v6753 = vpop.f32.mrb[0].mxu0
      %v6754 = vadd.f32 %v6679, %v6753
      %v6755 = vpop.f32.mrb[0].mxu0
      %6756 = vmatprep.mubr.f32.mxu0 0.0
      %6757 = vmatmul.mubr.f32.gmra.mrb[0].mxu0 %v6610
      %v6758 = vpop.f32.mrb[0].mxu0
      %v6759 = vadd.f32 %v6684, %v6758
      %v6760 = vpop.f32.mrb[0].mxu0
      %6761 = vdwg.mxu0
      %v6762 = vsel %vm6177, %v5828, 0
      %v6764 = vsel %vm6177, %v5827, 0
      %6766 = vmatprep.subr.mxu0 0.0
      %6767 = vmatpush1.msra.mxu0 %v5665
      %6768 = vmatprep.subr.mxu0 0.0
      %6769 = vmatpush1.msra.mxu0 %v5666
      %6770 = vmatprep.subr.mxu0 0.0
      %6771 = vmatpush1.msra.mxu0 %v5667
      %6772 = vmatprep.subr.mxu0 0.0
      %6773 = vmatpush1.msra.mxu0 %v5668
      %6774 = vmatprep.subr.mxu0 0.0
      %6775 = vmatpush1.msra.mxu0 %v5669
      %6776 = vmatprep.subr.mxu0 0.0
      %6777 = vmatpush1.msra.mxu0 %v5670
      %6778 = vmatprep.subr.mxu0 0.0
      %6779 = vmatpush1.msra.mxu0 %v5671
      %6780 = vmatprep.subr.mxu0 0.0
      %6781 = vmatpush1.msra.mxu0 %v5672
      %6782 = vmatprep.subr.mxu0 0.0
      %6783 = vmatpush1.msra.mxu0 %v5673
      %6784 = vmatprep.subr.mxu0 0.0
      %6785 = vmatpush1.msra.mxu0 %v5674
      %6786 = vmatprep.subr.mxu0 0.0
      %6787 = vmatpush1.msra.mxu0 %v5675
      %6788 = vmatprep.subr.mxu0 0.0
      %6789 = vmatpush1.msra.mxu0 %v5676
      %6790 = vmatprep.subr.mxu0 0.0
      %6791 = vmatpush1.msra.mxu0 %v5677
      %6792 = vmatprep.subr.mxu0 0.0
      %6793 = vmatpush1.msra.mxu0 %v5678
      %6794 = vmatprep.subr.mxu0 0.0
      %6795 = vmatpush1.msra.mxu0 %v5679
      %6796 = vmatprep.subr.mxu0 0.0
      %6797 = vmatpush1.msra.mxu0 %v5680
      %6798 = vmatprep.subr.mxu0 0.0
      %6799 = vmatpush1.msra.mxu0 %v5681
      %6800 = vmatprep.subr.mxu0 0.0
      %6801 = vmatpush1.msra.mxu0 %v5682
      %6802 = vmatprep.subr.mxu0 0.0
      %6803 = vmatpush1.msra.mxu0 %v5683
      %6804 = vmatprep.subr.mxu0 0.0
      %6805 = vmatpush1.msra.mxu0 %v5684
      %6806 = vmatprep.subr.mxu0 0.0
      %6807 = vmatpush1.msra.mxu0 %v5685
      %6808 = vmatprep.subr.mxu0 0.0
      %6809 = vmatpush1.msra.mxu0 %v5686
      %6810 = vmatprep.subr.mxu0 0.0
      %6811 = vmatpush1.msra.mxu0 %v5687
      %6812 = vmatprep.subr.mxu0 0.0
      %6813 = vmatpush1.msra.mxu0 %v5688
      %6814 = vmatprep.subr.mxu0 0.0
      %6815 = vmatpush1.msra.mxu0 %v5689
      %6816 = vmatprep.subr.mxu0 0.0
      %6817 = vmatpush1.msra.mxu0 %v5690
      %6818 = vmatprep.subr.mxu0 0.0
      %6819 = vmatpush1.msra.mxu0 %v5691
      %6820 = vmatprep.subr.mxu0 0.0
      %6821 = vmatpush1.msra.mxu0 %v5692
      %6822 = vmatprep.subr.mxu0 0.0
      %6823 = vmatpush1.msra.mxu0 %v5693
      %6824 = vmatprep.subr.mxu0 0.0
      %6825 = vmatpush1.msra.mxu0 %v5694
      %6826 = vmatprep.subr.mxu0 0.0
      %6827 = vmatpush1.msra.mxu0 %v5695
      %6828 = vmatprep.subr.mxu0 0.0
      %6829 = vmatpush1.msra.mxu0 %v5696
      %6830 = vmatprep.mubr.f32.mxu0 %v6286
      %6831 = vmatmul.mubr.f32.gmra.mrb[0].mxu0 %v6226
      %v6832 = vpop.f32.mrb[0].mxu0
      %v6833 = vadd.f32 0.0, %v6832
      %v6834 = vpop.f32.mrb[0].mxu0
      %6835 = vmatprep.mubr.f32.mxu0 %v6287
      %6836 = vmatmul.mubr.f32.gmra.mrb[0].mxu0 %v6227
      %v6837 = vpop.f32.mrb[0].mxu0
      %v6838 = vadd.f32 0.0, %v6837
      %v6839 = vpop.f32.mrb[0].mxu0
      %6840 = vdwg.mxu0
      %6841 = vmatprep.subr.mxu0 0.0
      %6842 = vmatpush1.msra.mxu0 %v5697
      %6843 = vmatprep.subr.mxu0 0.0
      %6844 = vmatpush1.msra.mxu0 %v5698
      %6845 = vmatprep.subr.mxu0 0.0
      %6846 = vmatpush1.msra.mxu0 %v5699
      %6847 = vmatprep.subr.mxu0 0.0
      %6848 = vmatpush1.msra.mxu0 %v5700
      %6849 = vmatprep.subr.mxu0 0.0
      %6850 = vmatpush1.msra.mxu0 0.0
      %6851 = vmatprep.subr.mxu0 0.0
      %6852 = vmatpush1.msra.mxu0 0.0
      %6853 = vmatprep.subr.mxu0 0.0
      %6854 = vmatpush1.msra.mxu0 0.0
      %6855 = vmatprep.subr.mxu0 0.0
      %6856 = vmatpush1.msra.mxu0 0.0
      %6857 = vmatprep.subr.mxu0 0.0
      %6858 = vmatpush1.msra.mxu0 0.0
      %6859 = vmatprep.subr.mxu0 0.0
      %6860 = vmatpush1.msra.mxu0 0.0
      %6861 = vmatprep.subr.mxu0 0.0
      %6862 = vmatpush1.msra.mxu0 0.0
      %6863 = vmatprep.subr.mxu0 0.0
      %6864 = vmatpush1.msra.mxu0 0.0
      %6865 = vmatprep.subr.mxu0 0.0
      %6866 = vmatpush1.msra.mxu0 0.0
      %6867 = vmatprep.subr.mxu0 0.0
      %6868 = vmatpush1.msra.mxu0 0.0
      %6869 = vmatprep.subr.mxu0 0.0
      %6870 = vmatpush1.msra.mxu0 0.0
      %6871 = vmatprep.subr.mxu0 0.0
      %6872 = vmatpush1.msra.mxu0 0.0
      %6873 = vmatprep.subr.mxu0 0.0
      %6874 = vmatpush1.msra.mxu0 0.0
      %6875 = vmatprep.subr.mxu0 0.0
      %6876 = vmatpush1.msra.mxu0 0.0
      %6877 = vmatprep.subr.mxu0 0.0
      %6878 = vmatpush1.msra.mxu0 0.0
      %6879 = vmatprep.subr.mxu0 0.0
      %6880 = vmatpush1.msra.mxu0 0.0
      %6881 = vmatprep.subr.mxu0 0.0
      %6882 = vmatpush1.msra.mxu0 0.0
      %6883 = vmatprep.subr.mxu0 0.0
      %6884 = vmatpush1.msra.mxu0 0.0
      %6885 = vmatprep.subr.mxu0 0.0
      %6886 = vmatpush1.msra.mxu0 0.0
      %6887 = vmatprep.subr.mxu0 0.0
      %6888 = vmatpush1.msra.mxu0 0.0
      %6889 = vmatprep.subr.mxu0 0.0
      %6890 = vmatpush1.msra.mxu0 0.0
      %6891 = vmatprep.subr.mxu0 0.0
      %6892 = vmatpush1.msra.mxu0 0.0
      %6893 = vmatprep.subr.mxu0 0.0
      %6894 = vmatpush1.msra.mxu0 0.0
      %6895 = vmatprep.subr.mxu0 0.0
      %6896 = vmatpush1.msra.mxu0 0.0
      %6897 = vmatprep.subr.mxu0 0.0
      %6898 = vmatpush1.msra.mxu0 0.0
      %6899 = vmatprep.subr.mxu0 0.0
      %6900 = vmatpush1.msra.mxu0 0.0
      %6901 = vmatprep.subr.mxu0 0.0
      %6902 = vmatpush1.msra.mxu0 0.0
      %6903 = vmatprep.subr.mxu0 0.0
      %6904 = vmatpush1.msra.mxu0 0.0
      %6905 = vmatprep.mubr.f32.mxu0 0.0
      %6906 = vmatmul.mubr.f32.gmra.mrb[0].mxu0 %v6762
      %v6907 = vpop.f32.mrb[0].mxu0
      %v6908 = vadd.f32 %v6833, %v6907
      %v6909 = vpop.f32.mrb[0].mxu0
      %6910 = vmatprep.mubr.f32.mxu0 0.0
      %6911 = vmatmul.mubr.f32.gmra.mrb[0].mxu0 %v6764
      %v6912 = vpop.f32.mrb[0].mxu0
      %v6913 = vadd.f32 %v6838, %v6912
      %v6914 = vpop.f32.mrb[0].mxu0
      %6915 = vdwg.mxu0
      %v6916 = vsel %vm6177, %v5831, 0
      %v6918 = vsel %vm6177, %v5830, 0
      %6920 = vmatprep.subr.mxu0 0.0
      %6921 = vmatpush1.msra.mxu0 %v5665
      %6922 = vmatprep.subr.mxu0 0.0
      %6923 = vmatpush1.msra.mxu0 %v5666
      %6924 = vmatprep.subr.mxu0 0.0
      %6925 = vmatpush1.msra.mxu0 %v5667
      %6926 = vmatprep.subr.mxu0 0.0
      %6927 = vmatpush1.msra.mxu0 %v5668
      %6928 = vmatprep.subr.mxu0 0.0
      %6929 = vmatpush1.msra.mxu0 %v5669
      %6930 = vmatprep.subr.mxu0 0.0
      %6931 = vmatpush1.msra.mxu0 %v5670
      %6932 = vmatprep.subr.mxu0 0.0
      %6933 = vmatpush1.msra.mxu0 %v5671
      %6934 = vmatprep.subr.mxu0 0.0
      %6935 = vmatpush1.msra.mxu0 %v5672
      %6936 = vmatprep.subr.mxu0 0.0
      %6937 = vmatpush1.msra.mxu0 %v5673
      %6938 = vmatprep.subr.mxu0 0.0
      %6939 = vmatpush1.msra.mxu0 %v5674
      %6940 = vmatprep.subr.mxu0 0.0
      %6941 = vmatpush1.msra.mxu0 %v5675
      %6942 = vmatprep.subr.mxu0 0.0
      %6943 = vmatpush1.msra.mxu0 %v5676
      %6944 = vmatprep.subr.mxu0 0.0
      %6945 = vmatpush1.msra.mxu0 %v5677
      %6946 = vmatprep.subr.mxu0 0.0
      %6947 = vmatpush1.msra.mxu0 %v5678
      %6948 = vmatprep.subr.mxu0 0.0
      %6949 = vmatpush1.msra.mxu0 %v5679
      %6950 = vmatprep.subr.mxu0 0.0
      %6951 = vmatpush1.msra.mxu0 %v5680
      %6952 = vmatprep.subr.mxu0 0.0
      %6953 = vmatpush1.msra.mxu0 %v5681
      %6954 = vmatprep.subr.mxu0 0.0
      %6955 = vmatpush1.msra.mxu0 %v5682
      %6956 = vmatprep.subr.mxu0 0.0
      %6957 = vmatpush1.msra.mxu0 %v5683
      %6958 = vmatprep.subr.mxu0 0.0
      %6959 = vmatpush1.msra.mxu0 %v5684
      %6960 = vmatprep.subr.mxu0 0.0
      %6961 = vmatpush1.msra.mxu0 %v5685
      %6962 = vmatprep.subr.mxu0 0.0
      %6963 = vmatpush1.msra.mxu0 %v5686
      %6964 = vmatprep.subr.mxu0 0.0
      %6965 = vmatpush1.msra.mxu0 %v5687
      %6966 = vmatprep.subr.mxu0 0.0
      %6967 = vmatpush1.msra.mxu0 %v5688
      %6968 = vmatprep.subr.mxu0 0.0
      %6969 = vmatpush1.msra.mxu0 %v5689
      %6970 = vmatprep.subr.mxu0 0.0
      %6971 = vmatpush1.msra.mxu0 %v5690
      %6972 = vmatprep.subr.mxu0 0.0
      %6973 = vmatpush1.msra.mxu0 %v5691
      %6974 = vmatprep.subr.mxu0 0.0
      %6975 = vmatpush1.msra.mxu0 %v5692
      %6976 = vmatprep.subr.mxu0 0.0
      %6977 = vmatpush1.msra.mxu0 %v5693
      %6978 = vmatprep.subr.mxu0 0.0
      %6979 = vmatpush1.msra.mxu0 %v5694
      %6980 = vmatprep.subr.mxu0 0.0
      %6981 = vmatpush1.msra.mxu0 %v5695
      %6982 = vmatprep.subr.mxu0 0.0
      %6983 = vmatpush1.msra.mxu0 %v5696
      %6984 = vmatprep.mubr.f32.mxu0 %v6288
      %6985 = vmatmul.mubr.f32.gmra.mrb[0].mxu0 %v6228
      %v6986 = vpop.f32.mrb[0].mxu0
      %v6987 = vadd.f32 0.0, %v6986
      %v6988 = vpop.f32.mrb[0].mxu0
      %6989 = vmatprep.mubr.f32.mxu0 %v6289
      %6990 = vmatmul.mubr.f32.gmra.mrb[0].mxu0 %v6229
      %v6991 = vpop.f32.mrb[0].mxu0
      %v6992 = vadd.f32 0.0, %v6991
      %v6993 = vpop.f32.mrb[0].mxu0
      %6994 = vdwg.mxu0
      %6995 = vmatprep.subr.mxu0 0.0
      %6996 = vmatpush1.msra.mxu0 %v5697
      %6997 = vmatprep.subr.mxu0 0.0
      %6998 = vmatpush1.msra.mxu0 %v5698
      %6999 = vmatprep.subr.mxu0 0.0
      %7000 = vmatpush1.msra.mxu0 %v5699
      %7001 = vmatprep.subr.mxu0 0.0
      %7002 = vmatpush1.msra.mxu0 %v5700
      %7003 = vmatprep.subr.mxu0 0.0
      %7004 = vmatpush1.msra.mxu0 0.0
      %7005 = vmatprep.subr.mxu0 0.0
      %7006 = vmatpush1.msra.mxu0 0.0
      %7007 = vmatprep.subr.mxu0 0.0
      %7008 = vmatpush1.msra.mxu0 0.0
      %7009 = vmatprep.subr.mxu0 0.0
      %7010 = vmatpush1.msra.mxu0 0.0
      %7011 = vmatprep.subr.mxu0 0.0
      %7012 = vmatpush1.msra.mxu0 0.0
      %7013 = vmatprep.subr.mxu0 0.0
      %7014 = vmatpush1.msra.mxu0 0.0
      %7015 = vmatprep.subr.mxu0 0.0
      %7016 = vmatpush1.msra.mxu0 0.0
      %7017 = vmatprep.subr.mxu0 0.0
      %7018 = vmatpush1.msra.mxu0 0.0
      %7019 = vmatprep.subr.mxu0 0.0
      %7020 = vmatpush1.msra.mxu0 0.0
      %7021 = vmatprep.subr.mxu0 0.0
      %7022 = vmatpush1.msra.mxu0 0.0
      %7023 = vmatprep.subr.mxu0 0.0
      %7024 = vmatpush1.msra.mxu0 0.0
      %7025 = vmatprep.subr.mxu0 0.0
      %7026 = vmatpush1.msra.mxu0 0.0
      %7027 = vmatprep.subr.mxu0 0.0
      %7028 = vmatpush1.msra.mxu0 0.0
      %7029 = vmatprep.subr.mxu0 0.0
      %7030 = vmatpush1.msra.mxu0 0.0
      %7031 = vmatprep.subr.mxu0 0.0
      %7032 = vmatpush1.msra.mxu0 0.0
      %7033 = vmatprep.subr.mxu0 0.0
      %7034 = vmatpush1.msra.mxu0 0.0
      %7035 = vmatprep.subr.mxu0 0.0
      %7036 = vmatpush1.msra.mxu0 0.0
      %7037 = vmatprep.subr.mxu0 0.0
      %7038 = vmatpush1.msra.mxu0 0.0
      %7039 = vmatprep.subr.mxu0 0.0
      %7040 = vmatpush1.msra.mxu0 0.0
      %7041 = vmatprep.subr.mxu0 0.0
      %7042 = vmatpush1.msra.mxu0 0.0
      %7043 = vmatprep.subr.mxu0 0.0
      %7044 = vmatpush1.msra.mxu0 0.0
      %7045 = vmatprep.subr.mxu0 0.0
      %7046 = vmatpush1.msra.mxu0 0.0
      %7047 = vmatprep.subr.mxu0 0.0
      %7048 = vmatpush1.msra.mxu0 0.0
      %7049 = vmatprep.subr.mxu0 0.0
      %7050 = vmatpush1.msra.mxu0 0.0
      %7051 = vmatprep.subr.mxu0 0.0
      %7052 = vmatpush1.msra.mxu0 0.0
      %7053 = vmatprep.subr.mxu0 0.0
      %7054 = vmatpush1.msra.mxu0 0.0
      %7055 = vmatprep.subr.mxu0 0.0
      %7056 = vmatpush1.msra.mxu0 0.0
      %7057 = vmatprep.subr.mxu0 0.0
      %7058 = vmatpush1.msra.mxu0 0.0
      %7059 = vmatprep.mubr.f32.mxu0 0.0
      %7060 = vmatmul.mubr.f32.gmra.mrb[0].mxu0 %v6916
      %v7061 = vpop.f32.mrb[0].mxu0
      %v7062 = vadd.f32 %v6987, %v7061
      %v7063 = vpop.f32.mrb[0].mxu0
      %7064 = vmatprep.mubr.f32.mxu0 0.0
      %7065 = vmatmul.mubr.f32.gmra.mrb[0].mxu0 %v6918
      %v7066 = vpop.f32.mrb[0].mxu0
      %v7067 = vadd.f32 %v6992, %v7066
      %v7068 = vpop.f32.mrb[0].mxu0
      %7069 = vdwg.mxu0
      %v7070 = vsel %vm6177, %v5834, 0
      %v7072 = vsel %vm6177, %v5833, 0
      %7074 = vmatprep.subr.mxu0 0.0
      %7075 = vmatpush1.msra.mxu0 %v5665
      %7076 = vmatprep.subr.mxu0 0.0
      %7077 = vmatpush1.msra.mxu0 %v5666
      %7078 = vmatprep.subr.mxu0 0.0
      %7079 = vmatpush1.msra.mxu0 %v5667
      %7080 = vmatprep.subr.mxu0 0.0
      %7081 = vmatpush1.msra.mxu0 %v5668
      %7082 = vmatprep.subr.mxu0 0.0
      %7083 = vmatpush1.msra.mxu0 %v5669
      %7084 = vmatprep.subr.mxu0 0.0
      %7085 = vmatpush1.msra.mxu0 %v5670
      %7086 = vmatprep.subr.mxu0 0.0
      %7087 = vmatpush1.msra.mxu0 %v5671
      %7088 = vmatprep.subr.mxu0 0.0
      %7089 = vmatpush1.msra.mxu0 %v5672
      %7090 = vmatprep.subr.mxu0 0.0
      %7091 = vmatpush1.msra.mxu0 %v5673
      %7092 = vmatprep.subr.mxu0 0.0
      %7093 = vmatpush1.msra.mxu0 %v5674
      %7094 = vmatprep.subr.mxu0 0.0
      %7095 = vmatpush1.msra.mxu0 %v5675
      %7096 = vmatprep.subr.mxu0 0.0
      %7097 = vmatpush1.msra.mxu0 %v5676
      %7098 = vmatprep.subr.mxu0 0.0
      %7099 = vmatpush1.msra.mxu0 %v5677
      %7100 = vmatprep.subr.mxu0 0.0
      %7101 = vmatpush1.msra.mxu0 %v5678
      %7102 = vmatprep.subr.mxu0 0.0
      %7103 = vmatpush1.msra.mxu0 %v5679
      %7104 = vmatprep.subr.mxu0 0.0
      %7105 = vmatpush1.msra.mxu0 %v5680
      %7106 = vmatprep.subr.mxu0 0.0
      %7107 = vmatpush1.msra.mxu0 %v5681
      %7108 = vmatprep.subr.mxu0 0.0
      %7109 = vmatpush1.msra.mxu0 %v5682
      %7110 = vmatprep.subr.mxu0 0.0
      %7111 = vmatpush1.msra.mxu0 %v5683
      %7112 = vmatprep.subr.mxu0 0.0
      %7113 = vmatpush1.msra.mxu0 %v5684
      %7114 = vmatprep.subr.mxu0 0.0
      %7115 = vmatpush1.msra.mxu0 %v5685
      %7116 = vmatprep.subr.mxu0 0.0
      %7117 = vmatpush1.msra.mxu0 %v5686
      %7118 = vmatprep.subr.mxu0 0.0
      %7119 = vmatpush1.msra.mxu0 %v5687
      %7120 = vmatprep.subr.mxu0 0.0
      %7121 = vmatpush1.msra.mxu0 %v5688
      %7122 = vmatprep.subr.mxu0 0.0
      %7123 = vmatpush1.msra.mxu0 %v5689
      %7124 = vmatprep.subr.mxu0 0.0
      %7125 = vmatpush1.msra.mxu0 %v5690
      %7126 = vmatprep.subr.mxu0 0.0
      %7127 = vmatpush1.msra.mxu0 %v5691
      %7128 = vmatprep.subr.mxu0 0.0
      %7129 = vmatpush1.msra.mxu0 %v5692
      %7130 = vmatprep.subr.mxu0 0.0
      %7131 = vmatpush1.msra.mxu0 %v5693
      %7132 = vmatprep.subr.mxu0 0.0
      %7133 = vmatpush1.msra.mxu0 %v5694
      %7134 = vmatprep.subr.mxu0 0.0
      %7135 = vmatpush1.msra.mxu0 %v5695
      %7136 = vmatprep.subr.mxu0 0.0
      %7137 = vmatpush1.msra.mxu0 %v5696
      %7138 = vmatprep.mubr.f32.mxu0 %v6290
      %7139 = vmatmul.mubr.f32.gmra.mrb[0].mxu0 %v6230
      %v7140 = vpop.f32.mrb[0].mxu0
      %v7141 = vadd.f32 0.0, %v7140
      %v7142 = vpop.f32.mrb[0].mxu0
      %7143 = vmatprep.mubr.f32.mxu0 %v6291
      %7144 = vmatmul.mubr.f32.gmra.mrb[0].mxu0 %v6231
      %v7145 = vpop.f32.mrb[0].mxu0
      %v7146 = vadd.f32 0.0, %v7145
      %v7147 = vpop.f32.mrb[0].mxu0
      %7148 = vdwg.mxu0
      %7149 = vmatprep.subr.mxu0 0.0
      %7150 = vmatpush1.msra.mxu0 %v5697
      %7151 = vmatprep.subr.mxu0 0.0
      %7152 = vmatpush1.msra.mxu0 %v5698
      %7153 = vmatprep.subr.mxu0 0.0
      %7154 = vmatpush1.msra.mxu0 %v5699
      %7155 = vmatprep.subr.mxu0 0.0
      %7156 = vmatpush1.msra.mxu0 %v5700
      %7157 = vmatprep.subr.mxu0 0.0
      %7158 = vmatpush1.msra.mxu0 0.0
      %7159 = vmatprep.subr.mxu0 0.0
      %7160 = vmatpush1.msra.mxu0 0.0
      %7161 = vmatprep.subr.mxu0 0.0
      %7162 = vmatpush1.msra.mxu0 0.0
      %7163 = vmatprep.subr.mxu0 0.0
      %7164 = vmatpush1.msra.mxu0 0.0
      %7165 = vmatprep.subr.mxu0 0.0
      %7166 = vmatpush1.msra.mxu0 0.0
      %7167 = vmatprep.subr.mxu0 0.0
      %7168 = vmatpush1.msra.mxu0 0.0
      %7169 = vmatprep.subr.mxu0 0.0
      %7170 = vmatpush1.msra.mxu0 0.0
      %7171 = vmatprep.subr.mxu0 0.0
      %7172 = vmatpush1.msra.mxu0 0.0
      %7173 = vmatprep.subr.mxu0 0.0
      %7174 = vmatpush1.msra.mxu0 0.0
      %7175 = vmatprep.subr.mxu0 0.0
      %7176 = vmatpush1.msra.mxu0 0.0
      %7177 = vmatprep.subr.mxu0 0.0
      %7178 = vmatpush1.msra.mxu0 0.0
      %7179 = vmatprep.subr.mxu0 0.0
      %7180 = vmatpush1.msra.mxu0 0.0
      %7181 = vmatprep.subr.mxu0 0.0
      %7182 = vmatpush1.msra.mxu0 0.0
      %7183 = vmatprep.subr.mxu0 0.0
      %7184 = vmatpush1.msra.mxu0 0.0
      %7185 = vmatprep.subr.mxu0 0.0
      %7186 = vmatpush1.msra.mxu0 0.0
      %7187 = vmatprep.subr.mxu0 0.0
      %7188 = vmatpush1.msra.mxu0 0.0
      %7189 = vmatprep.subr.mxu0 0.0
      %7190 = vmatpush1.msra.mxu0 0.0
      %7191 = vmatprep.subr.mxu0 0.0
      %7192 = vmatpush1.msra.mxu0 0.0
      %7193 = vmatprep.subr.mxu0 0.0
      %7194 = vmatpush1.msra.mxu0 0.0
      %7195 = vmatprep.subr.mxu0 0.0
      %7196 = vmatpush1.msra.mxu0 0.0
      %7197 = vmatprep.subr.mxu0 0.0
      %7198 = vmatpush1.msra.mxu0 0.0
      %7199 = vmatprep.subr.mxu0 0.0
      %7200 = vmatpush1.msra.mxu0 0.0
      %7201 = vmatprep.subr.mxu0 0.0
      %7202 = vmatpush1.msra.mxu0 0.0
      %7203 = vmatprep.subr.mxu0 0.0
      %7204 = vmatpush1.msra.mxu0 0.0
      %7205 = vmatprep.subr.mxu0 0.0
      %7206 = vmatpush1.msra.mxu0 0.0
      %7207 = vmatprep.subr.mxu0 0.0
      %7208 = vmatpush1.msra.mxu0 0.0
      %7209 = vmatprep.subr.mxu0 0.0
      %7210 = vmatpush1.msra.mxu0 0.0
      %7211 = vmatprep.subr.mxu0 0.0
      %7212 = vmatpush1.msra.mxu0 0.0
      %7213 = vmatprep.mubr.f32.mxu0 0.0
      %7214 = vmatmul.mubr.f32.gmra.mrb[0].mxu0 %v7070
      %v7215 = vpop.f32.mrb[0].mxu0
      %v7216 = vadd.f32 %v7141, %v7215
      %v7217 = vpop.f32.mrb[0].mxu0
      %7218 = vmatprep.mubr.f32.mxu0 0.0
      %7219 = vmatmul.mubr.f32.gmra.mrb[0].mxu0 %v7072
      %v7220 = vpop.f32.mrb[0].mxu0
      %v7221 = vadd.f32 %v7146, %v7220
      %v7222 = vpop.f32.mrb[0].mxu0
      %7223 = vdwg.mxu0
      %v7224 = vsel %vm6177, %v5837, 0
      %v7226 = vsel %vm6177, %v5836, 0
      %7228 = vmatprep.subr.mxu0 0.0
      %7229 = vmatpush1.msra.mxu0 %v5665
      %7230 = vmatprep.subr.mxu0 0.0
      %7231 = vmatpush1.msra.mxu0 %v5666
      %7232 = vmatprep.subr.mxu0 0.0
      %7233 = vmatpush1.msra.mxu0 %v5667
      %7234 = vmatprep.subr.mxu0 0.0
      %7235 = vmatpush1.msra.mxu0 %v5668
      %7236 = vmatprep.subr.mxu0 0.0
      %7237 = vmatpush1.msra.mxu0 %v5669
      %7238 = vmatprep.subr.mxu0 0.0
      %7239 = vmatpush1.msra.mxu0 %v5670
      %7240 = vmatprep.subr.mxu0 0.0
      %7241 = vmatpush1.msra.mxu0 %v5671
      %7242 = vmatprep.subr.mxu0 0.0
      %7243 = vmatpush1.msra.mxu0 %v5672
      %7244 = vmatprep.subr.mxu0 0.0
      %7245 = vmatpush1.msra.mxu0 %v5673
      %7246 = vmatprep.subr.mxu0 0.0
      %7247 = vmatpush1.msra.mxu0 %v5674
      %7248 = vmatprep.subr.mxu0 0.0
      %7249 = vmatpush1.msra.mxu0 %v5675
      %7250 = vmatprep.subr.mxu0 0.0
      %7251 = vmatpush1.msra.mxu0 %v5676
      %7252 = vmatprep.subr.mxu0 0.0
      %7253 = vmatpush1.msra.mxu0 %v5677
      %7254 = vmatprep.subr.mxu0 0.0
      %7255 = vmatpush1.msra.mxu0 %v5678
      %7256 = vmatprep.subr.mxu0 0.0
      %7257 = vmatpush1.msra.mxu0 %v5679
      %7258 = vmatprep.subr.mxu0 0.0
      %7259 = vmatpush1.msra.mxu0 %v5680
      %7260 = vmatprep.subr.mxu0 0.0
      %7261 = vmatpush1.msra.mxu0 %v5681
      %7262 = vmatprep.subr.mxu0 0.0
      %7263 = vmatpush1.msra.mxu0 %v5682
      %7264 = vmatprep.subr.mxu0 0.0
      %7265 = vmatpush1.msra.mxu0 %v5683
      %7266 = vmatprep.subr.mxu0 0.0
      %7267 = vmatpush1.msra.mxu0 %v5684
      %7268 = vmatprep.subr.mxu0 0.0
      %7269 = vmatpush1.msra.mxu0 %v5685
      %7270 = vmatprep.subr.mxu0 0.0
      %7271 = vmatpush1.msra.mxu0 %v5686
      %7272 = vmatprep.subr.mxu0 0.0
      %7273 = vmatpush1.msra.mxu0 %v5687
      %7274 = vmatprep.subr.mxu0 0.0
      %7275 = vmatpush1.msra.mxu0 %v5688
      %7276 = vmatprep.subr.mxu0 0.0
      %7277 = vmatpush1.msra.mxu0 %v5689
      %7278 = vmatprep.subr.mxu0 0.0
      %7279 = vmatpush1.msra.mxu0 %v5690
      %7280 = vmatprep.subr.mxu0 0.0
      %7281 = vmatpush1.msra.mxu0 %v5691
      %7282 = vmatprep.subr.mxu0 0.0
      %7283 = vmatpush1.msra.mxu0 %v5692
      %7284 = vmatprep.subr.mxu0 0.0
      %7285 = vmatpush1.msra.mxu0 %v5693
      %7286 = vmatprep.subr.mxu0 0.0
      %7287 = vmatpush1.msra.mxu0 %v5694
      %7288 = vmatprep.subr.mxu0 0.0
      %7289 = vmatpush1.msra.mxu0 %v5695
      %7290 = vmatprep.subr.mxu0 0.0
      %7291 = vmatpush1.msra.mxu0 %v5696
      %7292 = vmatprep.mubr.f32.mxu0 %v6292
      %7293 = vmatmul.mubr.f32.gmra.mrb[0].mxu0 %v6232
      %v7294 = vpop.f32.mrb[0].mxu0
      %v7295 = vadd.f32 0.0, %v7294
      %v7296 = vpop.f32.mrb[0].mxu0
      %7297 = vmatprep.mubr.f32.mxu0 %v6293
      %7298 = vmatmul.mubr.f32.gmra.mrb[0].mxu0 %v6233
      %v7299 = vpop.f32.mrb[0].mxu0
      %v7300 = vadd.f32 0.0, %v7299
      %v7301 = vpop.f32.mrb[0].mxu0
      %7302 = vdwg.mxu0
      %7303 = vmatprep.subr.mxu0 0.0
      %7304 = vmatpush1.msra.mxu0 %v5697
      %7305 = vmatprep.subr.mxu0 0.0
      %7306 = vmatpush1.msra.mxu0 %v5698
      %7307 = vmatprep.subr.mxu0 0.0
      %7308 = vmatpush1.msra.mxu0 %v5699
      %7309 = vmatprep.subr.mxu0 0.0
      %7310 = vmatpush1.msra.mxu0 %v5700
      %7311 = vmatprep.subr.mxu0 0.0
      %7312 = vmatpush1.msra.mxu0 0.0
      %7313 = vmatprep.subr.mxu0 0.0
      %7314 = vmatpush1.msra.mxu0 0.0
      %7315 = vmatprep.subr.mxu0 0.0
      %7316 = vmatpush1.msra.mxu0 0.0
      %7317 = vmatprep.subr.mxu0 0.0
      %7318 = vmatpush1.msra.mxu0 0.0
      %7319 = vmatprep.subr.mxu0 0.0
      %7320 = vmatpush1.msra.mxu0 0.0
      %7321 = vmatprep.subr.mxu0 0.0
      %7322 = vmatpush1.msra.mxu0 0.0
      %7323 = vmatprep.subr.mxu0 0.0
      %7324 = vmatpush1.msra.mxu0 0.0
      %7325 = vmatprep.subr.mxu0 0.0
      %7326 = vmatpush1.msra.mxu0 0.0
      %7327 = vmatprep.subr.mxu0 0.0
      %7328 = vmatpush1.msra.mxu0 0.0
      %7329 = vmatprep.subr.mxu0 0.0
      %7330 = vmatpush1.msra.mxu0 0.0
      %7331 = vmatprep.subr.mxu0 0.0
      %7332 = vmatpush1.msra.mxu0 0.0
      %7333 = vmatprep.subr.mxu0 0.0
      %7334 = vmatpush1.msra.mxu0 0.0
      %7335 = vmatprep.subr.mxu0 0.0
      %7336 = vmatpush1.msra.mxu0 0.0
      %7337 = vmatprep.subr.mxu0 0.0
      %7338 = vmatpush1.msra.mxu0 0.0
      %7339 = vmatprep.subr.mxu0 0.0
      %7340 = vmatpush1.msra.mxu0 0.0
      %7341 = vmatprep.subr.mxu0 0.0
      %7342 = vmatpush1.msra.mxu0 0.0
      %7343 = vmatprep.subr.mxu0 0.0
      %7344 = vmatpush1.msra.mxu0 0.0
      %7345 = vmatprep.subr.mxu0 0.0
      %7346 = vmatpush1.msra.mxu0 0.0
      %7347 = vmatprep.subr.mxu0 0.0
      %7348 = vmatpush1.msra.mxu0 0.0
      %7349 = vmatprep.subr.mxu0 0.0
      %7350 = vmatpush1.msra.mxu0 0.0
      %7351 = vmatprep.subr.mxu0 0.0
      %7352 = vmatpush1.msra.mxu0 0.0
      %7353 = vmatprep.subr.mxu0 0.0
      %7354 = vmatpush1.msra.mxu0 0.0
      %7355 = vmatprep.subr.mxu0 0.0
      %7356 = vmatpush1.msra.mxu0 0.0
      %7357 = vmatprep.subr.mxu0 0.0
      %7358 = vmatpush1.msra.mxu0 0.0
      %7359 = vmatprep.subr.mxu0 0.0
      %7360 = vmatpush1.msra.mxu0 0.0
      %7361 = vmatprep.subr.mxu0 0.0
      %7362 = vmatpush1.msra.mxu0 0.0
      %7363 = vmatprep.subr.mxu0 0.0
      %7364 = vmatpush1.msra.mxu0 0.0
      %7365 = vmatprep.subr.mxu0 0.0
      %7366 = vmatpush1.msra.mxu0 0.0
      %7367 = vmatprep.mubr.f32.mxu0 0.0
      %7368 = vmatmul.mubr.f32.gmra.mrb[0].mxu0 %v7224
      %v7369 = vpop.f32.mrb[0].mxu0
      %v7370 = vadd.f32 %v7295, %v7369
      %v7371 = vpop.f32.mrb[0].mxu0
      %7372 = vmatprep.mubr.f32.mxu0 0.0
      %7373 = vmatmul.mubr.f32.gmra.mrb[0].mxu0 %v7226
      %v7374 = vpop.f32.mrb[0].mxu0
      %v7375 = vadd.f32 %v7300, %v7374
      %v7376 = vpop.f32.mrb[0].mxu0
      %7377 = vdwg.mxu0
      %v7378 = vsel %vm6177, %v5840, 0
      %v7380 = vsel %vm6177, %v5839, 0
      %7382 = vmatprep.subr.mxu0 0.0
      %7383 = vmatpush1.msra.mxu0 %v5665
      %7384 = vmatprep.subr.mxu0 0.0
      %7385 = vmatpush1.msra.mxu0 %v5666
      %7386 = vmatprep.subr.mxu0 0.0
      %7387 = vmatpush1.msra.mxu0 %v5667
      %7388 = vmatprep.subr.mxu0 0.0
      %7389 = vmatpush1.msra.mxu0 %v5668
      %7390 = vmatprep.subr.mxu0 0.0
      %7391 = vmatpush1.msra.mxu0 %v5669
      %7392 = vmatprep.subr.mxu0 0.0
      %7393 = vmatpush1.msra.mxu0 %v5670
      %7394 = vmatprep.subr.mxu0 0.0
      %7395 = vmatpush1.msra.mxu0 %v5671
      %7396 = vmatprep.subr.mxu0 0.0
      %7397 = vmatpush1.msra.mxu0 %v5672
      %7398 = vmatprep.subr.mxu0 0.0
      %7399 = vmatpush1.msra.mxu0 %v5673
      %7400 = vmatprep.subr.mxu0 0.0
      %7401 = vmatpush1.msra.mxu0 %v5674
      %7402 = vmatprep.subr.mxu0 0.0
      %7403 = vmatpush1.msra.mxu0 %v5675
      %7404 = vmatprep.subr.mxu0 0.0
      %7405 = vmatpush1.msra.mxu0 %v5676
      %7406 = vmatprep.subr.mxu0 0.0
      %7407 = vmatpush1.msra.mxu0 %v5677
      %7408 = vmatprep.subr.mxu0 0.0
      %7409 = vmatpush1.msra.mxu0 %v5678
      %7410 = vmatprep.subr.mxu0 0.0
      %7411 = vmatpush1.msra.mxu0 %v5679
      %7412 = vmatprep.subr.mxu0 0.0
      %7413 = vmatpush1.msra.mxu0 %v5680
      %7414 = vmatprep.subr.mxu0 0.0
      %7415 = vmatpush1.msra.mxu0 %v5681
      %7416 = vmatprep.subr.mxu0 0.0
      %7417 = vmatpush1.msra.mxu0 %v5682
      %7418 = vmatprep.subr.mxu0 0.0
      %7419 = vmatpush1.msra.mxu0 %v5683
      %7420 = vmatprep.subr.mxu0 0.0
      %7421 = vmatpush1.msra.mxu0 %v5684
      %7422 = vmatprep.subr.mxu0 0.0
      %7423 = vmatpush1.msra.mxu0 %v5685
      %7424 = vmatprep.subr.mxu0 0.0
      %7425 = vmatpush1.msra.mxu0 %v5686
      %7426 = vmatprep.subr.mxu0 0.0
      %7427 = vmatpush1.msra.mxu0 %v5687
      %7428 = vmatprep.subr.mxu0 0.0
      %7429 = vmatpush1.msra.mxu0 %v5688
      %7430 = vmatprep.subr.mxu0 0.0
      %7431 = vmatpush1.msra.mxu0 %v5689
      %7432 = vmatprep.subr.mxu0 0.0
      %7433 = vmatpush1.msra.mxu0 %v5690
      %7434 = vmatprep.subr.mxu0 0.0
      %7435 = vmatpush1.msra.mxu0 %v5691
      %7436 = vmatprep.subr.mxu0 0.0
      %7437 = vmatpush1.msra.mxu0 %v5692
      %7438 = vmatprep.subr.mxu0 0.0
      %7439 = vmatpush1.msra.mxu0 %v5693
      %7440 = vmatprep.subr.mxu0 0.0
      %7441 = vmatpush1.msra.mxu0 %v5694
      %7442 = vmatprep.subr.mxu0 0.0
      %7443 = vmatpush1.msra.mxu0 %v5695
      %7444 = vmatprep.subr.mxu0 0.0
      %7445 = vmatpush1.msra.mxu0 %v5696
      %7446 = vmatprep.mubr.f32.mxu0 %v6294
      %7447 = vmatmul.mubr.f32.gmra.mrb[0].mxu0 %v6234
      %v7448 = vpop.f32.mrb[0].mxu0
      %v7449 = vadd.f32 0.0, %v7448
      %v7450 = vpop.f32.mrb[0].mxu0
      %7451 = vmatprep.mubr.f32.mxu0 %v6295
      %7452 = vmatmul.mubr.f32.gmra.mrb[0].mxu0 %v6235
      %v7453 = vpop.f32.mrb[0].mxu0
      %v7454 = vadd.f32 0.0, %v7453
      %v7455 = vpop.f32.mrb[0].mxu0
      %7456 = vdwg.mxu0
      %7457 = vmatprep.subr.mxu0 0.0
      %7458 = vmatpush1.msra.mxu0 %v5697
      %7459 = vmatprep.subr.mxu0 0.0
      %7460 = vmatpush1.msra.mxu0 %v5698
      %7461 = vmatprep.subr.mxu0 0.0
      %7462 = vmatpush1.msra.mxu0 %v5699
      %7463 = vmatprep.subr.mxu0 0.0
      %7464 = vmatpush1.msra.mxu0 %v5700
      %7465 = vmatprep.subr.mxu0 0.0
      %7466 = vmatpush1.msra.mxu0 0.0
      %7467 = vmatprep.subr.mxu0 0.0
      %7468 = vmatpush1.msra.mxu0 0.0
      %7469 = vmatprep.subr.mxu0 0.0
      %7470 = vmatpush1.msra.mxu0 0.0
      %7471 = vmatprep.subr.mxu0 0.0
      %7472 = vmatpush1.msra.mxu0 0.0
      %7473 = vmatprep.subr.mxu0 0.0
      %7474 = vmatpush1.msra.mxu0 0.0
      %7475 = vmatprep.subr.mxu0 0.0
      %7476 = vmatpush1.msra.mxu0 0.0
      %7477 = vmatprep.subr.mxu0 0.0
      %7478 = vmatpush1.msra.mxu0 0.0
      %7479 = vmatprep.subr.mxu0 0.0
      %7480 = vmatpush1.msra.mxu0 0.0
      %7481 = vmatprep.subr.mxu0 0.0
      %7482 = vmatpush1.msra.mxu0 0.0
      %7483 = vmatprep.subr.mxu0 0.0
      %7484 = vmatpush1.msra.mxu0 0.0
      %7485 = vmatprep.subr.mxu0 0.0
      %7486 = vmatpush1.msra.mxu0 0.0
      %7487 = vmatprep.subr.mxu0 0.0
      %7488 = vmatpush1.msra.mxu0 0.0
      %7489 = vmatprep.subr.mxu0 0.0
      %7490 = vmatpush1.msra.mxu0 0.0
      %7491 = vmatprep.subr.mxu0 0.0
      %7492 = vmatpush1.msra.mxu0 0.0
      %7493 = vmatprep.subr.mxu0 0.0
      %7494 = vmatpush1.msra.mxu0 0.0
      %7495 = vmatprep.subr.mxu0 0.0
      %7496 = vmatpush1.msra.mxu0 0.0
      %7497 = vmatprep.subr.mxu0 0.0
      %7498 = vmatpush1.msra.mxu0 0.0
      %7499 = vmatprep.subr.mxu0 0.0
      %7500 = vmatpush1.msra.mxu0 0.0
      %7501 = vmatprep.subr.mxu0 0.0
      %7502 = vmatpush1.msra.mxu0 0.0
      %7503 = vmatprep.subr.mxu0 0.0
      %7504 = vmatpush1.msra.mxu0 0.0
      %7505 = vmatprep.subr.mxu0 0.0
      %7506 = vmatpush1.msra.mxu0 0.0
      %7507 = vmatprep.subr.mxu0 0.0
      %7508 = vmatpush1.msra.mxu0 0.0
      %7509 = vmatprep.subr.mxu0 0.0
      %7510 = vmatpush1.msra.mxu0 0.0
      %7511 = vmatprep.subr.mxu0 0.0
      %7512 = vmatpush1.msra.mxu0 0.0
      %7513 = vmatprep.subr.mxu0 0.0
      %7514 = vmatpush1.msra.mxu0 0.0
      %7515 = vmatprep.subr.mxu0 0.0
      %7516 = vmatpush1.msra.mxu0 0.0
      %7517 = vmatprep.subr.mxu0 0.0
      %7518 = vmatpush1.msra.mxu0 0.0
      %7519 = vmatprep.subr.mxu0 0.0
      %7520 = vmatpush1.msra.mxu0 0.0
      %7521 = vmatprep.mubr.f32.mxu0 0.0
      %7522 = vmatmul.mubr.f32.gmra.mrb[0].mxu0 %v7378
      %v7523 = vpop.f32.mrb[0].mxu0
      %v7524 = vadd.f32 %v7449, %v7523
      %v7525 = vpop.f32.mrb[0].mxu0
      %7526 = vmatprep.mubr.f32.mxu0 0.0
      %7527 = vmatmul.mubr.f32.gmra.mrb[0].mxu0 %v7380
      %v7528 = vpop.f32.mrb[0].mxu0
      %v7529 = vadd.f32 %v7454, %v7528
      %v7530 = vpop.f32.mrb[0].mxu0
      %7531 = vdwg.mxu0
      %v7532 = vsel %vm6177, %v5988, 0
      %v7534 = vsel %vm6177, %v5987, 0
      %7536 = vmatprep.subr.mxu0 0.0
      %7537 = vmatpush1.msra.mxu0 %v5665
      %7538 = vmatprep.subr.mxu0 0.0
      %7539 = vmatpush1.msra.mxu0 %v5666
      %7540 = vmatprep.subr.mxu0 0.0
      %7541 = vmatpush1.msra.mxu0 %v5667
      %7542 = vmatprep.subr.mxu0 0.0
      %7543 = vmatpush1.msra.mxu0 %v5668
      %7544 = vmatprep.subr.mxu0 0.0
      %7545 = vmatpush1.msra.mxu0 %v5669
      %7546 = vmatprep.subr.mxu0 0.0
      %7547 = vmatpush1.msra.mxu0 %v5670
      %7548 = vmatprep.subr.mxu0 0.0
      %7549 = vmatpush1.msra.mxu0 %v5671
      %7550 = vmatprep.subr.mxu0 0.0
      %7551 = vmatpush1.msra.mxu0 %v5672
      %7552 = vmatprep.subr.mxu0 0.0
      %7553 = vmatpush1.msra.mxu0 %v5673
      %7554 = vmatprep.subr.mxu0 0.0
      %7555 = vmatpush1.msra.mxu0 %v5674
      %7556 = vmatprep.subr.mxu0 0.0
      %7557 = vmatpush1.msra.mxu0 %v5675
      %7558 = vmatprep.subr.mxu0 0.0
      %7559 = vmatpush1.msra.mxu0 %v5676
      %7560 = vmatprep.subr.mxu0 0.0
      %7561 = vmatpush1.msra.mxu0 %v5677
      %7562 = vmatprep.subr.mxu0 0.0
      %7563 = vmatpush1.msra.mxu0 %v5678
      %7564 = vmatprep.subr.mxu0 0.0
      %7565 = vmatpush1.msra.mxu0 %v5679
      %7566 = vmatprep.subr.mxu0 0.0
      %7567 = vmatpush1.msra.mxu0 %v5680
      %7568 = vmatprep.subr.mxu0 0.0
      %7569 = vmatpush1.msra.mxu0 %v5681
      %7570 = vmatprep.subr.mxu0 0.0
      %7571 = vmatpush1.msra.mxu0 %v5682
      %7572 = vmatprep.subr.mxu0 0.0
      %7573 = vmatpush1.msra.mxu0 %v5683
      %7574 = vmatprep.subr.mxu0 0.0
      %7575 = vmatpush1.msra.mxu0 %v5684
      %7576 = vmatprep.subr.mxu0 0.0
      %7577 = vmatpush1.msra.mxu0 %v5685
      %7578 = vmatprep.subr.mxu0 0.0
      %7579 = vmatpush1.msra.mxu0 %v5686
      %7580 = vmatprep.subr.mxu0 0.0
      %7581 = vmatpush1.msra.mxu0 %v5687
      %7582 = vmatprep.subr.mxu0 0.0
      %7583 = vmatpush1.msra.mxu0 %v5688
      %7584 = vmatprep.subr.mxu0 0.0
      %7585 = vmatpush1.msra.mxu0 %v5689
      %7586 = vmatprep.subr.mxu0 0.0
      %7587 = vmatpush1.msra.mxu0 %v5690
      %7588 = vmatprep.subr.mxu0 0.0
      %7589 = vmatpush1.msra.mxu0 %v5691
      %7590 = vmatprep.subr.mxu0 0.0
      %7591 = vmatpush1.msra.mxu0 %v5692
      %7592 = vmatprep.subr.mxu0 0.0
      %7593 = vmatpush1.msra.mxu0 %v5693
      %7594 = vmatprep.subr.mxu0 0.0
      %7595 = vmatpush1.msra.mxu0 %v5694
      %7596 = vmatprep.subr.mxu0 0.0
      %7597 = vmatpush1.msra.mxu0 %v5695
      %7598 = vmatprep.subr.mxu0 0.0
      %7599 = vmatpush1.msra.mxu0 %v5696
      %7600 = vmatprep.mubr.f32.mxu0 %v6296
      %7601 = vmatmul.mubr.f32.gmra.mrb[0].mxu0 %v6236
      %v7602 = vpop.f32.mrb[0].mxu0
      %v7603 = vadd.f32 0.0, %v7602
      %v7604 = vpop.f32.mrb[0].mxu0
      %7605 = vmatprep.mubr.f32.mxu0 %v6297
      %7606 = vmatmul.mubr.f32.gmra.mrb[0].mxu0 %v6237
      %v7607 = vpop.f32.mrb[0].mxu0
      %v7608 = vadd.f32 0.0, %v7607
      %v7609 = vpop.f32.mrb[0].mxu0
      %7610 = vdwg.mxu0
      %7611 = vmatprep.subr.mxu0 0.0
      %7612 = vmatpush1.msra.mxu0 %v5697
      %7613 = vmatprep.subr.mxu0 0.0
      %7614 = vmatpush1.msra.mxu0 %v5698
      %7615 = vmatprep.subr.mxu0 0.0
      %7616 = vmatpush1.msra.mxu0 %v5699
      %7617 = vmatprep.subr.mxu0 0.0
      %7618 = vmatpush1.msra.mxu0 %v5700
      %7619 = vmatprep.subr.mxu0 0.0
      %7620 = vmatpush1.msra.mxu0 0.0
      %7621 = vmatprep.subr.mxu0 0.0
      %7622 = vmatpush1.msra.mxu0 0.0
      %7623 = vmatprep.subr.mxu0 0.0
      %7624 = vmatpush1.msra.mxu0 0.0
      %7625 = vmatprep.subr.mxu0 0.0
      %7626 = vmatpush1.msra.mxu0 0.0
      %7627 = vmatprep.subr.mxu0 0.0
      %7628 = vmatpush1.msra.mxu0 0.0
      %7629 = vmatprep.subr.mxu0 0.0
      %7630 = vmatpush1.msra.mxu0 0.0
      %7631 = vmatprep.subr.mxu0 0.0
      %7632 = vmatpush1.msra.mxu0 0.0
      %7633 = vmatprep.subr.mxu0 0.0
      %7634 = vmatpush1.msra.mxu0 0.0
      %7635 = vmatprep.subr.mxu0 0.0
      %7636 = vmatpush1.msra.mxu0 0.0
      %7637 = vmatprep.subr.mxu0 0.0
      %7638 = vmatpush1.msra.mxu0 0.0
      %7639 = vmatprep.subr.mxu0 0.0
      %7640 = vmatpush1.msra.mxu0 0.0
      %7641 = vmatprep.subr.mxu0 0.0
      %7642 = vmatpush1.msra.mxu0 0.0
      %7643 = vmatprep.subr.mxu0 0.0
      %7644 = vmatpush1.msra.mxu0 0.0
      %7645 = vmatprep.subr.mxu0 0.0
      %7646 = vmatpush1.msra.mxu0 0.0
      %7647 = vmatprep.subr.mxu0 0.0
      %7648 = vmatpush1.msra.mxu0 0.0
      %7649 = vmatprep.subr.mxu0 0.0
      %7650 = vmatpush1.msra.mxu0 0.0
      %7651 = vmatprep.subr.mxu0 0.0
      %7652 = vmatpush1.msra.mxu0 0.0
      %7653 = vmatprep.subr.mxu0 0.0
      %7654 = vmatpush1.msra.mxu0 0.0
      %7655 = vmatprep.subr.mxu0 0.0
      %7656 = vmatpush1.msra.mxu0 0.0
      %7657 = vmatprep.subr.mxu0 0.0
      %7658 = vmatpush1.msra.mxu0 0.0
      %7659 = vmatprep.subr.mxu0 0.0
      %7660 = vmatpush1.msra.mxu0 0.0
      %7661 = vmatprep.subr.mxu0 0.0
      %7662 = vmatpush1.msra.mxu0 0.0
      %7663 = vmatprep.subr.mxu0 0.0
      %7664 = vmatpush1.msra.mxu0 0.0
      %7665 = vmatprep.subr.mxu0 0.0
      %7666 = vmatpush1.msra.mxu0 0.0
      %7667 = vmatprep.subr.mxu0 0.0
      %7668 = vmatpush1.msra.mxu0 0.0
      %7669 = vmatprep.subr.mxu0 0.0
      %7670 = vmatpush1.msra.mxu0 0.0
      %7671 = vmatprep.subr.mxu0 0.0
      %7672 = vmatpush1.msra.mxu0 0.0
      %7673 = vmatprep.subr.mxu0 0.0
      %7674 = vmatpush1.msra.mxu0 0.0
      %7675 = vmatprep.mubr.f32.mxu0 0.0
      %7676 = vmatmul.mubr.f32.gmra.mrb[0].mxu0 %v7532
      %v7677 = vpop.f32.mrb[0].mxu0
      %v7678 = vadd.f32 %v7603, %v7677
      %v7679 = vpop.f32.mrb[0].mxu0
      %7680 = vmatprep.mubr.f32.mxu0 0.0
      %7681 = vmatmul.mubr.f32.gmra.mrb[0].mxu0 %v7534
      %v7682 = vpop.f32.mrb[0].mxu0
      %v7683 = vadd.f32 %v7608, %v7682
      %v7684 = vpop.f32.mrb[0].mxu0
      %7685 = vdwg.mxu0
      %v7686 = vsel %vm6177, %v6176, 0
      %v7688 = vsel %vm6177, %v6175, 0
      %7690 = vmatprep.subr.mxu0 0.0
      %7691 = vmatpush1.msra.mxu0 %v5665
      %7692 = vmatprep.subr.mxu0 0.0
      %7693 = vmatpush1.msra.mxu0 %v5666
      %7694 = vmatprep.subr.mxu0 0.0
      %7695 = vmatpush1.msra.mxu0 %v5667
      %7696 = vmatprep.subr.mxu0 0.0
      %7697 = vmatpush1.msra.mxu0 %v5668
      %7698 = vmatprep.subr.mxu0 0.0
      %7699 = vmatpush1.msra.mxu0 %v5669
      %7700 = vmatprep.subr.mxu0 0.0
      %7701 = vmatpush1.msra.mxu0 %v5670
      %7702 = vmatprep.subr.mxu0 0.0
      %7703 = vmatpush1.msra.mxu0 %v5671
      %7704 = vmatprep.subr.mxu0 0.0
      %7705 = vmatpush1.msra.mxu0 %v5672
      %7706 = vmatprep.subr.mxu0 0.0
      %7707 = vmatpush1.msra.mxu0 %v5673
      %7708 = vmatprep.subr.mxu0 0.0
      %7709 = vmatpush1.msra.mxu0 %v5674
      %7710 = vmatprep.subr.mxu0 0.0
      %7711 = vmatpush1.msra.mxu0 %v5675
      %7712 = vmatprep.subr.mxu0 0.0
      %7713 = vmatpush1.msra.mxu0 %v5676
      %7714 = vmatprep.subr.mxu0 0.0
      %7715 = vmatpush1.msra.mxu0 %v5677
      %7716 = vmatprep.subr.mxu0 0.0
      %7717 = vmatpush1.msra.mxu0 %v5678
      %7718 = vmatprep.subr.mxu0 0.0
      %7719 = vmatpush1.msra.mxu0 %v5679
      %7720 = vmatprep.subr.mxu0 0.0
      %7721 = vmatpush1.msra.mxu0 %v5680
      %7722 = vmatprep.subr.mxu0 0.0
      %7723 = vmatpush1.msra.mxu0 %v5681
      %7724 = vmatprep.subr.mxu0 0.0
      %7725 = vmatpush1.msra.mxu0 %v5682
      %7726 = vmatprep.subr.mxu0 0.0
      %7727 = vmatpush1.msra.mxu0 %v5683
      %7728 = vmatprep.subr.mxu0 0.0
      %7729 = vmatpush1.msra.mxu0 %v5684
      %7730 = vmatprep.subr.mxu0 0.0
      %7731 = vmatpush1.msra.mxu0 %v5685
      %7732 = vmatprep.subr.mxu0 0.0
      %7733 = vmatpush1.msra.mxu0 %v5686
      %7734 = vmatprep.subr.mxu0 0.0
      %7735 = vmatpush1.msra.mxu0 %v5687
      %7736 = vmatprep.subr.mxu0 0.0
      %7737 = vmatpush1.msra.mxu0 %v5688
      %7738 = vmatprep.subr.mxu0 0.0
      %7739 = vmatpush1.msra.mxu0 %v5689
      %7740 = vmatprep.subr.mxu0 0.0
      %7741 = vmatpush1.msra.mxu0 %v5690
      %7742 = vmatprep.subr.mxu0 0.0
      %7743 = vmatpush1.msra.mxu0 %v5691
      %7744 = vmatprep.subr.mxu0 0.0
      %7745 = vmatpush1.msra.mxu0 %v5692
      %7746 = vmatprep.subr.mxu0 0.0
      %7747 = vmatpush1.msra.mxu0 %v5693
      %7748 = vmatprep.subr.mxu0 0.0
      %7749 = vmatpush1.msra.mxu0 %v5694
      %7750 = vmatprep.subr.mxu0 0.0
      %7751 = vmatpush1.msra.mxu0 %v5695
      %7752 = vmatprep.subr.mxu0 0.0
      %7753 = vmatpush1.msra.mxu0 %v5696
      %7754 = vmatprep.mubr.f32.mxu0 %v6298
      %7755 = vmatmul.mubr.f32.gmra.mrb[0].mxu0 %v6238
      %v7756 = vpop.f32.mrb[0].mxu0
      %v7757 = vadd.f32 0.0, %v7756
      %v7758 = vpop.f32.mrb[0].mxu0
      %7759 = vmatprep.mubr.f32.mxu0 %v6299
      %7760 = vmatmul.mubr.f32.gmra.mrb[0].mxu0 %v6239
      %v7761 = vpop.f32.mrb[0].mxu0
      %v7762 = vadd.f32 0.0, %v7761
      %v7763 = vpop.f32.mrb[0].mxu0
      %7764 = vdwg.mxu0
      %7765 = vmatprep.subr.mxu0 0.0
      %7766 = vmatpush1.msra.mxu0 %v5697
      %7767 = vmatprep.subr.mxu0 0.0
      %7768 = vmatpush1.msra.mxu0 %v5698
      %7769 = vmatprep.subr.mxu0 0.0
      %7770 = vmatpush1.msra.mxu0 %v5699
      %7771 = vmatprep.subr.mxu0 0.0
      %7772 = vmatpush1.msra.mxu0 %v5700
      %7773 = vmatprep.subr.mxu0 0.0
      %7774 = vmatpush1.msra.mxu0 0.0
      %7775 = vmatprep.subr.mxu0 0.0
      %7776 = vmatpush1.msra.mxu0 0.0
      %7777 = vmatprep.subr.mxu0 0.0
      %7778 = vmatpush1.msra.mxu0 0.0
      %7779 = vmatprep.subr.mxu0 0.0
      %7780 = vmatpush1.msra.mxu0 0.0
      %7781 = vmatprep.subr.mxu0 0.0
      %7782 = vmatpush1.msra.mxu0 0.0
      %7783 = vmatprep.subr.mxu0 0.0
      %7784 = vmatpush1.msra.mxu0 0.0
      %7785 = vmatprep.subr.mxu0 0.0
      %7786 = vmatpush1.msra.mxu0 0.0
      %7787 = vmatprep.subr.mxu0 0.0
      %7788 = vmatpush1.msra.mxu0 0.0
      %7789 = vmatprep.subr.mxu0 0.0
      %7790 = vmatpush1.msra.mxu0 0.0
      %7791 = vmatprep.subr.mxu0 0.0
      %7792 = vmatpush1.msra.mxu0 0.0
      %7793 = vmatprep.subr.mxu0 0.0
      %7794 = vmatpush1.msra.mxu0 0.0
      %7795 = vmatprep.subr.mxu0 0.0
      %7796 = vmatpush1.msra.mxu0 0.0
      %7797 = vmatprep.subr.mxu0 0.0
      %7798 = vmatpush1.msra.mxu0 0.0
      %7799 = vmatprep.subr.mxu0 0.0
      %7800 = vmatpush1.msra.mxu0 0.0
      %7801 = vmatprep.subr.mxu0 0.0
      %7802 = vmatpush1.msra.mxu0 0.0
      %7803 = vmatprep.subr.mxu0 0.0
      %7804 = vmatpush1.msra.mxu0 0.0
      %7805 = vmatprep.subr.mxu0 0.0
      %7806 = vmatpush1.msra.mxu0 0.0
      %7807 = vmatprep.subr.mxu0 0.0
      %7808 = vmatpush1.msra.mxu0 0.0
      %7809 = vmatprep.subr.mxu0 0.0
      %7810 = vmatpush1.msra.mxu0 0.0
      %7811 = vmatprep.subr.mxu0 0.0
      %7812 = vmatpush1.msra.mxu0 0.0
      %7813 = vmatprep.subr.mxu0 0.0
      %7814 = vmatpush1.msra.mxu0 0.0
      %7815 = vmatprep.subr.mxu0 0.0
      %7816 = vmatpush1.msra.mxu0 0.0
      %7817 = vmatprep.subr.mxu0 0.0
      %7818 = vmatpush1.msra.mxu0 0.0
      %7819 = vmatprep.subr.mxu0 0.0
      %7820 = vmatpush1.msra.mxu0 0.0
      %7821 = vmatprep.subr.mxu0 0.0
      %7822 = vmatpush1.msra.mxu0 0.0
      %7823 = vmatprep.subr.mxu0 0.0
      %7824 = vmatpush1.msra.mxu0 0.0
      %7825 = vmatprep.subr.mxu0 0.0
      %7826 = vmatpush1.msra.mxu0 0.0
      %7827 = vmatprep.subr.mxu0 0.0
      %7828 = vmatpush1.msra.mxu0 0.0
      %7829 = vmatprep.mubr.f32.mxu0 0.0
      %7830 = vmatmul.mubr.f32.gmra.mrb[0].mxu0 %v7686
      %v7831 = vpop.f32.mrb[0].mxu0
      %v7832 = vadd.f32 %v7757, %v7831
      %v7833 = vpop.f32.mrb[0].mxu0
      %7834 = vmatprep.mubr.f32.mxu0 0.0
      %7835 = vmatmul.mubr.f32.gmra.mrb[0].mxu0 %v7688
      %v7836 = vpop.f32.mrb[0].mxu0
      %v7837 = vadd.f32 %v7762, %v7836
      %v7838 = vpop.f32.mrb[0].mxu0
      %7839 = vdwg.mxu0
      %v7840 = vld [vmem:[%s4] sm:$0x1]
      %v7842 = vlaneseq
      %v7843 = vshrl.u32 %v7842, 7
      %v7844 = vsub.s32 0, %v7843
      %v7845 = vrot.slane %v7840, %v7844
      %v7847 = vadd.f32 %v6446, %v7845
      %v7848 = vadd.f32 %v6451, %v7845
      %v7849 = vadd.f32 %v6600, %v7845
      %v7850 = vadd.f32 %v6605, %v7845
      %v7851 = vadd.f32 %v6754, %v7845
      %v7852 = vadd.f32 %v6759, %v7845
      %v7853 = vadd.f32 %v6908, %v7845
      %v7854 = vadd.f32 %v6913, %v7845
      %v7855 = vadd.f32 %v7062, %v7845
      %v7856 = vadd.f32 %v7067, %v7845
      %v7857 = vadd.f32 %v7216, %v7845
      %v7858 = vadd.f32 %v7221, %v7845
      %v7859 = vadd.f32 %v7370, %v7845
      %v7860 = vadd.f32 %v7375, %v7845
      %v7861 = vadd.f32 %v7524, %v7845
      %v7862 = vadd.f32 %v7529, %v7845
      %v7863 = vadd.f32 %v7678, %v7845
      %v7864 = vadd.f32 %v7683, %v7845
      %v7865 = vadd.f32 %v7832, %v7845
      %v7866 = vadd.f32 %v7837, %v7845
      %v7867 = vmax.f32 %v7847, 0.0
      %v7868 = vmax.f32 %v7848, 0.0
      %v7869 = vmax.f32 %v7849, 0.0
      %v7870 = vmax.f32 %v7850, 0.0
      %v7871 = vmax.f32 %v7851, 0.0
      %v7872 = vmax.f32 %v7852, 0.0
      %v7873 = vmax.f32 %v7853, 0.0
      %v7874 = vmax.f32 %v7854, 0.0
      %v7875 = vmax.f32 %v7855, 0.0
      %v7876 = vmax.f32 %v7856, 0.0
      %v7877 = vmax.f32 %v7857, 0.0
      %v7878 = vmax.f32 %v7858, 0.0
      %v7879 = vmax.f32 %v7859, 0.0
      %v7880 = vmax.f32 %v7860, 0.0
      %v7881 = vmax.f32 %v7861, 0.0
      %v7882 = vmax.f32 %v7862, 0.0
      %v7883 = vmax.f32 %v7863, 0.0
      %v7884 = vmax.f32 %v7864, 0.0
      %v7885 = vmax.f32 %v7865, 0.0
      %v7886 = vmax.f32 %v7866, 0.0
      %v7887 = vmax.f32 %v7867, %v7869
      %v7888 = vmax.f32 %v7868, %v7870
      %v7889 = vmax.f32 %v7871, %v7873
      %v7890 = vmax.f32 %v7872, %v7874
      %v7891 = vmax.f32 %v7875, %v7877
      %v7892 = vmax.f32 %v7876, %v7878
      %v7893 = vmax.f32 %v7879, %v7881
      %v7894 = vmax.f32 %v7880, %v7882
      %v7895 = vmax.f32 %v7883, %v7885
      %v7896 = vmax.f32 %v7884, %v7886
      %v7902 = vrot.slane %v7887, 1
      %v7903 = vrot.slane %v7889, 1
      %v7904 = vrot.slane %v7891, 1
      %v7905 = vrot.slane %v7893, 1
      %v7906 = vrot.slane %v7895, 1
      %v7912 = vmax.f32 %v7887, %v7902
      %v7913 = vmax.f32 %v7889, %v7903
      %v7914 = vmax.f32 %v7891, %v7904
      %v7915 = vmax.f32 %v7893, %v7905
      %v7916 = vmax.f32 %v7895, %v7906
      %v7922 = vrot.slane %v7888, 1
      %v7923 = vrot.slane %v7890, 1
      %v7924 = vrot.slane %v7892, 1
      %v7925 = vrot.slane %v7894, 1
      %v7926 = vrot.slane %v7896, 1
      %v7932 = vmax.f32 %v7888, %v7922
      %v7933 = vmax.f32 %v7890, %v7923
      %v7934 = vmax.f32 %v7892, %v7924
      %v7935 = vmax.f32 %v7894, %v7925
      %v7936 = vmax.f32 %v7896, %v7926
      %v7942 = vrot.slane %v7912, 1
      %v7943 = vrot.slane %v7913, 1
      %v7944 = vrot.slane %v7914, 1
      %v7945 = vrot.slane %v7915, 1
      %v7946 = vrot.slane %v7916, 1
      %v7952 = vrot.slane %v7912, 2
      %v7953 = vrot.slane %v7913, 2
      %v7954 = vrot.slane %v7914, 2
      %v7955 = vrot.slane %v7915, 2
      %v7956 = vrot.slane %v7916, 2
      %v7962 = vrot.slane %v7912, 3
      %v7963 = vrot.slane %v7913, 3
      %v7964 = vrot.slane %v7914, 3
      %v7965 = vrot.slane %v7915, 3
      %v7966 = vrot.slane %v7916, 3
      %v7977 = vrot.slane %v7932, 4
      %v7978 = vrot.slane %v7933, 4
      %v7979 = vrot.slane %v7934, 4
      %v7980 = vrot.slane %v7935, 4
      %v7981 = vrot.slane %v7936, 4
      %v7987 = vsel %vm5528, %v7912, %v7942
      %v7988 = vsel %vm5528, %v7913, %v7943
      %v7989 = vsel %vm5528, %v7914, %v7944
      %v7990 = vsel %vm5528, %v7915, %v7945
      %v7991 = vsel %vm5528, %v7916, %v7946
      %v7992 = vsel %vm5541, %v7987, %v7952
      %v7993 = vsel %vm5541, %v7988, %v7953
      %v7994 = vsel %vm5541, %v7989, %v7954
      %v7995 = vsel %vm5541, %v7990, %v7955
      %v7996 = vsel %vm5541, %v7991, %v7956
      %v7997 = vsel %vm5554, %v7992, %v7962
      %v7998 = vsel %vm5554, %v7993, %v7963
      %v7999 = vsel %vm5554, %v7994, %v7964
      %v8000 = vsel %vm5554, %v7995, %v7965
      %v8001 = vsel %vm5554, %v7996, %v7966
      %v8002 = vsel %vm5567, %v7997, %v7977
      %v8003 = vsel %vm5567, %v7998, %v7978
      %v8004 = vsel %vm5567, %v7999, %v7979
      %v8005 = vsel %vm5567, %v8000, %v7980
      %v8006 = vsel %vm5567, %v8001, %v7981
      %vm8007 = vcmask 520192
      %8008 = vst.msk [vmem:[%s224] sm:$0x1f] %vm8007, %v8002
      %8009 = vst.msk [vmem:[%s224 + $0x8] sm:$0x1f] %vm8007, %v8003
      %8010 = vst.msk [vmem:[%s224 + $0x10] sm:$0x1f] %vm8007, %v8004
      %8011 = vst.msk [vmem:[%s224 + $0x18] sm:$0x1f] %vm8007, %v8005
      %8012 = vst.msk [vmem:[%s224 + $0x20] sm:$0x1f] %vm8007, %v8006
      %p8013 = scmp.lt.s32.totalorder %s16, 1
      %s8014 = scalar_select %p8013, %s16, 1
      %s8015 = smul.addr %s8014, 5
      %s8016 = smul.addr %s8015, 8
      %s8017 = scalar_lea.vmem %s5, %s8016
      // Predicated region
      $region41: #{cnn_forward.2} parent=39 // pred_check
        %p8018 = pneg %p144
      $region42: #{cnn_forward.2} parent=39 // pred_check_branch
        %8020 = sbr.rel (%p8018) target = $region44
      $region43: #{cnn_forward.2} parent=39 // pred_region
        _
      $region44: #{cnn_forward.2} parent=39 // pred_fallthru
        _
    $region40: #{cnn_forward.2} parent=5 // pred_fallthru
      _
    %p8021 = scmp.le.s32.totalorder 2, %s11
    // Predicated region
    $region45: #{cnn_forward.2} parent=5 // pred_check
      %p8022 = pneg %p8021
    $region46: #{cnn_forward.2} parent=5 // pred_check_branch
      %8024 = sbr.rel (%p8022) target = $region48
    $region47: #{cnn_forward.2} parent=5 // pred_region
      %s8025 = ssub.s32 %s11, 2
      // Predicated region
      $region49: #{cnn_forward.2} parent=47 // pred_check
        %p8026 = pneg %p150
      $region50: #{cnn_forward.2} parent=47 // pred_check_branch
        %8028 = sbr.rel (%p8026) target = $region52
      $region51: #{cnn_forward.2} parent=47 // pred_region
        %p8029 = scmp.lt.s32.totalorder %s17, 1
        %s8030 = scalar_select %p8029, %s17, 1
        %s8031 = smul.addr %s8030, 5
        %s8032 = smul.addr %s8031, 8
        %s8033 = scalar_lea.vmem %s5, %s8032
      $region52: #{cnn_forward.2} parent=47 // pred_fallthru
        _
    $region48: #{cnn_forward.2} parent=5 // pred_fallthru
      _
  $region6: #{cnn_forward.2} parent=0 // loop_footer
    %s15 = sadd.s32 1, %s11
  $region7: #{cnn_forward.2} parent=0 // loop_footer_branch
    %10 = sbr.rel target = $region3
  $region8: #{cnn_forward.2} parent=0 // loop_exit
    _

</llo_original>
